<compile_context>
chip_gen: v7x
topology: tpu7x:2x2x1
jax: 0.10.0
libtpu: 0.0.40
codegen_flags: <defaults>
</compile_context>

<pallas_src>
import functools

import jax
import jax.numpy as jnp
from jax import lax
from jax.experimental import pallas as pl
from jax.experimental.pallas import tpu as pltpu

# Shapes pinned by the architecture.
H0, W0 = 192, 9            # input spatial (Cin = 1)
HP = 93                    # pooled height
HPAD = 96                  # padded pooled height (48 lane-pairs of 128)
FEAT = HP * 64             # 5952 real flattened features
FEATP = HPAD * 64          # 6144 padded features (pad rows meet zero weights)
NH = 128                   # fc1 width
NOUT = 126                 # fc2 width (padded to 128 inside the kernel)


# ---------------------------------------------------------------------------
# Kernel 1: conv1 + conv2 + conv3 + ReLU + 2x2 max-pool, fused per image,
#           n_img images per grid step.
# ---------------------------------------------------------------------------

def _tower_kernel(x_ref, w1_ref, b1_ref, w2_ref, b2_ref, w3_ref, b3_ref,
                  o_ref, c1_ref, c2_ref, c3_ref, pm_ref):
    """Fused conv tower for a block of images.

    x_ref : (n_img, 192, 9) f32
    w1_ref: (27, 192)  bf16  conv1, rows (kh, iw), cols (w*32 + c), cols 0..5 only
    b1_ref: (1, 192)   f32
    w2_ref: (384, 128) bf16  conv2 paired output cols, rows (kh, kw*32+ci shifted)
    b2_ref: (1, 256)   f32
    w3_ref: (768, 128) bf16  conv3 paired output cols (0,1)
    b3_ref: (1, 128)   f32
    o_ref : (n_img, 48, 128) bf16  pooled feats: o[n, j, t*64+c] = pooled[n, 2j+t, c]
    c1_ref: (192, 192) f32   conv1 slab, lane = w*32 + c  (w in 0..5)
    c2_ref: (192, 256) f32   conv2 slab, lane = w*64 + c  (w in 0..3)
    c3_ref: (192, 128) f32   conv3 slab (pre-ReLU), lanes [0:64]=col0, [64:128]=col1
    pm_ref: (96, 128)  f32   row-pair max scratch
    """
    n_img = x_ref.shape[0]
    bf16 = jnp.bfloat16

    # conv3 never writes rows >= 186; zero them once so the pooled pad rows
    # (h in {93,94,95}) are exactly zero (they also meet zero fc1 weight rows).
    c3_ref[186:192, :] = jnp.zeros((6, 128), jnp.float32)

    for n in range(n_img):
        # ---- conv1 (1->32, 3x3) on the MXU: two row-chunks x 3 kh dots, K=9 ----
        for r0, rn in ((0, 96), (96, 94)):
            a = None
            for kh in range(3):
                lhs = x_ref[n, r0 + kh:r0 + kh + rn, :].astype(bf16)   # (rn, 9)
                rhs = w1_ref[kh * 9:(kh + 1) * 9, :]                   # (9, 192)
                d = jnp.dot(lhs, rhs, preferred_element_type=jnp.float32)
                a = d if a is None else a + d
            c1_ref[r0:r0 + rn, :] = jnp.maximum(a + b1_ref[...], 0.0)

        # ---- conv2 (32->64): output columns (0,1) and (2,3) as N=128 dots ----
        for lo, oo in ((0, 0), (64, 128)):     # lhs lane offset, c2 out lane offset
            a = None
            for kh in range(3):
                lhs = c1_ref[kh:kh + 188, lo:lo + 128].astype(bf16)    # (188, 128)
                rhs = w2_ref[kh * 128:(kh + 1) * 128, :]               # (128, 128)
                d = jnp.dot(lhs, rhs, preferred_element_type=jnp.float32)
                a = d if a is None else a + d
            c2_ref[0:188, oo:oo + 128] = jnp.maximum(a + b2_ref[:, oo:oo + 128], 0.0)

        # ---- conv3 (64->64): pool-surviving columns (0,1) as one N=128 dot ----
        a = None
        for kh in range(3):
            lhs = c2_ref[kh:kh + 186, :].astype(bf16)                  # (186, 256)
            rhs = w3_ref[kh * 256:(kh + 1) * 256, :]                   # (256, 128)
            d = jnp.dot(lhs, rhs, preferred_element_type=jnp.float32)
            a = d if a is None else a + d
        # Pre-ReLU (ReLU commutes with the max-pool -> clamp once at the end).
        c3_ref[0:186, :] = a + b3_ref[...]

        # ---- 2x2 max-pool + ReLU; two pooled rows packed into one 128-lane row ----
        pm_ref[...] = jnp.maximum(c3_ref[pl.ds(0, 96, stride=2), :],
                                  c3_ref[pl.ds(1, 96, stride=2), :])
        ev = pm_ref[pl.ds(0, 48, stride=2), :]       # pooled rows h = 2*j
        od = pm_ref[pl.ds(1, 48, stride=2), :]       # pooled rows h = 2*j + 1
        ev = jnp.maximum(jnp.maximum(ev[:, 0:64], ev[:, 64:128]), 0.0)
        od = jnp.maximum(jnp.maximum(od[:, 0:64], od[:, 64:128]), 0.0)
        o_ref[n, :, 0:64] = ev.astype(bf16)
        o_ref[n, :, 64:128] = od.astype(bf16)


def conv_tower(x, p, n_img):
    """x: (Bp, 192, 9) f32 with Bp % n_img == 0 -> packed pooled feats (Bp, 48, 128) bf16."""
    Bp = x.shape[0]
    return pl.pallas_call(
        _tower_kernel,
        out_shape=jax.ShapeDtypeStruct((Bp, 48, 128), jnp.bfloat16),
        grid=(Bp // n_img,),
        in_specs=[
            pl.BlockSpec((n_img, H0, W0), lambda b: (b, 0, 0)),   # per-block images
            pl.BlockSpec((27, 192), lambda b: (0, 0)),            # resident weights
            pl.BlockSpec((1, 192), lambda b: (0, 0)),
            pl.BlockSpec((384, 128), lambda b: (0, 0)),
            pl.BlockSpec((1, 256), lambda b: (0, 0)),
            pl.BlockSpec((768, 128), lambda b: (0, 0)),
            pl.BlockSpec((1, 128), lambda b: (0, 0)),
        ],
        out_specs=pl.BlockSpec((n_img, 48, 128), lambda b: (b, 0, 0)),
        scratch_shapes=[
            pltpu.VMEM((192, 192), jnp.float32),   # conv1 activations
            pltpu.VMEM((192, 256), jnp.float32),   # conv2 activations
            pltpu.VMEM((192, 128), jnp.float32),   # conv3 pre-activation
            pltpu.VMEM((96, 128), jnp.float32),    # row-pair max
        ],
        compiler_params=pltpu.CompilerParams(
            dimension_semantics=("parallel",),
            vmem_limit_bytes=32 * 1024 * 1024),
    )(x, p["w1"], p["b1"], p["w2"], p["b2"], p["w3"], p["b3"])


# ---------------------------------------------------------------------------
# Kernel 2: fc1 + ReLU + fc2 fused (fc2 padded to 128 lanes).
# ---------------------------------------------------------------------------

def _head_kernel(feat_ref, w1_ref, b1_ref, w2_ref, b2_ref, o_ref):
    h = jnp.dot(feat_ref[...], w1_ref[...], preferred_element_type=jnp.float32)
    h = jnp.maximum(h + b1_ref[...], 0.0)
    out = jnp.dot(h.astype(jnp.bfloat16), w2_ref[...],
                  preferred_element_type=jnp.float32)
    o_ref[...] = out + b2_ref[...]


def head(feat, p, *, tm=256):
    """feat: (Bp, 6144) bf16 -> (Bp, 128) f32 (last 2 columns are zero padding)."""
    M, K = feat.shape
    if M <= tm:
        tm_eff, Mp = M, M                       # single full-dim block
    else:
        tm_eff = tm
        Mp = ((M + tm - 1) // tm) * tm
        if Mp != M:
            feat = jnp.pad(feat, ((0, Mp - M), (0, 0)))
    out = pl.pallas_call(
        _head_kernel,
        out_shape=jax.ShapeDtypeStruct((Mp, NH), jnp.float32),
        grid=(Mp // tm_eff,),
        in_specs=[
            pl.BlockSpec((tm_eff, K), lambda i: (i, 0)),
            pl.BlockSpec((K, NH), lambda i: (0, 0)),
            pl.BlockSpec((1, NH), lambda i: (0, 0)),
            pl.BlockSpec((NH, NH), lambda i: (0, 0)),
            pl.BlockSpec((1, NH), lambda i: (0, 0)),
        ],
        out_specs=pl.BlockSpec((tm_eff, NH), lambda i: (i, 0)),
        compiler_params=pltpu.CompilerParams(
            dimension_semantics=("parallel",),
            vmem_limit_bytes=32 * 1024 * 1024),
    )(feat, p["fc1_w"], p["fc1_b"], p["fc2_w"], p["fc2_b"])
    return out[:M]


# ---------------------------------------------------------------------------
# Parameters: synthetic PyTorch-layout params + one-time conversion to the
# packed kernel layouts.
# ---------------------------------------------------------------------------

def init_torch_params(key):
    """Synthetic parameters in PyTorch layouts (OIHW conv, (out,in) linear)."""
    ks = jax.random.split(key, 10)

    def w(k, fan_in, shape):
        return jax.random.normal(k, shape, jnp.float32) / jnp.sqrt(float(fan_in))

    return {
        "conv1_w": w(ks[0], 1 * 9, (32, 1, 3, 3)),   "conv1_b": w(ks[1], 1 * 9, (32,)),
        "conv2_w": w(ks[2], 32 * 9, (64, 32, 3, 3)), "conv2_b": w(ks[3], 32 * 9, (64,)),
        "conv3_w": w(ks[4], 64 * 9, (64, 64, 3, 3)), "conv3_b": w(ks[5], 64 * 9, (64,)),
        "fc1_w": w(ks[6], FEAT, (NH, FEAT)),         "fc1_b": w(ks[7], FEAT, (NH,)),
        "fc2_w": w(ks[8], NH, (NOUT, NH)),           "fc2_b": w(ks[9], NH, (NOUT,)),
    }


def prepare_params(tp):
    """Convert PyTorch-layout weights to the packed kernel layouts (offline, once)."""
    f32, bf16 = jnp.float32, jnp.bfloat16

    # conv1: OIHW (32,1,3,3) -> W1[kh, kw, c]; packed over the 9 input columns:
    # w1p[kh*9 + iw, w*32 + c] = W1[kh, iw - w, c] for 0 <= iw - w < 3, w in 0..5.
    # (Output column 6 only feeds the conv2/conv3 columns dropped by the pool.)
    w1 = jnp.transpose(tp["conv1_w"], (2, 3, 1, 0)).reshape(3, 3, 32)
    w1p = jnp.zeros((3, 9, 6, 32), f32)
    for kh in range(3):
        for w in range(6):
            for kw in range(3):
                w1p = w1p.at[kh, w + kw, w, :].set(w1[kh, kw])
    w1p = w1p.reshape(27, 192)

    # conv2: per-kh (96,64) block, rows (kw*32 + ci).  Paired output columns
    # (w, w+1) via a block-shifted (128,128) weight: cols[0:64] at rows[0:96],
    # cols[64:128] at rows[32:128].
    w2 = jnp.transpose(tp["conv2_w"], (2, 3, 1, 0))          # (kh, kw, ci, co)
    w2p = jnp.zeros((3, 128, 128), f32)
    for kh in range(3):
        blk = w2[kh].reshape(96, 64)
        w2p = w2p.at[kh, 0:96, 0:64].set(blk)
        w2p = w2p.at[kh, 32:128, 64:128].set(blk)
    w2p = w2p.reshape(384, 128)

    # conv3: per-kh (192,64) block, rows (kw*64 + ci).  Paired output columns
    # (0,1): cols[0:64] at rows[0:192], cols[64:128] at rows[64:256].
    w3 = jnp.transpose(tp["conv3_w"], (2, 3, 1, 0))          # (kh, kw, ci, co)
    w3p = jnp.zeros((3, 256, 128), f32)
    for kh in range(3):
        blk = w3[kh].reshape(192, 64)
        w3p = w3p.at[kh, 0:192, 0:64].set(blk)
        w3p = w3p.at[kh, 64:256, 64:128].set(blk)
    w3p = w3p.reshape(768, 128)

    # fc1: PyTorch flatten index is c*93 + h (NCHW); the kernel feat index is
    # h*64 + c, padded with zero rows for the pooled pad rows h in {93,94,95}.
    fc1 = jnp.transpose(tp["fc1_w"].reshape(NH, 64, HP), (2, 1, 0)).reshape(FEAT, NH)
    fc1 = jnp.concatenate([fc1, jnp.zeros((FEATP - FEAT, NH), f32)], axis=0)
    # fc2: transpose to (in, out) and zero-pad the output dim to 128 lanes.
    fc2 = jnp.zeros((NH, NH), f32).at[:, :NOUT].set(tp["fc2_w"].T)
    fc2_b = jnp.zeros((NH,), f32).at[:NOUT].set(tp["fc2_b"])

    return {
        "w1": w1p.astype(bf16),
        "b1": jnp.tile(tp["conv1_b"], 6).reshape(1, 192).astype(f32),
        "w2": w2p.astype(bf16),
        "b2": jnp.tile(tp["conv2_b"], 4).reshape(1, 256).astype(f32),
        "w3": w3p.astype(bf16),
        "b3": jnp.tile(tp["conv3_b"], 2).reshape(1, 128).astype(f32),
        "fc1_w": fc1.astype(bf16),
        "fc1_b": tp["fc1_b"].reshape(1, NH).astype(f32),
        "fc2_w": fc2.astype(bf16),
        "fc2_b": fc2_b.reshape(1, NH).astype(f32),
    }


# ---------------------------------------------------------------------------
# Forward pass + pure-JAX reference
# ---------------------------------------------------------------------------

def tabcnn_forward(x_nchw, params):
    """x_nchw: (B, 1, 192, 9) f32 -> logits (B, 6, 21) f32."""
    B = x_nchw.shape[0]
    # Images per grid step: amortize the ~0.35us/step grid overhead, but keep
    # at least 2 grid blocks so both TensorCores of a v7x chip get work.
    n_img = 8 if B >= 16 else max(1, B // 2)
    Bp = ((B + n_img - 1) // n_img) * n_img
    x = x_nchw.reshape(B, H0, W0)                  # Cin = 1
    if Bp != B:
        x = jnp.pad(x, ((0, Bp - B), (0, 0), (0, 0)))
    pooled = conv_tower(x, params, n_img)          # (Bp, 48, 128) bf16, lane-dense
    feat = pooled.reshape(Bp, FEATP)               # free reshape: lane = h*64 + c
    out = head(feat, params)                       # (Bp, 128) f32
    # Dropout layers are identity at inference.
    # TODO(synk): self.softmax is defined in __init__ but never applied in forward().
    return out[:B, :NOUT].reshape(B, 6, 21)


def tabcnn_reference(x_nchw, tp):
    """Pure-JAX/XLA reference of the PyTorch forward (f32), for validation."""
    dn = ("NCHW", "OIHW", "NCHW")
    hi = lax.Precision.HIGHEST
    y = x_nchw
    for i in (1, 2, 3):
        y = lax.conv_general_dilated(y, tp[f"conv{i}_w"], (1, 1), "VALID",
                                     dimension_numbers=dn, precision=hi)
        y = jnp.maximum(y + tp[f"conv{i}_b"].reshape(1, -1, 1, 1), 0.0)
    y = lax.reduce_window(y, -jnp.inf, lax.max, (1, 1, 2, 2), (1, 1, 2, 2), "VALID")
    flat = y.reshape(y.shape[0], -1)               # NCHW flatten: index = c*93 + h
    h = jnp.maximum(jnp.dot(flat, tp["fc1_w"].T, precision=hi) + tp["fc1_b"], 0.0)
    o = jnp.dot(h, tp["fc2_w"].T, precision=hi) + tp["fc2_b"]
    return o.reshape(-1, 6, 21)


# ---------------------------------------------------------------------------
# Demo
# ---------------------------------------------------------------------------

if __name__ == "__main__":
    key = jax.random.PRNGKey(0)
    pkey, xkey = jax.random.split(key)
    torch_params = init_torch_params(pkey)
    kparams = prepare_params(torch_params)

    # Input shape is pinned by fc1 (in_features = 64*93): (B, 1, 192, 9).
    x = jax.random.normal(xkey, (2, 1, 192, 9), jnp.float32)

    fwd = jax.jit(functools.partial(tabcnn_forward, params=kparams))
    out = jax.block_until_ready(fwd(x))

    assert out.shape == (2, 6, 21), out.shape
    assert out.dtype == jnp.float32
    assert bool(jnp.all(jnp.isfinite(out)))

    # Validate vs a pure-JAX f32 reference (bf16 MXU operands -> relaxed tolerance).
    ref = jax.block_until_ready(
        jax.jit(functools.partial(tabcnn_reference, tp=torch_params))(x))
    max_err = float(jnp.max(jnp.abs(out - ref)))
    tol = 0.1 * (float(jnp.max(jnp.abs(ref))) + 1.0)
    assert max_err <= tol, (max_err, tol)

    print("KERNEL_OK")
</pallas_src>

<mosaic_0001>
module attributes {stable_mosaic.version = 11 : i64} {
  func.func @_head_kernel(%arg0: i32, %arg1: memref<2x6144xbf16, #tpu.memory_space<vmem>>, %arg2: memref<6144x128xbf16, #tpu.memory_space<vmem>>, %arg3: memref<1x128xf32, #tpu.memory_space<vmem>>, %arg4: memref<128x128xbf16, #tpu.memory_space<vmem>>, %arg5: memref<1x128xf32, #tpu.memory_space<vmem>>, %arg6: memref<2x128xf32, #tpu.memory_space<vmem>>) attributes {dimension_semantics = [#tpu.dimension_semantics<parallel>], iteration_bounds = array<i64: 1>, scalar_prefetch = 0 : i64, scratch_operands = 0 : i64, tpu.core_type = #tpu.core_type<tc>, window_params = [{transform_indices = @transform_0, window_bounds = array<i64: 2, 6144>}, {pipeline_mode = #tpu.pipeline_mode<synchronous>, transform_indices = @transform_1, window_bounds = array<i64: 6144, 128>}, {pipeline_mode = #tpu.pipeline_mode<synchronous>, transform_indices = @transform_2, window_bounds = array<i64: 1, 128>}, {pipeline_mode = #tpu.pipeline_mode<synchronous>, transform_indices = @transform_3, window_bounds = array<i64: 128, 128>}, {pipeline_mode = #tpu.pipeline_mode<synchronous>, transform_indices = @transform_4, window_bounds = array<i64: 1, 128>}, {transform_indices = @transform_5, window_bounds = array<i64: 2, 128>}]} {
    %c0 = arith.constant 0 : index
    %c0_0 = arith.constant 0 : index
    %0 = vector.load %arg1[%c0, %c0_0] : memref<2x6144xbf16, #tpu.memory_space<vmem>>, vector<2x6144xbf16>
    %c0_1 = arith.constant 0 : index
    %c0_2 = arith.constant 0 : index
    %1 = vector.load %arg2[%c0_1, %c0_2] : memref<6144x128xbf16, #tpu.memory_space<vmem>>, vector<6144x128xbf16>
    %cst = arith.constant dense<0.000000e+00> : vector<2x128xf32>
    %2 = tpu.matmul %0, %1, %cst {dimension_numbers = #tpu.dot_dimension_numbers<[1], [0], [0], [1], [0, 0, 1, 1], [], []>} : vector<2x6144xbf16>, vector<6144x128xbf16>, vector<2x128xf32> -> vector<2x128xf32>
    %c0_3 = arith.constant 0 : index
    %c0_4 = arith.constant 0 : index
    %3 = vector.load %arg3[%c0_3, %c0_4] : memref<1x128xf32, #tpu.memory_space<vmem>>, vector<1x128xf32>
    %4 = vector.broadcast %3 : vector<1x128xf32> to vector<2x128xf32>
    %5 = arith.addf %2, %4 : vector<2x128xf32>
    %cst_5 = arith.constant 0.000000e+00 : f32
    %6 = vector.broadcast %cst_5 : f32 to vector<2x128xf32>
    %7 = arith.maximumf %5, %6 : vector<2x128xf32>
    %8 = arith.truncf %7 : vector<2x128xf32> to vector<2x128xbf16>
    %c0_6 = arith.constant 0 : index
    %c0_7 = arith.constant 0 : index
    %9 = vector.load %arg4[%c0_6, %c0_7] : memref<128x128xbf16, #tpu.memory_space<vmem>>, vector<128x128xbf16>
    %cst_8 = arith.constant dense<0.000000e+00> : vector<2x128xf32>
    %10 = tpu.matmul %8, %9, %cst_8 {dimension_numbers = #tpu.dot_dimension_numbers<[1], [0], [0], [1], [0, 0, 1, 1], [], []>} : vector<2x128xbf16>, vector<128x128xbf16>, vector<2x128xf32> -> vector<2x128xf32>
    %c0_9 = arith.constant 0 : index
    %c0_10 = arith.constant 0 : index
    %11 = vector.load %arg5[%c0_9, %c0_10] : memref<1x128xf32, #tpu.memory_space<vmem>>, vector<1x128xf32>
    %12 = vector.broadcast %11 : vector<1x128xf32> to vector<2x128xf32>
    %13 = arith.addf %10, %12 : vector<2x128xf32>
    %c0_11 = arith.constant 0 : index
    %c0_12 = arith.constant 0 : index
    %14 = vector.load %arg6[%c0_11, %c0_12] : memref<2x128xf32, #tpu.memory_space<vmem>>, vector<2x128xf32>
    tpu.vector_store %arg6[%c0_11, %c0_12], %13 {strides = array<i32>} : memref<2x128xf32, #tpu.memory_space<vmem>>, vector<2x128xf32>,
    return
  }
  func.func @transform_0(%arg0: i32) -> (i32, i32) {
    %c0_i32 = arith.constant 0 : i32
    %c0_i32_0 = arith.constant 0 : i32
    return %arg0, %c0_i32 : i32, i32
  }
  func.func @transform_1(%arg0: i32) -> (i32, i32) {
    %c0_i32 = arith.constant 0 : i32
    %c0_i32_0 = arith.constant 0 : i32
    %c0_i32_1 = arith.constant 0 : i32
    return %c0_i32, %c0_i32_0 : i32, i32
  }
  func.func @transform_2(%arg0: i32) -> (i32, i32) {
    %c0_i32 = arith.constant 0 : i32
    %c0_i32_0 = arith.constant 0 : i32
    %c0_i32_1 = arith.constant 0 : i32
    return %c0_i32, %c0_i32_0 : i32, i32
  }
  func.func @transform_3(%arg0: i32) -> (i32, i32) {
    %c0_i32 = arith.constant 0 : i32
    %c0_i32_0 = arith.constant 0 : i32
    %c0_i32_1 = arith.constant 0 : i32
    return %c0_i32, %c0_i32_0 : i32, i32
  }
  func.func @transform_4(%arg0: i32) -> (i32, i32) {
    %c0_i32 = arith.constant 0 : i32
    %c0_i32_0 = arith.constant 0 : i32
    %c0_i32_1 = arith.constant 0 : i32
    return %c0_i32, %c0_i32_0 : i32, i32
  }
  func.func @transform_5(%arg0: i32) -> (i32, i32) {
    %c0_i32 = arith.constant 0 : i32
    %c0_i32_0 = arith.constant 0 : i32
    return %arg0, %c0_i32 : i32, i32
  }
}

module attributes {stable_mosaic.version = 11 : i64} {
  func.func @_tower_kernel(%arg0: i32, %arg1: memref<1x192x9xf32, #tpu.memory_space<vmem>>, %arg2: memref<27x192xbf16, #tpu.memory_space<vmem>>, %arg3: memref<1x192xf32, #tpu.memory_space<vmem>>, %arg4: memref<384x128xbf16, #tpu.memory_space<vmem>>, %arg5: memref<1x256xf32, #tpu.memory_space<vmem>>, %arg6: memref<768x128xbf16, #tpu.memory_space<vmem>>, %arg7: memref<1x128xf32, #tpu.memory_space<vmem>>, %arg8: memref<1x48x128xbf16, #tpu.memory_space<vmem>>, %arg9: memref<192x192xf32, #tpu.memory_space<vmem>>, %arg10: memref<192x256xf32, #tpu.memory_space<vmem>>, %arg11: memref<192x128xf32, #tpu.memory_space<vmem>>, %arg12: memref<96x128xf32, #tpu.memory_space<vmem>>) attributes {dimension_semantics = [#tpu.dimension_semantics<parallel>], iteration_bounds = array<i64: 2>, scalar_prefetch = 0 : i64, scratch_operands = 4 : i64, tpu.core_type = #tpu.core_type<tc>, window_params = [{transform_indices = @transform_0, window_bounds = array<i64: 1, 192, 9>}, {pipeline_mode = #tpu.pipeline_mode<synchronous>, transform_indices = @transform_1, window_bounds = array<i64: 27, 192>}, {pipeline_mode = #tpu.pipeline_mode<synchronous>, transform_indices = @transform_2, window_bounds = array<i64: 1, 192>}, {pipeline_mode = #tpu.pipeline_mode<synchronous>, transform_indices = @transform_3, window_bounds = array<i64: 384, 128>}, {pipeline_mode = #tpu.pipeline_mode<synchronous>, transform_indices = @transform_4, window_bounds = array<i64: 1, 256>}, {pipeline_mode = #tpu.pipeline_mode<synchronous>, transform_indices = @transform_5, window_bounds = array<i64: 768, 128>}, {pipeline_mode = #tpu.pipeline_mode<synchronous>, transform_indices = @transform_6, window_bounds = array<i64: 1, 128>}, {transform_indices = @transform_7, window_bounds = array<i64: 1, 48, 128>}]} {
    %cst = arith.constant 0.000000e+00 : f32
    %0 = vector.broadcast %cst : f32 to vector<6x128xf32>
    %c186 = arith.constant 186 : index
    %c0 = arith.constant 0 : index
    %1 = vector.load %arg11[%c186, %c0] : memref<192x128xf32, #tpu.memory_space<vmem>>, vector<6x128xf32>
    tpu.vector_store %arg11[%c186, %c0], %0 {strides = array<i32>} : memref<192x128xf32, #tpu.memory_space<vmem>>, vector<6x128xf32>,
    %c0_0 = arith.constant 0 : index
    %c0_1 = arith.constant 0 : index
    %c0_2 = arith.constant 0 : index
    %2 = vector.load %arg1[%c0_0, %c0_1, %c0_2] : memref<1x192x9xf32, #tpu.memory_space<vmem>>, vector<1x96x9xf32>
    %3 = vector.shape_cast %2 : vector<1x96x9xf32> to vector<96x9xf32>
    %4 = arith.truncf %3 : vector<96x9xf32> to vector<96x9xbf16>
    %c0_3 = arith.constant 0 : index
    %c0_4 = arith.constant 0 : index
    %5 = vector.load %arg2[%c0_3, %c0_4] : memref<27x192xbf16, #tpu.memory_space<vmem>>, vector<9x192xbf16>
    %cst_5 = arith.constant dense<0.000000e+00> : vector<96x192xf32>
    %6 = tpu.matmul %4, %5, %cst_5 {dimension_numbers = #tpu.dot_dimension_numbers<[1], [0], [0], [1], [0, 0, 1, 1], [], []>} : vector<96x9xbf16>, vector<9x192xbf16>, vector<96x192xf32> -> vector<96x192xf32>
    %c0_6 = arith.constant 0 : index
    %c1 = arith.constant 1 : index
    %c0_7 = arith.constant 0 : index
    %7 = vector.load %arg1[%c0_6, %c1, %c0_7] : memref<1x192x9xf32, #tpu.memory_space<vmem>>, vector<1x96x9xf32>
    %8 = vector.shape_cast %7 : vector<1x96x9xf32> to vector<96x9xf32>
    %9 = arith.truncf %8 : vector<96x9xf32> to vector<96x9xbf16>
    %c9 = arith.constant 9 : index
    %c0_8 = arith.constant 0 : index
    %10 = vector.load %arg2[%c9, %c0_8] : memref<27x192xbf16, #tpu.memory_space<vmem>>, vector<9x192xbf16>
    %cst_9 = arith.constant dense<0.000000e+00> : vector<96x192xf32>
    %11 = tpu.matmul %9, %10, %cst_9 {dimension_numbers = #tpu.dot_dimension_numbers<[1], [0], [0], [1], [0, 0, 1, 1], [], []>} : vector<96x9xbf16>, vector<9x192xbf16>, vector<96x192xf32> -> vector<96x192xf32>
    %12 = arith.addf %6, %11 : vector<96x192xf32>
    %c0_10 = arith.constant 0 : index
    %c2 = arith.constant 2 : index
    %c0_11 = arith.constant 0 : index
    %13 = vector.load %arg1[%c0_10, %c2, %c0_11] : memref<1x192x9xf32, #tpu.memory_space<vmem>>, vector<1x96x9xf32>
    %14 = vector.shape_cast %13 : vector<1x96x9xf32> to vector<96x9xf32>
    %15 = arith.truncf %14 : vector<96x9xf32> to vector<96x9xbf16>
    %c18 = arith.constant 18 : index
    %c0_12 = arith.constant 0 : index
    %16 = vector.load %arg2[%c18, %c0_12] : memref<27x192xbf16, #tpu.memory_space<vmem>>, vector<9x192xbf16>
    %cst_13 = arith.constant dense<0.000000e+00> : vector<96x192xf32>
    %17 = tpu.matmul %15, %16, %cst_13 {dimension_numbers = #tpu.dot_dimension_numbers<[1], [0], [0], [1], [0, 0, 1, 1], [], []>} : vector<96x9xbf16>, vector<9x192xbf16>, vector<96x192xf32> -> vector<96x192xf32>
    %18 = arith.addf %12, %17 : vector<96x192xf32>
    %c0_14 = arith.constant 0 : index
    %c0_15 = arith.constant 0 : index
    %19 = vector.load %arg3[%c0_14, %c0_15] : memref<1x192xf32, #tpu.memory_space<vmem>>, vector<1x192xf32>
    %20 = vector.broadcast %19 : vector<1x192xf32> to vector<96x192xf32>
    %21 = arith.addf %18, %20 : vector<96x192xf32>
    %cst_16 = arith.constant 0.000000e+00 : f32
    %22 = vector.broadcast %cst_16 : f32 to vector<96x192xf32>
    %23 = arith.maximumf %21, %22 : vector<96x192xf32>
    %c0_17 = arith.constant 0 : index
    %c0_18 = arith.constant 0 : index
    %24 = vector.load %arg9[%c0_17, %c0_18] : memref<192x192xf32, #tpu.memory_space<vmem>>, vector<96x192xf32>
    tpu.vector_store %arg9[%c0_17, %c0_18], %23 {strides = array<i32>} : memref<192x192xf32, #tpu.memory_space<vmem>>, vector<96x192xf32>,
    %c0_19 = arith.constant 0 : index
    %c96 = arith.constant 96 : index
    %c0_20 = arith.constant 0 : index
    %25 = vector.load %arg1[%c0_19, %c96, %c0_20] : memref<1x192x9xf32, #tpu.memory_space<vmem>>, vector<1x94x9xf32>
    %26 = vector.shape_cast %25 : vector<1x94x9xf32> to vector<94x9xf32>
    %27 = arith.truncf %26 : vector<94x9xf32> to vector<94x9xbf16>
    %c0_21 = arith.constant 0 : index
    %c0_22 = arith.constant 0 : index
    %28 = vector.load %arg2[%c0_21, %c0_22] : memref<27x192xbf16, #tpu.memory_space<vmem>>, vector<9x192xbf16>
    %cst_23 = arith.constant dense<0.000000e+00> : vector<94x192xf32>
    %29 = tpu.matmul %27, %28, %cst_23 {dimension_numbers = #tpu.dot_dimension_numbers<[1], [0], [0], [1], [0, 0, 1, 1], [], []>} : vector<94x9xbf16>, vector<9x192xbf16>, vector<94x192xf32> -> vector<94x192xf32>
    %c0_24 = arith.constant 0 : index
    %c97 = arith.constant 97 : index
    %c0_25 = arith.constant 0 : index
    %30 = vector.load %arg1[%c0_24, %c97, %c0_25] : memref<1x192x9xf32, #tpu.memory_space<vmem>>, vector<1x94x9xf32>
    %31 = vector.shape_cast %30 : vector<1x94x9xf32> to vector<94x9xf32>
    %32 = arith.truncf %31 : vector<94x9xf32> to vector<94x9xbf16>
    %c9_26 = arith.constant 9 : index
    %c0_27 = arith.constant 0 : index
    %33 = vector.load %arg2[%c9_26, %c0_27] : memref<27x192xbf16, #tpu.memory_space<vmem>>, vector<9x192xbf16>
    %cst_28 = arith.constant dense<0.000000e+00> : vector<94x192xf32>
    %34 = tpu.matmul %32, %33, %cst_28 {dimension_numbers = #tpu.dot_dimension_numbers<[1], [0], [0], [1], [0, 0, 1, 1], [], []>} : vector<94x9xbf16>, vector<9x192xbf16>, vector<94x192xf32> -> vector<94x192xf32>
    %35 = arith.addf %29, %34 : vector<94x192xf32>
    %c0_29 = arith.constant 0 : index
    %c98 = arith.constant 98 : index
    %c0_30 = arith.constant 0 : index
    %36 = vector.load %arg1[%c0_29, %c98, %c0_30] : memref<1x192x9xf32, #tpu.memory_space<vmem>>, vector<1x94x9xf32>
    %37 = vector.shape_cast %36 : vector<1x94x9xf32> to vector<94x9xf32>
    %38 = arith.truncf %37 : vector<94x9xf32> to vector<94x9xbf16>
    %c18_31 = arith.constant 18 : index
    %c0_32 = arith.constant 0 : index
    %39 = vector.load %arg2[%c18_31, %c0_32] : memref<27x192xbf16, #tpu.memory_space<vmem>>, vector<9x192xbf16>
    %cst_33 = arith.constant dense<0.000000e+00> : vector<94x192xf32>
    %40 = tpu.matmul %38, %39, %cst_33 {dimension_numbers = #tpu.dot_dimension_numbers<[1], [0], [0], [1], [0, 0, 1, 1], [], []>} : vector<94x9xbf16>, vector<9x192xbf16>, vector<94x192xf32> -> vector<94x192xf32>
    %41 = arith.addf %35, %40 : vector<94x192xf32>
    %c0_34 = arith.constant 0 : index
    %c0_35 = arith.constant 0 : index
    %42 = vector.load %arg3[%c0_34, %c0_35] : memref<1x192xf32, #tpu.memory_space<vmem>>, vector<1x192xf32>
    %43 = vector.broadcast %42 : vector<1x192xf32> to vector<94x192xf32>
    %44 = arith.addf %41, %43 : vector<94x192xf32>
    %cst_36 = arith.constant 0.000000e+00 : f32
    %45 = vector.broadcast %cst_36 : f32 to vector<94x192xf32>
    %46 = arith.maximumf %44, %45 : vector<94x192xf32>
    %c96_37 = arith.constant 96 : index
    %c0_38 = arith.constant 0 : index
    %47 = vector.load %arg9[%c96_37, %c0_38] : memref<192x192xf32, #tpu.memory_space<vmem>>, vector<94x192xf32>
    tpu.vector_store %arg9[%c96_37, %c0_38], %46 {strides = array<i32>} : memref<192x192xf32, #tpu.memory_space<vmem>>, vector<94x192xf32>,
    %c0_39 = arith.constant 0 : index
    %c0_40 = arith.constant 0 : index
    %48 = vector.load %arg9[%c0_39, %c0_40] : memref<192x192xf32, #tpu.memory_space<vmem>>, vector<188x128xf32>
    %49 = arith.truncf %48 : vector<188x128xf32> to vector<188x128xbf16>
    %c0_41 = arith.constant 0 : index
    %c0_42 = arith.constant 0 : index
    %50 = vector.load %arg4[%c0_41, %c0_42] : memref<384x128xbf16, #tpu.memory_space<vmem>>, vector<128x128xbf16>
    %cst_43 = arith.constant dense<0.000000e+00> : vector<188x128xf32>
    %51 = tpu.matmul %49, %50, %cst_43 {dimension_numbers = #tpu.dot_dimension_numbers<[1], [0], [0], [1], [0, 0, 1, 1], [], []>} : vector<188x128xbf16>, vector<128x128xbf16>, vector<188x128xf32> -> vector<188x128xf32>
    %c1_44 = arith.constant 1 : index
    %c0_45 = arith.constant 0 : index
    %52 = vector.load %arg9[%c1_44, %c0_45] : memref<192x192xf32, #tpu.memory_space<vmem>>, vector<188x128xf32>
    %53 = arith.truncf %52 : vector<188x128xf32> to vector<188x128xbf16>
    %c128 = arith.constant 128 : index
    %c0_46 = arith.constant 0 : index
    %54 = vector.load %arg4[%c128, %c0_46] : memref<384x128xbf16, #tpu.memory_space<vmem>>, vector<128x128xbf16>
    %cst_47 = arith.constant dense<0.000000e+00> : vector<188x128xf32>
    %55 = tpu.matmul %53, %54, %cst_47 {dimension_numbers = #tpu.dot_dimension_numbers<[1], [0], [0], [1], [0, 0, 1, 1], [], []>} : vector<188x128xbf16>, vector<128x128xbf16>, vector<188x128xf32> -> vector<188x128xf32>
    %56 = arith.addf %51, %55 : vector<188x128xf32>
    %c2_48 = arith.constant 2 : index
    %c0_49 = arith.constant 0 : index
    %57 = vector.load %arg9[%c2_48, %c0_49] : memref<192x192xf32, #tpu.memory_space<vmem>>, vector<188x128xf32>
    %58 = arith.truncf %57 : vector<188x128xf32> to vector<188x128xbf16>
    %c256 = arith.constant 256 : index
    %c0_50 = arith.constant 0 : index
    %59 = vector.load %arg4[%c256, %c0_50] : memref<384x128xbf16, #tpu.memory_space<vmem>>, vector<128x128xbf16>
    %cst_51 = arith.constant dense<0.000000e+00> : vector<188x128xf32>
    %60 = tpu.matmul %58, %59, %cst_51 {dimension_numbers = #tpu.dot_dimension_numbers<[1], [0], [0], [1], [0, 0, 1, 1], [], []>} : vector<188x128xbf16>, vector<128x128xbf16>, vector<188x128xf32> -> vector<188x128xf32>
    %61 = arith.addf %56, %60 : vector<188x128xf32>
    %c0_52 = arith.constant 0 : index
    %c0_53 = arith.constant 0 : index
    %62 = vector.load %arg5[%c0_52, %c0_53] : memref<1x256xf32, #tpu.memory_space<vmem>>, vector<1x128xf32>
    %63 = vector.broadcast %62 : vector<1x128xf32> to vector<188x128xf32>
    %64 = arith.addf %61, %63 : vector<188x128xf32>
    %cst_54 = arith.constant 0.000000e+00 : f32
    %65 = vector.broadcast %cst_54 : f32 to vector<188x128xf32>
    %66 = arith.maximumf %64, %65 : vector<188x128xf32>
    %c0_55 = arith.constant 0 : index
    %c0_56 = arith.constant 0 : index
    %67 = vector.load %arg10[%c0_55, %c0_56] : memref<192x256xf32, #tpu.memory_space<vmem>>, vector<188x128xf32>
    tpu.vector_store %arg10[%c0_55, %c0_56], %66 {strides = array<i32>} : memref<192x256xf32, #tpu.memory_space<vmem>>, vector<188x128xf32>,
    %c0_57 = arith.constant 0 : index
    %c64 = arith.constant 64 : index
    %68 = vector.load %arg9[%c0_57, %c64] : memref<192x192xf32, #tpu.memory_space<vmem>>, vector<188x128xf32>
    %69 = arith.truncf %68 : vector<188x128xf32> to vector<188x128xbf16>
    %c0_58 = arith.constant 0 : index
    %c0_59 = arith.constant 0 : index
    %70 = vector.load %arg4[%c0_58, %c0_59] : memref<384x128xbf16, #tpu.memory_space<vmem>>, vector<128x128xbf16>
    %cst_60 = arith.constant dense<0.000000e+00> : vector<188x128xf32>
    %71 = tpu.matmul %69, %70, %cst_60 {dimension_numbers = #tpu.dot_dimension_numbers<[1], [0], [0], [1], [0, 0, 1, 1], [], []>} : vector<188x128xbf16>, vector<128x128xbf16>, vector<188x128xf32> -> vector<188x128xf32>
    %c1_61 = arith.constant 1 : index
    %c64_62 = arith.constant 64 : index
    %72 = vector.load %arg9[%c1_61, %c64_62] : memref<192x192xf32, #tpu.memory_space<vmem>>, vector<188x128xf32>
    %73 = arith.truncf %72 : vector<188x128xf32> to vector<188x128xbf16>
    %c128_63 = arith.constant 128 : index
    %c0_64 = arith.constant 0 : index
    %74 = vector.load %arg4[%c128_63, %c0_64] : memref<384x128xbf16, #tpu.memory_space<vmem>>, vector<128x128xbf16>
    %cst_65 = arith.constant dense<0.000000e+00> : vector<188x128xf32>
    %75 = tpu.matmul %73, %74, %cst_65 {dimension_numbers = #tpu.dot_dimension_numbers<[1], [0], [0], [1], [0, 0, 1, 1], [], []>} : vector<188x128xbf16>, vector<128x128xbf16>, vector<188x128xf32> -> vector<188x128xf32>
    %76 = arith.addf %71, %75 : vector<188x128xf32>
    %c2_66 = arith.constant 2 : index
    %c64_67 = arith.constant 64 : index
    %77 = vector.load %arg9[%c2_66, %c64_67] : memref<192x192xf32, #tpu.memory_space<vmem>>, vector<188x128xf32>
    %78 = arith.truncf %77 : vector<188x128xf32> to vector<188x128xbf16>
    %c256_68 = arith.constant 256 : index
    %c0_69 = arith.constant 0 : index
    %79 = vector.load %arg4[%c256_68, %c0_69] : memref<384x128xbf16, #tpu.memory_space<vmem>>, vector<128x128xbf16>
    %cst_70 = arith.constant dense<0.000000e+00> : vector<188x128xf32>
    %80 = tpu.matmul %78, %79, %cst_70 {dimension_numbers = #tpu.dot_dimension_numbers<[1], [0], [0], [1], [0, 0, 1, 1], [], []>} : vector<188x128xbf16>, vector<128x128xbf16>, vector<188x128xf32> -> vector<188x128xf32>
    %81 = arith.addf %76, %80 : vector<188x128xf32>
    %c0_71 = arith.constant 0 : index
    %c128_72 = arith.constant 128 : index
    %82 = vector.load %arg5[%c0_71, %c128_72] : memref<1x256xf32, #tpu.memory_space<vmem>>, vector<1x128xf32>
    %83 = vector.broadcast %82 : vector<1x128xf32> to vector<188x128xf32>
    %84 = arith.addf %81, %83 : vector<188x128xf32>
    %cst_73 = arith.constant 0.000000e+00 : f32
    %85 = vector.broadcast %cst_73 : f32 to vector<188x128xf32>
    %86 = arith.maximumf %84, %85 : vector<188x128xf32>
    %c0_74 = arith.constant 0 : index
    %c128_75 = arith.constant 128 : index
    %87 = vector.load %arg10[%c0_74, %c128_75] : memref<192x256xf32, #tpu.memory_space<vmem>>, vector<188x128xf32>
    tpu.vector_store %arg10[%c0_74, %c128_75], %86 {strides = array<i32>} : memref<192x256xf32, #tpu.memory_space<vmem>>, vector<188x128xf32>,
    %c0_76 = arith.constant 0 : index
    %c0_77 = arith.constant 0 : index
    %88 = vector.load %arg10[%c0_76, %c0_77] : memref<192x256xf32, #tpu.memory_space<vmem>>, vector<186x256xf32>
    %89 = arith.truncf %88 : vector<186x256xf32> to vector<186x256xbf16>
    %c0_78 = arith.constant 0 : index
    %c0_79 = arith.constant 0 : index
    %90 = vector.load %arg6[%c0_78, %c0_79] : memref<768x128xbf16, #tpu.memory_space<vmem>>, vector<256x128xbf16>
    %cst_80 = arith.constant dense<0.000000e+00> : vector<186x128xf32>
    %91 = tpu.matmul %89, %90, %cst_80 {dimension_numbers = #tpu.dot_dimension_numbers<[1], [0], [0], [1], [0, 0, 1, 1], [], []>} : vector<186x256xbf16>, vector<256x128xbf16>, vector<186x128xf32> -> vector<186x128xf32>
    %c1_81 = arith.constant 1 : index
    %c0_82 = arith.constant 0 : index
    %92 = vector.load %arg10[%c1_81, %c0_82] : memref<192x256xf32, #tpu.memory_space<vmem>>, vector<186x256xf32>
    %93 = arith.truncf %92 : vector<186x256xf32> to vector<186x256xbf16>
    %c256_83 = arith.constant 256 : index
    %c0_84 = arith.constant 0 : index
    %94 = vector.load %arg6[%c256_83, %c0_84] : memref<768x128xbf16, #tpu.memory_space<vmem>>, vector<256x128xbf16>
    %cst_85 = arith.constant dense<0.000000e+00> : vector<186x128xf32>
    %95 = tpu.matmul %93, %94, %cst_85 {dimension_numbers = #tpu.dot_dimension_numbers<[1], [0], [0], [1], [0, 0, 1, 1], [], []>} : vector<186x256xbf16>, vector<256x128xbf16>, vector<186x128xf32> -> vector<186x128xf32>
    %96 = arith.addf %91, %95 : vector<186x128xf32>
    %c2_86 = arith.constant 2 : index
    %c0_87 = arith.constant 0 : index
    %97 = vector.load %arg10[%c2_86, %c0_87] : memref<192x256xf32, #tpu.memory_space<vmem>>, vector<186x256xf32>
    %98 = arith.truncf %97 : vector<186x256xf32> to vector<186x256xbf16>
    %c512 = arith.constant 512 : index
    %c0_88 = arith.constant 0 : index
    %99 = vector.load %arg6[%c512, %c0_88] : memref<768x128xbf16, #tpu.memory_space<vmem>>, vector<256x128xbf16>
    %cst_89 = arith.constant dense<0.000000e+00> : vector<186x128xf32>
    %100 = tpu.matmul %98, %99, %cst_89 {dimension_numbers = #tpu.dot_dimension_numbers<[1], [0], [0], [1], [0, 0, 1, 1], [], []>} : vector<186x256xbf16>, vector<256x128xbf16>, vector<186x128xf32> -> vector<186x128xf32>
    %101 = arith.addf %96, %100 : vector<186x128xf32>
    %c0_90 = arith.constant 0 : index
    %c0_91 = arith.constant 0 : index
    %102 = vector.load %arg7[%c0_90, %c0_91] : memref<1x128xf32, #tpu.memory_space<vmem>>, vector<1x128xf32>
    %103 = vector.broadcast %102 : vector<1x128xf32> to vector<186x128xf32>
    %104 = arith.addf %101, %103 : vector<186x128xf32>
    %c0_92 = arith.constant 0 : index
    %c0_93 = arith.constant 0 : index
    %105 = vector.load %arg11[%c0_92, %c0_93] : memref<192x128xf32, #tpu.memory_space<vmem>>, vector<186x128xf32>
    tpu.vector_store %arg11[%c0_92, %c0_93], %104 {strides = array<i32>} : memref<192x128xf32, #tpu.memory_space<vmem>>, vector<186x128xf32>,
    %c0_94 = arith.constant 0 : index
    %c0_95 = arith.constant 0 : index
    %106 = tpu.strided_load %arg11[%c0_94, %c0_95] {strides = array<i32: 2, 1>} : memref<192x128xf32, #tpu.memory_space<vmem>>, vector<96x128xf32>
    %c1_96 = arith.constant 1 : index
    %c0_97 = arith.constant 0 : index
    %107 = tpu.strided_load %arg11[%c1_96, %c0_97] {strides = array<i32: 2, 1>} : memref<192x128xf32, #tpu.memory_space<vmem>>, vector<96x128xf32>
    %108 = arith.maximumf %106, %107 : vector<96x128xf32>
    %c0_98 = arith.constant 0 : index
    %c0_99 = arith.constant 0 : index
    %109 = vector.load %arg12[%c0_98, %c0_99] : memref<96x128xf32, #tpu.memory_space<vmem>>, vector<96x128xf32>
    tpu.vector_store %arg12[%c0_98, %c0_99], %108 {strides = array<i32>} : memref<96x128xf32, #tpu.memory_space<vmem>>, vector<96x128xf32>,
    %c0_100 = arith.constant 0 : index
    %c0_101 = arith.constant 0 : index
    %110 = tpu.strided_load %arg12[%c0_100, %c0_101] {strides = array<i32: 2, 1>} : memref<96x128xf32, #tpu.memory_space<vmem>>, vector<48x128xf32>
    %c1_102 = arith.constant 1 : index
    %c0_103 = arith.constant 0 : index
    %111 = tpu.strided_load %arg12[%c1_102, %c0_103] {strides = array<i32: 2, 1>} : memref<96x128xf32, #tpu.memory_space<vmem>>, vector<48x128xf32>
    %112 = vector.extract_strided_slice %110 {offsets = [0, 0], sizes = [48, 64], strides = [1, 1]} : vector<48x128xf32> to vector<48x64xf32>
    %113 = vector.extract_strided_slice %110 {offsets = [0, 64], sizes = [48, 64], strides = [1, 1]} : vector<48x128xf32> to vector<48x64xf32>
    %114 = arith.maximumf %112, %113 : vector<48x64xf32>
    %cst_104 = arith.constant 0.000000e+00 : f32
    %115 = vector.broadcast %cst_104 : f32 to vector<48x64xf32>
    %116 = arith.maximumf %114, %115 : vector<48x64xf32>
    %117 = vector.extract_strided_slice %111 {offsets = [0, 0], sizes = [48, 64], strides = [1, 1]} : vector<48x128xf32> to vector<48x64xf32>
    %118 = vector.extract_strided_slice %111 {offsets = [0, 64], sizes = [48, 64], strides = [1, 1]} : vector<48x128xf32> to vector<48x64xf32>
    %119 = arith.maximumf %117, %118 : vector<48x64xf32>
    %cst_105 = arith.constant 0.000000e+00 : f32
    %120 = vector.broadcast %cst_105 : f32 to vector<48x64xf32>
    %121 = arith.maximumf %119, %120 : vector<48x64xf32>
    %122 = arith.truncf %116 : vector<48x64xf32> to vector<48x64xbf16>
    %c0_106 = arith.constant 0 : index
    %c0_107 = arith.constant 0 : index
    %c0_108 = arith.constant 0 : index
    %123 = vector.load %arg8[%c0_106, %c0_107, %c0_108] : memref<1x48x128xbf16, #tpu.memory_space<vmem>>, vector<1x48x64xbf16>
    %124 = vector.shape_cast %123 : vector<1x48x64xbf16> to vector<48x64xbf16>
    %125 = vector.shape_cast %122 : vector<48x64xbf16> to vector<1x48x64xbf16>
    tpu.vector_store %arg8[%c0_106, %c0_107, %c0_108], %125 {strides = array<i32>} : memref<1x48x128xbf16, #tpu.memory_space<vmem>>, vector<1x48x64xbf16>,
    %126 = arith.truncf %121 : vector<48x64xf32> to vector<48x64xbf16>
    %c0_109 = arith.constant 0 : index
    %c0_110 = arith.constant 0 : index
    %c64_111 = arith.constant 64 : index
    %127 = vector.load %arg8[%c0_109, %c0_110, %c64_111] : memref<1x48x128xbf16, #tpu.memory_space<vmem>>, vector<1x48x64xbf16>
    %128 = vector.shape_cast %127 : vector<1x48x64xbf16> to vector<48x64xbf16>
    %129 = vector.shape_cast %126 : vector<48x64xbf16> to vector<1x48x64xbf16>
    tpu.vector_store %arg8[%c0_109, %c0_110, %c64_111], %129 {strides = array<i32>} : memref<1x48x128xbf16, #tpu.memory_space<vmem>>, vector<1x48x64xbf16>,
    return
  }
  func.func @transform_0(%arg0: i32) -> (i32, i32, i32) {
    %c0_i32 = arith.constant 0 : i32
    %c0_i32_0 = arith.constant 0 : i32
    %c0_i32_1 = arith.constant 0 : i32
    return %arg0, %c0_i32, %c0_i32_0 : i32, i32, i32
  }
  func.func @transform_1(%arg0: i32) -> (i32, i32) {
    %c0_i32 = arith.constant 0 : i32
    %c0_i32_0 = arith.constant 0 : i32
    %c0_i32_1 = arith.constant 0 : i32
    return %c0_i32, %c0_i32_0 : i32, i32
  }
  func.func @transform_2(%arg0: i32) -> (i32, i32) {
    %c0_i32 = arith.constant 0 : i32
    %c0_i32_0 = arith.constant 0 : i32
    %c0_i32_1 = arith.constant 0 : i32
    return %c0_i32, %c0_i32_0 : i32, i32
  }
  func.func @transform_3(%arg0: i32) -> (i32, i32) {
    %c0_i32 = arith.constant 0 : i32
    %c0_i32_0 = arith.constant 0 : i32
    %c0_i32_1 = arith.constant 0 : i32
    return %c0_i32, %c0_i32_0 : i32, i32
  }
  func.func @transform_4(%arg0: i32) -> (i32, i32) {
    %c0_i32 = arith.constant 0 : i32
    %c0_i32_0 = arith.constant 0 : i32
    %c0_i32_1 = arith.constant 0 : i32
    return %c0_i32, %c0_i32_0 : i32, i32
  }
  func.func @transform_5(%arg0: i32) -> (i32, i32) {
    %c0_i32 = arith.constant 0 : i32
    %c0_i32_0 = arith.constant 0 : i32
    %c0_i32_1 = arith.constant 0 : i32
    return %c0_i32, %c0_i32_0 : i32, i32
  }
  func.func @transform_6(%arg0: i32) -> (i32, i32) {
    %c0_i32 = arith.constant 0 : i32
    %c0_i32_0 = arith.constant 0 : i32
    %c0_i32_1 = arith.constant 0 : i32
    return %c0_i32, %c0_i32_0 : i32, i32
  }
  func.func @transform_7(%arg0: i32) -> (i32, i32, i32) {
    %c0_i32 = arith.constant 0 : i32
    %c0_i32_0 = arith.constant 0 : i32
    %c0_i32_1 = arith.constant 0 : i32
    return %arg0, %c0_i32, %c0_i32_0 : i32, i32, i32
  }
}

</mosaic_0001>

<llo_original>
// kernel: tabcnn_forward.3
$region0: #{tabcnn_forward.3}
  #allocation0 [shape = 'u32[]', space=smem, size = 0x4, offset = 0x4, fixed_abs, tag = 'smem constant byte address 0x4 - core index']
  #allocation1 [shape = 'u32[144,128]{1,0:T(1,128)}', space=vmem, size = 0x12000, scoped, tag = 'internal scratch']
  %s0 = inlined_call_operand.vmem [shape: bf16[2,6144], index: 0, kind: input, shape index: {}]
  %s1 = inlined_call_operand.hbm [shape: bf16[6144,128], index: 1, kind: input, shape index: {}]
  %s2 = inlined_call_operand.hbm [shape: f32[1,128], index: 2, kind: input, shape index: {}]
  %s3 = inlined_call_operand.hbm [shape: bf16[128,128], index: 3, kind: input, shape index: {}]
  %s4 = inlined_call_operand.hbm [shape: f32[1,128], index: 4, kind: input, shape index: {}]
  %s5 = inlined_call_operand.vmem [shape: f32[2,128], index: 5, kind: output, shape index: {}]
  %s6 = sld [smem:[#allocation0]]
  $region46: #{tabcnn_forward.3} parent=0
    _
  %s8 = ssub.s32 1, %s6
  %s9 = scalar_select 0, %s8, %s6
  $region1: #{tabcnn_forward.3} parent=0
    #allocation2 [shape = 'u8[1572864]{0}', space=vmem, size = 0x180000, scoped, tag = 'input window, operand 1, single buffered']
    #allocation3 [shape = 's32[1]{0}', space=sflag, size = 0x4, scoped, tag = 'scoped memory for tabcnn_forward.3']
    #allocation4 [shape = 'u8[512]{0}', space=vmem, size = 0x400, scoped, tag = 'input window, operand 2, single buffered']
    #allocation5 [shape = 's32[1]{0}', space=sflag, size = 0x4, scoped, tag = 'scoped memory for tabcnn_forward.3']
    #allocation6 [shape = 'u8[32768]{0}', space=vmem, size = 0x8000, scoped, tag = 'input window, operand 3, single buffered']
    #allocation7 [shape = 'u8[512]{0}', space=vmem, size = 0x400, scoped, tag = 'input window, operand 4, single buffered']
    #allocation8 [shape = 's32[1]{0}', space=sflag, size = 0x4, scoped, tag = 'scoped memory for tabcnn_forward.3']
    %10 = vsyncpa [#allocation3], 0
    %11 = vsyncpa [#allocation5], 0
    %12 = vsyncpa [#allocation8], 0
    // Predicated region
    $region2: #{tabcnn_forward.3} parent=1 // pred_check
      _
    $region3: #{tabcnn_forward.3} parent=1 // pred_check_branch
      %14 = sbr.rel (0) target = $region5
    $region4: #{tabcnn_forward.3} parent=1 // pred_region
      _
    $region5: #{tabcnn_forward.3} parent=1 // pred_fallthru
      _
    // Predicated region
    $region6: #{tabcnn_forward.3} parent=1 // pred_check
      _
    $region7: #{tabcnn_forward.3} parent=1 // pred_check_branch
      %16 = sbr.rel (0) target = $region9
    $region8: #{tabcnn_forward.3} parent=1 // pred_region
      %s18 = ssub.s32 49152, 49152
      %19 = vsyncadd [#allocation3], %s18
      %s20 = sshll.u32 [#allocation2], 4
      %s21 = int_to_ptr.vmem [resolvable:$true] %s20
      %26 = dma.hbm_to_vmem [thread:$0]  %s1, 49152, %s21, [#allocation3], 64, 64, 4
    $region9: #{tabcnn_forward.3} parent=1 // pred_fallthru
      _
    // Predicated region
    $region10: #{tabcnn_forward.3} parent=1 // pred_check
      _
    $region11: #{tabcnn_forward.3} parent=1 // pred_check_branch
      %28 = sbr.rel (0) target = $region13
    $region12: #{tabcnn_forward.3} parent=1 // pred_region
      %s30 = ssub.s32 16, 16
      %31 = vsyncadd [#allocation5], %s30
      %s33 = sshll.u32 [#allocation4], 4
      %s34 = int_to_ptr.vmem [resolvable:$true] %s33
      %36 = dma.hbm_to_vmem [thread:$0]  %s2, 16, %s34, [#allocation5]
    $region13: #{tabcnn_forward.3} parent=1 // pred_fallthru
      _
    // Predicated region
    $region14: #{tabcnn_forward.3} parent=1 // pred_check
      _
    $region15: #{tabcnn_forward.3} parent=1 // pred_check_branch
      %38 = sbr.rel (0) target = $region17
    $region16: #{tabcnn_forward.3} parent=1 // pred_region
      %s40 = ssub.s32 1024, 1024
      %41 = vsyncadd [#allocation5], %s40
      %s42 = sshll.u32 [#allocation6], 4
      %s43 = int_to_ptr.vmem [resolvable:$true] %s42
      %48 = dma.hbm_to_vmem [thread:$0]  %s3, 1024, %s43, [#allocation5], 64, 64, 4
    $region17: #{tabcnn_forward.3} parent=1 // pred_fallthru
      _
    // Predicated region
    $region18: #{tabcnn_forward.3} parent=1 // pred_check
      _
    $region19: #{tabcnn_forward.3} parent=1 // pred_check_branch
      %50 = sbr.rel (0) target = $region21
    $region20: #{tabcnn_forward.3} parent=1 // pred_region
      %s52 = ssub.s32 16, 16
      %53 = vsyncadd [#allocation8], %s52
      %s55 = sshll.u32 [#allocation7], 4
      %s56 = int_to_ptr.vmem [resolvable:$true] %s55
      %58 = dma.hbm_to_vmem [thread:$0]  %s4, 16, %s56, [#allocation8]
    $region21: #{tabcnn_forward.3} parent=1 // pred_fallthru
      _
    // Predicated region
    $region22: #{tabcnn_forward.3} parent=1 // pred_check
      _
    $region23: #{tabcnn_forward.3} parent=1 // pred_check_branch
      %60 = sbr.rel (0) target = $region25
    $region24: #{tabcnn_forward.3} parent=1 // pred_region
      %61 = dma.done [#allocation3], 49152
    $region25: #{tabcnn_forward.3} parent=1 // pred_fallthru
      _
    // Predicated region
    $region26: #{tabcnn_forward.3} parent=1 // pred_check
      _
    $region27: #{tabcnn_forward.3} parent=1 // pred_check_branch
      %63 = sbr.rel (0) target = $region29
    $region28: #{tabcnn_forward.3} parent=1 // pred_region
      %64 = dma.done [#allocation5], 16
    $region29: #{tabcnn_forward.3} parent=1 // pred_fallthru
      _
    // Predicated region
    $region30: #{tabcnn_forward.3} parent=1 // pred_check
      _
    $region31: #{tabcnn_forward.3} parent=1 // pred_check_branch
      %66 = sbr.rel (0) target = $region33
    $region32: #{tabcnn_forward.3} parent=1 // pred_region
      %67 = dma.done [#allocation5], 1024
    $region33: #{tabcnn_forward.3} parent=1 // pred_fallthru
      _
    // Predicated region
    $region34: #{tabcnn_forward.3} parent=1 // pred_check
      _
    $region35: #{tabcnn_forward.3} parent=1 // pred_check_branch
      %69 = sbr.rel (0) target = $region37
    $region36: #{tabcnn_forward.3} parent=1 // pred_region
      %70 = dma.done [#allocation8], 16
    $region37: #{tabcnn_forward.3} parent=1 // pred_fallthru
      _
    %v72 = vld [vmem:[%s0] sm:$0xff]
    %v73 = vld [vmem:[%s0 + $0x8] sm:$0xff]
    %v74 = vld [vmem:[%s0 + $0x10] sm:$0xff]
    %v75 = vld [vmem:[%s0 + $0x18] sm:$0xff]
    %v76 = vld [vmem:[%s0 + $0x20] sm:$0xff]
    %v77 = vld [vmem:[%s0 + $0x28] sm:$0xff]
    %v78 = vld [vmem:[#allocation2] sm:$0xf]
    %v79 = vld [vmem:[#allocation2 + $0x4] sm:$0xf]
    %v80 = vld [vmem:[#allocation2 + $0x8] sm:$0xf]
    %v81 = vld [vmem:[#allocation2 + $0xc] sm:$0xf]
    %v82 = vld [vmem:[#allocation2 + $0x10] sm:$0xf]
    %v83 = vld [vmem:[#allocation2 + $0x14] sm:$0xf]
    %v84 = vld [vmem:[#allocation2 + $0x18] sm:$0xf]
    %v85 = vld [vmem:[#allocation2 + $0x1c] sm:$0xf]
    %v86 = vld [vmem:[#allocation2 + $0x20] sm:$0xf]
    %v87 = vld [vmem:[#allocation2 + $0x24] sm:$0xf]
    %v88 = vld [vmem:[#allocation2 + $0x28] sm:$0xf]
    %v89 = vld [vmem:[#allocation2 + $0x2c] sm:$0xf]
    %v90 = vld [vmem:[#allocation2 + $0x30] sm:$0xf]
    %v91 = vld [vmem:[#allocation2 + $0x34] sm:$0xf]
    %v92 = vld [vmem:[#allocation2 + $0x38] sm:$0xf]
    %v93 = vld [vmem:[#allocation2 + $0x3c] sm:$0xf]
    %v94 = vld [vmem:[#allocation2 + $0x40] sm:$0xf]
    %v95 = vld [vmem:[#allocation2 + $0x44] sm:$0xf]
    %v96 = vld [vmem:[#allocation2 + $0x48] sm:$0xf]
    %v97 = vld [vmem:[#allocation2 + $0x4c] sm:$0xf]
    %v98 = vld [vmem:[#allocation2 + $0x50] sm:$0xf]
    %v99 = vld [vmem:[#allocation2 + $0x54] sm:$0xf]
    %v100 = vld [vmem:[#allocation2 + $0x58] sm:$0xf]
    %v101 = vld [vmem:[#allocation2 + $0x5c] sm:$0xf]
    %v102 = vld [vmem:[#allocation2 + $0x60] sm:$0xf]
    %v103 = vld [vmem:[#allocation2 + $0x64] sm:$0xf]
    %v104 = vld [vmem:[#allocation2 + $0x68] sm:$0xf]
    %v105 = vld [vmem:[#allocation2 + $0x6c] sm:$0xf]
    %v106 = vld [vmem:[#allocation2 + $0x70] sm:$0xf]
    %v107 = vld [vmem:[#allocation2 + $0x74] sm:$0xf]
    %v108 = vld [vmem:[#allocation2 + $0x78] sm:$0xf]
    %v109 = vld [vmem:[#allocation2 + $0x7c] sm:$0xf]
    %v110 = vld [vmem:[#allocation2 + $0x80] sm:$0xf]
    %v111 = vld [vmem:[#allocation2 + $0x84] sm:$0xf]
    %v112 = vld [vmem:[#allocation2 + $0x88] sm:$0xf]
    %v113 = vld [vmem:[#allocation2 + $0x8c] sm:$0xf]
    %v114 = vld [vmem:[#allocation2 + $0x90] sm:$0xf]
    %v115 = vld [vmem:[#allocation2 + $0x94] sm:$0xf]
    %v116 = vld [vmem:[#allocation2 + $0x98] sm:$0xf]
    %v117 = vld [vmem:[#allocation2 + $0x9c] sm:$0xf]
    %v118 = vld [vmem:[#allocation2 + $0xa0] sm:$0xf]
    %v119 = vld [vmem:[#allocation2 + $0xa4] sm:$0xf]
    %v120 = vld [vmem:[#allocation2 + $0xa8] sm:$0xf]
    %v121 = vld [vmem:[#allocation2 + $0xac] sm:$0xf]
    %v122 = vld [vmem:[#allocation2 + $0xb0] sm:$0xf]
    %v123 = vld [vmem:[#allocation2 + $0xb4] sm:$0xf]
    %v124 = vld [vmem:[#allocation2 + $0xb8] sm:$0xf]
    %v125 = vld [vmem:[#allocation2 + $0xbc] sm:$0xf]
    %v126 = vld [vmem:[#allocation2 + $0xc0] sm:$0xf]
    %v127 = vld [vmem:[#allocation2 + $0xc4] sm:$0xf]
    %v128 = vld [vmem:[#allocation2 + $0xc8] sm:$0xf]
    %v129 = vld [vmem:[#allocation2 + $0xcc] sm:$0xf]
    %v130 = vld [vmem:[#allocation2 + $0xd0] sm:$0xf]
    %v131 = vld [vmem:[#allocation2 + $0xd4] sm:$0xf]
    %v132 = vld [vmem:[#allocation2 + $0xd8] sm:$0xf]
    %v133 = vld [vmem:[#allocation2 + $0xdc] sm:$0xf]
    %v134 = vld [vmem:[#allocation2 + $0xe0] sm:$0xf]
    %v135 = vld [vmem:[#allocation2 + $0xe4] sm:$0xf]
    %v136 = vld [vmem:[#allocation2 + $0xe8] sm:$0xf]
    %v137 = vld [vmem:[#allocation2 + $0xec] sm:$0xf]
    %v138 = vld [vmem:[#allocation2 + $0xf0] sm:$0xf]
    %v139 = vld [vmem:[#allocation2 + $0xf4] sm:$0xf]
    %v140 = vld [vmem:[#allocation2 + $0xf8] sm:$0xf]
    %v141 = vld [vmem:[#allocation2 + $0xfc] sm:$0xf]
    %v142 = vld [vmem:[#allocation2 + $0x100] sm:$0xf]
    %v143 = vld [vmem:[#allocation2 + $0x104] sm:$0xf]
    %v144 = vld [vmem:[#allocation2 + $0x108] sm:$0xf]
    %v145 = vld [vmem:[#allocation2 + $0x10c] sm:$0xf]
    %v146 = vld [vmem:[#allocation2 + $0x110] sm:$0xf]
    %v147 = vld [vmem:[#allocation2 + $0x114] sm:$0xf]
    %v148 = vld [vmem:[#allocation2 + $0x118] sm:$0xf]
    %v149 = vld [vmem:[#allocation2 + $0x11c] sm:$0xf]
    %v150 = vld [vmem:[#allocation2 + $0x120] sm:$0xf]
    %v151 = vld [vmem:[#allocation2 + $0x124] sm:$0xf]
    %v152 = vld [vmem:[#allocation2 + $0x128] sm:$0xf]
    %v153 = vld [vmem:[#allocation2 + $0x12c] sm:$0xf]
    %v154 = vld [vmem:[#allocation2 + $0x130] sm:$0xf]
    %v155 = vld [vmem:[#allocation2 + $0x134] sm:$0xf]
    %v156 = vld [vmem:[#allocation2 + $0x138] sm:$0xf]
    %v157 = vld [vmem:[#allocation2 + $0x13c] sm:$0xf]
    %v158 = vld [vmem:[#allocation2 + $0x140] sm:$0xf]
    %v159 = vld [vmem:[#allocation2 + $0x144] sm:$0xf]
    %v160 = vld [vmem:[#allocation2 + $0x148] sm:$0xf]
    %v161 = vld [vmem:[#allocation2 + $0x14c] sm:$0xf]
    %v162 = vld [vmem:[#allocation2 + $0x150] sm:$0xf]
    %v163 = vld [vmem:[#allocation2 + $0x154] sm:$0xf]
    %v164 = vld [vmem:[#allocation2 + $0x158] sm:$0xf]
    %v165 = vld [vmem:[#allocation2 + $0x15c] sm:$0xf]
    %v166 = vld [vmem:[#allocation2 + $0x160] sm:$0xf]
    %v167 = vld [vmem:[#allocation2 + $0x164] sm:$0xf]
    %v168 = vld [vmem:[#allocation2 + $0x168] sm:$0xf]
    %v169 = vld [vmem:[#allocation2 + $0x16c] sm:$0xf]
    %v170 = vld [vmem:[#allocation2 + $0x170] sm:$0xf]
    %v171 = vld [vmem:[#allocation2 + $0x174] sm:$0xf]
    %v172 = vld [vmem:[#allocation2 + $0x178] sm:$0xf]
    %v173 = vld [vmem:[#allocation2 + $0x17c] sm:$0xf]
    %v174 = vld [vmem:[#allocation2 + $0x180] sm:$0xf]
    %v175 = vld [vmem:[#allocation2 + $0x184] sm:$0xf]
    %v176 = vld [vmem:[#allocation2 + $0x188] sm:$0xf]
    %v177 = vld [vmem:[#allocation2 + $0x18c] sm:$0xf]
    %v178 = vld [vmem:[#allocation2 + $0x190] sm:$0xf]
    %v179 = vld [vmem:[#allocation2 + $0x194] sm:$0xf]
    %v180 = vld [vmem:[#allocation2 + $0x198] sm:$0xf]
    %v181 = vld [vmem:[#allocation2 + $0x19c] sm:$0xf]
    %v182 = vld [vmem:[#allocation2 + $0x1a0] sm:$0xf]
    %v183 = vld [vmem:[#allocation2 + $0x1a4] sm:$0xf]
    %v184 = vld [vmem:[#allocation2 + $0x1a8] sm:$0xf]
    %v185 = vld [vmem:[#allocation2 + $0x1ac] sm:$0xf]
    %v186 = vld [vmem:[#allocation2 + $0x1b0] sm:$0xf]
    %v187 = vld [vmem:[#allocation2 + $0x1b4] sm:$0xf]
    %v188 = vld [vmem:[#allocation2 + $0x1b8] sm:$0xf]
    %v189 = vld [vmem:[#allocation2 + $0x1bc] sm:$0xf]
    %v190 = vld [vmem:[#allocation2 + $0x1c0] sm:$0xf]
    %v191 = vld [vmem:[#allocation2 + $0x1c4] sm:$0xf]
    %v192 = vld [vmem:[#allocation2 + $0x1c8] sm:$0xf]
    %v193 = vld [vmem:[#allocation2 + $0x1cc] sm:$0xf]
    %v194 = vld [vmem:[#allocation2 + $0x1d0] sm:$0xf]
    %v195 = vld [vmem:[#allocation2 + $0x1d4] sm:$0xf]
    %v196 = vld [vmem:[#allocation2 + $0x1d8] sm:$0xf]
    %v197 = vld [vmem:[#allocation2 + $0x1dc] sm:$0xf]
    %v198 = vld [vmem:[#allocation2 + $0x1e0] sm:$0xf]
    %v199 = vld [vmem:[#allocation2 + $0x1e4] sm:$0xf]
    %v200 = vld [vmem:[#allocation2 + $0x1e8] sm:$0xf]
    %v201 = vld [vmem:[#allocation2 + $0x1ec] sm:$0xf]
    %v202 = vld [vmem:[#allocation2 + $0x1f0] sm:$0xf]
    %v203 = vld [vmem:[#allocation2 + $0x1f4] sm:$0xf]
    %v204 = vld [vmem:[#allocation2 + $0x1f8] sm:$0xf]
    %v205 = vld [vmem:[#allocation2 + $0x1fc] sm:$0xf]
    %v206 = vld [vmem:[#allocation2 + $0x200] sm:$0xf]
    %v207 = vld [vmem:[#allocation2 + $0x204] sm:$0xf]
    %v208 = vld [vmem:[#allocation2 + $0x208] sm:$0xf]
    %v209 = vld [vmem:[#allocation2 + $0x20c] sm:$0xf]
    %v210 = vld [vmem:[#allocation2 + $0x210] sm:$0xf]
    %v211 = vld [vmem:[#allocation2 + $0x214] sm:$0xf]
    %v212 = vld [vmem:[#allocation2 + $0x218] sm:$0xf]
    %v213 = vld [vmem:[#allocation2 + $0x21c] sm:$0xf]
    %v214 = vld [vmem:[#allocation2 + $0x220] sm:$0xf]
    %v215 = vld [vmem:[#allocation2 + $0x224] sm:$0xf]
    %v216 = vld [vmem:[#allocation2 + $0x228] sm:$0xf]
    %v217 = vld [vmem:[#allocation2 + $0x22c] sm:$0xf]
    %v218 = vld [vmem:[#allocation2 + $0x230] sm:$0xf]
    %v219 = vld [vmem:[#allocation2 + $0x234] sm:$0xf]
    %v220 = vld [vmem:[#allocation2 + $0x238] sm:$0xf]
    %v221 = vld [vmem:[#allocation2 + $0x23c] sm:$0xf]
    %v222 = vld [vmem:[#allocation2 + $0x240] sm:$0xf]
    %v223 = vld [vmem:[#allocation2 + $0x244] sm:$0xf]
    %v224 = vld [vmem:[#allocation2 + $0x248] sm:$0xf]
    %v225 = vld [vmem:[#allocation2 + $0x24c] sm:$0xf]
    %v226 = vld [vmem:[#allocation2 + $0x250] sm:$0xf]
    %v227 = vld [vmem:[#allocation2 + $0x254] sm:$0xf]
    %v228 = vld [vmem:[#allocation2 + $0x258] sm:$0xf]
    %v229 = vld [vmem:[#allocation2 + $0x25c] sm:$0xf]
    %v230 = vld [vmem:[#allocation2 + $0x260] sm:$0xf]
    %v231 = vld [vmem:[#allocation2 + $0x264] sm:$0xf]
    %v232 = vld [vmem:[#allocation2 + $0x268] sm:$0xf]
    %v233 = vld [vmem:[#allocation2 + $0x26c] sm:$0xf]
    %v234 = vld [vmem:[#allocation2 + $0x270] sm:$0xf]
    %v235 = vld [vmem:[#allocation2 + $0x274] sm:$0xf]
    %v236 = vld [vmem:[#allocation2 + $0x278] sm:$0xf]
    %v237 = vld [vmem:[#allocation2 + $0x27c] sm:$0xf]
    %v238 = vld [vmem:[#allocation2 + $0x280] sm:$0xf]
    %v239 = vld [vmem:[#allocation2 + $0x284] sm:$0xf]
    %v240 = vld [vmem:[#allocation2 + $0x288] sm:$0xf]
    %v241 = vld [vmem:[#allocation2 + $0x28c] sm:$0xf]
    %v242 = vld [vmem:[#allocation2 + $0x290] sm:$0xf]
    %v243 = vld [vmem:[#allocation2 + $0x294] sm:$0xf]
    %v244 = vld [vmem:[#allocation2 + $0x298] sm:$0xf]
    %v245 = vld [vmem:[#allocation2 + $0x29c] sm:$0xf]
    %v246 = vld [vmem:[#allocation2 + $0x2a0] sm:$0xf]
    %v247 = vld [vmem:[#allocation2 + $0x2a4] sm:$0xf]
    %v248 = vld [vmem:[#allocation2 + $0x2a8] sm:$0xf]
    %v249 = vld [vmem:[#allocation2 + $0x2ac] sm:$0xf]
    %v250 = vld [vmem:[#allocation2 + $0x2b0] sm:$0xf]
    %v251 = vld [vmem:[#allocation2 + $0x2b4] sm:$0xf]
    %v252 = vld [vmem:[#allocation2 + $0x2b8] sm:$0xf]
    %v253 = vld [vmem:[#allocation2 + $0x2bc] sm:$0xf]
    %v254 = vld [vmem:[#allocation2 + $0x2c0] sm:$0xf]
    %v255 = vld [vmem:[#allocation2 + $0x2c4] sm:$0xf]
    %v256 = vld [vmem:[#allocation2 + $0x2c8] sm:$0xf]
    %v257 = vld [vmem:[#allocation2 + $0x2cc] sm:$0xf]
    %v258 = vld [vmem:[#allocation2 + $0x2d0] sm:$0xf]
    %v259 = vld [vmem:[#allocation2 + $0x2d4] sm:$0xf]
    %v260 = vld [vmem:[#allocation2 + $0x2d8] sm:$0xf]
    %v261 = vld [vmem:[#allocation2 + $0x2dc] sm:$0xf]
    %v262 = vld [vmem:[#allocation2 + $0x2e0] sm:$0xf]
    %v263 = vld [vmem:[#allocation2 + $0x2e4] sm:$0xf]
    %v264 = vld [vmem:[#allocation2 + $0x2e8] sm:$0xf]
    %v265 = vld [vmem:[#allocation2 + $0x2ec] sm:$0xf]
    %v266 = vld [vmem:[#allocation2 + $0x2f0] sm:$0xf]
    %v267 = vld [vmem:[#allocation2 + $0x2f4] sm:$0xf]
    %v268 = vld [vmem:[#allocation2 + $0x2f8] sm:$0xf]
    %v269 = vld [vmem:[#allocation2 + $0x2fc] sm:$0xf]
    %v270 = vld [vmem:[#allocation2 + $0x300] sm:$0xf]
    %v271 = vld [vmem:[#allocation2 + $0x304] sm:$0xf]
    %v272 = vld [vmem:[#allocation2 + $0x308] sm:$0xf]
    %v273 = vld [vmem:[#allocation2 + $0x30c] sm:$0xf]
    %v274 = vld [vmem:[#allocation2 + $0x310] sm:$0xf]
    %v275 = vld [vmem:[#allocation2 + $0x314] sm:$0xf]
    %v276 = vld [vmem:[#allocation2 + $0x318] sm:$0xf]
    %v277 = vld [vmem:[#allocation2 + $0x31c] sm:$0xf]
    %v278 = vld [vmem:[#allocation2 + $0x320] sm:$0xf]
    %v279 = vld [vmem:[#allocation2 + $0x324] sm:$0xf]
    %v280 = vld [vmem:[#allocation2 + $0x328] sm:$0xf]
    %v281 = vld [vmem:[#allocation2 + $0x32c] sm:$0xf]
    %v282 = vld [vmem:[#allocation2 + $0x330] sm:$0xf]
    %v283 = vld [vmem:[#allocation2 + $0x334] sm:$0xf]
    %v284 = vld [vmem:[#allocation2 + $0x338] sm:$0xf]
    %v285 = vld [vmem:[#allocation2 + $0x33c] sm:$0xf]
    %v286 = vld [vmem:[#allocation2 + $0x340] sm:$0xf]
    %v287 = vld [vmem:[#allocation2 + $0x344] sm:$0xf]
    %v288 = vld [vmem:[#allocation2 + $0x348] sm:$0xf]
    %v289 = vld [vmem:[#allocation2 + $0x34c] sm:$0xf]
    %v290 = vld [vmem:[#allocation2 + $0x350] sm:$0xf]
    %v291 = vld [vmem:[#allocation2 + $0x354] sm:$0xf]
    %v292 = vld [vmem:[#allocation2 + $0x358] sm:$0xf]
    %v293 = vld [vmem:[#allocation2 + $0x35c] sm:$0xf]
    %v294 = vld [vmem:[#allocation2 + $0x360] sm:$0xf]
    %v295 = vld [vmem:[#allocation2 + $0x364] sm:$0xf]
    %v296 = vld [vmem:[#allocation2 + $0x368] sm:$0xf]
    %v297 = vld [vmem:[#allocation2 + $0x36c] sm:$0xf]
    %v298 = vld [vmem:[#allocation2 + $0x370] sm:$0xf]
    %v299 = vld [vmem:[#allocation2 + $0x374] sm:$0xf]
    %v300 = vld [vmem:[#allocation2 + $0x378] sm:$0xf]
    %v301 = vld [vmem:[#allocation2 + $0x37c] sm:$0xf]
    %v302 = vld [vmem:[#allocation2 + $0x380] sm:$0xf]
    %v303 = vld [vmem:[#allocation2 + $0x384] sm:$0xf]
    %v304 = vld [vmem:[#allocation2 + $0x388] sm:$0xf]
    %v305 = vld [vmem:[#allocation2 + $0x38c] sm:$0xf]
    %v306 = vld [vmem:[#allocation2 + $0x390] sm:$0xf]
    %v307 = vld [vmem:[#allocation2 + $0x394] sm:$0xf]
    %v308 = vld [vmem:[#allocation2 + $0x398] sm:$0xf]
    %v309 = vld [vmem:[#allocation2 + $0x39c] sm:$0xf]
    %v310 = vld [vmem:[#allocation2 + $0x3a0] sm:$0xf]
    %v311 = vld [vmem:[#allocation2 + $0x3a4] sm:$0xf]
    %v312 = vld [vmem:[#allocation2 + $0x3a8] sm:$0xf]
    %v313 = vld [vmem:[#allocation2 + $0x3ac] sm:$0xf]
    %v314 = vld [vmem:[#allocation2 + $0x3b0] sm:$0xf]
    %v315 = vld [vmem:[#allocation2 + $0x3b4] sm:$0xf]
    %v316 = vld [vmem:[#allocation2 + $0x3b8] sm:$0xf]
    %v317 = vld [vmem:[#allocation2 + $0x3bc] sm:$0xf]
    %v318 = vld [vmem:[#allocation2 + $0x3c0] sm:$0xf]
    %v319 = vld [vmem:[#allocation2 + $0x3c4] sm:$0xf]
    %v320 = vld [vmem:[#allocation2 + $0x3c8] sm:$0xf]
    %v321 = vld [vmem:[#allocation2 + $0x3cc] sm:$0xf]
    %v322 = vld [vmem:[#allocation2 + $0x3d0] sm:$0xf]
    %v323 = vld [vmem:[#allocation2 + $0x3d4] sm:$0xf]
    %v324 = vld [vmem:[#allocation2 + $0x3d8] sm:$0xf]
    %v325 = vld [vmem:[#allocation2 + $0x3dc] sm:$0xf]
    %v326 = vld [vmem:[#allocation2 + $0x3e0] sm:$0xf]
    %v327 = vld [vmem:[#allocation2 + $0x3e4] sm:$0xf]
    %v328 = vld [vmem:[#allocation2 + $0x3e8] sm:$0xf]
    %v329 = vld [vmem:[#allocation2 + $0x3ec] sm:$0xf]
    %v330 = vld [vmem:[#allocation2 + $0x3f0] sm:$0xf]
    %v331 = vld [vmem:[#allocation2 + $0x3f4] sm:$0xf]
    %v332 = vld [vmem:[#allocation2 + $0x3f8] sm:$0xf]
    %v333 = vld [vmem:[#allocation2 + $0x3fc] sm:$0xf]
    %v334 = vld [vmem:[#allocation2 + $0x400] sm:$0xf]
    %v335 = vld [vmem:[#allocation2 + $0x404] sm:$0xf]
    %v336 = vld [vmem:[#allocation2 + $0x408] sm:$0xf]
    %v337 = vld [vmem:[#allocation2 + $0x40c] sm:$0xf]
    %v338 = vld [vmem:[#allocation2 + $0x410] sm:$0xf]
    %v339 = vld [vmem:[#allocation2 + $0x414] sm:$0xf]
    %v340 = vld [vmem:[#allocation2 + $0x418] sm:$0xf]
    %v341 = vld [vmem:[#allocation2 + $0x41c] sm:$0xf]
    %v342 = vld [vmem:[#allocation2 + $0x420] sm:$0xf]
    %v343 = vld [vmem:[#allocation2 + $0x424] sm:$0xf]
    %v344 = vld [vmem:[#allocation2 + $0x428] sm:$0xf]
    %v345 = vld [vmem:[#allocation2 + $0x42c] sm:$0xf]
    %v346 = vld [vmem:[#allocation2 + $0x430] sm:$0xf]
    %v347 = vld [vmem:[#allocation2 + $0x434] sm:$0xf]
    %v348 = vld [vmem:[#allocation2 + $0x438] sm:$0xf]
    %v349 = vld [vmem:[#allocation2 + $0x43c] sm:$0xf]
    %v350 = vld [vmem:[#allocation2 + $0x440] sm:$0xf]
    %v351 = vld [vmem:[#allocation2 + $0x444] sm:$0xf]
    %v352 = vld [vmem:[#allocation2 + $0x448] sm:$0xf]
    %v353 = vld [vmem:[#allocation2 + $0x44c] sm:$0xf]
    %v354 = vld [vmem:[#allocation2 + $0x450] sm:$0xf]
    %v355 = vld [vmem:[#allocation2 + $0x454] sm:$0xf]
    %v356 = vld [vmem:[#allocation2 + $0x458] sm:$0xf]
    %v357 = vld [vmem:[#allocation2 + $0x45c] sm:$0xf]
    %v358 = vld [vmem:[#allocation2 + $0x460] sm:$0xf]
    %v359 = vld [vmem:[#allocation2 + $0x464] sm:$0xf]
    %v360 = vld [vmem:[#allocation2 + $0x468] sm:$0xf]
    %v361 = vld [vmem:[#allocation2 + $0x46c] sm:$0xf]
    %v362 = vld [vmem:[#allocation2 + $0x470] sm:$0xf]
    %v363 = vld [vmem:[#allocation2 + $0x474] sm:$0xf]
    %v364 = vld [vmem:[#allocation2 + $0x478] sm:$0xf]
    %v365 = vld [vmem:[#allocation2 + $0x47c] sm:$0xf]
    %v366 = vld [vmem:[#allocation2 + $0x480] sm:$0xf]
    %v367 = vld [vmem:[#allocation2 + $0x484] sm:$0xf]
    %v368 = vld [vmem:[#allocation2 + $0x488] sm:$0xf]
    %v369 = vld [vmem:[#allocation2 + $0x48c] sm:$0xf]
    %v370 = vld [vmem:[#allocation2 + $0x490] sm:$0xf]
    %v371 = vld [vmem:[#allocation2 + $0x494] sm:$0xf]
    %v372 = vld [vmem:[#allocation2 + $0x498] sm:$0xf]
    %v373 = vld [vmem:[#allocation2 + $0x49c] sm:$0xf]
    %v374 = vld [vmem:[#allocation2 + $0x4a0] sm:$0xf]
    %v375 = vld [vmem:[#allocation2 + $0x4a4] sm:$0xf]
    %v376 = vld [vmem:[#allocation2 + $0x4a8] sm:$0xf]
    %v377 = vld [vmem:[#allocation2 + $0x4ac] sm:$0xf]
    %v378 = vld [vmem:[#allocation2 + $0x4b0] sm:$0xf]
    %v379 = vld [vmem:[#allocation2 + $0x4b4] sm:$0xf]
    %v380 = vld [vmem:[#allocation2 + $0x4b8] sm:$0xf]
    %v381 = vld [vmem:[#allocation2 + $0x4bc] sm:$0xf]
    %v382 = vld [vmem:[#allocation2 + $0x4c0] sm:$0xf]
    %v383 = vld [vmem:[#allocation2 + $0x4c4] sm:$0xf]
    %v384 = vld [vmem:[#allocation2 + $0x4c8] sm:$0xf]
    %v385 = vld [vmem:[#allocation2 + $0x4cc] sm:$0xf]
    %v386 = vld [vmem:[#allocation2 + $0x4d0] sm:$0xf]
    %v387 = vld [vmem:[#allocation2 + $0x4d4] sm:$0xf]
    %v388 = vld [vmem:[#allocation2 + $0x4d8] sm:$0xf]
    %v389 = vld [vmem:[#allocation2 + $0x4dc] sm:$0xf]
    %v390 = vld [vmem:[#allocation2 + $0x4e0] sm:$0xf]
    %v391 = vld [vmem:[#allocation2 + $0x4e4] sm:$0xf]
    %v392 = vld [vmem:[#allocation2 + $0x4e8] sm:$0xf]
    %v393 = vld [vmem:[#allocation2 + $0x4ec] sm:$0xf]
    %v394 = vld [vmem:[#allocation2 + $0x4f0] sm:$0xf]
    %v395 = vld [vmem:[#allocation2 + $0x4f4] sm:$0xf]
    %v396 = vld [vmem:[#allocation2 + $0x4f8] sm:$0xf]
    %v397 = vld [vmem:[#allocation2 + $0x4fc] sm:$0xf]
    %v398 = vld [vmem:[#allocation2 + $0x500] sm:$0xf]
    %v399 = vld [vmem:[#allocation2 + $0x504] sm:$0xf]
    %v400 = vld [vmem:[#allocation2 + $0x508] sm:$0xf]
    %v401 = vld [vmem:[#allocation2 + $0x50c] sm:$0xf]
    %v402 = vld [vmem:[#allocation2 + $0x510] sm:$0xf]
    %v403 = vld [vmem:[#allocation2 + $0x514] sm:$0xf]
    %v404 = vld [vmem:[#allocation2 + $0x518] sm:$0xf]
    %v405 = vld [vmem:[#allocation2 + $0x51c] sm:$0xf]
    %v406 = vld [vmem:[#allocation2 + $0x520] sm:$0xf]
    %v407 = vld [vmem:[#allocation2 + $0x524] sm:$0xf]
    %v408 = vld [vmem:[#allocation2 + $0x528] sm:$0xf]
    %v409 = vld [vmem:[#allocation2 + $0x52c] sm:$0xf]
    %v410 = vld [vmem:[#allocation2 + $0x530] sm:$0xf]
    %v411 = vld [vmem:[#allocation2 + $0x534] sm:$0xf]
    %v412 = vld [vmem:[#allocation2 + $0x538] sm:$0xf]
    %v413 = vld [vmem:[#allocation2 + $0x53c] sm:$0xf]
    %v414 = vld [vmem:[#allocation2 + $0x540] sm:$0xf]
    %v415 = vld [vmem:[#allocation2 + $0x544] sm:$0xf]
    %v416 = vld [vmem:[#allocation2 + $0x548] sm:$0xf]
    %v417 = vld [vmem:[#allocation2 + $0x54c] sm:$0xf]
    %v418 = vld [vmem:[#allocation2 + $0x550] sm:$0xf]
    %v419 = vld [vmem:[#allocation2 + $0x554] sm:$0xf]
    %v420 = vld [vmem:[#allocation2 + $0x558] sm:$0xf]
    %v421 = vld [vmem:[#allocation2 + $0x55c] sm:$0xf]
    %v422 = vld [vmem:[#allocation2 + $0x560] sm:$0xf]
    %v423 = vld [vmem:[#allocation2 + $0x564] sm:$0xf]
    %v424 = vld [vmem:[#allocation2 + $0x568] sm:$0xf]
    %v425 = vld [vmem:[#allocation2 + $0x56c] sm:$0xf]
    %v426 = vld [vmem:[#allocation2 + $0x570] sm:$0xf]
    %v427 = vld [vmem:[#allocation2 + $0x574] sm:$0xf]
    %v428 = vld [vmem:[#allocation2 + $0x578] sm:$0xf]
    %v429 = vld [vmem:[#allocation2 + $0x57c] sm:$0xf]
    %v430 = vld [vmem:[#allocation2 + $0x580] sm:$0xf]
    %v431 = vld [vmem:[#allocation2 + $0x584] sm:$0xf]
    %v432 = vld [vmem:[#allocation2 + $0x588] sm:$0xf]
    %v433 = vld [vmem:[#allocation2 + $0x58c] sm:$0xf]
    %v434 = vld [vmem:[#allocation2 + $0x590] sm:$0xf]
    %v435 = vld [vmem:[#allocation2 + $0x594] sm:$0xf]
    %v436 = vld [vmem:[#allocation2 + $0x598] sm:$0xf]
    %v437 = vld [vmem:[#allocation2 + $0x59c] sm:$0xf]
    %v438 = vld [vmem:[#allocation2 + $0x5a0] sm:$0xf]
    %v439 = vld [vmem:[#allocation2 + $0x5a4] sm:$0xf]
    %v440 = vld [vmem:[#allocation2 + $0x5a8] sm:$0xf]
    %v441 = vld [vmem:[#allocation2 + $0x5ac] sm:$0xf]
    %v442 = vld [vmem:[#allocation2 + $0x5b0] sm:$0xf]
    %v443 = vld [vmem:[#allocation2 + $0x5b4] sm:$0xf]
    %v444 = vld [vmem:[#allocation2 + $0x5b8] sm:$0xf]
    %v445 = vld [vmem:[#allocation2 + $0x5bc] sm:$0xf]
    %v446 = vld [vmem:[#allocation2 + $0x5c0] sm:$0xf]
    %v447 = vld [vmem:[#allocation2 + $0x5c4] sm:$0xf]
    %v448 = vld [vmem:[#allocation2 + $0x5c8] sm:$0xf]
    %v449 = vld [vmem:[#allocation2 + $0x5cc] sm:$0xf]
    %v450 = vld [vmem:[#allocation2 + $0x5d0] sm:$0xf]
    %v451 = vld [vmem:[#allocation2 + $0x5d4] sm:$0xf]
    %v452 = vld [vmem:[#allocation2 + $0x5d8] sm:$0xf]
    %v453 = vld [vmem:[#allocation2 + $0x5dc] sm:$0xf]
    %v454 = vld [vmem:[#allocation2 + $0x5e0] sm:$0xf]
    %v455 = vld [vmem:[#allocation2 + $0x5e4] sm:$0xf]
    %v456 = vld [vmem:[#allocation2 + $0x5e8] sm:$0xf]
    %v457 = vld [vmem:[#allocation2 + $0x5ec] sm:$0xf]
    %v458 = vld [vmem:[#allocation2 + $0x5f0] sm:$0xf]
    %v459 = vld [vmem:[#allocation2 + $0x5f4] sm:$0xf]
    %v460 = vld [vmem:[#allocation2 + $0x5f8] sm:$0xf]
    %v461 = vld [vmem:[#allocation2 + $0x5fc] sm:$0xf]
    %v462 = vld [vmem:[#allocation2 + $0x600] sm:$0xf]
    %v463 = vld [vmem:[#allocation2 + $0x604] sm:$0xf]
    %v464 = vld [vmem:[#allocation2 + $0x608] sm:$0xf]
    %v465 = vld [vmem:[#allocation2 + $0x60c] sm:$0xf]
    %v466 = vld [vmem:[#allocation2 + $0x610] sm:$0xf]
    %v467 = vld [vmem:[#allocation2 + $0x614] sm:$0xf]
    %v468 = vld [vmem:[#allocation2 + $0x618] sm:$0xf]
    %v469 = vld [vmem:[#allocation2 + $0x61c] sm:$0xf]
    %v470 = vld [vmem:[#allocation2 + $0x620] sm:$0xf]
    %v471 = vld [vmem:[#allocation2 + $0x624] sm:$0xf]
    %v472 = vld [vmem:[#allocation2 + $0x628] sm:$0xf]
    %v473 = vld [vmem:[#allocation2 + $0x62c] sm:$0xf]
    %v474 = vld [vmem:[#allocation2 + $0x630] sm:$0xf]
    %v475 = vld [vmem:[#allocation2 + $0x634] sm:$0xf]
    %v476 = vld [vmem:[#allocation2 + $0x638] sm:$0xf]
    %v477 = vld [vmem:[#allocation2 + $0x63c] sm:$0xf]
    %v478 = vld [vmem:[#allocation2 + $0x640] sm:$0xf]
    %v479 = vld [vmem:[#allocation2 + $0x644] sm:$0xf]
    %v480 = vld [vmem:[#allocation2 + $0x648] sm:$0xf]
    %v481 = vld [vmem:[#allocation2 + $0x64c] sm:$0xf]
    %v482 = vld [vmem:[#allocation2 + $0x650] sm:$0xf]
    %v483 = vld [vmem:[#allocation2 + $0x654] sm:$0xf]
    %v484 = vld [vmem:[#allocation2 + $0x658] sm:$0xf]
    %v485 = vld [vmem:[#allocation2 + $0x65c] sm:$0xf]
    %v486 = vld [vmem:[#allocation2 + $0x660] sm:$0xf]
    %v487 = vld [vmem:[#allocation2 + $0x664] sm:$0xf]
    %v488 = vld [vmem:[#allocation2 + $0x668] sm:$0xf]
    %v489 = vld [vmem:[#allocation2 + $0x66c] sm:$0xf]
    %v490 = vld [vmem:[#allocation2 + $0x670] sm:$0xf]
    %v491 = vld [vmem:[#allocation2 + $0x674] sm:$0xf]
    %v492 = vld [vmem:[#allocation2 + $0x678] sm:$0xf]
    %v493 = vld [vmem:[#allocation2 + $0x67c] sm:$0xf]
    %v494 = vld [vmem:[#allocation2 + $0x680] sm:$0xf]
    %v495 = vld [vmem:[#allocation2 + $0x684] sm:$0xf]
    %v496 = vld [vmem:[#allocation2 + $0x688] sm:$0xf]
    %v497 = vld [vmem:[#allocation2 + $0x68c] sm:$0xf]
    %v498 = vld [vmem:[#allocation2 + $0x690] sm:$0xf]
    %v499 = vld [vmem:[#allocation2 + $0x694] sm:$0xf]
    %v500 = vld [vmem:[#allocation2 + $0x698] sm:$0xf]
    %v501 = vld [vmem:[#allocation2 + $0x69c] sm:$0xf]
    %v502 = vld [vmem:[#allocation2 + $0x6a0] sm:$0xf]
    %v503 = vld [vmem:[#allocation2 + $0x6a4] sm:$0xf]
    %v504 = vld [vmem:[#allocation2 + $0x6a8] sm:$0xf]
    %v505 = vld [vmem:[#allocation2 + $0x6ac] sm:$0xf]
    %v506 = vld [vmem:[#allocation2 + $0x6b0] sm:$0xf]
    %v507 = vld [vmem:[#allocation2 + $0x6b4] sm:$0xf]
    %v508 = vld [vmem:[#allocation2 + $0x6b8] sm:$0xf]
    %v509 = vld [vmem:[#allocation2 + $0x6bc] sm:$0xf]
    %v510 = vld [vmem:[#allocation2 + $0x6c0] sm:$0xf]
    %v511 = vld [vmem:[#allocation2 + $0x6c4] sm:$0xf]
    %v512 = vld [vmem:[#allocation2 + $0x6c8] sm:$0xf]
    %v513 = vld [vmem:[#allocation2 + $0x6cc] sm:$0xf]
    %v514 = vld [vmem:[#allocation2 + $0x6d0] sm:$0xf]
    %v515 = vld [vmem:[#allocation2 + $0x6d4] sm:$0xf]
    %v516 = vld [vmem:[#allocation2 + $0x6d8] sm:$0xf]
    %v517 = vld [vmem:[#allocation2 + $0x6dc] sm:$0xf]
    %v518 = vld [vmem:[#allocation2 + $0x6e0] sm:$0xf]
    %v519 = vld [vmem:[#allocation2 + $0x6e4] sm:$0xf]
    %v520 = vld [vmem:[#allocation2 + $0x6e8] sm:$0xf]
    %v521 = vld [vmem:[#allocation2 + $0x6ec] sm:$0xf]
    %v522 = vld [vmem:[#allocation2 + $0x6f0] sm:$0xf]
    %v523 = vld [vmem:[#allocation2 + $0x6f4] sm:$0xf]
    %v524 = vld [vmem:[#allocation2 + $0x6f8] sm:$0xf]
    %v525 = vld [vmem:[#allocation2 + $0x6fc] sm:$0xf]
    %v526 = vld [vmem:[#allocation2 + $0x700] sm:$0xf]
    %v527 = vld [vmem:[#allocation2 + $0x704] sm:$0xf]
    %v528 = vld [vmem:[#allocation2 + $0x708] sm:$0xf]
    %v529 = vld [vmem:[#allocation2 + $0x70c] sm:$0xf]
    %v530 = vld [vmem:[#allocation2 + $0x710] sm:$0xf]
    %v531 = vld [vmem:[#allocation2 + $0x714] sm:$0xf]
    %v532 = vld [vmem:[#allocation2 + $0x718] sm:$0xf]
    %v533 = vld [vmem:[#allocation2 + $0x71c] sm:$0xf]
    %v534 = vld [vmem:[#allocation2 + $0x720] sm:$0xf]
    %v535 = vld [vmem:[#allocation2 + $0x724] sm:$0xf]
    %v536 = vld [vmem:[#allocation2 + $0x728] sm:$0xf]
    %v537 = vld [vmem:[#allocation2 + $0x72c] sm:$0xf]
    %v538 = vld [vmem:[#allocation2 + $0x730] sm:$0xf]
    %v539 = vld [vmem:[#allocation2 + $0x734] sm:$0xf]
    %v540 = vld [vmem:[#allocation2 + $0x738] sm:$0xf]
    %v541 = vld [vmem:[#allocation2 + $0x73c] sm:$0xf]
    %v542 = vld [vmem:[#allocation2 + $0x740] sm:$0xf]
    %v543 = vld [vmem:[#allocation2 + $0x744] sm:$0xf]
    %v544 = vld [vmem:[#allocation2 + $0x748] sm:$0xf]
    %v545 = vld [vmem:[#allocation2 + $0x74c] sm:$0xf]
    %v546 = vld [vmem:[#allocation2 + $0x750] sm:$0xf]
    %v547 = vld [vmem:[#allocation2 + $0x754] sm:$0xf]
    %v548 = vld [vmem:[#allocation2 + $0x758] sm:$0xf]
    %v549 = vld [vmem:[#allocation2 + $0x75c] sm:$0xf]
    %v550 = vld [vmem:[#allocation2 + $0x760] sm:$0xf]
    %v551 = vld [vmem:[#allocation2 + $0x764] sm:$0xf]
    %v552 = vld [vmem:[#allocation2 + $0x768] sm:$0xf]
    %v553 = vld [vmem:[#allocation2 + $0x76c] sm:$0xf]
    %v554 = vld [vmem:[#allocation2 + $0x770] sm:$0xf]
    %v555 = vld [vmem:[#allocation2 + $0x774] sm:$0xf]
    %v556 = vld [vmem:[#allocation2 + $0x778] sm:$0xf]
    %v557 = vld [vmem:[#allocation2 + $0x77c] sm:$0xf]
    %v558 = vld [vmem:[#allocation2 + $0x780] sm:$0xf]
    %v559 = vld [vmem:[#allocation2 + $0x784] sm:$0xf]
    %v560 = vld [vmem:[#allocation2 + $0x788] sm:$0xf]
    %v561 = vld [vmem:[#allocation2 + $0x78c] sm:$0xf]
    %v562 = vld [vmem:[#allocation2 + $0x790] sm:$0xf]
    %v563 = vld [vmem:[#allocation2 + $0x794] sm:$0xf]
    %v564 = vld [vmem:[#allocation2 + $0x798] sm:$0xf]
    %v565 = vld [vmem:[#allocation2 + $0x79c] sm:$0xf]
    %v566 = vld [vmem:[#allocation2 + $0x7a0] sm:$0xf]
    %v567 = vld [vmem:[#allocation2 + $0x7a4] sm:$0xf]
    %v568 = vld [vmem:[#allocation2 + $0x7a8] sm:$0xf]
    %v569 = vld [vmem:[#allocation2 + $0x7ac] sm:$0xf]
    %v570 = vld [vmem:[#allocation2 + $0x7b0] sm:$0xf]
    %v571 = vld [vmem:[#allocation2 + $0x7b4] sm:$0xf]
    %v572 = vld [vmem:[#allocation2 + $0x7b8] sm:$0xf]
    %v573 = vld [vmem:[#allocation2 + $0x7bc] sm:$0xf]
    %v574 = vld [vmem:[#allocation2 + $0x7c0] sm:$0xf]
    %v575 = vld [vmem:[#allocation2 + $0x7c4] sm:$0xf]
    %v576 = vld [vmem:[#allocation2 + $0x7c8] sm:$0xf]
    %v577 = vld [vmem:[#allocation2 + $0x7cc] sm:$0xf]
    %v578 = vld [vmem:[#allocation2 + $0x7d0] sm:$0xf]
    %v579 = vld [vmem:[#allocation2 + $0x7d4] sm:$0xf]
    %v580 = vld [vmem:[#allocation2 + $0x7d8] sm:$0xf]
    %v581 = vld [vmem:[#allocation2 + $0x7dc] sm:$0xf]
    %v582 = vld [vmem:[#allocation2 + $0x7e0] sm:$0xf]
    %v583 = vld [vmem:[#allocation2 + $0x7e4] sm:$0xf]
    %v584 = vld [vmem:[#allocation2 + $0x7e8] sm:$0xf]
    %v585 = vld [vmem:[#allocation2 + $0x7ec] sm:$0xf]
    %v586 = vld [vmem:[#allocation2 + $0x7f0] sm:$0xf]
    %v587 = vld [vmem:[#allocation2 + $0x7f4] sm:$0xf]
    %v588 = vld [vmem:[#allocation2 + $0x7f8] sm:$0xf]
    %v589 = vld [vmem:[#allocation2 + $0x7fc] sm:$0xf]
    %v590 = vld [vmem:[#allocation2 + $0x800] sm:$0xf]
    %v591 = vld [vmem:[#allocation2 + $0x804] sm:$0xf]
    %v592 = vld [vmem:[#allocation2 + $0x808] sm:$0xf]
    %v593 = vld [vmem:[#allocation2 + $0x80c] sm:$0xf]
    %v594 = vld [vmem:[#allocation2 + $0x810] sm:$0xf]
    %v595 = vld [vmem:[#allocation2 + $0x814] sm:$0xf]
    %v596 = vld [vmem:[#allocation2 + $0x818] sm:$0xf]
    %v597 = vld [vmem:[#allocation2 + $0x81c] sm:$0xf]
    %v598 = vld [vmem:[#allocation2 + $0x820] sm:$0xf]
    %v599 = vld [vmem:[#allocation2 + $0x824] sm:$0xf]
    %v600 = vld [vmem:[#allocation2 + $0x828] sm:$0xf]
    %v601 = vld [vmem:[#allocation2 + $0x82c] sm:$0xf]
    %v602 = vld [vmem:[#allocation2 + $0x830] sm:$0xf]
    %v603 = vld [vmem:[#allocation2 + $0x834] sm:$0xf]
    %v604 = vld [vmem:[#allocation2 + $0x838] sm:$0xf]
    %v605 = vld [vmem:[#allocation2 + $0x83c] sm:$0xf]
    %v606 = vld [vmem:[#allocation2 + $0x840] sm:$0xf]
    %v607 = vld [vmem:[#allocation2 + $0x844] sm:$0xf]
    %v608 = vld [vmem:[#allocation2 + $0x848] sm:$0xf]
    %v609 = vld [vmem:[#allocation2 + $0x84c] sm:$0xf]
    %v610 = vld [vmem:[#allocation2 + $0x850] sm:$0xf]
    %v611 = vld [vmem:[#allocation2 + $0x854] sm:$0xf]
    %v612 = vld [vmem:[#allocation2 + $0x858] sm:$0xf]
    %v613 = vld [vmem:[#allocation2 + $0x85c] sm:$0xf]
    %v614 = vld [vmem:[#allocation2 + $0x860] sm:$0xf]
    %v615 = vld [vmem:[#allocation2 + $0x864] sm:$0xf]
    %v616 = vld [vmem:[#allocation2 + $0x868] sm:$0xf]
    %v617 = vld [vmem:[#allocation2 + $0x86c] sm:$0xf]
    %v618 = vld [vmem:[#allocation2 + $0x870] sm:$0xf]
    %v619 = vld [vmem:[#allocation2 + $0x874] sm:$0xf]
    %v620 = vld [vmem:[#allocation2 + $0x878] sm:$0xf]
    %v621 = vld [vmem:[#allocation2 + $0x87c] sm:$0xf]
    %v622 = vld [vmem:[#allocation2 + $0x880] sm:$0xf]
    %v623 = vld [vmem:[#allocation2 + $0x884] sm:$0xf]
    %v624 = vld [vmem:[#allocation2 + $0x888] sm:$0xf]
    %v625 = vld [vmem:[#allocation2 + $0x88c] sm:$0xf]
    %v626 = vld [vmem:[#allocation2 + $0x890] sm:$0xf]
    %v627 = vld [vmem:[#allocation2 + $0x894] sm:$0xf]
    %v628 = vld [vmem:[#allocation2 + $0x898] sm:$0xf]
    %v629 = vld [vmem:[#allocation2 + $0x89c] sm:$0xf]
    %v630 = vld [vmem:[#allocation2 + $0x8a0] sm:$0xf]
    %v631 = vld [vmem:[#allocation2 + $0x8a4] sm:$0xf]
    %v632 = vld [vmem:[#allocation2 + $0x8a8] sm:$0xf]
    %v633 = vld [vmem:[#allocation2 + $0x8ac] sm:$0xf]
    %v634 = vld [vmem:[#allocation2 + $0x8b0] sm:$0xf]
    %v635 = vld [vmem:[#allocation2 + $0x8b4] sm:$0xf]
    %v636 = vld [vmem:[#allocation2 + $0x8b8] sm:$0xf]
    %v637 = vld [vmem:[#allocation2 + $0x8bc] sm:$0xf]
    %v638 = vld [vmem:[#allocation2 + $0x8c0] sm:$0xf]
    %v639 = vld [vmem:[#allocation2 + $0x8c4] sm:$0xf]
    %v640 = vld [vmem:[#allocation2 + $0x8c8] sm:$0xf]
    %v641 = vld [vmem:[#allocation2 + $0x8cc] sm:$0xf]
    %v642 = vld [vmem:[#allocation2 + $0x8d0] sm:$0xf]
    %v643 = vld [vmem:[#allocation2 + $0x8d4] sm:$0xf]
    %v644 = vld [vmem:[#allocation2 + $0x8d8] sm:$0xf]
    %v645 = vld [vmem:[#allocation2 + $0x8dc] sm:$0xf]
    %v646 = vld [vmem:[#allocation2 + $0x8e0] sm:$0xf]
    %v647 = vld [vmem:[#allocation2 + $0x8e4] sm:$0xf]
    %v648 = vld [vmem:[#allocation2 + $0x8e8] sm:$0xf]
    %v649 = vld [vmem:[#allocation2 + $0x8ec] sm:$0xf]
    %v650 = vld [vmem:[#allocation2 + $0x8f0] sm:$0xf]
    %v651 = vld [vmem:[#allocation2 + $0x8f4] sm:$0xf]
    %v652 = vld [vmem:[#allocation2 + $0x8f8] sm:$0xf]
    %v653 = vld [vmem:[#allocation2 + $0x8fc] sm:$0xf]
    %v654 = vld [vmem:[#allocation2 + $0x900] sm:$0xf]
    %v655 = vld [vmem:[#allocation2 + $0x904] sm:$0xf]
    %v656 = vld [vmem:[#allocation2 + $0x908] sm:$0xf]
    %v657 = vld [vmem:[#allocation2 + $0x90c] sm:$0xf]
    %v658 = vld [vmem:[#allocation2 + $0x910] sm:$0xf]
    %v659 = vld [vmem:[#allocation2 + $0x914] sm:$0xf]
    %v660 = vld [vmem:[#allocation2 + $0x918] sm:$0xf]
    %v661 = vld [vmem:[#allocation2 + $0x91c] sm:$0xf]
    %v662 = vld [vmem:[#allocation2 + $0x920] sm:$0xf]
    %v663 = vld [vmem:[#allocation2 + $0x924] sm:$0xf]
    %v664 = vld [vmem:[#allocation2 + $0x928] sm:$0xf]
    %v665 = vld [vmem:[#allocation2 + $0x92c] sm:$0xf]
    %v666 = vld [vmem:[#allocation2 + $0x930] sm:$0xf]
    %v667 = vld [vmem:[#allocation2 + $0x934] sm:$0xf]
    %v668 = vld [vmem:[#allocation2 + $0x938] sm:$0xf]
    %v669 = vld [vmem:[#allocation2 + $0x93c] sm:$0xf]
    %v670 = vld [vmem:[#allocation2 + $0x940] sm:$0xf]
    %v671 = vld [vmem:[#allocation2 + $0x944] sm:$0xf]
    %v672 = vld [vmem:[#allocation2 + $0x948] sm:$0xf]
    %v673 = vld [vmem:[#allocation2 + $0x94c] sm:$0xf]
    %v674 = vld [vmem:[#allocation2 + $0x950] sm:$0xf]
    %v675 = vld [vmem:[#allocation2 + $0x954] sm:$0xf]
    %v676 = vld [vmem:[#allocation2 + $0x958] sm:$0xf]
    %v677 = vld [vmem:[#allocation2 + $0x95c] sm:$0xf]
    %v678 = vld [vmem:[#allocation2 + $0x960] sm:$0xf]
    %v679 = vld [vmem:[#allocation2 + $0x964] sm:$0xf]
    %v680 = vld [vmem:[#allocation2 + $0x968] sm:$0xf]
    %v681 = vld [vmem:[#allocation2 + $0x96c] sm:$0xf]
    %v682 = vld [vmem:[#allocation2 + $0x970] sm:$0xf]
    %v683 = vld [vmem:[#allocation2 + $0x974] sm:$0xf]
    %v684 = vld [vmem:[#allocation2 + $0x978] sm:$0xf]
    %v685 = vld [vmem:[#allocation2 + $0x97c] sm:$0xf]
    %v686 = vld [vmem:[#allocation2 + $0x980] sm:$0xf]
    %v687 = vld [vmem:[#allocation2 + $0x984] sm:$0xf]
    %v688 = vld [vmem:[#allocation2 + $0x988] sm:$0xf]
    %v689 = vld [vmem:[#allocation2 + $0x98c] sm:$0xf]
    %v690 = vld [vmem:[#allocation2 + $0x990] sm:$0xf]
    %v691 = vld [vmem:[#allocation2 + $0x994] sm:$0xf]
    %v692 = vld [vmem:[#allocation2 + $0x998] sm:$0xf]
    %v693 = vld [vmem:[#allocation2 + $0x99c] sm:$0xf]
    %v694 = vld [vmem:[#allocation2 + $0x9a0] sm:$0xf]
    %v695 = vld [vmem:[#allocation2 + $0x9a4] sm:$0xf]
    %v696 = vld [vmem:[#allocation2 + $0x9a8] sm:$0xf]
    %v697 = vld [vmem:[#allocation2 + $0x9ac] sm:$0xf]
    %v698 = vld [vmem:[#allocation2 + $0x9b0] sm:$0xf]
    %v699 = vld [vmem:[#allocation2 + $0x9b4] sm:$0xf]
    %v700 = vld [vmem:[#allocation2 + $0x9b8] sm:$0xf]
    %v701 = vld [vmem:[#allocation2 + $0x9bc] sm:$0xf]
    %v702 = vld [vmem:[#allocation2 + $0x9c0] sm:$0xf]
    %v703 = vld [vmem:[#allocation2 + $0x9c4] sm:$0xf]
    %v704 = vld [vmem:[#allocation2 + $0x9c8] sm:$0xf]
    %v705 = vld [vmem:[#allocation2 + $0x9cc] sm:$0xf]
    %v706 = vld [vmem:[#allocation2 + $0x9d0] sm:$0xf]
    %v707 = vld [vmem:[#allocation2 + $0x9d4] sm:$0xf]
    %v708 = vld [vmem:[#allocation2 + $0x9d8] sm:$0xf]
    %v709 = vld [vmem:[#allocation2 + $0x9dc] sm:$0xf]
    %v710 = vld [vmem:[#allocation2 + $0x9e0] sm:$0xf]
    %v711 = vld [vmem:[#allocation2 + $0x9e4] sm:$0xf]
    %v712 = vld [vmem:[#allocation2 + $0x9e8] sm:$0xf]
    %v713 = vld [vmem:[#allocation2 + $0x9ec] sm:$0xf]
    %v714 = vld [vmem:[#allocation2 + $0x9f0] sm:$0xf]
    %v715 = vld [vmem:[#allocation2 + $0x9f4] sm:$0xf]
    %v716 = vld [vmem:[#allocation2 + $0x9f8] sm:$0xf]
    %v717 = vld [vmem:[#allocation2 + $0x9fc] sm:$0xf]
    %v718 = vld [vmem:[#allocation2 + $0xa00] sm:$0xf]
    %v719 = vld [vmem:[#allocation2 + $0xa04] sm:$0xf]
    %v720 = vld [vmem:[#allocation2 + $0xa08] sm:$0xf]
    %v721 = vld [vmem:[#allocation2 + $0xa0c] sm:$0xf]
    %v722 = vld [vmem:[#allocation2 + $0xa10] sm:$0xf]
    %v723 = vld [vmem:[#allocation2 + $0xa14] sm:$0xf]
    %v724 = vld [vmem:[#allocation2 + $0xa18] sm:$0xf]
    %v725 = vld [vmem:[#allocation2 + $0xa1c] sm:$0xf]
    %v726 = vld [vmem:[#allocation2 + $0xa20] sm:$0xf]
    %v727 = vld [vmem:[#allocation2 + $0xa24] sm:$0xf]
    %v728 = vld [vmem:[#allocation2 + $0xa28] sm:$0xf]
    %v729 = vld [vmem:[#allocation2 + $0xa2c] sm:$0xf]
    %v730 = vld [vmem:[#allocation2 + $0xa30] sm:$0xf]
    %v731 = vld [vmem:[#allocation2 + $0xa34] sm:$0xf]
    %v732 = vld [vmem:[#allocation2 + $0xa38] sm:$0xf]
    %v733 = vld [vmem:[#allocation2 + $0xa3c] sm:$0xf]
    %v734 = vld [vmem:[#allocation2 + $0xa40] sm:$0xf]
    %v735 = vld [vmem:[#allocation2 + $0xa44] sm:$0xf]
    %v736 = vld [vmem:[#allocation2 + $0xa48] sm:$0xf]
    %v737 = vld [vmem:[#allocation2 + $0xa4c] sm:$0xf]
    %v738 = vld [vmem:[#allocation2 + $0xa50] sm:$0xf]
    %v739 = vld [vmem:[#allocation2 + $0xa54] sm:$0xf]
    %v740 = vld [vmem:[#allocation2 + $0xa58] sm:$0xf]
    %v741 = vld [vmem:[#allocation2 + $0xa5c] sm:$0xf]
    %v742 = vld [vmem:[#allocation2 + $0xa60] sm:$0xf]
    %v743 = vld [vmem:[#allocation2 + $0xa64] sm:$0xf]
    %v744 = vld [vmem:[#allocation2 + $0xa68] sm:$0xf]
    %v745 = vld [vmem:[#allocation2 + $0xa6c] sm:$0xf]
    %v746 = vld [vmem:[#allocation2 + $0xa70] sm:$0xf]
    %v747 = vld [vmem:[#allocation2 + $0xa74] sm:$0xf]
    %v748 = vld [vmem:[#allocation2 + $0xa78] sm:$0xf]
    %v749 = vld [vmem:[#allocation2 + $0xa7c] sm:$0xf]
    %v750 = vld [vmem:[#allocation2 + $0xa80] sm:$0xf]
    %v751 = vld [vmem:[#allocation2 + $0xa84] sm:$0xf]
    %v752 = vld [vmem:[#allocation2 + $0xa88] sm:$0xf]
    %v753 = vld [vmem:[#allocation2 + $0xa8c] sm:$0xf]
    %v754 = vld [vmem:[#allocation2 + $0xa90] sm:$0xf]
    %v755 = vld [vmem:[#allocation2 + $0xa94] sm:$0xf]
    %v756 = vld [vmem:[#allocation2 + $0xa98] sm:$0xf]
    %v757 = vld [vmem:[#allocation2 + $0xa9c] sm:$0xf]
    %v758 = vld [vmem:[#allocation2 + $0xaa0] sm:$0xf]
    %v759 = vld [vmem:[#allocation2 + $0xaa4] sm:$0xf]
    %v760 = vld [vmem:[#allocation2 + $0xaa8] sm:$0xf]
    %v761 = vld [vmem:[#allocation2 + $0xaac] sm:$0xf]
    %v762 = vld [vmem:[#allocation2 + $0xab0] sm:$0xf]
    %v763 = vld [vmem:[#allocation2 + $0xab4] sm:$0xf]
    %v764 = vld [vmem:[#allocation2 + $0xab8] sm:$0xf]
    %v765 = vld [vmem:[#allocation2 + $0xabc] sm:$0xf]
    %v766 = vld [vmem:[#allocation2 + $0xac0] sm:$0xf]
    %v767 = vld [vmem:[#allocation2 + $0xac4] sm:$0xf]
    %v768 = vld [vmem:[#allocation2 + $0xac8] sm:$0xf]
    %v769 = vld [vmem:[#allocation2 + $0xacc] sm:$0xf]
    %v770 = vld [vmem:[#allocation2 + $0xad0] sm:$0xf]
    %v771 = vld [vmem:[#allocation2 + $0xad4] sm:$0xf]
    %v772 = vld [vmem:[#allocation2 + $0xad8] sm:$0xf]
    %v773 = vld [vmem:[#allocation2 + $0xadc] sm:$0xf]
    %v774 = vld [vmem:[#allocation2 + $0xae0] sm:$0xf]
    %v775 = vld [vmem:[#allocation2 + $0xae4] sm:$0xf]
    %v776 = vld [vmem:[#allocation2 + $0xae8] sm:$0xf]
    %v777 = vld [vmem:[#allocation2 + $0xaec] sm:$0xf]
    %v778 = vld [vmem:[#allocation2 + $0xaf0] sm:$0xf]
    %v779 = vld [vmem:[#allocation2 + $0xaf4] sm:$0xf]
    %v780 = vld [vmem:[#allocation2 + $0xaf8] sm:$0xf]
    %v781 = vld [vmem:[#allocation2 + $0xafc] sm:$0xf]
    %v782 = vld [vmem:[#allocation2 + $0xb00] sm:$0xf]
    %v783 = vld [vmem:[#allocation2 + $0xb04] sm:$0xf]
    %v784 = vld [vmem:[#allocation2 + $0xb08] sm:$0xf]
    %v785 = vld [vmem:[#allocation2 + $0xb0c] sm:$0xf]
    %v786 = vld [vmem:[#allocation2 + $0xb10] sm:$0xf]
    %v787 = vld [vmem:[#allocation2 + $0xb14] sm:$0xf]
    %v788 = vld [vmem:[#allocation2 + $0xb18] sm:$0xf]
    %v789 = vld [vmem:[#allocation2 + $0xb1c] sm:$0xf]
    %v790 = vld [vmem:[#allocation2 + $0xb20] sm:$0xf]
    %v791 = vld [vmem:[#allocation2 + $0xb24] sm:$0xf]
    %v792 = vld [vmem:[#allocation2 + $0xb28] sm:$0xf]
    %v793 = vld [vmem:[#allocation2 + $0xb2c] sm:$0xf]
    %v794 = vld [vmem:[#allocation2 + $0xb30] sm:$0xf]
    %v795 = vld [vmem:[#allocation2 + $0xb34] sm:$0xf]
    %v796 = vld [vmem:[#allocation2 + $0xb38] sm:$0xf]
    %v797 = vld [vmem:[#allocation2 + $0xb3c] sm:$0xf]
    %v798 = vld [vmem:[#allocation2 + $0xb40] sm:$0xf]
    %v799 = vld [vmem:[#allocation2 + $0xb44] sm:$0xf]
    %v800 = vld [vmem:[#allocation2 + $0xb48] sm:$0xf]
    %v801 = vld [vmem:[#allocation2 + $0xb4c] sm:$0xf]
    %v802 = vld [vmem:[#allocation2 + $0xb50] sm:$0xf]
    %v803 = vld [vmem:[#allocation2 + $0xb54] sm:$0xf]
    %v804 = vld [vmem:[#allocation2 + $0xb58] sm:$0xf]
    %v805 = vld [vmem:[#allocation2 + $0xb5c] sm:$0xf]
    %v806 = vld [vmem:[#allocation2 + $0xb60] sm:$0xf]
    %v807 = vld [vmem:[#allocation2 + $0xb64] sm:$0xf]
    %v808 = vld [vmem:[#allocation2 + $0xb68] sm:$0xf]
    %v809 = vld [vmem:[#allocation2 + $0xb6c] sm:$0xf]
    %v810 = vld [vmem:[#allocation2 + $0xb70] sm:$0xf]
    %v811 = vld [vmem:[#allocation2 + $0xb74] sm:$0xf]
    %v812 = vld [vmem:[#allocation2 + $0xb78] sm:$0xf]
    %v813 = vld [vmem:[#allocation2 + $0xb7c] sm:$0xf]
    %v814 = vld [vmem:[#allocation2 + $0xb80] sm:$0xf]
    %v815 = vld [vmem:[#allocation2 + $0xb84] sm:$0xf]
    %v816 = vld [vmem:[#allocation2 + $0xb88] sm:$0xf]
    %v817 = vld [vmem:[#allocation2 + $0xb8c] sm:$0xf]
    %v818 = vld [vmem:[#allocation2 + $0xb90] sm:$0xf]
    %v819 = vld [vmem:[#allocation2 + $0xb94] sm:$0xf]
    %v820 = vld [vmem:[#allocation2 + $0xb98] sm:$0xf]
    %v821 = vld [vmem:[#allocation2 + $0xb9c] sm:$0xf]
    %v822 = vld [vmem:[#allocation2 + $0xba0] sm:$0xf]
    %v823 = vld [vmem:[#allocation2 + $0xba4] sm:$0xf]
    %v824 = vld [vmem:[#allocation2 + $0xba8] sm:$0xf]
    %v825 = vld [vmem:[#allocation2 + $0xbac] sm:$0xf]
    %v826 = vld [vmem:[#allocation2 + $0xbb0] sm:$0xf]
    %v827 = vld [vmem:[#allocation2 + $0xbb4] sm:$0xf]
    %v828 = vld [vmem:[#allocation2 + $0xbb8] sm:$0xf]
    %v829 = vld [vmem:[#allocation2 + $0xbbc] sm:$0xf]
    %v830 = vld [vmem:[#allocation2 + $0xbc0] sm:$0xf]
    %v831 = vld [vmem:[#allocation2 + $0xbc4] sm:$0xf]
    %v832 = vld [vmem:[#allocation2 + $0xbc8] sm:$0xf]
    %v833 = vld [vmem:[#allocation2 + $0xbcc] sm:$0xf]
    %v834 = vld [vmem:[#allocation2 + $0xbd0] sm:$0xf]
    %v835 = vld [vmem:[#allocation2 + $0xbd4] sm:$0xf]
    %v836 = vld [vmem:[#allocation2 + $0xbd8] sm:$0xf]
    %v837 = vld [vmem:[#allocation2 + $0xbdc] sm:$0xf]
    %v838 = vld [vmem:[#allocation2 + $0xbe0] sm:$0xf]
    %v839 = vld [vmem:[#allocation2 + $0xbe4] sm:$0xf]
    %v840 = vld [vmem:[#allocation2 + $0xbe8] sm:$0xf]
    %v841 = vld [vmem:[#allocation2 + $0xbec] sm:$0xf]
    %v842 = vld [vmem:[#allocation2 + $0xbf0] sm:$0xf]
    %v843 = vld [vmem:[#allocation2 + $0xbf4] sm:$0xf]
    %v844 = vld [vmem:[#allocation2 + $0xbf8] sm:$0xf]
    %v845 = vld [vmem:[#allocation2 + $0xbfc] sm:$0xf]
    %v846 = vld [vmem:[#allocation4] sm:$0x1]
    %v848 = vlaneseq
    %v849 = vshrl.u32 %v848, 7
    %v850 = vsub.s32 0, %v849
    %v851 = vrot.slane %v846, %v850
    %v859 = vcombine.high %v72, %v72
    %v861 = vunpack.c.l.s4 1966171168
    %v862 = vunpack.c.0.s8 %v861
    %v863 = vlaneseq
    %v864 = vshrl.u32 %v863, 7
    %v865 = vsub.s32 %v862, %v864
    %v866 = vrot.slane %v72, %v865
    %v868 = vunpack.c.l.s4 1966171168
    %v869 = vunpack.c.0.s8 %v868
    %v870 = vlaneseq
    %v871 = vshrl.u32 %v870, 7
    %v872 = vsub.s32 %v869, %v871
    %v873 = vrot.slane %v859, %v872
    %v874 = vcombine.high %v866, %v866
    %v875 = vcombine.high %v873, %v873
    %v877 = vunpack.c.l.s4 1966171168
    %v878 = vunpack.c.0.s8 %v877
    %v879 = vlaneseq
    %v880 = vshrl.u32 %v879, 7
    %v881 = vsub.s32 %v878, %v880
    %v882 = vrot.slane %v866, %v881
    %v884 = vunpack.c.l.s4 1966171168
    %v885 = vunpack.c.0.s8 %v884
    %v886 = vlaneseq
    %v887 = vshrl.u32 %v886, 7
    %v888 = vsub.s32 %v885, %v887
    %v889 = vrot.slane %v873, %v888
    %v891 = vunpack.c.l.s4 1966171168
    %v892 = vunpack.c.0.s8 %v891
    %v893 = vlaneseq
    %v894 = vshrl.u32 %v893, 7
    %v895 = vsub.s32 %v892, %v894
    %v896 = vrot.slane %v874, %v895
    %v898 = vunpack.c.l.s4 1966171168
    %v899 = vunpack.c.0.s8 %v898
    %v900 = vlaneseq
    %v901 = vshrl.u32 %v900, 7
    %v902 = vsub.s32 %v899, %v901
    %v903 = vrot.slane %v875, %v902
    %v904 = vcombine.high %v882, %v882
    %v905 = vcombine.high %v889, %v889
    %v906 = vcombine.high %v896, %v896
    %v907 = vcombine.high %v903, %v903
    %v908 = vcombine.high %v73, %v73
    %v910 = vunpack.c.l.s4 1966171168
    %v911 = vunpack.c.0.s8 %v910
    %v912 = vlaneseq
    %v913 = vshrl.u32 %v912, 7
    %v914 = vsub.s32 %v911, %v913
    %v915 = vrot.slane %v73, %v914
    %v917 = vunpack.c.l.s4 1966171168
    %v918 = vunpack.c.0.s8 %v917
    %v919 = vlaneseq
    %v920 = vshrl.u32 %v919, 7
    %v921 = vsub.s32 %v918, %v920
    %v922 = vrot.slane %v908, %v921
    %v923 = vcombine.high %v915, %v915
    %v924 = vcombine.high %v922, %v922
    %v926 = vunpack.c.l.s4 1966171168
    %v927 = vunpack.c.0.s8 %v926
    %v928 = vlaneseq
    %v929 = vshrl.u32 %v928, 7
    %v930 = vsub.s32 %v927, %v929
    %v931 = vrot.slane %v915, %v930
    %v933 = vunpack.c.l.s4 1966171168
    %v934 = vunpack.c.0.s8 %v933
    %v935 = vlaneseq
    %v936 = vshrl.u32 %v935, 7
    %v937 = vsub.s32 %v934, %v936
    %v938 = vrot.slane %v922, %v937
    %v940 = vunpack.c.l.s4 1966171168
    %v941 = vunpack.c.0.s8 %v940
    %v942 = vlaneseq
    %v943 = vshrl.u32 %v942, 7
    %v944 = vsub.s32 %v941, %v943
    %v945 = vrot.slane %v923, %v944
    %v947 = vunpack.c.l.s4 1966171168
    %v948 = vunpack.c.0.s8 %v947
    %v949 = vlaneseq
    %v950 = vshrl.u32 %v949, 7
    %v951 = vsub.s32 %v948, %v950
    %v952 = vrot.slane %v924, %v951
    %v953 = vcombine.high %v931, %v931
    %v954 = vcombine.high %v938, %v938
    %v955 = vcombine.high %v945, %v945
    %v956 = vcombine.high %v952, %v952
    %v957 = vcombine.high %v74, %v74
    %v959 = vunpack.c.l.s4 1966171168
    %v960 = vunpack.c.0.s8 %v959
    %v961 = vlaneseq
    %v962 = vshrl.u32 %v961, 7
    %v963 = vsub.s32 %v960, %v962
    %v964 = vrot.slane %v74, %v963
    %v966 = vunpack.c.l.s4 1966171168
    %v967 = vunpack.c.0.s8 %v966
    %v968 = vlaneseq
    %v969 = vshrl.u32 %v968, 7
    %v970 = vsub.s32 %v967, %v969
    %v971 = vrot.slane %v957, %v970
    %v972 = vcombine.high %v964, %v964
    %v973 = vcombine.high %v971, %v971
    %v975 = vunpack.c.l.s4 1966171168
    %v976 = vunpack.c.0.s8 %v975
    %v977 = vlaneseq
    %v978 = vshrl.u32 %v977, 7
    %v979 = vsub.s32 %v976, %v978
    %v980 = vrot.slane %v964, %v979
    %v982 = vunpack.c.l.s4 1966171168
    %v983 = vunpack.c.0.s8 %v982
    %v984 = vlaneseq
    %v985 = vshrl.u32 %v984, 7
    %v986 = vsub.s32 %v983, %v985
    %v987 = vrot.slane %v971, %v986
    %v989 = vunpack.c.l.s4 1966171168
    %v990 = vunpack.c.0.s8 %v989
    %v991 = vlaneseq
    %v992 = vshrl.u32 %v991, 7
    %v993 = vsub.s32 %v990, %v992
    %v994 = vrot.slane %v972, %v993
    %v996 = vunpack.c.l.s4 1966171168
    %v997 = vunpack.c.0.s8 %v996
    %v998 = vlaneseq
    %v999 = vshrl.u32 %v998, 7
    %v1000 = vsub.s32 %v997, %v999
    %v1001 = vrot.slane %v973, %v1000
    %v1002 = vcombine.high %v980, %v980
    %v1003 = vcombine.high %v987, %v987
    %v1004 = vcombine.high %v994, %v994
    %v1005 = vcombine.high %v1001, %v1001
    %v1006 = vcombine.high %v75, %v75
    %v1008 = vunpack.c.l.s4 1966171168
    %v1009 = vunpack.c.0.s8 %v1008
    %v1010 = vlaneseq
    %v1011 = vshrl.u32 %v1010, 7
    %v1012 = vsub.s32 %v1009, %v1011
    %v1013 = vrot.slane %v75, %v1012
    %v1015 = vunpack.c.l.s4 1966171168
    %v1016 = vunpack.c.0.s8 %v1015
    %v1017 = vlaneseq
    %v1018 = vshrl.u32 %v1017, 7
    %v1019 = vsub.s32 %v1016, %v1018
    %v1020 = vrot.slane %v1006, %v1019
    %v1021 = vcombine.high %v1013, %v1013
    %v1022 = vcombine.high %v1020, %v1020
    %v1024 = vunpack.c.l.s4 1966171168
    %v1025 = vunpack.c.0.s8 %v1024
    %v1026 = vlaneseq
    %v1027 = vshrl.u32 %v1026, 7
    %v1028 = vsub.s32 %v1025, %v1027
    %v1029 = vrot.slane %v1013, %v1028
    %v1031 = vunpack.c.l.s4 1966171168
    %v1032 = vunpack.c.0.s8 %v1031
    %v1033 = vlaneseq
    %v1034 = vshrl.u32 %v1033, 7
    %v1035 = vsub.s32 %v1032, %v1034
    %v1036 = vrot.slane %v1020, %v1035
    %v1038 = vunpack.c.l.s4 1966171168
    %v1039 = vunpack.c.0.s8 %v1038
    %v1040 = vlaneseq
    %v1041 = vshrl.u32 %v1040, 7
    %v1042 = vsub.s32 %v1039, %v1041
    %v1043 = vrot.slane %v1021, %v1042
    %v1045 = vunpack.c.l.s4 1966171168
    %v1046 = vunpack.c.0.s8 %v1045
    %v1047 = vlaneseq
    %v1048 = vshrl.u32 %v1047, 7
    %v1049 = vsub.s32 %v1046, %v1048
    %v1050 = vrot.slane %v1022, %v1049
    %v1051 = vcombine.high %v1029, %v1029
    %v1052 = vcombine.high %v1036, %v1036
    %v1053 = vcombine.high %v1043, %v1043
    %v1054 = vcombine.high %v1050, %v1050
    %v1055 = vcombine.high %v76, %v76
    %v1057 = vunpack.c.l.s4 1966171168
    %v1058 = vunpack.c.0.s8 %v1057
    %v1059 = vlaneseq
    %v1060 = vshrl.u32 %v1059, 7
    %v1061 = vsub.s32 %v1058, %v1060
    %v1062 = vrot.slane %v76, %v1061
    %v1064 = vunpack.c.l.s4 1966171168
    %v1065 = vunpack.c.0.s8 %v1064
    %v1066 = vlaneseq
    %v1067 = vshrl.u32 %v1066, 7
    %v1068 = vsub.s32 %v1065, %v1067
    %v1069 = vrot.slane %v1055, %v1068
    %v1070 = vcombine.high %v1062, %v1062
    %v1071 = vcombine.high %v1069, %v1069
    %v1073 = vunpack.c.l.s4 1966171168
    %v1074 = vunpack.c.0.s8 %v1073
    %v1075 = vlaneseq
    %v1076 = vshrl.u32 %v1075, 7
    %v1077 = vsub.s32 %v1074, %v1076
    %v1078 = vrot.slane %v1062, %v1077
    %v1080 = vunpack.c.l.s4 1966171168
    %v1081 = vunpack.c.0.s8 %v1080
    %v1082 = vlaneseq
    %v1083 = vshrl.u32 %v1082, 7
    %v1084 = vsub.s32 %v1081, %v1083
    %v1085 = vrot.slane %v1069, %v1084
    %v1087 = vunpack.c.l.s4 1966171168
    %v1088 = vunpack.c.0.s8 %v1087
    %v1089 = vlaneseq
    %v1090 = vshrl.u32 %v1089, 7
    %v1091 = vsub.s32 %v1088, %v1090
    %v1092 = vrot.slane %v1070, %v1091
    %v1094 = vunpack.c.l.s4 1966171168
    %v1095 = vunpack.c.0.s8 %v1094
    %v1096 = vlaneseq
    %v1097 = vshrl.u32 %v1096, 7
    %v1098 = vsub.s32 %v1095, %v1097
    %v1099 = vrot.slane %v1071, %v1098
    %v1100 = vcombine.high %v1078, %v1078
    %v1101 = vcombine.high %v1085, %v1085
    %v1102 = vcombine.high %v1092, %v1092
    %v1103 = vcombine.high %v1099, %v1099
    %v1104 = vcombine.high %v77, %v77
    %v1106 = vunpack.c.l.s4 1966171168
    %v1107 = vunpack.c.0.s8 %v1106
    %v1108 = vlaneseq
    %v1109 = vshrl.u32 %v1108, 7
    %v1110 = vsub.s32 %v1107, %v1109
    %v1111 = vrot.slane %v77, %v1110
    %v1113 = vunpack.c.l.s4 1966171168
    %v1114 = vunpack.c.0.s8 %v1113
    %v1115 = vlaneseq
    %v1116 = vshrl.u32 %v1115, 7
    %v1117 = vsub.s32 %v1114, %v1116
    %v1118 = vrot.slane %v1104, %v1117
    %v1119 = vcombine.high %v1111, %v1111
    %v1120 = vcombine.high %v1118, %v1118
    %v1122 = vunpack.c.l.s4 1966171168
    %v1123 = vunpack.c.0.s8 %v1122
    %v1124 = vlaneseq
    %v1125 = vshrl.u32 %v1124, 7
    %v1126 = vsub.s32 %v1123, %v1125
    %v1127 = vrot.slane %v1111, %v1126
    %v1129 = vunpack.c.l.s4 1966171168
    %v1130 = vunpack.c.0.s8 %v1129
    %v1131 = vlaneseq
    %v1132 = vshrl.u32 %v1131, 7
    %v1133 = vsub.s32 %v1130, %v1132
    %v1134 = vrot.slane %v1118, %v1133
    %v1136 = vunpack.c.l.s4 1966171168
    %v1137 = vunpack.c.0.s8 %v1136
    %v1138 = vlaneseq
    %v1139 = vshrl.u32 %v1138, 7
    %v1140 = vsub.s32 %v1137, %v1139
    %v1141 = vrot.slane %v1119, %v1140
    %v1143 = vunpack.c.l.s4 1966171168
    %v1144 = vunpack.c.0.s8 %v1143
    %v1145 = vlaneseq
    %v1146 = vshrl.u32 %v1145, 7
    %v1147 = vsub.s32 %v1144, %v1146
    %v1148 = vrot.slane %v1120, %v1147
    %v1149 = vcombine.high %v1127, %v1127
    %v1150 = vcombine.high %v1134, %v1134
    %v1151 = vcombine.high %v1141, %v1141
    %v1152 = vcombine.high %v1148, %v1148
    %v1969 = vunpack.c.l.b16 %v78
    %v1970 = vunpack.c.l.b16 %v79
    %v1971 = vunpack.c.l.b16 %v80
    %v1972 = vunpack.c.l.b16 %v81
    %v1973 = vunpack.c.l.b16 %v82
    %v1974 = vunpack.c.l.b16 %v83
    %v1975 = vunpack.c.l.b16 %v84
    %v1976 = vunpack.c.l.b16 %v85
    %v1977 = vunpack.c.l.b16 %v86
    %v1978 = vunpack.c.l.b16 %v87
    %v1979 = vunpack.c.l.b16 %v88
    %v1980 = vunpack.c.l.b16 %v89
    %v1981 = vunpack.c.l.b16 %v90
    %v1982 = vunpack.c.l.b16 %v91
    %v1983 = vunpack.c.l.b16 %v92
    %v1984 = vunpack.c.l.b16 %v93
    %v1985 = vunpack.c.l.b16 %v94
    %v1986 = vunpack.c.l.b16 %v95
    %v1987 = vunpack.c.l.b16 %v96
    %v1988 = vunpack.c.l.b16 %v97
    %v1989 = vunpack.c.l.b16 %v98
    %v1990 = vunpack.c.l.b16 %v99
    %v1991 = vunpack.c.l.b16 %v100
    %v1992 = vunpack.c.l.b16 %v101
    %v1993 = vunpack.c.l.b16 %v102
    %v1994 = vunpack.c.l.b16 %v103
    %v1995 = vunpack.c.l.b16 %v104
    %v1996 = vunpack.c.l.b16 %v105
    %v1997 = vunpack.c.l.b16 %v106
    %v1998 = vunpack.c.l.b16 %v107
    %v1999 = vunpack.c.l.b16 %v108
    %v2000 = vunpack.c.l.b16 %v109
    %v2001 = vunpack.c.l.b16 %v110
    %v2002 = vunpack.c.l.b16 %v111
    %v2003 = vunpack.c.l.b16 %v112
    %v2004 = vunpack.c.l.b16 %v113
    %v2005 = vunpack.c.l.b16 %v114
    %v2006 = vunpack.c.l.b16 %v115
    %v2007 = vunpack.c.l.b16 %v116
    %v2008 = vunpack.c.l.b16 %v117
    %v2009 = vunpack.c.l.b16 %v118
    %v2010 = vunpack.c.l.b16 %v119
    %v2011 = vunpack.c.l.b16 %v120
    %v2012 = vunpack.c.l.b16 %v121
    %v2013 = vunpack.c.l.b16 %v122
    %v2014 = vunpack.c.l.b16 %v123
    %v2015 = vunpack.c.l.b16 %v124
    %v2016 = vunpack.c.l.b16 %v125
    %v2017 = vunpack.c.l.b16 %v126
    %v2018 = vunpack.c.l.b16 %v127
    %v2019 = vunpack.c.l.b16 %v128
    %v2020 = vunpack.c.l.b16 %v129
    %v2021 = vunpack.c.l.b16 %v130
    %v2022 = vunpack.c.l.b16 %v131
    %v2023 = vunpack.c.l.b16 %v132
    %v2024 = vunpack.c.l.b16 %v133
    %v2025 = vunpack.c.l.b16 %v134
    %v2026 = vunpack.c.l.b16 %v135
    %v2027 = vunpack.c.l.b16 %v136
    %v2028 = vunpack.c.l.b16 %v137
    %v2029 = vunpack.c.l.b16 %v138
    %v2030 = vunpack.c.l.b16 %v139
    %v2031 = vunpack.c.l.b16 %v140
    %v2032 = vunpack.c.l.b16 %v141
    %v2033 = vunpack.c.l.b16 %v142
    %v2034 = vunpack.c.l.b16 %v143
    %v2035 = vunpack.c.l.b16 %v144
    %v2036 = vunpack.c.l.b16 %v145
    %v2037 = vunpack.c.l.b16 %v146
    %v2038 = vunpack.c.l.b16 %v147
    %v2039 = vunpack.c.l.b16 %v148
    %v2040 = vunpack.c.l.b16 %v149
    %v2041 = vunpack.c.l.b16 %v150
    %v2042 = vunpack.c.l.b16 %v151
    %v2043 = vunpack.c.l.b16 %v152
    %v2044 = vunpack.c.l.b16 %v153
    %v2045 = vunpack.c.l.b16 %v154
    %v2046 = vunpack.c.l.b16 %v155
    %v2047 = vunpack.c.l.b16 %v156
    %v2048 = vunpack.c.l.b16 %v157
    %v2049 = vunpack.c.l.b16 %v158
    %v2050 = vunpack.c.l.b16 %v159
    %v2051 = vunpack.c.l.b16 %v160
    %v2052 = vunpack.c.l.b16 %v161
    %v2053 = vunpack.c.l.b16 %v162
    %v2054 = vunpack.c.l.b16 %v163
    %v2055 = vunpack.c.l.b16 %v164
    %v2056 = vunpack.c.l.b16 %v165
    %v2057 = vunpack.c.l.b16 %v166
    %v2058 = vunpack.c.l.b16 %v167
    %v2059 = vunpack.c.l.b16 %v168
    %v2060 = vunpack.c.l.b16 %v169
    %v2061 = vunpack.c.l.b16 %v170
    %v2062 = vunpack.c.l.b16 %v171
    %v2063 = vunpack.c.l.b16 %v172
    %v2064 = vunpack.c.l.b16 %v173
    %v2065 = vunpack.c.l.b16 %v174
    %v2066 = vunpack.c.l.b16 %v175
    %v2067 = vunpack.c.l.b16 %v176
    %v2068 = vunpack.c.l.b16 %v177
    %v2069 = vunpack.c.l.b16 %v178
    %v2070 = vunpack.c.l.b16 %v179
    %v2071 = vunpack.c.l.b16 %v180
    %v2072 = vunpack.c.l.b16 %v181
    %v2073 = vunpack.c.l.b16 %v182
    %v2074 = vunpack.c.l.b16 %v183
    %v2075 = vunpack.c.l.b16 %v184
    %v2076 = vunpack.c.l.b16 %v185
    %v2077 = vunpack.c.l.b16 %v186
    %v2078 = vunpack.c.l.b16 %v187
    %v2079 = vunpack.c.l.b16 %v188
    %v2080 = vunpack.c.l.b16 %v189
    %v2081 = vunpack.c.l.b16 %v190
    %v2082 = vunpack.c.l.b16 %v191
    %v2083 = vunpack.c.l.b16 %v192
    %v2084 = vunpack.c.l.b16 %v193
    %v2085 = vunpack.c.l.b16 %v194
    %v2086 = vunpack.c.l.b16 %v195
    %v2087 = vunpack.c.l.b16 %v196
    %v2088 = vunpack.c.l.b16 %v197
    %v2089 = vunpack.c.l.b16 %v198
    %v2090 = vunpack.c.l.b16 %v199
    %v2091 = vunpack.c.l.b16 %v200
    %v2092 = vunpack.c.l.b16 %v201
    %v2093 = vunpack.c.l.b16 %v202
    %v2094 = vunpack.c.l.b16 %v203
    %v2095 = vunpack.c.l.b16 %v204
    %v2096 = vunpack.c.l.b16 %v205
    %v2097 = vunpack.c.l.b16 %v206
    %v2098 = vunpack.c.l.b16 %v207
    %v2099 = vunpack.c.l.b16 %v208
    %v2100 = vunpack.c.l.b16 %v209
    %v2101 = vunpack.c.l.b16 %v210
    %v2102 = vunpack.c.l.b16 %v211
    %v2103 = vunpack.c.l.b16 %v212
    %v2104 = vunpack.c.l.b16 %v213
    %v2105 = vunpack.c.l.b16 %v214
    %v2106 = vunpack.c.l.b16 %v215
    %v2107 = vunpack.c.l.b16 %v216
    %v2108 = vunpack.c.l.b16 %v217
    %v2109 = vunpack.c.l.b16 %v218
    %v2110 = vunpack.c.l.b16 %v219
    %v2111 = vunpack.c.l.b16 %v220
    %v2112 = vunpack.c.l.b16 %v221
    %v2113 = vunpack.c.l.b16 %v222
    %v2114 = vunpack.c.l.b16 %v223
    %v2115 = vunpack.c.l.b16 %v224
    %v2116 = vunpack.c.l.b16 %v225
    %v2117 = vunpack.c.l.b16 %v226
    %v2118 = vunpack.c.l.b16 %v227
    %v2119 = vunpack.c.l.b16 %v228
    %v2120 = vunpack.c.l.b16 %v229
    %v2121 = vunpack.c.l.b16 %v230
    %v2122 = vunpack.c.l.b16 %v231
    %v2123 = vunpack.c.l.b16 %v232
    %v2124 = vunpack.c.l.b16 %v233
    %v2125 = vunpack.c.l.b16 %v234
    %v2126 = vunpack.c.l.b16 %v235
    %v2127 = vunpack.c.l.b16 %v236
    %v2128 = vunpack.c.l.b16 %v237
    %v2129 = vunpack.c.l.b16 %v238
    %v2130 = vunpack.c.l.b16 %v239
    %v2131 = vunpack.c.l.b16 %v240
    %v2132 = vunpack.c.l.b16 %v241
    %v2133 = vunpack.c.l.b16 %v242
    %v2134 = vunpack.c.l.b16 %v243
    %v2135 = vunpack.c.l.b16 %v244
    %v2136 = vunpack.c.l.b16 %v245
    %v2137 = vunpack.c.l.b16 %v246
    %v2138 = vunpack.c.l.b16 %v247
    %v2139 = vunpack.c.l.b16 %v248
    %v2140 = vunpack.c.l.b16 %v249
    %v2141 = vunpack.c.l.b16 %v250
    %v2142 = vunpack.c.l.b16 %v251
    %v2143 = vunpack.c.l.b16 %v252
    %v2144 = vunpack.c.l.b16 %v253
    %v2145 = vunpack.c.l.b16 %v254
    %v2146 = vunpack.c.l.b16 %v255
    %v2147 = vunpack.c.l.b16 %v256
    %v2148 = vunpack.c.l.b16 %v257
    %v2149 = vunpack.c.l.b16 %v258
    %v2150 = vunpack.c.l.b16 %v259
    %v2151 = vunpack.c.l.b16 %v260
    %v2152 = vunpack.c.l.b16 %v261
    %v2153 = vunpack.c.l.b16 %v262
    %v2154 = vunpack.c.l.b16 %v263
    %v2155 = vunpack.c.l.b16 %v264
    %v2156 = vunpack.c.l.b16 %v265
    %v2157 = vunpack.c.l.b16 %v266
    %v2158 = vunpack.c.l.b16 %v267
    %v2159 = vunpack.c.l.b16 %v268
    %v2160 = vunpack.c.l.b16 %v269
    %v2161 = vunpack.c.l.b16 %v270
    %v2162 = vunpack.c.l.b16 %v271
    %v2163 = vunpack.c.l.b16 %v272
    %v2164 = vunpack.c.l.b16 %v273
    %v2165 = vunpack.c.l.b16 %v274
    %v2166 = vunpack.c.l.b16 %v275
    %v2167 = vunpack.c.l.b16 %v276
    %v2168 = vunpack.c.l.b16 %v277
    %v2169 = vunpack.c.l.b16 %v278
    %v2170 = vunpack.c.l.b16 %v279
    %v2171 = vunpack.c.l.b16 %v280
    %v2172 = vunpack.c.l.b16 %v281
    %v2173 = vunpack.c.l.b16 %v282
    %v2174 = vunpack.c.l.b16 %v283
    %v2175 = vunpack.c.l.b16 %v284
    %v2176 = vunpack.c.l.b16 %v285
    %v2177 = vunpack.c.l.b16 %v286
    %v2178 = vunpack.c.l.b16 %v287
    %v2179 = vunpack.c.l.b16 %v288
    %v2180 = vunpack.c.l.b16 %v289
    %v2181 = vunpack.c.l.b16 %v290
    %v2182 = vunpack.c.l.b16 %v291
    %v2183 = vunpack.c.l.b16 %v292
    %v2184 = vunpack.c.l.b16 %v293
    %v2185 = vunpack.c.l.b16 %v294
    %v2186 = vunpack.c.l.b16 %v295
    %v2187 = vunpack.c.l.b16 %v296
    %v2188 = vunpack.c.l.b16 %v297
    %v2189 = vunpack.c.l.b16 %v298
    %v2190 = vunpack.c.l.b16 %v299
    %v2191 = vunpack.c.l.b16 %v300
    %v2192 = vunpack.c.l.b16 %v301
    %v2193 = vunpack.c.l.b16 %v302
    %v2194 = vunpack.c.l.b16 %v303
    %v2195 = vunpack.c.l.b16 %v304
    %v2196 = vunpack.c.l.b16 %v305
    %v2197 = vunpack.c.l.b16 %v306
    %v2198 = vunpack.c.l.b16 %v307
    %v2199 = vunpack.c.l.b16 %v308
    %v2200 = vunpack.c.l.b16 %v309
    %v2201 = vunpack.c.l.b16 %v310
    %v2202 = vunpack.c.l.b16 %v311
    %v2203 = vunpack.c.l.b16 %v312
    %v2204 = vunpack.c.l.b16 %v313
    %v2205 = vunpack.c.l.b16 %v314
    %v2206 = vunpack.c.l.b16 %v315
    %v2207 = vunpack.c.l.b16 %v316
    %v2208 = vunpack.c.l.b16 %v317
    %v2209 = vunpack.c.l.b16 %v318
    %v2210 = vunpack.c.l.b16 %v319
    %v2211 = vunpack.c.l.b16 %v320
    %v2212 = vunpack.c.l.b16 %v321
    %v2213 = vunpack.c.l.b16 %v322
    %v2214 = vunpack.c.l.b16 %v323
    %v2215 = vunpack.c.l.b16 %v324
    %v2216 = vunpack.c.l.b16 %v325
    %v2217 = vunpack.c.l.b16 %v326
    %v2218 = vunpack.c.l.b16 %v327
    %v2219 = vunpack.c.l.b16 %v328
    %v2220 = vunpack.c.l.b16 %v329
    %v2221 = vunpack.c.l.b16 %v330
    %v2222 = vunpack.c.l.b16 %v331
    %v2223 = vunpack.c.l.b16 %v332
    %v2224 = vunpack.c.l.b16 %v333
    %v2225 = vunpack.c.l.b16 %v334
    %v2226 = vunpack.c.l.b16 %v335
    %v2227 = vunpack.c.l.b16 %v336
    %v2228 = vunpack.c.l.b16 %v337
    %v2229 = vunpack.c.l.b16 %v338
    %v2230 = vunpack.c.l.b16 %v339
    %v2231 = vunpack.c.l.b16 %v340
    %v2232 = vunpack.c.l.b16 %v341
    %v2233 = vunpack.c.l.b16 %v342
    %v2234 = vunpack.c.l.b16 %v343
    %v2235 = vunpack.c.l.b16 %v344
    %v2236 = vunpack.c.l.b16 %v345
    %v2237 = vunpack.c.l.b16 %v346
    %v2238 = vunpack.c.l.b16 %v347
    %v2239 = vunpack.c.l.b16 %v348
    %v2240 = vunpack.c.l.b16 %v349
    %v2241 = vunpack.c.l.b16 %v350
    %v2242 = vunpack.c.l.b16 %v351
    %v2243 = vunpack.c.l.b16 %v352
    %v2244 = vunpack.c.l.b16 %v353
    %v2245 = vunpack.c.l.b16 %v354
    %v2246 = vunpack.c.l.b16 %v355
    %v2247 = vunpack.c.l.b16 %v356
    %v2248 = vunpack.c.l.b16 %v357
    %v2249 = vunpack.c.l.b16 %v358
    %v2250 = vunpack.c.l.b16 %v359
    %v2251 = vunpack.c.l.b16 %v360
    %v2252 = vunpack.c.l.b16 %v361
    %v2253 = vunpack.c.l.b16 %v362
    %v2254 = vunpack.c.l.b16 %v363
    %v2255 = vunpack.c.l.b16 %v364
    %v2256 = vunpack.c.l.b16 %v365
    %v2257 = vunpack.c.l.b16 %v366
    %v2258 = vunpack.c.l.b16 %v367
    %v2259 = vunpack.c.l.b16 %v368
    %v2260 = vunpack.c.l.b16 %v369
    %v2261 = vunpack.c.l.b16 %v370
    %v2262 = vunpack.c.l.b16 %v371
    %v2263 = vunpack.c.l.b16 %v372
    %v2264 = vunpack.c.l.b16 %v373
    %v2265 = vunpack.c.l.b16 %v374
    %v2266 = vunpack.c.l.b16 %v375
    %v2267 = vunpack.c.l.b16 %v376
    %v2268 = vunpack.c.l.b16 %v377
    %v2269 = vunpack.c.l.b16 %v378
    %v2270 = vunpack.c.l.b16 %v379
    %v2271 = vunpack.c.l.b16 %v380
    %v2272 = vunpack.c.l.b16 %v381
    %v2273 = vunpack.c.l.b16 %v382
    %v2274 = vunpack.c.l.b16 %v383
    %v2275 = vunpack.c.l.b16 %v384
    %v2276 = vunpack.c.l.b16 %v385
    %v2277 = vunpack.c.l.b16 %v386
    %v2278 = vunpack.c.l.b16 %v387
    %v2279 = vunpack.c.l.b16 %v388
    %v2280 = vunpack.c.l.b16 %v389
    %v2281 = vunpack.c.l.b16 %v390
    %v2282 = vunpack.c.l.b16 %v391
    %v2283 = vunpack.c.l.b16 %v392
    %v2284 = vunpack.c.l.b16 %v393
    %v2285 = vunpack.c.l.b16 %v394
    %v2286 = vunpack.c.l.b16 %v395
    %v2287 = vunpack.c.l.b16 %v396
    %v2288 = vunpack.c.l.b16 %v397
    %v2289 = vunpack.c.l.b16 %v398
    %v2290 = vunpack.c.l.b16 %v399
    %v2291 = vunpack.c.l.b16 %v400
    %v2292 = vunpack.c.l.b16 %v401
    %v2293 = vunpack.c.l.b16 %v402
    %v2294 = vunpack.c.l.b16 %v403
    %v2295 = vunpack.c.l.b16 %v404
    %v2296 = vunpack.c.l.b16 %v405
    %v2297 = vunpack.c.l.b16 %v406
    %v2298 = vunpack.c.l.b16 %v407
    %v2299 = vunpack.c.l.b16 %v408
    %v2300 = vunpack.c.l.b16 %v409
    %v2301 = vunpack.c.l.b16 %v410
    %v2302 = vunpack.c.l.b16 %v411
    %v2303 = vunpack.c.l.b16 %v412
    %v2304 = vunpack.c.l.b16 %v413
    %v2305 = vunpack.c.l.b16 %v414
    %v2306 = vunpack.c.l.b16 %v415
    %v2307 = vunpack.c.l.b16 %v416
    %v2308 = vunpack.c.l.b16 %v417
    %v2309 = vunpack.c.l.b16 %v418
    %v2310 = vunpack.c.l.b16 %v419
    %v2311 = vunpack.c.l.b16 %v420
    %v2312 = vunpack.c.l.b16 %v421
    %v2313 = vunpack.c.l.b16 %v422
    %v2314 = vunpack.c.l.b16 %v423
    %v2315 = vunpack.c.l.b16 %v424
    %v2316 = vunpack.c.l.b16 %v425
    %v2317 = vunpack.c.l.b16 %v426
    %v2318 = vunpack.c.l.b16 %v427
    %v2319 = vunpack.c.l.b16 %v428
    %v2320 = vunpack.c.l.b16 %v429
    %v2321 = vunpack.c.l.b16 %v430
    %v2322 = vunpack.c.l.b16 %v431
    %v2323 = vunpack.c.l.b16 %v432
    %v2324 = vunpack.c.l.b16 %v433
    %v2325 = vunpack.c.l.b16 %v434
    %v2326 = vunpack.c.l.b16 %v435
    %v2327 = vunpack.c.l.b16 %v436
    %v2328 = vunpack.c.l.b16 %v437
    %v2329 = vunpack.c.l.b16 %v438
    %v2330 = vunpack.c.l.b16 %v439
    %v2331 = vunpack.c.l.b16 %v440
    %v2332 = vunpack.c.l.b16 %v441
    %v2333 = vunpack.c.l.b16 %v442
    %v2334 = vunpack.c.l.b16 %v443
    %v2335 = vunpack.c.l.b16 %v444
    %v2336 = vunpack.c.l.b16 %v445
    %v2337 = vunpack.c.l.b16 %v446
    %v2338 = vunpack.c.l.b16 %v447
    %v2339 = vunpack.c.l.b16 %v448
    %v2340 = vunpack.c.l.b16 %v449
    %v2341 = vunpack.c.l.b16 %v450
    %v2342 = vunpack.c.l.b16 %v451
    %v2343 = vunpack.c.l.b16 %v452
    %v2344 = vunpack.c.l.b16 %v453
    %v2345 = vunpack.c.l.b16 %v454
    %v2346 = vunpack.c.l.b16 %v455
    %v2347 = vunpack.c.l.b16 %v456
    %v2348 = vunpack.c.l.b16 %v457
    %v2349 = vunpack.c.l.b16 %v458
    %v2350 = vunpack.c.l.b16 %v459
    %v2351 = vunpack.c.l.b16 %v460
    %v2352 = vunpack.c.l.b16 %v461
    %v2353 = vunpack.c.l.b16 %v462
    %v2354 = vunpack.c.l.b16 %v463
    %v2355 = vunpack.c.l.b16 %v464
    %v2356 = vunpack.c.l.b16 %v465
    %v2357 = vunpack.c.l.b16 %v466
    %v2358 = vunpack.c.l.b16 %v467
    %v2359 = vunpack.c.l.b16 %v468
    %v2360 = vunpack.c.l.b16 %v469
    %v2361 = vunpack.c.l.b16 %v470
    %v2362 = vunpack.c.l.b16 %v471
    %v2363 = vunpack.c.l.b16 %v472
    %v2364 = vunpack.c.l.b16 %v473
    %v2365 = vunpack.c.l.b16 %v474
    %v2366 = vunpack.c.l.b16 %v475
    %v2367 = vunpack.c.l.b16 %v476
    %v2368 = vunpack.c.l.b16 %v477
    %v2369 = vunpack.c.l.b16 %v478
    %v2370 = vunpack.c.l.b16 %v479
    %v2371 = vunpack.c.l.b16 %v480
    %v2372 = vunpack.c.l.b16 %v481
    %v2373 = vunpack.c.l.b16 %v482
    %v2374 = vunpack.c.l.b16 %v483
    %v2375 = vunpack.c.l.b16 %v484
    %v2376 = vunpack.c.l.b16 %v485
    %v2377 = vunpack.c.l.b16 %v486
    %v2378 = vunpack.c.l.b16 %v487
    %v2379 = vunpack.c.l.b16 %v488
    %v2380 = vunpack.c.l.b16 %v489
    %v2381 = vunpack.c.l.b16 %v490
    %v2382 = vunpack.c.l.b16 %v491
    %v2383 = vunpack.c.l.b16 %v492
    %v2384 = vunpack.c.l.b16 %v493
    %v2385 = vunpack.c.l.b16 %v494
    %v2386 = vunpack.c.l.b16 %v495
    %v2387 = vunpack.c.l.b16 %v496
    %v2388 = vunpack.c.l.b16 %v497
    %v2389 = vunpack.c.l.b16 %v498
    %v2390 = vunpack.c.l.b16 %v499
    %v2391 = vunpack.c.l.b16 %v500
    %v2392 = vunpack.c.l.b16 %v501
    %v2393 = vunpack.c.l.b16 %v502
    %v2394 = vunpack.c.l.b16 %v503
    %v2395 = vunpack.c.l.b16 %v504
    %v2396 = vunpack.c.l.b16 %v505
    %v2397 = vunpack.c.l.b16 %v506
    %v2398 = vunpack.c.l.b16 %v507
    %v2399 = vunpack.c.l.b16 %v508
    %v2400 = vunpack.c.l.b16 %v509
    %v2401 = vunpack.c.l.b16 %v510
    %v2402 = vunpack.c.l.b16 %v511
    %v2403 = vunpack.c.l.b16 %v512
    %v2404 = vunpack.c.l.b16 %v513
    %v2405 = vunpack.c.l.b16 %v514
    %v2406 = vunpack.c.l.b16 %v515
    %v2407 = vunpack.c.l.b16 %v516
    %v2408 = vunpack.c.l.b16 %v517
    %v2409 = vunpack.c.l.b16 %v518
    %v2410 = vunpack.c.l.b16 %v519
    %v2411 = vunpack.c.l.b16 %v520
    %v2412 = vunpack.c.l.b16 %v521
    %v2413 = vunpack.c.l.b16 %v522
    %v2414 = vunpack.c.l.b16 %v523
    %v2415 = vunpack.c.l.b16 %v524
    %v2416 = vunpack.c.l.b16 %v525
    %v2417 = vunpack.c.l.b16 %v526
    %v2418 = vunpack.c.l.b16 %v527
    %v2419 = vunpack.c.l.b16 %v528
    %v2420 = vunpack.c.l.b16 %v529
    %v2421 = vunpack.c.l.b16 %v530
    %v2422 = vunpack.c.l.b16 %v531
    %v2423 = vunpack.c.l.b16 %v532
    %v2424 = vunpack.c.l.b16 %v533
    %v2425 = vunpack.c.l.b16 %v534
    %v2426 = vunpack.c.l.b16 %v535
    %v2427 = vunpack.c.l.b16 %v536
    %v2428 = vunpack.c.l.b16 %v537
    %v2429 = vunpack.c.l.b16 %v538
    %v2430 = vunpack.c.l.b16 %v539
    %v2431 = vunpack.c.l.b16 %v540
    %v2432 = vunpack.c.l.b16 %v541
    %v2433 = vunpack.c.l.b16 %v542
    %v2434 = vunpack.c.l.b16 %v543
    %v2435 = vunpack.c.l.b16 %v544
    %v2436 = vunpack.c.l.b16 %v545
    %v2437 = vunpack.c.l.b16 %v546
    %v2438 = vunpack.c.l.b16 %v547
    %v2439 = vunpack.c.l.b16 %v548
    %v2440 = vunpack.c.l.b16 %v549
    %v2441 = vunpack.c.l.b16 %v550
    %v2442 = vunpack.c.l.b16 %v551
    %v2443 = vunpack.c.l.b16 %v552
    %v2444 = vunpack.c.l.b16 %v553
    %v2445 = vunpack.c.l.b16 %v554
    %v2446 = vunpack.c.l.b16 %v555
    %v2447 = vunpack.c.l.b16 %v556
    %v2448 = vunpack.c.l.b16 %v557
    %v2449 = vunpack.c.l.b16 %v558
    %v2450 = vunpack.c.l.b16 %v559
    %v2451 = vunpack.c.l.b16 %v560
    %v2452 = vunpack.c.l.b16 %v561
    %v2453 = vunpack.c.l.b16 %v562
    %v2454 = vunpack.c.l.b16 %v563
    %v2455 = vunpack.c.l.b16 %v564
    %v2456 = vunpack.c.l.b16 %v565
    %v2457 = vunpack.c.l.b16 %v566
    %v2458 = vunpack.c.l.b16 %v567
    %v2459 = vunpack.c.l.b16 %v568
    %v2460 = vunpack.c.l.b16 %v569
    %v2461 = vunpack.c.l.b16 %v570
    %v2462 = vunpack.c.l.b16 %v571
    %v2463 = vunpack.c.l.b16 %v572
    %v2464 = vunpack.c.l.b16 %v573
    %v2465 = vunpack.c.l.b16 %v574
    %v2466 = vunpack.c.l.b16 %v575
    %v2467 = vunpack.c.l.b16 %v576
    %v2468 = vunpack.c.l.b16 %v577
    %v2469 = vunpack.c.l.b16 %v578
    %v2470 = vunpack.c.l.b16 %v579
    %v2471 = vunpack.c.l.b16 %v580
    %v2472 = vunpack.c.l.b16 %v581
    %v2473 = vunpack.c.l.b16 %v582
    %v2474 = vunpack.c.l.b16 %v583
    %v2475 = vunpack.c.l.b16 %v584
    %v2476 = vunpack.c.l.b16 %v585
    %v2477 = vunpack.c.l.b16 %v586
    %v2478 = vunpack.c.l.b16 %v587
    %v2479 = vunpack.c.l.b16 %v588
    %v2480 = vunpack.c.l.b16 %v589
    %v2481 = vunpack.c.l.b16 %v590
    %v2482 = vunpack.c.l.b16 %v591
    %v2483 = vunpack.c.l.b16 %v592
    %v2484 = vunpack.c.l.b16 %v593
    %v2485 = vunpack.c.l.b16 %v594
    %v2486 = vunpack.c.l.b16 %v595
    %v2487 = vunpack.c.l.b16 %v596
    %v2488 = vunpack.c.l.b16 %v597
    %v2489 = vunpack.c.l.b16 %v598
    %v2490 = vunpack.c.l.b16 %v599
    %v2491 = vunpack.c.l.b16 %v600
    %v2492 = vunpack.c.l.b16 %v601
    %v2493 = vunpack.c.l.b16 %v602
    %v2494 = vunpack.c.l.b16 %v603
    %v2495 = vunpack.c.l.b16 %v604
    %v2496 = vunpack.c.l.b16 %v605
    %v2497 = vunpack.c.l.b16 %v606
    %v2498 = vunpack.c.l.b16 %v607
    %v2499 = vunpack.c.l.b16 %v608
    %v2500 = vunpack.c.l.b16 %v609
    %v2501 = vunpack.c.l.b16 %v610
    %v2502 = vunpack.c.l.b16 %v611
    %v2503 = vunpack.c.l.b16 %v612
    %v2504 = vunpack.c.l.b16 %v613
    %v2505 = vunpack.c.l.b16 %v614
    %v2506 = vunpack.c.l.b16 %v615
    %v2507 = vunpack.c.l.b16 %v616
    %v2508 = vunpack.c.l.b16 %v617
    %v2509 = vunpack.c.l.b16 %v618
    %v2510 = vunpack.c.l.b16 %v619
    %v2511 = vunpack.c.l.b16 %v620
    %v2512 = vunpack.c.l.b16 %v621
    %v2513 = vunpack.c.l.b16 %v622
    %v2514 = vunpack.c.l.b16 %v623
    %v2515 = vunpack.c.l.b16 %v624
    %v2516 = vunpack.c.l.b16 %v625
    %v2517 = vunpack.c.l.b16 %v626
    %v2518 = vunpack.c.l.b16 %v627
    %v2519 = vunpack.c.l.b16 %v628
    %v2520 = vunpack.c.l.b16 %v629
    %v2521 = vunpack.c.l.b16 %v630
    %v2522 = vunpack.c.l.b16 %v631
    %v2523 = vunpack.c.l.b16 %v632
    %v2524 = vunpack.c.l.b16 %v633
    %v2525 = vunpack.c.l.b16 %v634
    %v2526 = vunpack.c.l.b16 %v635
    %v2527 = vunpack.c.l.b16 %v636
    %v2528 = vunpack.c.l.b16 %v637
    %v2529 = vunpack.c.l.b16 %v638
    %v2530 = vunpack.c.l.b16 %v639
    %v2531 = vunpack.c.l.b16 %v640
    %v2532 = vunpack.c.l.b16 %v641
    %v2533 = vunpack.c.l.b16 %v642
    %v2534 = vunpack.c.l.b16 %v643
    %v2535 = vunpack.c.l.b16 %v644
    %v2536 = vunpack.c.l.b16 %v645
    %v2537 = vunpack.c.l.b16 %v646
    %v2538 = vunpack.c.l.b16 %v647
    %v2539 = vunpack.c.l.b16 %v648
    %v2540 = vunpack.c.l.b16 %v649
    %v2541 = vunpack.c.l.b16 %v650
    %v2542 = vunpack.c.l.b16 %v651
    %v2543 = vunpack.c.l.b16 %v652
    %v2544 = vunpack.c.l.b16 %v653
    %v2545 = vunpack.c.l.b16 %v654
    %v2546 = vunpack.c.l.b16 %v655
    %v2547 = vunpack.c.l.b16 %v656
    %v2548 = vunpack.c.l.b16 %v657
    %v2549 = vunpack.c.l.b16 %v658
    %v2550 = vunpack.c.l.b16 %v659
    %v2551 = vunpack.c.l.b16 %v660
    %v2552 = vunpack.c.l.b16 %v661
    %v2553 = vunpack.c.l.b16 %v662
    %v2554 = vunpack.c.l.b16 %v663
    %v2555 = vunpack.c.l.b16 %v664
    %v2556 = vunpack.c.l.b16 %v665
    %v2557 = vunpack.c.l.b16 %v666
    %v2558 = vunpack.c.l.b16 %v667
    %v2559 = vunpack.c.l.b16 %v668
    %v2560 = vunpack.c.l.b16 %v669
    %v2561 = vunpack.c.l.b16 %v670
    %v2562 = vunpack.c.l.b16 %v671
    %v2563 = vunpack.c.l.b16 %v672
    %v2564 = vunpack.c.l.b16 %v673
    %v2565 = vunpack.c.l.b16 %v674
    %v2566 = vunpack.c.l.b16 %v675
    %v2567 = vunpack.c.l.b16 %v676
    %v2568 = vunpack.c.l.b16 %v677
    %v2569 = vunpack.c.l.b16 %v678
    %v2570 = vunpack.c.l.b16 %v679
    %v2571 = vunpack.c.l.b16 %v680
    %v2572 = vunpack.c.l.b16 %v681
    %v2573 = vunpack.c.l.b16 %v682
    %v2574 = vunpack.c.l.b16 %v683
    %v2575 = vunpack.c.l.b16 %v684
    %v2576 = vunpack.c.l.b16 %v685
    %v2577 = vunpack.c.l.b16 %v686
    %v2578 = vunpack.c.l.b16 %v687
    %v2579 = vunpack.c.l.b16 %v688
    %v2580 = vunpack.c.l.b16 %v689
    %v2581 = vunpack.c.l.b16 %v690
    %v2582 = vunpack.c.l.b16 %v691
    %v2583 = vunpack.c.l.b16 %v692
    %v2584 = vunpack.c.l.b16 %v693
    %v2585 = vunpack.c.l.b16 %v694
    %v2586 = vunpack.c.l.b16 %v695
    %v2587 = vunpack.c.l.b16 %v696
    %v2588 = vunpack.c.l.b16 %v697
    %v2589 = vunpack.c.l.b16 %v698
    %v2590 = vunpack.c.l.b16 %v699
    %v2591 = vunpack.c.l.b16 %v700
    %v2592 = vunpack.c.l.b16 %v701
    %v2593 = vunpack.c.l.b16 %v702
    %v2594 = vunpack.c.l.b16 %v703
    %v2595 = vunpack.c.l.b16 %v704
    %v2596 = vunpack.c.l.b16 %v705
    %v2597 = vunpack.c.l.b16 %v706
    %v2598 = vunpack.c.l.b16 %v707
    %v2599 = vunpack.c.l.b16 %v708
    %v2600 = vunpack.c.l.b16 %v709
    %v2601 = vunpack.c.l.b16 %v710
    %v2602 = vunpack.c.l.b16 %v711
    %v2603 = vunpack.c.l.b16 %v712
    %v2604 = vunpack.c.l.b16 %v713
    %v2605 = vunpack.c.l.b16 %v714
    %v2606 = vunpack.c.l.b16 %v715
    %v2607 = vunpack.c.l.b16 %v716
    %v2608 = vunpack.c.l.b16 %v717
    %v2609 = vunpack.c.l.b16 %v718
    %v2610 = vunpack.c.l.b16 %v719
    %v2611 = vunpack.c.l.b16 %v720
    %v2612 = vunpack.c.l.b16 %v721
    %v2613 = vunpack.c.l.b16 %v722
    %v2614 = vunpack.c.l.b16 %v723
    %v2615 = vunpack.c.l.b16 %v724
    %v2616 = vunpack.c.l.b16 %v725
    %v2617 = vunpack.c.l.b16 %v726
    %v2618 = vunpack.c.l.b16 %v727
    %v2619 = vunpack.c.l.b16 %v728
    %v2620 = vunpack.c.l.b16 %v729
    %v2621 = vunpack.c.l.b16 %v730
    %v2622 = vunpack.c.l.b16 %v731
    %v2623 = vunpack.c.l.b16 %v732
    %v2624 = vunpack.c.l.b16 %v733
    %v2625 = vunpack.c.l.b16 %v734
    %v2626 = vunpack.c.l.b16 %v735
    %v2627 = vunpack.c.l.b16 %v736
    %v2628 = vunpack.c.l.b16 %v737
    %v2629 = vunpack.c.l.b16 %v738
    %v2630 = vunpack.c.l.b16 %v739
    %v2631 = vunpack.c.l.b16 %v740
    %v2632 = vunpack.c.l.b16 %v741
    %v2633 = vunpack.c.l.b16 %v742
    %v2634 = vunpack.c.l.b16 %v743
    %v2635 = vunpack.c.l.b16 %v744
    %v2636 = vunpack.c.l.b16 %v745
    %v2637 = vunpack.c.l.b16 %v746
    %v2638 = vunpack.c.l.b16 %v747
    %v2639 = vunpack.c.l.b16 %v748
    %v2640 = vunpack.c.l.b16 %v749
    %v2641 = vunpack.c.l.b16 %v750
    %v2642 = vunpack.c.l.b16 %v751
    %v2643 = vunpack.c.l.b16 %v752
    %v2644 = vunpack.c.l.b16 %v753
    %v2645 = vunpack.c.l.b16 %v754
    %v2646 = vunpack.c.l.b16 %v755
    %v2647 = vunpack.c.l.b16 %v756
    %v2648 = vunpack.c.l.b16 %v757
    %v2649 = vunpack.c.l.b16 %v758
    %v2650 = vunpack.c.l.b16 %v759
    %v2651 = vunpack.c.l.b16 %v760
    %v2652 = vunpack.c.l.b16 %v761
    %v2653 = vunpack.c.l.b16 %v762
    %v2654 = vunpack.c.l.b16 %v763
    %v2655 = vunpack.c.l.b16 %v764
    %v2656 = vunpack.c.l.b16 %v765
    %v2657 = vunpack.c.l.b16 %v766
    %v2658 = vunpack.c.l.b16 %v767
    %v2659 = vunpack.c.l.b16 %v768
    %v2660 = vunpack.c.l.b16 %v769
    %v2661 = vunpack.c.l.b16 %v770
    %v2662 = vunpack.c.l.b16 %v771
    %v2663 = vunpack.c.l.b16 %v772
    %v2664 = vunpack.c.l.b16 %v773
    %v2665 = vunpack.c.l.b16 %v774
    %v2666 = vunpack.c.l.b16 %v775
    %v2667 = vunpack.c.l.b16 %v776
    %v2668 = vunpack.c.l.b16 %v777
    %v2669 = vunpack.c.l.b16 %v778
    %v2670 = vunpack.c.l.b16 %v779
    %v2671 = vunpack.c.l.b16 %v780
    %v2672 = vunpack.c.l.b16 %v781
    %v2673 = vunpack.c.l.b16 %v782
    %v2674 = vunpack.c.l.b16 %v783
    %v2675 = vunpack.c.l.b16 %v784
    %v2676 = vunpack.c.l.b16 %v785
    %v2677 = vunpack.c.l.b16 %v786
    %v2678 = vunpack.c.l.b16 %v787
    %v2679 = vunpack.c.l.b16 %v788
    %v2680 = vunpack.c.l.b16 %v789
    %v2681 = vunpack.c.l.b16 %v790
    %v2682 = vunpack.c.l.b16 %v791
    %v2683 = vunpack.c.l.b16 %v792
    %v2684 = vunpack.c.l.b16 %v793
    %v2685 = vunpack.c.l.b16 %v794
    %v2686 = vunpack.c.l.b16 %v795
    %v2687 = vunpack.c.l.b16 %v796
    %v2688 = vunpack.c.l.b16 %v797
    %v2689 = vunpack.c.l.b16 %v798
    %v2690 = vunpack.c.l.b16 %v799
    %v2691 = vunpack.c.l.b16 %v800
    %v2692 = vunpack.c.l.b16 %v801
    %v2693 = vunpack.c.l.b16 %v802
    %v2694 = vunpack.c.l.b16 %v803
    %v2695 = vunpack.c.l.b16 %v804
    %v2696 = vunpack.c.l.b16 %v805
    %v2697 = vunpack.c.l.b16 %v806
    %v2698 = vunpack.c.l.b16 %v807
    %v2699 = vunpack.c.l.b16 %v808
    %v2700 = vunpack.c.l.b16 %v809
    %v2701 = vunpack.c.l.b16 %v810
    %v2702 = vunpack.c.l.b16 %v811
    %v2703 = vunpack.c.l.b16 %v812
    %v2704 = vunpack.c.l.b16 %v813
    %v2705 = vunpack.c.l.b16 %v814
    %v2706 = vunpack.c.l.b16 %v815
    %v2707 = vunpack.c.l.b16 %v816
    %v2708 = vunpack.c.l.b16 %v817
    %v2709 = vunpack.c.l.b16 %v818
    %v2710 = vunpack.c.l.b16 %v819
    %v2711 = vunpack.c.l.b16 %v820
    %v2712 = vunpack.c.l.b16 %v821
    %v2713 = vunpack.c.l.b16 %v822
    %v2714 = vunpack.c.l.b16 %v823
    %v2715 = vunpack.c.l.b16 %v824
    %v2716 = vunpack.c.l.b16 %v825
    %v2717 = vunpack.c.l.b16 %v826
    %v2718 = vunpack.c.l.b16 %v827
    %v2719 = vunpack.c.l.b16 %v828
    %v2720 = vunpack.c.l.b16 %v829
    %v2721 = vunpack.c.l.b16 %v830
    %v2722 = vunpack.c.l.b16 %v831
    %v2723 = vunpack.c.l.b16 %v832
    %v2724 = vunpack.c.l.b16 %v833
    %v2725 = vunpack.c.l.b16 %v834
    %v2726 = vunpack.c.l.b16 %v835
    %v2727 = vunpack.c.l.b16 %v836
    %v2728 = vunpack.c.l.b16 %v837
    %v2729 = vunpack.c.l.b16 %v838
    %v2730 = vunpack.c.l.b16 %v839
    %v2731 = vunpack.c.l.b16 %v840
    %v2732 = vunpack.c.l.b16 %v841
    %v2733 = vunpack.c.l.b16 %v842
    %v2734 = vunpack.c.l.b16 %v843
    %v2735 = vunpack.c.l.b16 %v844
    %v2736 = vunpack.c.l.b16 %v845
    %v2737 = vpack.c.b16 %v1970, %v1969
    %v2738 = vpack.c.b16 %v1972, %v1971
    %v2739 = vpack.c.b16 %v1974, %v1973
    %v2740 = vpack.c.b16 %v1976, %v1975
    %v2741 = vpack.c.b16 %v1978, %v1977
    %v2742 = vpack.c.b16 %v1980, %v1979
    %v2743 = vpack.c.b16 %v1982, %v1981
    %v2744 = vpack.c.b16 %v1984, %v1983
    %v2745 = vpack.c.b16 %v1986, %v1985
    %v2746 = vpack.c.b16 %v1988, %v1987
    %v2747 = vpack.c.b16 %v1990, %v1989
    %v2748 = vpack.c.b16 %v1992, %v1991
    %v2749 = vpack.c.b16 %v1994, %v1993
    %v2750 = vpack.c.b16 %v1996, %v1995
    %v2751 = vpack.c.b16 %v1998, %v1997
    %v2752 = vpack.c.b16 %v2000, %v1999
    %v2753 = vpack.c.b16 %v2002, %v2001
    %v2754 = vpack.c.b16 %v2004, %v2003
    %v2755 = vpack.c.b16 %v2006, %v2005
    %v2756 = vpack.c.b16 %v2008, %v2007
    %v2757 = vpack.c.b16 %v2010, %v2009
    %v2758 = vpack.c.b16 %v2012, %v2011
    %v2759 = vpack.c.b16 %v2014, %v2013
    %v2760 = vpack.c.b16 %v2016, %v2015
    %v2761 = vpack.c.b16 %v2018, %v2017
    %v2762 = vpack.c.b16 %v2020, %v2019
    %v2763 = vpack.c.b16 %v2022, %v2021
    %v2764 = vpack.c.b16 %v2024, %v2023
    %v2765 = vpack.c.b16 %v2026, %v2025
    %v2766 = vpack.c.b16 %v2028, %v2027
    %v2767 = vpack.c.b16 %v2030, %v2029
    %v2768 = vpack.c.b16 %v2032, %v2031
    %v2769 = vpack.c.b16 %v2034, %v2033
    %v2770 = vpack.c.b16 %v2036, %v2035
    %v2771 = vpack.c.b16 %v2038, %v2037
    %v2772 = vpack.c.b16 %v2040, %v2039
    %v2773 = vpack.c.b16 %v2042, %v2041
    %v2774 = vpack.c.b16 %v2044, %v2043
    %v2775 = vpack.c.b16 %v2046, %v2045
    %v2776 = vpack.c.b16 %v2048, %v2047
    %v2777 = vpack.c.b16 %v2050, %v2049
    %v2778 = vpack.c.b16 %v2052, %v2051
    %v2779 = vpack.c.b16 %v2054, %v2053
    %v2780 = vpack.c.b16 %v2056, %v2055
    %v2781 = vpack.c.b16 %v2058, %v2057
    %v2782 = vpack.c.b16 %v2060, %v2059
    %v2783 = vpack.c.b16 %v2062, %v2061
    %v2784 = vpack.c.b16 %v2064, %v2063
    %v2785 = vpack.c.b16 %v2066, %v2065
    %v2786 = vpack.c.b16 %v2068, %v2067
    %v2787 = vpack.c.b16 %v2070, %v2069
    %v2788 = vpack.c.b16 %v2072, %v2071
    %v2789 = vpack.c.b16 %v2074, %v2073
    %v2790 = vpack.c.b16 %v2076, %v2075
    %v2791 = vpack.c.b16 %v2078, %v2077
    %v2792 = vpack.c.b16 %v2080, %v2079
    %v2793 = vpack.c.b16 %v2082, %v2081
    %v2794 = vpack.c.b16 %v2084, %v2083
    %v2795 = vpack.c.b16 %v2086, %v2085
    %v2796 = vpack.c.b16 %v2088, %v2087
    %v2797 = vpack.c.b16 %v2090, %v2089
    %v2798 = vpack.c.b16 %v2092, %v2091
    %v2799 = vpack.c.b16 %v2094, %v2093
    %v2800 = vpack.c.b16 %v2096, %v2095
    %v2801 = vpack.c.b16 %v2098, %v2097
    %v2802 = vpack.c.b16 %v2100, %v2099
    %v2803 = vpack.c.b16 %v2102, %v2101
    %v2804 = vpack.c.b16 %v2104, %v2103
    %v2805 = vpack.c.b16 %v2106, %v2105
    %v2806 = vpack.c.b16 %v2108, %v2107
    %v2807 = vpack.c.b16 %v2110, %v2109
    %v2808 = vpack.c.b16 %v2112, %v2111
    %v2809 = vpack.c.b16 %v2114, %v2113
    %v2810 = vpack.c.b16 %v2116, %v2115
    %v2811 = vpack.c.b16 %v2118, %v2117
    %v2812 = vpack.c.b16 %v2120, %v2119
    %v2813 = vpack.c.b16 %v2122, %v2121
    %v2814 = vpack.c.b16 %v2124, %v2123
    %v2815 = vpack.c.b16 %v2126, %v2125
    %v2816 = vpack.c.b16 %v2128, %v2127
    %v2817 = vpack.c.b16 %v2130, %v2129
    %v2818 = vpack.c.b16 %v2132, %v2131
    %v2819 = vpack.c.b16 %v2134, %v2133
    %v2820 = vpack.c.b16 %v2136, %v2135
    %v2821 = vpack.c.b16 %v2138, %v2137
    %v2822 = vpack.c.b16 %v2140, %v2139
    %v2823 = vpack.c.b16 %v2142, %v2141
    %v2824 = vpack.c.b16 %v2144, %v2143
    %v2825 = vpack.c.b16 %v2146, %v2145
    %v2826 = vpack.c.b16 %v2148, %v2147
    %v2827 = vpack.c.b16 %v2150, %v2149
    %v2828 = vpack.c.b16 %v2152, %v2151
    %v2829 = vpack.c.b16 %v2154, %v2153
    %v2830 = vpack.c.b16 %v2156, %v2155
    %v2831 = vpack.c.b16 %v2158, %v2157
    %v2832 = vpack.c.b16 %v2160, %v2159
    %v2833 = vpack.c.b16 %v2162, %v2161
    %v2834 = vpack.c.b16 %v2164, %v2163
    %v2835 = vpack.c.b16 %v2166, %v2165
    %v2836 = vpack.c.b16 %v2168, %v2167
    %v2837 = vpack.c.b16 %v2170, %v2169
    %v2838 = vpack.c.b16 %v2172, %v2171
    %v2839 = vpack.c.b16 %v2174, %v2173
    %v2840 = vpack.c.b16 %v2176, %v2175
    %v2841 = vpack.c.b16 %v2178, %v2177
    %v2842 = vpack.c.b16 %v2180, %v2179
    %v2843 = vpack.c.b16 %v2182, %v2181
    %v2844 = vpack.c.b16 %v2184, %v2183
    %v2845 = vpack.c.b16 %v2186, %v2185
    %v2846 = vpack.c.b16 %v2188, %v2187
    %v2847 = vpack.c.b16 %v2190, %v2189
    %v2848 = vpack.c.b16 %v2192, %v2191
    %v2849 = vpack.c.b16 %v2194, %v2193
    %v2850 = vpack.c.b16 %v2196, %v2195
    %v2851 = vpack.c.b16 %v2198, %v2197
    %v2852 = vpack.c.b16 %v2200, %v2199
    %v2853 = vpack.c.b16 %v2202, %v2201
    %v2854 = vpack.c.b16 %v2204, %v2203
    %v2855 = vpack.c.b16 %v2206, %v2205
    %v2856 = vpack.c.b16 %v2208, %v2207
    %v2857 = vpack.c.b16 %v2210, %v2209
    %v2858 = vpack.c.b16 %v2212, %v2211
    %v2859 = vpack.c.b16 %v2214, %v2213
    %v2860 = vpack.c.b16 %v2216, %v2215
    %v2861 = vpack.c.b16 %v2218, %v2217
    %v2862 = vpack.c.b16 %v2220, %v2219
    %v2863 = vpack.c.b16 %v2222, %v2221
    %v2864 = vpack.c.b16 %v2224, %v2223
    %v2865 = vpack.c.b16 %v2226, %v2225
    %v2866 = vpack.c.b16 %v2228, %v2227
    %v2867 = vpack.c.b16 %v2230, %v2229
    %v2868 = vpack.c.b16 %v2232, %v2231
    %v2869 = vpack.c.b16 %v2234, %v2233
    %v2870 = vpack.c.b16 %v2236, %v2235
    %v2871 = vpack.c.b16 %v2238, %v2237
    %v2872 = vpack.c.b16 %v2240, %v2239
    %v2873 = vpack.c.b16 %v2242, %v2241
    %v2874 = vpack.c.b16 %v2244, %v2243
    %v2875 = vpack.c.b16 %v2246, %v2245
    %v2876 = vpack.c.b16 %v2248, %v2247
    %v2877 = vpack.c.b16 %v2250, %v2249
    %v2878 = vpack.c.b16 %v2252, %v2251
    %v2879 = vpack.c.b16 %v2254, %v2253
    %v2880 = vpack.c.b16 %v2256, %v2255
    %v2881 = vpack.c.b16 %v2258, %v2257
    %v2882 = vpack.c.b16 %v2260, %v2259
    %v2883 = vpack.c.b16 %v2262, %v2261
    %v2884 = vpack.c.b16 %v2264, %v2263
    %v2885 = vpack.c.b16 %v2266, %v2265
    %v2886 = vpack.c.b16 %v2268, %v2267
    %v2887 = vpack.c.b16 %v2270, %v2269
    %v2888 = vpack.c.b16 %v2272, %v2271
    %v2889 = vpack.c.b16 %v2274, %v2273
    %v2890 = vpack.c.b16 %v2276, %v2275
    %v2891 = vpack.c.b16 %v2278, %v2277
    %v2892 = vpack.c.b16 %v2280, %v2279
    %v2893 = vpack.c.b16 %v2282, %v2281
    %v2894 = vpack.c.b16 %v2284, %v2283
    %v2895 = vpack.c.b16 %v2286, %v2285
    %v2896 = vpack.c.b16 %v2288, %v2287
    %v2897 = vpack.c.b16 %v2290, %v2289
    %v2898 = vpack.c.b16 %v2292, %v2291
    %v2899 = vpack.c.b16 %v2294, %v2293
    %v2900 = vpack.c.b16 %v2296, %v2295
    %v2901 = vpack.c.b16 %v2298, %v2297
    %v2902 = vpack.c.b16 %v2300, %v2299
    %v2903 = vpack.c.b16 %v2302, %v2301
    %v2904 = vpack.c.b16 %v2304, %v2303
    %v2905 = vpack.c.b16 %v2306, %v2305
    %v2906 = vpack.c.b16 %v2308, %v2307
    %v2907 = vpack.c.b16 %v2310, %v2309
    %v2908 = vpack.c.b16 %v2312, %v2311
    %v2909 = vpack.c.b16 %v2314, %v2313
    %v2910 = vpack.c.b16 %v2316, %v2315
    %v2911 = vpack.c.b16 %v2318, %v2317
    %v2912 = vpack.c.b16 %v2320, %v2319
    %v2913 = vpack.c.b16 %v2322, %v2321
    %v2914 = vpack.c.b16 %v2324, %v2323
    %v2915 = vpack.c.b16 %v2326, %v2325
    %v2916 = vpack.c.b16 %v2328, %v2327
    %v2917 = vpack.c.b16 %v2330, %v2329
    %v2918 = vpack.c.b16 %v2332, %v2331
    %v2919 = vpack.c.b16 %v2334, %v2333
    %v2920 = vpack.c.b16 %v2336, %v2335
    %v2921 = vpack.c.b16 %v2338, %v2337
    %v2922 = vpack.c.b16 %v2340, %v2339
    %v2923 = vpack.c.b16 %v2342, %v2341
    %v2924 = vpack.c.b16 %v2344, %v2343
    %v2925 = vpack.c.b16 %v2346, %v2345
    %v2926 = vpack.c.b16 %v2348, %v2347
    %v2927 = vpack.c.b16 %v2350, %v2349
    %v2928 = vpack.c.b16 %v2352, %v2351
    %v2929 = vpack.c.b16 %v2354, %v2353
    %v2930 = vpack.c.b16 %v2356, %v2355
    %v2931 = vpack.c.b16 %v2358, %v2357
    %v2932 = vpack.c.b16 %v2360, %v2359
    %v2933 = vpack.c.b16 %v2362, %v2361
    %v2934 = vpack.c.b16 %v2364, %v2363
    %v2935 = vpack.c.b16 %v2366, %v2365
    %v2936 = vpack.c.b16 %v2368, %v2367
    %v2937 = vpack.c.b16 %v2370, %v2369
    %v2938 = vpack.c.b16 %v2372, %v2371
    %v2939 = vpack.c.b16 %v2374, %v2373
    %v2940 = vpack.c.b16 %v2376, %v2375
    %v2941 = vpack.c.b16 %v2378, %v2377
    %v2942 = vpack.c.b16 %v2380, %v2379
    %v2943 = vpack.c.b16 %v2382, %v2381
    %v2944 = vpack.c.b16 %v2384, %v2383
    %v2945 = vpack.c.b16 %v2386, %v2385
    %v2946 = vpack.c.b16 %v2388, %v2387
    %v2947 = vpack.c.b16 %v2390, %v2389
    %v2948 = vpack.c.b16 %v2392, %v2391
    %v2949 = vpack.c.b16 %v2394, %v2393
    %v2950 = vpack.c.b16 %v2396, %v2395
    %v2951 = vpack.c.b16 %v2398, %v2397
    %v2952 = vpack.c.b16 %v2400, %v2399
    %v2953 = vpack.c.b16 %v2402, %v2401
    %v2954 = vpack.c.b16 %v2404, %v2403
    %v2955 = vpack.c.b16 %v2406, %v2405
    %v2956 = vpack.c.b16 %v2408, %v2407
    %v2957 = vpack.c.b16 %v2410, %v2409
    %v2958 = vpack.c.b16 %v2412, %v2411
    %v2959 = vpack.c.b16 %v2414, %v2413
    %v2960 = vpack.c.b16 %v2416, %v2415
    %v2961 = vpack.c.b16 %v2418, %v2417
    %v2962 = vpack.c.b16 %v2420, %v2419
    %v2963 = vpack.c.b16 %v2422, %v2421
    %v2964 = vpack.c.b16 %v2424, %v2423
    %v2965 = vpack.c.b16 %v2426, %v2425
    %v2966 = vpack.c.b16 %v2428, %v2427
    %v2967 = vpack.c.b16 %v2430, %v2429
    %v2968 = vpack.c.b16 %v2432, %v2431
    %v2969 = vpack.c.b16 %v2434, %v2433
    %v2970 = vpack.c.b16 %v2436, %v2435
    %v2971 = vpack.c.b16 %v2438, %v2437
    %v2972 = vpack.c.b16 %v2440, %v2439
    %v2973 = vpack.c.b16 %v2442, %v2441
    %v2974 = vpack.c.b16 %v2444, %v2443
    %v2975 = vpack.c.b16 %v2446, %v2445
    %v2976 = vpack.c.b16 %v2448, %v2447
    %v2977 = vpack.c.b16 %v2450, %v2449
    %v2978 = vpack.c.b16 %v2452, %v2451
    %v2979 = vpack.c.b16 %v2454, %v2453
    %v2980 = vpack.c.b16 %v2456, %v2455
    %v2981 = vpack.c.b16 %v2458, %v2457
    %v2982 = vpack.c.b16 %v2460, %v2459
    %v2983 = vpack.c.b16 %v2462, %v2461
    %v2984 = vpack.c.b16 %v2464, %v2463
    %v2985 = vpack.c.b16 %v2466, %v2465
    %v2986 = vpack.c.b16 %v2468, %v2467
    %v2987 = vpack.c.b16 %v2470, %v2469
    %v2988 = vpack.c.b16 %v2472, %v2471
    %v2989 = vpack.c.b16 %v2474, %v2473
    %v2990 = vpack.c.b16 %v2476, %v2475
    %v2991 = vpack.c.b16 %v2478, %v2477
    %v2992 = vpack.c.b16 %v2480, %v2479
    %v2993 = vpack.c.b16 %v2482, %v2481
    %v2994 = vpack.c.b16 %v2484, %v2483
    %v2995 = vpack.c.b16 %v2486, %v2485
    %v2996 = vpack.c.b16 %v2488, %v2487
    %v2997 = vpack.c.b16 %v2490, %v2489
    %v2998 = vpack.c.b16 %v2492, %v2491
    %v2999 = vpack.c.b16 %v2494, %v2493
    %v3000 = vpack.c.b16 %v2496, %v2495
    %v3001 = vpack.c.b16 %v2498, %v2497
    %v3002 = vpack.c.b16 %v2500, %v2499
    %v3003 = vpack.c.b16 %v2502, %v2501
    %v3004 = vpack.c.b16 %v2504, %v2503
    %v3005 = vpack.c.b16 %v2506, %v2505
    %v3006 = vpack.c.b16 %v2508, %v2507
    %v3007 = vpack.c.b16 %v2510, %v2509
    %v3008 = vpack.c.b16 %v2512, %v2511
    %v3009 = vpack.c.b16 %v2514, %v2513
    %v3010 = vpack.c.b16 %v2516, %v2515
    %v3011 = vpack.c.b16 %v2518, %v2517
    %v3012 = vpack.c.b16 %v2520, %v2519
    %v3013 = vpack.c.b16 %v2522, %v2521
    %v3014 = vpack.c.b16 %v2524, %v2523
    %v3015 = vpack.c.b16 %v2526, %v2525
    %v3016 = vpack.c.b16 %v2528, %v2527
    %v3017 = vpack.c.b16 %v2530, %v2529
    %v3018 = vpack.c.b16 %v2532, %v2531
    %v3019 = vpack.c.b16 %v2534, %v2533
    %v3020 = vpack.c.b16 %v2536, %v2535
    %v3021 = vpack.c.b16 %v2538, %v2537
    %v3022 = vpack.c.b16 %v2540, %v2539
    %v3023 = vpack.c.b16 %v2542, %v2541
    %v3024 = vpack.c.b16 %v2544, %v2543
    %v3025 = vpack.c.b16 %v2546, %v2545
    %v3026 = vpack.c.b16 %v2548, %v2547
    %v3027 = vpack.c.b16 %v2550, %v2549
    %v3028 = vpack.c.b16 %v2552, %v2551
    %v3029 = vpack.c.b16 %v2554, %v2553
    %v3030 = vpack.c.b16 %v2556, %v2555
    %v3031 = vpack.c.b16 %v2558, %v2557
    %v3032 = vpack.c.b16 %v2560, %v2559
    %v3033 = vpack.c.b16 %v2562, %v2561
    %v3034 = vpack.c.b16 %v2564, %v2563
    %v3035 = vpack.c.b16 %v2566, %v2565
    %v3036 = vpack.c.b16 %v2568, %v2567
    %v3037 = vpack.c.b16 %v2570, %v2569
    %v3038 = vpack.c.b16 %v2572, %v2571
    %v3039 = vpack.c.b16 %v2574, %v2573
    %v3040 = vpack.c.b16 %v2576, %v2575
    %v3041 = vpack.c.b16 %v2578, %v2577
    %v3042 = vpack.c.b16 %v2580, %v2579
    %v3043 = vpack.c.b16 %v2582, %v2581
    %v3044 = vpack.c.b16 %v2584, %v2583
    %v3045 = vpack.c.b16 %v2586, %v2585
    %v3046 = vpack.c.b16 %v2588, %v2587
    %v3047 = vpack.c.b16 %v2590, %v2589
    %v3048 = vpack.c.b16 %v2592, %v2591
    %v3049 = vpack.c.b16 %v2594, %v2593
    %v3050 = vpack.c.b16 %v2596, %v2595
    %v3051 = vpack.c.b16 %v2598, %v2597
    %v3052 = vpack.c.b16 %v2600, %v2599
    %v3053 = vpack.c.b16 %v2602, %v2601
    %v3054 = vpack.c.b16 %v2604, %v2603
    %v3055 = vpack.c.b16 %v2606, %v2605
    %v3056 = vpack.c.b16 %v2608, %v2607
    %v3057 = vpack.c.b16 %v2610, %v2609
    %v3058 = vpack.c.b16 %v2612, %v2611
    %v3059 = vpack.c.b16 %v2614, %v2613
    %v3060 = vpack.c.b16 %v2616, %v2615
    %v3061 = vpack.c.b16 %v2618, %v2617
    %v3062 = vpack.c.b16 %v2620, %v2619
    %v3063 = vpack.c.b16 %v2622, %v2621
    %v3064 = vpack.c.b16 %v2624, %v2623
    %v3065 = vpack.c.b16 %v2626, %v2625
    %v3066 = vpack.c.b16 %v2628, %v2627
    %v3067 = vpack.c.b16 %v2630, %v2629
    %v3068 = vpack.c.b16 %v2632, %v2631
    %v3069 = vpack.c.b16 %v2634, %v2633
    %v3070 = vpack.c.b16 %v2636, %v2635
    %v3071 = vpack.c.b16 %v2638, %v2637
    %v3072 = vpack.c.b16 %v2640, %v2639
    %v3073 = vpack.c.b16 %v2642, %v2641
    %v3074 = vpack.c.b16 %v2644, %v2643
    %v3075 = vpack.c.b16 %v2646, %v2645
    %v3076 = vpack.c.b16 %v2648, %v2647
    %v3077 = vpack.c.b16 %v2650, %v2649
    %v3078 = vpack.c.b16 %v2652, %v2651
    %v3079 = vpack.c.b16 %v2654, %v2653
    %v3080 = vpack.c.b16 %v2656, %v2655
    %v3081 = vpack.c.b16 %v2658, %v2657
    %v3082 = vpack.c.b16 %v2660, %v2659
    %v3083 = vpack.c.b16 %v2662, %v2661
    %v3084 = vpack.c.b16 %v2664, %v2663
    %v3085 = vpack.c.b16 %v2666, %v2665
    %v3086 = vpack.c.b16 %v2668, %v2667
    %v3087 = vpack.c.b16 %v2670, %v2669
    %v3088 = vpack.c.b16 %v2672, %v2671
    %v3089 = vpack.c.b16 %v2674, %v2673
    %v3090 = vpack.c.b16 %v2676, %v2675
    %v3091 = vpack.c.b16 %v2678, %v2677
    %v3092 = vpack.c.b16 %v2680, %v2679
    %v3093 = vpack.c.b16 %v2682, %v2681
    %v3094 = vpack.c.b16 %v2684, %v2683
    %v3095 = vpack.c.b16 %v2686, %v2685
    %v3096 = vpack.c.b16 %v2688, %v2687
    %v3097 = vpack.c.b16 %v2690, %v2689
    %v3098 = vpack.c.b16 %v2692, %v2691
    %v3099 = vpack.c.b16 %v2694, %v2693
    %v3100 = vpack.c.b16 %v2696, %v2695
    %v3101 = vpack.c.b16 %v2698, %v2697
    %v3102 = vpack.c.b16 %v2700, %v2699
    %v3103 = vpack.c.b16 %v2702, %v2701
    %v3104 = vpack.c.b16 %v2704, %v2703
    %v3105 = vpack.c.b16 %v2706, %v2705
    %v3106 = vpack.c.b16 %v2708, %v2707
    %v3107 = vpack.c.b16 %v2710, %v2709
    %v3108 = vpack.c.b16 %v2712, %v2711
    %v3109 = vpack.c.b16 %v2714, %v2713
    %v3110 = vpack.c.b16 %v2716, %v2715
    %v3111 = vpack.c.b16 %v2718, %v2717
    %v3112 = vpack.c.b16 %v2720, %v2719
    %v3113 = vpack.c.b16 %v2722, %v2721
    %v3114 = vpack.c.b16 %v2724, %v2723
    %v3115 = vpack.c.b16 %v2726, %v2725
    %v3116 = vpack.c.b16 %v2728, %v2727
    %v3117 = vpack.c.b16 %v2730, %v2729
    %v3118 = vpack.c.b16 %v2732, %v2731
    %v3119 = vpack.c.b16 %v2734, %v2733
    %v3120 = vpack.c.b16 %v2736, %v2735
    %3505 = vmatprep.subr.bf16.mxu0 0
    %3506 = vmatpush1.bf16.msra.mxu0 %v2737
    %3507 = vmatprep.subr.bf16.mxu0 0
    %3508 = vmatpush1.bf16.msra.mxu0 %v2738
    %3509 = vmatprep.subr.bf16.mxu0 0
    %3510 = vmatpush1.bf16.msra.mxu0 %v2739
    %3511 = vmatprep.subr.bf16.mxu0 0
    %3512 = vmatpush1.bf16.msra.mxu0 %v2740
    %3513 = vmatprep.subr.bf16.mxu0 0
    %3514 = vmatpush1.bf16.msra.mxu0 %v2741
    %3515 = vmatprep.subr.bf16.mxu0 0
    %3516 = vmatpush1.bf16.msra.mxu0 %v2742
    %3517 = vmatprep.subr.bf16.mxu0 0
    %3518 = vmatpush1.bf16.msra.mxu0 %v2743
    %3519 = vmatprep.subr.bf16.mxu0 0
    %3520 = vmatpush1.bf16.msra.mxu0 %v2744
    %3521 = vmatprep.subr.bf16.mxu0 0
    %3522 = vmatpush1.bf16.msra.mxu0 %v2745
    %3523 = vmatprep.subr.bf16.mxu0 0
    %3524 = vmatpush1.bf16.msra.mxu0 %v2746
    %3525 = vmatprep.subr.bf16.mxu0 0
    %3526 = vmatpush1.bf16.msra.mxu0 %v2747
    %3527 = vmatprep.subr.bf16.mxu0 0
    %3528 = vmatpush1.bf16.msra.mxu0 %v2748
    %3529 = vmatprep.subr.bf16.mxu0 0
    %3530 = vmatpush1.bf16.msra.mxu0 %v2749
    %3531 = vmatprep.subr.bf16.mxu0 0
    %3532 = vmatpush1.bf16.msra.mxu0 %v2750
    %3533 = vmatprep.subr.bf16.mxu0 0
    %3534 = vmatpush1.bf16.msra.mxu0 %v2751
    %3535 = vmatprep.subr.bf16.mxu0 0
    %3536 = vmatpush1.bf16.msra.mxu0 %v2752
    %3537 = vmatprep.mubr.bf16.mxu0 %v896
    %3538 = vmatmul.mubr.bf16.gmra.mrb[0].mxu0 %v882
    %v3539 = vpop.f32.mrb[0].mxu0
    %v3540 = vadd.f32 %v851, %v3539
    %v3541 = vpop.f32.mrb[0].mxu0
    %v3542 = vpop.f32.mrb[0].mxu0
    %v3543 = vpop.f32.mrb[0].mxu0
    %3544 = vdwg.mxu0
    %3545 = vmatprep.subr.bf16.mxu0 0
    %3546 = vmatpush1.bf16.msra.mxu0 %v2753
    %3547 = vmatprep.subr.bf16.mxu0 0
    %3548 = vmatpush1.bf16.msra.mxu0 %v2754
    %3549 = vmatprep.subr.bf16.mxu0 0
    %3550 = vmatpush1.bf16.msra.mxu0 %v2755
    %3551 = vmatprep.subr.bf16.mxu0 0
    %3552 = vmatpush1.bf16.msra.mxu0 %v2756
    %3553 = vmatprep.subr.bf16.mxu0 0
    %3554 = vmatpush1.bf16.msra.mxu0 %v2757
    %3555 = vmatprep.subr.bf16.mxu0 0
    %3556 = vmatpush1.bf16.msra.mxu0 %v2758
    %3557 = vmatprep.subr.bf16.mxu0 0
    %3558 = vmatpush1.bf16.msra.mxu0 %v2759
    %3559 = vmatprep.subr.bf16.mxu0 0
    %3560 = vmatpush1.bf16.msra.mxu0 %v2760
    %3561 = vmatprep.subr.bf16.mxu0 0
    %3562 = vmatpush1.bf16.msra.mxu0 %v2761
    %3563 = vmatprep.subr.bf16.mxu0 0
    %3564 = vmatpush1.bf16.msra.mxu0 %v2762
    %3565 = vmatprep.subr.bf16.mxu0 0
    %3566 = vmatpush1.bf16.msra.mxu0 %v2763
    %3567 = vmatprep.subr.bf16.mxu0 0
    %3568 = vmatpush1.bf16.msra.mxu0 %v2764
    %3569 = vmatprep.subr.bf16.mxu0 0
    %3570 = vmatpush1.bf16.msra.mxu0 %v2765
    %3571 = vmatprep.subr.bf16.mxu0 0
    %3572 = vmatpush1.bf16.msra.mxu0 %v2766
    %3573 = vmatprep.subr.bf16.mxu0 0
    %3574 = vmatpush1.bf16.msra.mxu0 %v2767
    %3575 = vmatprep.subr.bf16.mxu0 0
    %3576 = vmatpush1.bf16.msra.mxu0 %v2768
    %3577 = vmatprep.mubr.bf16.mxu0 %v906
    %3578 = vmatmul.mubr.bf16.gmra.mrb[0].mxu0 %v904
    %v3579 = vpop.f32.mrb[0].mxu0
    %v3580 = vadd.f32 %v3540, %v3579
    %v3581 = vpop.f32.mrb[0].mxu0
    %v3582 = vpop.f32.mrb[0].mxu0
    %v3583 = vpop.f32.mrb[0].mxu0
    %3584 = vdwg.mxu0
    %3585 = vmatprep.subr.bf16.mxu0 0
    %3586 = vmatpush1.bf16.msra.mxu0 %v2769
    %3587 = vmatprep.subr.bf16.mxu0 0
    %3588 = vmatpush1.bf16.msra.mxu0 %v2770
    %3589 = vmatprep.subr.bf16.mxu0 0
    %3590 = vmatpush1.bf16.msra.mxu0 %v2771
    %3591 = vmatprep.subr.bf16.mxu0 0
    %3592 = vmatpush1.bf16.msra.mxu0 %v2772
    %3593 = vmatprep.subr.bf16.mxu0 0
    %3594 = vmatpush1.bf16.msra.mxu0 %v2773
    %3595 = vmatprep.subr.bf16.mxu0 0
    %3596 = vmatpush1.bf16.msra.mxu0 %v2774
    %3597 = vmatprep.subr.bf16.mxu0 0
    %3598 = vmatpush1.bf16.msra.mxu0 %v2775
    %3599 = vmatprep.subr.bf16.mxu0 0
    %3600 = vmatpush1.bf16.msra.mxu0 %v2776
    %3601 = vmatprep.subr.bf16.mxu0 0
    %3602 = vmatpush1.bf16.msra.mxu0 %v2777
    %3603 = vmatprep.subr.bf16.mxu0 0
    %3604 = vmatpush1.bf16.msra.mxu0 %v2778
    %3605 = vmatprep.subr.bf16.mxu0 0
    %3606 = vmatpush1.bf16.msra.mxu0 %v2779
    %3607 = vmatprep.subr.bf16.mxu0 0
    %3608 = vmatpush1.bf16.msra.mxu0 %v2780
    %3609 = vmatprep.subr.bf16.mxu0 0
    %3610 = vmatpush1.bf16.msra.mxu0 %v2781
    %3611 = vmatprep.subr.bf16.mxu0 0
    %3612 = vmatpush1.bf16.msra.mxu0 %v2782
    %3613 = vmatprep.subr.bf16.mxu0 0
    %3614 = vmatpush1.bf16.msra.mxu0 %v2783
    %3615 = vmatprep.subr.bf16.mxu0 0
    %3616 = vmatpush1.bf16.msra.mxu0 %v2784
    %3617 = vmatprep.mubr.bf16.mxu0 %v903
    %3618 = vmatmul.mubr.bf16.gmra.mrb[0].mxu0 %v889
    %v3619 = vpop.f32.mrb[0].mxu0
    %v3620 = vadd.f32 %v3580, %v3619
    %v3621 = vpop.f32.mrb[0].mxu0
    %v3622 = vpop.f32.mrb[0].mxu0
    %v3623 = vpop.f32.mrb[0].mxu0
    %3624 = vdwg.mxu0
    %3625 = vmatprep.subr.bf16.mxu0 0
    %3626 = vmatpush1.bf16.msra.mxu0 %v2785
    %3627 = vmatprep.subr.bf16.mxu0 0
    %3628 = vmatpush1.bf16.msra.mxu0 %v2786
    %3629 = vmatprep.subr.bf16.mxu0 0
    %3630 = vmatpush1.bf16.msra.mxu0 %v2787
    %3631 = vmatprep.subr.bf16.mxu0 0
    %3632 = vmatpush1.bf16.msra.mxu0 %v2788
    %3633 = vmatprep.subr.bf16.mxu0 0
    %3634 = vmatpush1.bf16.msra.mxu0 %v2789
    %3635 = vmatprep.subr.bf16.mxu0 0
    %3636 = vmatpush1.bf16.msra.mxu0 %v2790
    %3637 = vmatprep.subr.bf16.mxu0 0
    %3638 = vmatpush1.bf16.msra.mxu0 %v2791
    %3639 = vmatprep.subr.bf16.mxu0 0
    %3640 = vmatpush1.bf16.msra.mxu0 %v2792
    %3641 = vmatprep.subr.bf16.mxu0 0
    %3642 = vmatpush1.bf16.msra.mxu0 %v2793
    %3643 = vmatprep.subr.bf16.mxu0 0
    %3644 = vmatpush1.bf16.msra.mxu0 %v2794
    %3645 = vmatprep.subr.bf16.mxu0 0
    %3646 = vmatpush1.bf16.msra.mxu0 %v2795
    %3647 = vmatprep.subr.bf16.mxu0 0
    %3648 = vmatpush1.bf16.msra.mxu0 %v2796
    %3649 = vmatprep.subr.bf16.mxu0 0
    %3650 = vmatpush1.bf16.msra.mxu0 %v2797
    %3651 = vmatprep.subr.bf16.mxu0 0
    %3652 = vmatpush1.bf16.msra.mxu0 %v2798
    %3653 = vmatprep.subr.bf16.mxu0 0
    %3654 = vmatpush1.bf16.msra.mxu0 %v2799
    %3655 = vmatprep.subr.bf16.mxu0 0
    %3656 = vmatpush1.bf16.msra.mxu0 %v2800
    %3657 = vmatprep.mubr.bf16.mxu0 %v907
    %3658 = vmatmul.mubr.bf16.gmra.mrb[0].mxu0 %v905
    %v3659 = vpop.f32.mrb[0].mxu0
    %v3660 = vadd.f32 %v3620, %v3659
    %v3661 = vpop.f32.mrb[0].mxu0
    %v3662 = vpop.f32.mrb[0].mxu0
    %v3663 = vpop.f32.mrb[0].mxu0
    %3664 = vdwg.mxu0
    %3665 = vmatprep.subr.bf16.mxu0 0
    %3666 = vmatpush1.bf16.msra.mxu0 %v2801
    %3667 = vmatprep.subr.bf16.mxu0 0
    %3668 = vmatpush1.bf16.msra.mxu0 %v2802
    %3669 = vmatprep.subr.bf16.mxu0 0
    %3670 = vmatpush1.bf16.msra.mxu0 %v2803
    %3671 = vmatprep.subr.bf16.mxu0 0
    %3672 = vmatpush1.bf16.msra.mxu0 %v2804
    %3673 = vmatprep.subr.bf16.mxu0 0
    %3674 = vmatpush1.bf16.msra.mxu0 %v2805
    %3675 = vmatprep.subr.bf16.mxu0 0
    %3676 = vmatpush1.bf16.msra.mxu0 %v2806
    %3677 = vmatprep.subr.bf16.mxu0 0
    %3678 = vmatpush1.bf16.msra.mxu0 %v2807
    %3679 = vmatprep.subr.bf16.mxu0 0
    %3680 = vmatpush1.bf16.msra.mxu0 %v2808
    %3681 = vmatprep.subr.bf16.mxu0 0
    %3682 = vmatpush1.bf16.msra.mxu0 %v2809
    %3683 = vmatprep.subr.bf16.mxu0 0
    %3684 = vmatpush1.bf16.msra.mxu0 %v2810
    %3685 = vmatprep.subr.bf16.mxu0 0
    %3686 = vmatpush1.bf16.msra.mxu0 %v2811
    %3687 = vmatprep.subr.bf16.mxu0 0
    %3688 = vmatpush1.bf16.msra.mxu0 %v2812
    %3689 = vmatprep.subr.bf16.mxu0 0
    %3690 = vmatpush1.bf16.msra.mxu0 %v2813
    %3691 = vmatprep.subr.bf16.mxu0 0
    %3692 = vmatpush1.bf16.msra.mxu0 %v2814
    %3693 = vmatprep.subr.bf16.mxu0 0
    %3694 = vmatpush1.bf16.msra.mxu0 %v2815
    %3695 = vmatprep.subr.bf16.mxu0 0
    %3696 = vmatpush1.bf16.msra.mxu0 %v2816
    %3697 = vmatprep.mubr.bf16.mxu0 %v945
    %3698 = vmatmul.mubr.bf16.gmra.mrb[0].mxu0 %v931
    %v3699 = vpop.f32.mrb[0].mxu0
    %v3700 = vadd.f32 %v3660, %v3699
    %v3701 = vpop.f32.mrb[0].mxu0
    %v3702 = vpop.f32.mrb[0].mxu0
    %v3703 = vpop.f32.mrb[0].mxu0
    %3704 = vdwg.mxu0
    %3705 = vmatprep.subr.bf16.mxu0 0
    %3706 = vmatpush1.bf16.msra.mxu0 %v2817
    %3707 = vmatprep.subr.bf16.mxu0 0
    %3708 = vmatpush1.bf16.msra.mxu0 %v2818
    %3709 = vmatprep.subr.bf16.mxu0 0
    %3710 = vmatpush1.bf16.msra.mxu0 %v2819
    %3711 = vmatprep.subr.bf16.mxu0 0
    %3712 = vmatpush1.bf16.msra.mxu0 %v2820
    %3713 = vmatprep.subr.bf16.mxu0 0
    %3714 = vmatpush1.bf16.msra.mxu0 %v2821
    %3715 = vmatprep.subr.bf16.mxu0 0
    %3716 = vmatpush1.bf16.msra.mxu0 %v2822
    %3717 = vmatprep.subr.bf16.mxu0 0
    %3718 = vmatpush1.bf16.msra.mxu0 %v2823
    %3719 = vmatprep.subr.bf16.mxu0 0
    %3720 = vmatpush1.bf16.msra.mxu0 %v2824
    %3721 = vmatprep.subr.bf16.mxu0 0
    %3722 = vmatpush1.bf16.msra.mxu0 %v2825
    %3723 = vmatprep.subr.bf16.mxu0 0
    %3724 = vmatpush1.bf16.msra.mxu0 %v2826
    %3725 = vmatprep.subr.bf16.mxu0 0
    %3726 = vmatpush1.bf16.msra.mxu0 %v2827
    %3727 = vmatprep.subr.bf16.mxu0 0
    %3728 = vmatpush1.bf16.msra.mxu0 %v2828
    %3729 = vmatprep.subr.bf16.mxu0 0
    %3730 = vmatpush1.bf16.msra.mxu0 %v2829
    %3731 = vmatprep.subr.bf16.mxu0 0
    %3732 = vmatpush1.bf16.msra.mxu0 %v2830
    %3733 = vmatprep.subr.bf16.mxu0 0
    %3734 = vmatpush1.bf16.msra.mxu0 %v2831
    %3735 = vmatprep.subr.bf16.mxu0 0
    %3736 = vmatpush1.bf16.msra.mxu0 %v2832
    %3737 = vmatprep.mubr.bf16.mxu0 %v955
    %3738 = vmatmul.mubr.bf16.gmra.mrb[0].mxu0 %v953
    %v3739 = vpop.f32.mrb[0].mxu0
    %v3740 = vadd.f32 %v3700, %v3739
    %v3741 = vpop.f32.mrb[0].mxu0
    %v3742 = vpop.f32.mrb[0].mxu0
    %v3743 = vpop.f32.mrb[0].mxu0
    %3744 = vdwg.mxu0
    %3745 = vmatprep.subr.bf16.mxu0 0
    %3746 = vmatpush1.bf16.msra.mxu0 %v2833
    %3747 = vmatprep.subr.bf16.mxu0 0
    %3748 = vmatpush1.bf16.msra.mxu0 %v2834
    %3749 = vmatprep.subr.bf16.mxu0 0
    %3750 = vmatpush1.bf16.msra.mxu0 %v2835
    %3751 = vmatprep.subr.bf16.mxu0 0
    %3752 = vmatpush1.bf16.msra.mxu0 %v2836
    %3753 = vmatprep.subr.bf16.mxu0 0
    %3754 = vmatpush1.bf16.msra.mxu0 %v2837
    %3755 = vmatprep.subr.bf16.mxu0 0
    %3756 = vmatpush1.bf16.msra.mxu0 %v2838
    %3757 = vmatprep.subr.bf16.mxu0 0
    %3758 = vmatpush1.bf16.msra.mxu0 %v2839
    %3759 = vmatprep.subr.bf16.mxu0 0
    %3760 = vmatpush1.bf16.msra.mxu0 %v2840
    %3761 = vmatprep.subr.bf16.mxu0 0
    %3762 = vmatpush1.bf16.msra.mxu0 %v2841
    %3763 = vmatprep.subr.bf16.mxu0 0
    %3764 = vmatpush1.bf16.msra.mxu0 %v2842
    %3765 = vmatprep.subr.bf16.mxu0 0
    %3766 = vmatpush1.bf16.msra.mxu0 %v2843
    %3767 = vmatprep.subr.bf16.mxu0 0
    %3768 = vmatpush1.bf16.msra.mxu0 %v2844
    %3769 = vmatprep.subr.bf16.mxu0 0
    %3770 = vmatpush1.bf16.msra.mxu0 %v2845
    %3771 = vmatprep.subr.bf16.mxu0 0
    %3772 = vmatpush1.bf16.msra.mxu0 %v2846
    %3773 = vmatprep.subr.bf16.mxu0 0
    %3774 = vmatpush1.bf16.msra.mxu0 %v2847
    %3775 = vmatprep.subr.bf16.mxu0 0
    %3776 = vmatpush1.bf16.msra.mxu0 %v2848
    %3777 = vmatprep.mubr.bf16.mxu0 %v952
    %3778 = vmatmul.mubr.bf16.gmra.mrb[0].mxu0 %v938
    %v3779 = vpop.f32.mrb[0].mxu0
    %v3780 = vadd.f32 %v3740, %v3779
    %v3781 = vpop.f32.mrb[0].mxu0
    %v3782 = vpop.f32.mrb[0].mxu0
    %v3783 = vpop.f32.mrb[0].mxu0
    %3784 = vdwg.mxu0
    %3785 = vmatprep.subr.bf16.mxu0 0
    %3786 = vmatpush1.bf16.msra.mxu0 %v2849
    %3787 = vmatprep.subr.bf16.mxu0 0
    %3788 = vmatpush1.bf16.msra.mxu0 %v2850
    %3789 = vmatprep.subr.bf16.mxu0 0
    %3790 = vmatpush1.bf16.msra.mxu0 %v2851
    %3791 = vmatprep.subr.bf16.mxu0 0
    %3792 = vmatpush1.bf16.msra.mxu0 %v2852
    %3793 = vmatprep.subr.bf16.mxu0 0
    %3794 = vmatpush1.bf16.msra.mxu0 %v2853
    %3795 = vmatprep.subr.bf16.mxu0 0
    %3796 = vmatpush1.bf16.msra.mxu0 %v2854
    %3797 = vmatprep.subr.bf16.mxu0 0
    %3798 = vmatpush1.bf16.msra.mxu0 %v2855
    %3799 = vmatprep.subr.bf16.mxu0 0
    %3800 = vmatpush1.bf16.msra.mxu0 %v2856
    %3801 = vmatprep.subr.bf16.mxu0 0
    %3802 = vmatpush1.bf16.msra.mxu0 %v2857
    %3803 = vmatprep.subr.bf16.mxu0 0
    %3804 = vmatpush1.bf16.msra.mxu0 %v2858
    %3805 = vmatprep.subr.bf16.mxu0 0
    %3806 = vmatpush1.bf16.msra.mxu0 %v2859
    %3807 = vmatprep.subr.bf16.mxu0 0
    %3808 = vmatpush1.bf16.msra.mxu0 %v2860
    %3809 = vmatprep.subr.bf16.mxu0 0
    %3810 = vmatpush1.bf16.msra.mxu0 %v2861
    %3811 = vmatprep.subr.bf16.mxu0 0
    %3812 = vmatpush1.bf16.msra.mxu0 %v2862
    %3813 = vmatprep.subr.bf16.mxu0 0
    %3814 = vmatpush1.bf16.msra.mxu0 %v2863
    %3815 = vmatprep.subr.bf16.mxu0 0
    %3816 = vmatpush1.bf16.msra.mxu0 %v2864
    %3817 = vmatprep.mubr.bf16.mxu0 %v956
    %3818 = vmatmul.mubr.bf16.gmra.mrb[0].mxu0 %v954
    %v3819 = vpop.f32.mrb[0].mxu0
    %v3820 = vadd.f32 %v3780, %v3819
    %v3821 = vpop.f32.mrb[0].mxu0
    %v3822 = vpop.f32.mrb[0].mxu0
    %v3823 = vpop.f32.mrb[0].mxu0
    %3824 = vdwg.mxu0
    %3825 = vmatprep.subr.bf16.mxu0 0
    %3826 = vmatpush1.bf16.msra.mxu0 %v2865
    %3827 = vmatprep.subr.bf16.mxu0 0
    %3828 = vmatpush1.bf16.msra.mxu0 %v2866
    %3829 = vmatprep.subr.bf16.mxu0 0
    %3830 = vmatpush1.bf16.msra.mxu0 %v2867
    %3831 = vmatprep.subr.bf16.mxu0 0
    %3832 = vmatpush1.bf16.msra.mxu0 %v2868
    %3833 = vmatprep.subr.bf16.mxu0 0
    %3834 = vmatpush1.bf16.msra.mxu0 %v2869
    %3835 = vmatprep.subr.bf16.mxu0 0
    %3836 = vmatpush1.bf16.msra.mxu0 %v2870
    %3837 = vmatprep.subr.bf16.mxu0 0
    %3838 = vmatpush1.bf16.msra.mxu0 %v2871
    %3839 = vmatprep.subr.bf16.mxu0 0
    %3840 = vmatpush1.bf16.msra.mxu0 %v2872
    %3841 = vmatprep.subr.bf16.mxu0 0
    %3842 = vmatpush1.bf16.msra.mxu0 %v2873
    %3843 = vmatprep.subr.bf16.mxu0 0
    %3844 = vmatpush1.bf16.msra.mxu0 %v2874
    %3845 = vmatprep.subr.bf16.mxu0 0
    %3846 = vmatpush1.bf16.msra.mxu0 %v2875
    %3847 = vmatprep.subr.bf16.mxu0 0
    %3848 = vmatpush1.bf16.msra.mxu0 %v2876
    %3849 = vmatprep.subr.bf16.mxu0 0
    %3850 = vmatpush1.bf16.msra.mxu0 %v2877
    %3851 = vmatprep.subr.bf16.mxu0 0
    %3852 = vmatpush1.bf16.msra.mxu0 %v2878
    %3853 = vmatprep.subr.bf16.mxu0 0
    %3854 = vmatpush1.bf16.msra.mxu0 %v2879
    %3855 = vmatprep.subr.bf16.mxu0 0
    %3856 = vmatpush1.bf16.msra.mxu0 %v2880
    %3857 = vmatprep.mubr.bf16.mxu0 %v994
    %3858 = vmatmul.mubr.bf16.gmra.mrb[0].mxu0 %v980
    %v3859 = vpop.f32.mrb[0].mxu0
    %v3860 = vadd.f32 %v3820, %v3859
    %v3861 = vpop.f32.mrb[0].mxu0
    %v3862 = vpop.f32.mrb[0].mxu0
    %v3863 = vpop.f32.mrb[0].mxu0
    %3864 = vdwg.mxu0
    %3865 = vmatprep.subr.bf16.mxu0 0
    %3866 = vmatpush1.bf16.msra.mxu0 %v2881
    %3867 = vmatprep.subr.bf16.mxu0 0
    %3868 = vmatpush1.bf16.msra.mxu0 %v2882
    %3869 = vmatprep.subr.bf16.mxu0 0
    %3870 = vmatpush1.bf16.msra.mxu0 %v2883
    %3871 = vmatprep.subr.bf16.mxu0 0
    %3872 = vmatpush1.bf16.msra.mxu0 %v2884
    %3873 = vmatprep.subr.bf16.mxu0 0
    %3874 = vmatpush1.bf16.msra.mxu0 %v2885
    %3875 = vmatprep.subr.bf16.mxu0 0
    %3876 = vmatpush1.bf16.msra.mxu0 %v2886
    %3877 = vmatprep.subr.bf16.mxu0 0
    %3878 = vmatpush1.bf16.msra.mxu0 %v2887
    %3879 = vmatprep.subr.bf16.mxu0 0
    %3880 = vmatpush1.bf16.msra.mxu0 %v2888
    %3881 = vmatprep.subr.bf16.mxu0 0
    %3882 = vmatpush1.bf16.msra.mxu0 %v2889
    %3883 = vmatprep.subr.bf16.mxu0 0
    %3884 = vmatpush1.bf16.msra.mxu0 %v2890
    %3885 = vmatprep.subr.bf16.mxu0 0
    %3886 = vmatpush1.bf16.msra.mxu0 %v2891
    %3887 = vmatprep.subr.bf16.mxu0 0
    %3888 = vmatpush1.bf16.msra.mxu0 %v2892
    %3889 = vmatprep.subr.bf16.mxu0 0
    %3890 = vmatpush1.bf16.msra.mxu0 %v2893
    %3891 = vmatprep.subr.bf16.mxu0 0
    %3892 = vmatpush1.bf16.msra.mxu0 %v2894
    %3893 = vmatprep.subr.bf16.mxu0 0
    %3894 = vmatpush1.bf16.msra.mxu0 %v2895
    %3895 = vmatprep.subr.bf16.mxu0 0
    %3896 = vmatpush1.bf16.msra.mxu0 %v2896
    %3897 = vmatprep.mubr.bf16.mxu0 %v1004
    %3898 = vmatmul.mubr.bf16.gmra.mrb[0].mxu0 %v1002
    %v3899 = vpop.f32.mrb[0].mxu0
    %v3900 = vadd.f32 %v3860, %v3899
    %v3901 = vpop.f32.mrb[0].mxu0
    %v3902 = vpop.f32.mrb[0].mxu0
    %v3903 = vpop.f32.mrb[0].mxu0
    %3904 = vdwg.mxu0
    %3905 = vmatprep.subr.bf16.mxu0 0
    %3906 = vmatpush1.bf16.msra.mxu0 %v2897
    %3907 = vmatprep.subr.bf16.mxu0 0
    %3908 = vmatpush1.bf16.msra.mxu0 %v2898
    %3909 = vmatprep.subr.bf16.mxu0 0
    %3910 = vmatpush1.bf16.msra.mxu0 %v2899
    %3911 = vmatprep.subr.bf16.mxu0 0
    %3912 = vmatpush1.bf16.msra.mxu0 %v2900
    %3913 = vmatprep.subr.bf16.mxu0 0
    %3914 = vmatpush1.bf16.msra.mxu0 %v2901
    %3915 = vmatprep.subr.bf16.mxu0 0
    %3916 = vmatpush1.bf16.msra.mxu0 %v2902
    %3917 = vmatprep.subr.bf16.mxu0 0
    %3918 = vmatpush1.bf16.msra.mxu0 %v2903
    %3919 = vmatprep.subr.bf16.mxu0 0
    %3920 = vmatpush1.bf16.msra.mxu0 %v2904
    %3921 = vmatprep.subr.bf16.mxu0 0
    %3922 = vmatpush1.bf16.msra.mxu0 %v2905
    %3923 = vmatprep.subr.bf16.mxu0 0
    %3924 = vmatpush1.bf16.msra.mxu0 %v2906
    %3925 = vmatprep.subr.bf16.mxu0 0
    %3926 = vmatpush1.bf16.msra.mxu0 %v2907
    %3927 = vmatprep.subr.bf16.mxu0 0
    %3928 = vmatpush1.bf16.msra.mxu0 %v2908
    %3929 = vmatprep.subr.bf16.mxu0 0
    %3930 = vmatpush1.bf16.msra.mxu0 %v2909
    %3931 = vmatprep.subr.bf16.mxu0 0
    %3932 = vmatpush1.bf16.msra.mxu0 %v2910
    %3933 = vmatprep.subr.bf16.mxu0 0
    %3934 = vmatpush1.bf16.msra.mxu0 %v2911
    %3935 = vmatprep.subr.bf16.mxu0 0
    %3936 = vmatpush1.bf16.msra.mxu0 %v2912
    %3937 = vmatprep.mubr.bf16.mxu0 %v1001
    %3938 = vmatmul.mubr.bf16.gmra.mrb[0].mxu0 %v987
    %v3939 = vpop.f32.mrb[0].mxu0
    %v3940 = vadd.f32 %v3900, %v3939
    %v3941 = vpop.f32.mrb[0].mxu0
    %v3942 = vpop.f32.mrb[0].mxu0
    %v3943 = vpop.f32.mrb[0].mxu0
    %3944 = vdwg.mxu0
    %3945 = vmatprep.subr.bf16.mxu0 0
    %3946 = vmatpush1.bf16.msra.mxu0 %v2913
    %3947 = vmatprep.subr.bf16.mxu0 0
    %3948 = vmatpush1.bf16.msra.mxu0 %v2914
    %3949 = vmatprep.subr.bf16.mxu0 0
    %3950 = vmatpush1.bf16.msra.mxu0 %v2915
    %3951 = vmatprep.subr.bf16.mxu0 0
    %3952 = vmatpush1.bf16.msra.mxu0 %v2916
    %3953 = vmatprep.subr.bf16.mxu0 0
    %3954 = vmatpush1.bf16.msra.mxu0 %v2917
    %3955 = vmatprep.subr.bf16.mxu0 0
    %3956 = vmatpush1.bf16.msra.mxu0 %v2918
    %3957 = vmatprep.subr.bf16.mxu0 0
    %3958 = vmatpush1.bf16.msra.mxu0 %v2919
    %3959 = vmatprep.subr.bf16.mxu0 0
    %3960 = vmatpush1.bf16.msra.mxu0 %v2920
    %3961 = vmatprep.subr.bf16.mxu0 0
    %3962 = vmatpush1.bf16.msra.mxu0 %v2921
    %3963 = vmatprep.subr.bf16.mxu0 0
    %3964 = vmatpush1.bf16.msra.mxu0 %v2922
    %3965 = vmatprep.subr.bf16.mxu0 0
    %3966 = vmatpush1.bf16.msra.mxu0 %v2923
    %3967 = vmatprep.subr.bf16.mxu0 0
    %3968 = vmatpush1.bf16.msra.mxu0 %v2924
    %3969 = vmatprep.subr.bf16.mxu0 0
    %3970 = vmatpush1.bf16.msra.mxu0 %v2925
    %3971 = vmatprep.subr.bf16.mxu0 0
    %3972 = vmatpush1.bf16.msra.mxu0 %v2926
    %3973 = vmatprep.subr.bf16.mxu0 0
    %3974 = vmatpush1.bf16.msra.mxu0 %v2927
    %3975 = vmatprep.subr.bf16.mxu0 0
    %3976 = vmatpush1.bf16.msra.mxu0 %v2928
    %3977 = vmatprep.mubr.bf16.mxu0 %v1005
    %3978 = vmatmul.mubr.bf16.gmra.mrb[0].mxu0 %v1003
    %v3979 = vpop.f32.mrb[0].mxu0
    %v3980 = vadd.f32 %v3940, %v3979
    %v3981 = vpop.f32.mrb[0].mxu0
    %v3982 = vpop.f32.mrb[0].mxu0
    %v3983 = vpop.f32.mrb[0].mxu0
    %3984 = vdwg.mxu0
    %3985 = vmatprep.subr.bf16.mxu0 0
    %3986 = vmatpush1.bf16.msra.mxu0 %v2929
    %3987 = vmatprep.subr.bf16.mxu0 0
    %3988 = vmatpush1.bf16.msra.mxu0 %v2930
    %3989 = vmatprep.subr.bf16.mxu0 0
    %3990 = vmatpush1.bf16.msra.mxu0 %v2931
    %3991 = vmatprep.subr.bf16.mxu0 0
    %3992 = vmatpush1.bf16.msra.mxu0 %v2932
    %3993 = vmatprep.subr.bf16.mxu0 0
    %3994 = vmatpush1.bf16.msra.mxu0 %v2933
    %3995 = vmatprep.subr.bf16.mxu0 0
    %3996 = vmatpush1.bf16.msra.mxu0 %v2934
    %3997 = vmatprep.subr.bf16.mxu0 0
    %3998 = vmatpush1.bf16.msra.mxu0 %v2935
    %3999 = vmatprep.subr.bf16.mxu0 0
    %4000 = vmatpush1.bf16.msra.mxu0 %v2936
    %4001 = vmatprep.subr.bf16.mxu0 0
    %4002 = vmatpush1.bf16.msra.mxu0 %v2937
    %4003 = vmatprep.subr.bf16.mxu0 0
    %4004 = vmatpush1.bf16.msra.mxu0 %v2938
    %4005 = vmatprep.subr.bf16.mxu0 0
    %4006 = vmatpush1.bf16.msra.mxu0 %v2939
    %4007 = vmatprep.subr.bf16.mxu0 0
    %4008 = vmatpush1.bf16.msra.mxu0 %v2940
    %4009 = vmatprep.subr.bf16.mxu0 0
    %4010 = vmatpush1.bf16.msra.mxu0 %v2941
    %4011 = vmatprep.subr.bf16.mxu0 0
    %4012 = vmatpush1.bf16.msra.mxu0 %v2942
    %4013 = vmatprep.subr.bf16.mxu0 0
    %4014 = vmatpush1.bf16.msra.mxu0 %v2943
    %4015 = vmatprep.subr.bf16.mxu0 0
    %4016 = vmatpush1.bf16.msra.mxu0 %v2944
    %4017 = vmatprep.mubr.bf16.mxu0 %v1043
    %4018 = vmatmul.mubr.bf16.gmra.mrb[0].mxu0 %v1029
    %v4019 = vpop.f32.mrb[0].mxu0
    %v4020 = vadd.f32 %v3980, %v4019
    %v4021 = vpop.f32.mrb[0].mxu0
    %v4022 = vpop.f32.mrb[0].mxu0
    %v4023 = vpop.f32.mrb[0].mxu0
    %4024 = vdwg.mxu0
    %4025 = vmatprep.subr.bf16.mxu0 0
    %4026 = vmatpush1.bf16.msra.mxu0 %v2945
    %4027 = vmatprep.subr.bf16.mxu0 0
    %4028 = vmatpush1.bf16.msra.mxu0 %v2946
    %4029 = vmatprep.subr.bf16.mxu0 0
    %4030 = vmatpush1.bf16.msra.mxu0 %v2947
    %4031 = vmatprep.subr.bf16.mxu0 0
    %4032 = vmatpush1.bf16.msra.mxu0 %v2948
    %4033 = vmatprep.subr.bf16.mxu0 0
    %4034 = vmatpush1.bf16.msra.mxu0 %v2949
    %4035 = vmatprep.subr.bf16.mxu0 0
    %4036 = vmatpush1.bf16.msra.mxu0 %v2950
    %4037 = vmatprep.subr.bf16.mxu0 0
    %4038 = vmatpush1.bf16.msra.mxu0 %v2951
    %4039 = vmatprep.subr.bf16.mxu0 0
    %4040 = vmatpush1.bf16.msra.mxu0 %v2952
    %4041 = vmatprep.subr.bf16.mxu0 0
    %4042 = vmatpush1.bf16.msra.mxu0 %v2953
    %4043 = vmatprep.subr.bf16.mxu0 0
    %4044 = vmatpush1.bf16.msra.mxu0 %v2954
    %4045 = vmatprep.subr.bf16.mxu0 0
    %4046 = vmatpush1.bf16.msra.mxu0 %v2955
    %4047 = vmatprep.subr.bf16.mxu0 0
    %4048 = vmatpush1.bf16.msra.mxu0 %v2956
    %4049 = vmatprep.subr.bf16.mxu0 0
    %4050 = vmatpush1.bf16.msra.mxu0 %v2957
    %4051 = vmatprep.subr.bf16.mxu0 0
    %4052 = vmatpush1.bf16.msra.mxu0 %v2958
    %4053 = vmatprep.subr.bf16.mxu0 0
    %4054 = vmatpush1.bf16.msra.mxu0 %v2959
    %4055 = vmatprep.subr.bf16.mxu0 0
    %4056 = vmatpush1.bf16.msra.mxu0 %v2960
    %4057 = vmatprep.mubr.bf16.mxu0 %v1053
    %4058 = vmatmul.mubr.bf16.gmra.mrb[0].mxu0 %v1051
    %v4059 = vpop.f32.mrb[0].mxu0
    %v4060 = vadd.f32 %v4020, %v4059
    %v4061 = vpop.f32.mrb[0].mxu0
    %v4062 = vpop.f32.mrb[0].mxu0
    %v4063 = vpop.f32.mrb[0].mxu0
    %4064 = vdwg.mxu0
    %4065 = vmatprep.subr.bf16.mxu0 0
    %4066 = vmatpush1.bf16.msra.mxu0 %v2961
    %4067 = vmatprep.subr.bf16.mxu0 0
    %4068 = vmatpush1.bf16.msra.mxu0 %v2962
    %4069 = vmatprep.subr.bf16.mxu0 0
    %4070 = vmatpush1.bf16.msra.mxu0 %v2963
    %4071 = vmatprep.subr.bf16.mxu0 0
    %4072 = vmatpush1.bf16.msra.mxu0 %v2964
    %4073 = vmatprep.subr.bf16.mxu0 0
    %4074 = vmatpush1.bf16.msra.mxu0 %v2965
    %4075 = vmatprep.subr.bf16.mxu0 0
    %4076 = vmatpush1.bf16.msra.mxu0 %v2966
    %4077 = vmatprep.subr.bf16.mxu0 0
    %4078 = vmatpush1.bf16.msra.mxu0 %v2967
    %4079 = vmatprep.subr.bf16.mxu0 0
    %4080 = vmatpush1.bf16.msra.mxu0 %v2968
    %4081 = vmatprep.subr.bf16.mxu0 0
    %4082 = vmatpush1.bf16.msra.mxu0 %v2969
    %4083 = vmatprep.subr.bf16.mxu0 0
    %4084 = vmatpush1.bf16.msra.mxu0 %v2970
    %4085 = vmatprep.subr.bf16.mxu0 0
    %4086 = vmatpush1.bf16.msra.mxu0 %v2971
    %4087 = vmatprep.subr.bf16.mxu0 0
    %4088 = vmatpush1.bf16.msra.mxu0 %v2972
    %4089 = vmatprep.subr.bf16.mxu0 0
    %4090 = vmatpush1.bf16.msra.mxu0 %v2973
    %4091 = vmatprep.subr.bf16.mxu0 0
    %4092 = vmatpush1.bf16.msra.mxu0 %v2974
    %4093 = vmatprep.subr.bf16.mxu0 0
    %4094 = vmatpush1.bf16.msra.mxu0 %v2975
    %4095 = vmatprep.subr.bf16.mxu0 0
    %4096 = vmatpush1.bf16.msra.mxu0 %v2976
    %4097 = vmatprep.mubr.bf16.mxu0 %v1050
    %4098 = vmatmul.mubr.bf16.gmra.mrb[0].mxu0 %v1036
    %v4099 = vpop.f32.mrb[0].mxu0
    %v4100 = vadd.f32 %v4060, %v4099
    %v4101 = vpop.f32.mrb[0].mxu0
    %v4102 = vpop.f32.mrb[0].mxu0
    %v4103 = vpop.f32.mrb[0].mxu0
    %4104 = vdwg.mxu0
    %4105 = vmatprep.subr.bf16.mxu0 0
    %4106 = vmatpush1.bf16.msra.mxu0 %v2977
    %4107 = vmatprep.subr.bf16.mxu0 0
    %4108 = vmatpush1.bf16.msra.mxu0 %v2978
    %4109 = vmatprep.subr.bf16.mxu0 0
    %4110 = vmatpush1.bf16.msra.mxu0 %v2979
    %4111 = vmatprep.subr.bf16.mxu0 0
    %4112 = vmatpush1.bf16.msra.mxu0 %v2980
    %4113 = vmatprep.subr.bf16.mxu0 0
    %4114 = vmatpush1.bf16.msra.mxu0 %v2981
    %4115 = vmatprep.subr.bf16.mxu0 0
    %4116 = vmatpush1.bf16.msra.mxu0 %v2982
    %4117 = vmatprep.subr.bf16.mxu0 0
    %4118 = vmatpush1.bf16.msra.mxu0 %v2983
    %4119 = vmatprep.subr.bf16.mxu0 0
    %4120 = vmatpush1.bf16.msra.mxu0 %v2984
    %4121 = vmatprep.subr.bf16.mxu0 0
    %4122 = vmatpush1.bf16.msra.mxu0 %v2985
    %4123 = vmatprep.subr.bf16.mxu0 0
    %4124 = vmatpush1.bf16.msra.mxu0 %v2986
    %4125 = vmatprep.subr.bf16.mxu0 0
    %4126 = vmatpush1.bf16.msra.mxu0 %v2987
    %4127 = vmatprep.subr.bf16.mxu0 0
    %4128 = vmatpush1.bf16.msra.mxu0 %v2988
    %4129 = vmatprep.subr.bf16.mxu0 0
    %4130 = vmatpush1.bf16.msra.mxu0 %v2989
    %4131 = vmatprep.subr.bf16.mxu0 0
    %4132 = vmatpush1.bf16.msra.mxu0 %v2990
    %4133 = vmatprep.subr.bf16.mxu0 0
    %4134 = vmatpush1.bf16.msra.mxu0 %v2991
    %4135 = vmatprep.subr.bf16.mxu0 0
    %4136 = vmatpush1.bf16.msra.mxu0 %v2992
    %4137 = vmatprep.mubr.bf16.mxu0 %v1054
    %4138 = vmatmul.mubr.bf16.gmra.mrb[0].mxu0 %v1052
    %v4139 = vpop.f32.mrb[0].mxu0
    %v4140 = vadd.f32 %v4100, %v4139
    %v4141 = vpop.f32.mrb[0].mxu0
    %v4142 = vpop.f32.mrb[0].mxu0
    %v4143 = vpop.f32.mrb[0].mxu0
    %4144 = vdwg.mxu0
    %4145 = vmatprep.subr.bf16.mxu0 0
    %4146 = vmatpush1.bf16.msra.mxu0 %v2993
    %4147 = vmatprep.subr.bf16.mxu0 0
    %4148 = vmatpush1.bf16.msra.mxu0 %v2994
    %4149 = vmatprep.subr.bf16.mxu0 0
    %4150 = vmatpush1.bf16.msra.mxu0 %v2995
    %4151 = vmatprep.subr.bf16.mxu0 0
    %4152 = vmatpush1.bf16.msra.mxu0 %v2996
    %4153 = vmatprep.subr.bf16.mxu0 0
    %4154 = vmatpush1.bf16.msra.mxu0 %v2997
    %4155 = vmatprep.subr.bf16.mxu0 0
    %4156 = vmatpush1.bf16.msra.mxu0 %v2998
    %4157 = vmatprep.subr.bf16.mxu0 0
    %4158 = vmatpush1.bf16.msra.mxu0 %v2999
    %4159 = vmatprep.subr.bf16.mxu0 0
    %4160 = vmatpush1.bf16.msra.mxu0 %v3000
    %4161 = vmatprep.subr.bf16.mxu0 0
    %4162 = vmatpush1.bf16.msra.mxu0 %v3001
    %4163 = vmatprep.subr.bf16.mxu0 0
    %4164 = vmatpush1.bf16.msra.mxu0 %v3002
    %4165 = vmatprep.subr.bf16.mxu0 0
    %4166 = vmatpush1.bf16.msra.mxu0 %v3003
    %4167 = vmatprep.subr.bf16.mxu0 0
    %4168 = vmatpush1.bf16.msra.mxu0 %v3004
    %4169 = vmatprep.subr.bf16.mxu0 0
    %4170 = vmatpush1.bf16.msra.mxu0 %v3005
    %4171 = vmatprep.subr.bf16.mxu0 0
    %4172 = vmatpush1.bf16.msra.mxu0 %v3006
    %4173 = vmatprep.subr.bf16.mxu0 0
    %4174 = vmatpush1.bf16.msra.mxu0 %v3007
    %4175 = vmatprep.subr.bf16.mxu0 0
    %4176 = vmatpush1.bf16.msra.mxu0 %v3008
    %4177 = vmatprep.mubr.bf16.mxu0 %v1092
    %4178 = vmatmul.mubr.bf16.gmra.mrb[0].mxu0 %v1078
    %v4179 = vpop.f32.mrb[0].mxu0
    %v4180 = vadd.f32 %v4140, %v4179
    %v4181 = vpop.f32.mrb[0].mxu0
    %v4182 = vpop.f32.mrb[0].mxu0
    %v4183 = vpop.f32.mrb[0].mxu0
    %4184 = vdwg.mxu0
    %4185 = vmatprep.subr.bf16.mxu0 0
    %4186 = vmatpush1.bf16.msra.mxu0 %v3009
    %4187 = vmatprep.subr.bf16.mxu0 0
    %4188 = vmatpush1.bf16.msra.mxu0 %v3010
    %4189 = vmatprep.subr.bf16.mxu0 0
    %4190 = vmatpush1.bf16.msra.mxu0 %v3011
    %4191 = vmatprep.subr.bf16.mxu0 0
    %4192 = vmatpush1.bf16.msra.mxu0 %v3012
    %4193 = vmatprep.subr.bf16.mxu0 0
    %4194 = vmatpush1.bf16.msra.mxu0 %v3013
    %4195 = vmatprep.subr.bf16.mxu0 0
    %4196 = vmatpush1.bf16.msra.mxu0 %v3014
    %4197 = vmatprep.subr.bf16.mxu0 0
    %4198 = vmatpush1.bf16.msra.mxu0 %v3015
    %4199 = vmatprep.subr.bf16.mxu0 0
    %4200 = vmatpush1.bf16.msra.mxu0 %v3016
    %4201 = vmatprep.subr.bf16.mxu0 0
    %4202 = vmatpush1.bf16.msra.mxu0 %v3017
    %4203 = vmatprep.subr.bf16.mxu0 0
    %4204 = vmatpush1.bf16.msra.mxu0 %v3018
    %4205 = vmatprep.subr.bf16.mxu0 0
    %4206 = vmatpush1.bf16.msra.mxu0 %v3019
    %4207 = vmatprep.subr.bf16.mxu0 0
    %4208 = vmatpush1.bf16.msra.mxu0 %v3020
    %4209 = vmatprep.subr.bf16.mxu0 0
    %4210 = vmatpush1.bf16.msra.mxu0 %v3021
    %4211 = vmatprep.subr.bf16.mxu0 0
    %4212 = vmatpush1.bf16.msra.mxu0 %v3022
    %4213 = vmatprep.subr.bf16.mxu0 0
    %4214 = vmatpush1.bf16.msra.mxu0 %v3023
    %4215 = vmatprep.subr.bf16.mxu0 0
    %4216 = vmatpush1.bf16.msra.mxu0 %v3024
    %4217 = vmatprep.mubr.bf16.mxu0 %v1102
    %4218 = vmatmul.mubr.bf16.gmra.mrb[0].mxu0 %v1100
    %v4219 = vpop.f32.mrb[0].mxu0
    %v4220 = vadd.f32 %v4180, %v4219
    %v4221 = vpop.f32.mrb[0].mxu0
    %v4222 = vpop.f32.mrb[0].mxu0
    %v4223 = vpop.f32.mrb[0].mxu0
    %4224 = vdwg.mxu0
    %4225 = vmatprep.subr.bf16.mxu0 0
    %4226 = vmatpush1.bf16.msra.mxu0 %v3025
    %4227 = vmatprep.subr.bf16.mxu0 0
    %4228 = vmatpush1.bf16.msra.mxu0 %v3026
    %4229 = vmatprep.subr.bf16.mxu0 0
    %4230 = vmatpush1.bf16.msra.mxu0 %v3027
    %4231 = vmatprep.subr.bf16.mxu0 0
    %4232 = vmatpush1.bf16.msra.mxu0 %v3028
    %4233 = vmatprep.subr.bf16.mxu0 0
    %4234 = vmatpush1.bf16.msra.mxu0 %v3029
    %4235 = vmatprep.subr.bf16.mxu0 0
    %4236 = vmatpush1.bf16.msra.mxu0 %v3030
    %4237 = vmatprep.subr.bf16.mxu0 0
    %4238 = vmatpush1.bf16.msra.mxu0 %v3031
    %4239 = vmatprep.subr.bf16.mxu0 0
    %4240 = vmatpush1.bf16.msra.mxu0 %v3032
    %4241 = vmatprep.subr.bf16.mxu0 0
    %4242 = vmatpush1.bf16.msra.mxu0 %v3033
    %4243 = vmatprep.subr.bf16.mxu0 0
    %4244 = vmatpush1.bf16.msra.mxu0 %v3034
    %4245 = vmatprep.subr.bf16.mxu0 0
    %4246 = vmatpush1.bf16.msra.mxu0 %v3035
    %4247 = vmatprep.subr.bf16.mxu0 0
    %4248 = vmatpush1.bf16.msra.mxu0 %v3036
    %4249 = vmatprep.subr.bf16.mxu0 0
    %4250 = vmatpush1.bf16.msra.mxu0 %v3037
    %4251 = vmatprep.subr.bf16.mxu0 0
    %4252 = vmatpush1.bf16.msra.mxu0 %v3038
    %4253 = vmatprep.subr.bf16.mxu0 0
    %4254 = vmatpush1.bf16.msra.mxu0 %v3039
    %4255 = vmatprep.subr.bf16.mxu0 0
    %4256 = vmatpush1.bf16.msra.mxu0 %v3040
    %4257 = vmatprep.mubr.bf16.mxu0 %v1099
    %4258 = vmatmul.mubr.bf16.gmra.mrb[0].mxu0 %v1085
    %v4259 = vpop.f32.mrb[0].mxu0
    %v4260 = vadd.f32 %v4220, %v4259
    %v4261 = vpop.f32.mrb[0].mxu0
    %v4262 = vpop.f32.mrb[0].mxu0
    %v4263 = vpop.f32.mrb[0].mxu0
    %4264 = vdwg.mxu0
    %4265 = vmatprep.subr.bf16.mxu0 0
    %4266 = vmatpush1.bf16.msra.mxu0 %v3041
    %4267 = vmatprep.subr.bf16.mxu0 0
    %4268 = vmatpush1.bf16.msra.mxu0 %v3042
    %4269 = vmatprep.subr.bf16.mxu0 0
    %4270 = vmatpush1.bf16.msra.mxu0 %v3043
    %4271 = vmatprep.subr.bf16.mxu0 0
    %4272 = vmatpush1.bf16.msra.mxu0 %v3044
    %4273 = vmatprep.subr.bf16.mxu0 0
    %4274 = vmatpush1.bf16.msra.mxu0 %v3045
    %4275 = vmatprep.subr.bf16.mxu0 0
    %4276 = vmatpush1.bf16.msra.mxu0 %v3046
    %4277 = vmatprep.subr.bf16.mxu0 0
    %4278 = vmatpush1.bf16.msra.mxu0 %v3047
    %4279 = vmatprep.subr.bf16.mxu0 0
    %4280 = vmatpush1.bf16.msra.mxu0 %v3048
    %4281 = vmatprep.subr.bf16.mxu0 0
    %4282 = vmatpush1.bf16.msra.mxu0 %v3049
    %4283 = vmatprep.subr.bf16.mxu0 0
    %4284 = vmatpush1.bf16.msra.mxu0 %v3050
    %4285 = vmatprep.subr.bf16.mxu0 0
    %4286 = vmatpush1.bf16.msra.mxu0 %v3051
    %4287 = vmatprep.subr.bf16.mxu0 0
    %4288 = vmatpush1.bf16.msra.mxu0 %v3052
    %4289 = vmatprep.subr.bf16.mxu0 0
    %4290 = vmatpush1.bf16.msra.mxu0 %v3053
    %4291 = vmatprep.subr.bf16.mxu0 0
    %4292 = vmatpush1.bf16.msra.mxu0 %v3054
    %4293 = vmatprep.subr.bf16.mxu0 0
    %4294 = vmatpush1.bf16.msra.mxu0 %v3055
    %4295 = vmatprep.subr.bf16.mxu0 0
    %4296 = vmatpush1.bf16.msra.mxu0 %v3056
    %4297 = vmatprep.mubr.bf16.mxu0 %v1103
    %4298 = vmatmul.mubr.bf16.gmra.mrb[0].mxu0 %v1101
    %v4299 = vpop.f32.mrb[0].mxu0
    %v4300 = vadd.f32 %v4260, %v4299
    %v4301 = vpop.f32.mrb[0].mxu0
    %v4302 = vpop.f32.mrb[0].mxu0
    %v4303 = vpop.f32.mrb[0].mxu0
    %4304 = vdwg.mxu0
    %4305 = vmatprep.subr.bf16.mxu0 0
    %4306 = vmatpush1.bf16.msra.mxu0 %v3057
    %4307 = vmatprep.subr.bf16.mxu0 0
    %4308 = vmatpush1.bf16.msra.mxu0 %v3058
    %4309 = vmatprep.subr.bf16.mxu0 0
    %4310 = vmatpush1.bf16.msra.mxu0 %v3059
    %4311 = vmatprep.subr.bf16.mxu0 0
    %4312 = vmatpush1.bf16.msra.mxu0 %v3060
    %4313 = vmatprep.subr.bf16.mxu0 0
    %4314 = vmatpush1.bf16.msra.mxu0 %v3061
    %4315 = vmatprep.subr.bf16.mxu0 0
    %4316 = vmatpush1.bf16.msra.mxu0 %v3062
    %4317 = vmatprep.subr.bf16.mxu0 0
    %4318 = vmatpush1.bf16.msra.mxu0 %v3063
    %4319 = vmatprep.subr.bf16.mxu0 0
    %4320 = vmatpush1.bf16.msra.mxu0 %v3064
    %4321 = vmatprep.subr.bf16.mxu0 0
    %4322 = vmatpush1.bf16.msra.mxu0 %v3065
    %4323 = vmatprep.subr.bf16.mxu0 0
    %4324 = vmatpush1.bf16.msra.mxu0 %v3066
    %4325 = vmatprep.subr.bf16.mxu0 0
    %4326 = vmatpush1.bf16.msra.mxu0 %v3067
    %4327 = vmatprep.subr.bf16.mxu0 0
    %4328 = vmatpush1.bf16.msra.mxu0 %v3068
    %4329 = vmatprep.subr.bf16.mxu0 0
    %4330 = vmatpush1.bf16.msra.mxu0 %v3069
    %4331 = vmatprep.subr.bf16.mxu0 0
    %4332 = vmatpush1.bf16.msra.mxu0 %v3070
    %4333 = vmatprep.subr.bf16.mxu0 0
    %4334 = vmatpush1.bf16.msra.mxu0 %v3071
    %4335 = vmatprep.subr.bf16.mxu0 0
    %4336 = vmatpush1.bf16.msra.mxu0 %v3072
    %4337 = vmatprep.mubr.bf16.mxu0 %v1141
    %4338 = vmatmul.mubr.bf16.gmra.mrb[0].mxu0 %v1127
    %v4339 = vpop.f32.mrb[0].mxu0
    %v4340 = vadd.f32 %v4300, %v4339
    %v4341 = vpop.f32.mrb[0].mxu0
    %v4342 = vpop.f32.mrb[0].mxu0
    %v4343 = vpop.f32.mrb[0].mxu0
    %4344 = vdwg.mxu0
    %4345 = vmatprep.subr.bf16.mxu0 0
    %4346 = vmatpush1.bf16.msra.mxu0 %v3073
    %4347 = vmatprep.subr.bf16.mxu0 0
    %4348 = vmatpush1.bf16.msra.mxu0 %v3074
    %4349 = vmatprep.subr.bf16.mxu0 0
    %4350 = vmatpush1.bf16.msra.mxu0 %v3075
    %4351 = vmatprep.subr.bf16.mxu0 0
    %4352 = vmatpush1.bf16.msra.mxu0 %v3076
    %4353 = vmatprep.subr.bf16.mxu0 0
    %4354 = vmatpush1.bf16.msra.mxu0 %v3077
    %4355 = vmatprep.subr.bf16.mxu0 0
    %4356 = vmatpush1.bf16.msra.mxu0 %v3078
    %4357 = vmatprep.subr.bf16.mxu0 0
    %4358 = vmatpush1.bf16.msra.mxu0 %v3079
    %4359 = vmatprep.subr.bf16.mxu0 0
    %4360 = vmatpush1.bf16.msra.mxu0 %v3080
    %4361 = vmatprep.subr.bf16.mxu0 0
    %4362 = vmatpush1.bf16.msra.mxu0 %v3081
    %4363 = vmatprep.subr.bf16.mxu0 0
    %4364 = vmatpush1.bf16.msra.mxu0 %v3082
    %4365 = vmatprep.subr.bf16.mxu0 0
    %4366 = vmatpush1.bf16.msra.mxu0 %v3083
    %4367 = vmatprep.subr.bf16.mxu0 0
    %4368 = vmatpush1.bf16.msra.mxu0 %v3084
    %4369 = vmatprep.subr.bf16.mxu0 0
    %4370 = vmatpush1.bf16.msra.mxu0 %v3085
    %4371 = vmatprep.subr.bf16.mxu0 0
    %4372 = vmatpush1.bf16.msra.mxu0 %v3086
    %4373 = vmatprep.subr.bf16.mxu0 0
    %4374 = vmatpush1.bf16.msra.mxu0 %v3087
    %4375 = vmatprep.subr.bf16.mxu0 0
    %4376 = vmatpush1.bf16.msra.mxu0 %v3088
    %4377 = vmatprep.mubr.bf16.mxu0 %v1151
    %4378 = vmatmul.mubr.bf16.gmra.mrb[0].mxu0 %v1149
    %v4379 = vpop.f32.mrb[0].mxu0
    %v4380 = vadd.f32 %v4340, %v4379
    %v4381 = vpop.f32.mrb[0].mxu0
    %v4382 = vpop.f32.mrb[0].mxu0
    %v4383 = vpop.f32.mrb[0].mxu0
    %4384 = vdwg.mxu0
    %4385 = vmatprep.subr.bf16.mxu0 0
    %4386 = vmatpush1.bf16.msra.mxu0 %v3089
    %4387 = vmatprep.subr.bf16.mxu0 0
    %4388 = vmatpush1.bf16.msra.mxu0 %v3090
    %4389 = vmatprep.subr.bf16.mxu0 0
    %4390 = vmatpush1.bf16.msra.mxu0 %v3091
    %4391 = vmatprep.subr.bf16.mxu0 0
    %4392 = vmatpush1.bf16.msra.mxu0 %v3092
    %4393 = vmatprep.subr.bf16.mxu0 0
    %4394 = vmatpush1.bf16.msra.mxu0 %v3093
    %4395 = vmatprep.subr.bf16.mxu0 0
    %4396 = vmatpush1.bf16.msra.mxu0 %v3094
    %4397 = vmatprep.subr.bf16.mxu0 0
    %4398 = vmatpush1.bf16.msra.mxu0 %v3095
    %4399 = vmatprep.subr.bf16.mxu0 0
    %4400 = vmatpush1.bf16.msra.mxu0 %v3096
    %4401 = vmatprep.subr.bf16.mxu0 0
    %4402 = vmatpush1.bf16.msra.mxu0 %v3097
    %4403 = vmatprep.subr.bf16.mxu0 0
    %4404 = vmatpush1.bf16.msra.mxu0 %v3098
    %4405 = vmatprep.subr.bf16.mxu0 0
    %4406 = vmatpush1.bf16.msra.mxu0 %v3099
    %4407 = vmatprep.subr.bf16.mxu0 0
    %4408 = vmatpush1.bf16.msra.mxu0 %v3100
    %4409 = vmatprep.subr.bf16.mxu0 0
    %4410 = vmatpush1.bf16.msra.mxu0 %v3101
    %4411 = vmatprep.subr.bf16.mxu0 0
    %4412 = vmatpush1.bf16.msra.mxu0 %v3102
    %4413 = vmatprep.subr.bf16.mxu0 0
    %4414 = vmatpush1.bf16.msra.mxu0 %v3103
    %4415 = vmatprep.subr.bf16.mxu0 0
    %4416 = vmatpush1.bf16.msra.mxu0 %v3104
    %4417 = vmatprep.mubr.bf16.mxu0 %v1148
    %4418 = vmatmul.mubr.bf16.gmra.mrb[0].mxu0 %v1134
    %v4419 = vpop.f32.mrb[0].mxu0
    %v4420 = vadd.f32 %v4380, %v4419
    %v4421 = vpop.f32.mrb[0].mxu0
    %v4422 = vpop.f32.mrb[0].mxu0
    %v4423 = vpop.f32.mrb[0].mxu0
    %4424 = vdwg.mxu0
    %4425 = vmatprep.subr.bf16.mxu0 0
    %4426 = vmatpush1.bf16.msra.mxu0 %v3105
    %4427 = vmatprep.subr.bf16.mxu0 0
    %4428 = vmatpush1.bf16.msra.mxu0 %v3106
    %4429 = vmatprep.subr.bf16.mxu0 0
    %4430 = vmatpush1.bf16.msra.mxu0 %v3107
    %4431 = vmatprep.subr.bf16.mxu0 0
    %4432 = vmatpush1.bf16.msra.mxu0 %v3108
    %4433 = vmatprep.subr.bf16.mxu0 0
    %4434 = vmatpush1.bf16.msra.mxu0 %v3109
    %4435 = vmatprep.subr.bf16.mxu0 0
    %4436 = vmatpush1.bf16.msra.mxu0 %v3110
    %4437 = vmatprep.subr.bf16.mxu0 0
    %4438 = vmatpush1.bf16.msra.mxu0 %v3111
    %4439 = vmatprep.subr.bf16.mxu0 0
    %4440 = vmatpush1.bf16.msra.mxu0 %v3112
    %4441 = vmatprep.subr.bf16.mxu0 0
    %4442 = vmatpush1.bf16.msra.mxu0 %v3113
    %4443 = vmatprep.subr.bf16.mxu0 0
    %4444 = vmatpush1.bf16.msra.mxu0 %v3114
    %4445 = vmatprep.subr.bf16.mxu0 0
    %4446 = vmatpush1.bf16.msra.mxu0 %v3115
    %4447 = vmatprep.subr.bf16.mxu0 0
    %4448 = vmatpush1.bf16.msra.mxu0 %v3116
    %4449 = vmatprep.subr.bf16.mxu0 0
    %4450 = vmatpush1.bf16.msra.mxu0 %v3117
    %4451 = vmatprep.subr.bf16.mxu0 0
    %4452 = vmatpush1.bf16.msra.mxu0 %v3118
    %4453 = vmatprep.subr.bf16.mxu0 0
    %4454 = vmatpush1.bf16.msra.mxu0 %v3119
    %4455 = vmatprep.subr.bf16.mxu0 0
    %4456 = vmatpush1.bf16.msra.mxu0 %v3120
    %4457 = vmatprep.mubr.bf16.mxu0 %v1152
    %4458 = vmatmul.mubr.bf16.gmra.mrb[0].mxu0 %v1150
    %v4459 = vpop.f32.mrb[0].mxu0
    %v4460 = vadd.f32 %v4420, %v4459
    %v4461 = vpop.f32.mrb[0].mxu0
    %v4462 = vpop.f32.mrb[0].mxu0
    %v4463 = vpop.f32.mrb[0].mxu0
    %4464 = vdwg.mxu0
    %v4465 = vmax.f32 %v4460, 0.0
    %v4466 = vpack.c.bf16 %v4465, %v4465
    %v4467 = vld [vmem:[#allocation6] sm:$0xf]
    %v4468 = vld [vmem:[#allocation6 + $0x4] sm:$0xf]
    %v4469 = vld [vmem:[#allocation6 + $0x8] sm:$0xf]
    %v4470 = vld [vmem:[#allocation6 + $0xc] sm:$0xf]
    %v4471 = vld [vmem:[#allocation6 + $0x10] sm:$0xf]
    %v4472 = vld [vmem:[#allocation6 + $0x14] sm:$0xf]
    %v4473 = vld [vmem:[#allocation6 + $0x18] sm:$0xf]
    %v4474 = vld [vmem:[#allocation6 + $0x1c] sm:$0xf]
    %v4475 = vld [vmem:[#allocation6 + $0x20] sm:$0xf]
    %v4476 = vld [vmem:[#allocation6 + $0x24] sm:$0xf]
    %v4477 = vld [vmem:[#allocation6 + $0x28] sm:$0xf]
    %v4478 = vld [vmem:[#allocation6 + $0x2c] sm:$0xf]
    %v4479 = vld [vmem:[#allocation6 + $0x30] sm:$0xf]
    %v4480 = vld [vmem:[#allocation6 + $0x34] sm:$0xf]
    %v4481 = vld [vmem:[#allocation6 + $0x38] sm:$0xf]
    %v4482 = vld [vmem:[#allocation6 + $0x3c] sm:$0xf]
    %v4483 = vld [vmem:[#allocation7] sm:$0x1]
    %v4485 = vlaneseq
    %v4486 = vshrl.u32 %v4485, 7
    %v4487 = vsub.s32 0, %v4486
    %v4488 = vrot.slane %v4483, %v4487
    %v4506 = vunpack.c.l.b16 %v4467
    %v4507 = vunpack.c.l.b16 %v4468
    %v4508 = vunpack.c.l.b16 %v4469
    %v4509 = vunpack.c.l.b16 %v4470
    %v4510 = vunpack.c.l.b16 %v4471
    %v4511 = vunpack.c.l.b16 %v4472
    %v4512 = vunpack.c.l.b16 %v4473
    %v4513 = vunpack.c.l.b16 %v4474
    %v4514 = vunpack.c.l.b16 %v4475
    %v4515 = vunpack.c.l.b16 %v4476
    %v4516 = vunpack.c.l.b16 %v4477
    %v4517 = vunpack.c.l.b16 %v4478
    %v4518 = vunpack.c.l.b16 %v4479
    %v4519 = vunpack.c.l.b16 %v4480
    %v4520 = vunpack.c.l.b16 %v4481
    %v4521 = vunpack.c.l.b16 %v4482
    %v4522 = vpack.c.b16 %v4507, %v4506
    %v4523 = vpack.c.b16 %v4509, %v4508
    %v4524 = vpack.c.b16 %v4511, %v4510
    %v4525 = vpack.c.b16 %v4513, %v4512
    %v4526 = vpack.c.b16 %v4515, %v4514
    %v4527 = vpack.c.b16 %v4517, %v4516
    %v4528 = vpack.c.b16 %v4519, %v4518
    %v4529 = vpack.c.b16 %v4521, %v4520
    %4538 = vmatprep.subr.bf16.mxu0 0
    %4539 = vmatpush1.bf16.msra.mxu0 %v4522
    %4540 = vmatprep.subr.bf16.mxu0 0
    %4541 = vmatpush1.bf16.msra.mxu0 %v4523
    %4542 = vmatprep.subr.bf16.mxu0 0
    %4543 = vmatpush1.bf16.msra.mxu0 %v4524
    %4544 = vmatprep.subr.bf16.mxu0 0
    %4545 = vmatpush1.bf16.msra.mxu0 %v4525
    %4546 = vmatprep.subr.bf16.mxu0 0
    %4547 = vmatpush1.bf16.msra.mxu0 %v4526
    %4548 = vmatprep.subr.bf16.mxu0 0
    %4549 = vmatpush1.bf16.msra.mxu0 %v4527
    %4550 = vmatprep.subr.bf16.mxu0 0
    %4551 = vmatpush1.bf16.msra.mxu0 %v4528
    %4552 = vmatprep.subr.bf16.mxu0 0
    %4553 = vmatpush1.bf16.msra.mxu0 %v4529
    %4554 = vmatprep.subr.bf16.mxu0 0
    %4555 = vmatpush1.bf16.msra.mxu0 0
    %4556 = vmatprep.subr.bf16.mxu0 0
    %4557 = vmatpush1.bf16.msra.mxu0 0
    %4558 = vmatprep.subr.bf16.mxu0 0
    %4559 = vmatpush1.bf16.msra.mxu0 0
    %4560 = vmatprep.subr.bf16.mxu0 0
    %4561 = vmatpush1.bf16.msra.mxu0 0
    %4562 = vmatprep.subr.bf16.mxu0 0
    %4563 = vmatpush1.bf16.msra.mxu0 0
    %4564 = vmatprep.subr.bf16.mxu0 0
    %4565 = vmatpush1.bf16.msra.mxu0 0
    %4566 = vmatprep.subr.bf16.mxu0 0
    %4567 = vmatpush1.bf16.msra.mxu0 0
    %4568 = vmatprep.subr.bf16.mxu0 0
    %4569 = vmatpush1.bf16.msra.mxu0 0
    %4570 = vmatprep.mubr.bf16.mxu0 0
    %4571 = vmatmul.mubr.bf16.gmra.mrb[0].mxu0 %v4466
    %v4572 = vpop.f32.mrb[0].mxu0
    %v4573 = vadd.f32 %v4488, %v4572
    %v4574 = vpop.f32.mrb[0].mxu0
    %v4575 = vpop.f32.mrb[0].mxu0
    %v4576 = vpop.f32.mrb[0].mxu0
    %4577 = vdwg.mxu0
    %4578 = vst [vmem:[%s5] sm:$0x3] %v4573
    // Predicated region
    $region38: #{tabcnn_forward.3} parent=1 // pred_check
      _
    $region39: #{tabcnn_forward.3} parent=1 // pred_check_branch
      %4580 = sbr.rel (0) target = $region41
    $region40: #{tabcnn_forward.3} parent=1 // pred_region
      _
    $region41: #{tabcnn_forward.3} parent=1 // pred_fallthru
      _
    // Predicated region
    $region42: #{tabcnn_forward.3} parent=1 // pred_check
      _
    $region43: #{tabcnn_forward.3} parent=1 // pred_check_branch
      %4582 = sbr.rel (0) target = $region45
    $region44: #{tabcnn_forward.3} parent=1 // pred_region
      _
    $region45: #{tabcnn_forward.3} parent=1 // pred_fallthru
      _
    %4583 = vsyncpa [#allocation3], 1
    %4584 = vsyncpa [#allocation5], 1
    %4585 = vsyncpa [#allocation8], 1

// kernel: tabcnn_forward.2
$region0: #{tabcnn_forward.2}
  #allocation0 [shape = 'u32[]', space=smem, size = 0x4, offset = 0x4, fixed_abs, tag = 'smem constant byte address 0x4 - core index']
  #allocation1 [shape = 'u32[144,128]{1,0:T(1,128)}', space=vmem, size = 0x12000, scoped, tag = 'internal scratch']
  #allocation2 [shape = 'f32[192,192]{1,0:T(8,128)}', space=vmem, size = 0x30000, scoped, tag = 'scratch operand']
  #allocation3 [shape = 'f32[192,256]{1,0:T(8,128)}', space=vmem, size = 0x30000, scoped, tag = 'scratch operand']
  #allocation4 [shape = 'f32[192,128]{1,0:T(8,128)}', space=vmem, size = 0x18000, scoped, tag = 'scratch operand']
  #allocation5 [shape = 'f32[96,128]{1,0:T(8,128)}', space=vmem, size = 0xc000, scoped, tag = 'scratch operand']
  %s0 = inlined_call_operand.vmem [shape: f32[2,192,9], index: 0, kind: input, shape index: {}]
  %s1 = inlined_call_operand.hbm [shape: bf16[27,192], index: 1, kind: input, shape index: {}]
  %s2 = inlined_call_operand.hbm [shape: f32[1,192], index: 2, kind: input, shape index: {}]
  %s3 = inlined_call_operand.hbm [shape: bf16[384,128], index: 3, kind: input, shape index: {}]
  %s4 = inlined_call_operand.hbm [shape: f32[1,256], index: 4, kind: input, shape index: {}]
  %s5 = inlined_call_operand.hbm [shape: bf16[768,128], index: 5, kind: input, shape index: {}]
  %s6 = inlined_call_operand.hbm [shape: f32[1,128], index: 6, kind: input, shape index: {}]
  %s7 = inlined_call_operand.vmem [shape: bf16[2,48,128], index: 7, kind: output, shape index: {}]
  %s8 = sld [smem:[#allocation0]]
  $region85: #{tabcnn_forward.2} parent=0
    _
  %s10 = ssub.s32 1, %s8
  %s11 = scalar_select 0, %s10, %s8
  $region1: #{tabcnn_forward.2} parent=0
    #allocation6 [shape = 'u8[16384]{0}', space=vmem, size = 0x4000, scoped, tag = 'input window, operand 1, single buffered']
    #allocation7 [shape = 's32[2]{0}', space=sflag, size = 0x8, scoped, tag = 'scoped memory for tabcnn_forward.2']
    #allocation8 [shape = 'u8[1024]{0}', space=vmem, size = 0x400, scoped, tag = 'input window, operand 2, single buffered']
    #allocation9 [shape = 's32[1]{0}', space=sflag, size = 0x4, scoped, tag = 'scoped memory for tabcnn_forward.2']
    #allocation10 [shape = 'u8[98304]{0}', space=vmem, size = 0x18000, scoped, tag = 'input window, operand 3, single buffered']
    #allocation11 [shape = 'u8[1024]{0}', space=vmem, size = 0x400, scoped, tag = 'input window, operand 4, single buffered']
    #allocation12 [shape = 's32[1]{0}', space=sflag, size = 0x4, scoped, tag = 'scoped memory for tabcnn_forward.2']
    #allocation13 [shape = 'u8[196608]{0}', space=vmem, size = 0x30000, scoped, tag = 'input window, operand 5, single buffered']
    #allocation14 [shape = 'u8[512]{0}', space=vmem, size = 0x400, scoped, tag = 'input window, operand 6, single buffered']
    #allocation15 [shape = 's32[1]{0}', space=sflag, size = 0x4, scoped, tag = 'scoped memory for tabcnn_forward.2']
    %12 = vsyncpa [#allocation7], 0
    %13 = vsyncpa [#allocation9], 0
    %14 = vsyncpa [#allocation12], 0
    %15 = vsyncpa [#allocation15], 0
    loop: start=0, step=1, limit=4
    $region2: #{tabcnn_forward.2} parent=1 // loop_pre_header
      _
    $region3: #{tabcnn_forward.2} parent=1 // loop_header
      %s17 = sphi 0, %s21
      %p18 = scmp.ge.s32.totalorder %s17, 4
      %s27 = sphi 0, %s29
      %s30 = sphi 0, %s27
      %s31 = sphi 0, %s30
      %s47 = sphi 0, %s31
      %s51 = sphi 0, %s51
      %s53 = sphi 0, %s51
      %s54 = sphi 0, %s53
      %s68 = sphi 0, %s54
      %s72 = sphi 0, %s72
      %s74 = sphi 0, %s72
      %s75 = sphi 0, %s74
      %s89 = sphi 0, %s75
      %s93 = sphi 0, %s93
      %s95 = sphi 0, %s93
      %s96 = sphi 0, %s95
      %s110 = sphi 0, %s96
      %s114 = sphi 0, %s114
      %s116 = sphi 0, %s114
      %s117 = sphi 0, %s116
      %s131 = sphi 0, %s117
      %s135 = sphi 0, %s135
      %s137 = sphi 0, %s135
      %s138 = sphi 0, %s137
      %s152 = sphi 0, %s138
      %s156 = sphi 0, %s156
      %s158 = sphi 0, %s156
      %s159 = sphi 0, %s158
      %s173 = sphi 0, %s159
      %s179 = sphi 0, %s181
      %s182 = sphi 0, %s179
      %s183 = sphi 0, %s182
      %s199 = sphi 0, %s183
    $region4: #{tabcnn_forward.2} parent=1 // loop_header_branch
      %20 = sbr.rel (%p18) target = $region8
    $region5: #{tabcnn_forward.2} parent=1 // loop_body
      %s22 = ssub.s32 %s17, 1
      %s23 = ssub.s32 %s17, 2
      %s24 = sadd.s32 %s17, 1
      %s25 = ssub.s32 %s17, %s24
      %p26 = scmp.eq.s32.totalorder %s25, 0
      %s28 = sadd.s32 %s27, 1
      %s29 = scalar_select %p26, %s27, %s28
      %p32 = pneg %p26
      %p33 = scmp.eq.s32.totalorder %s17, 1
      %p34 = por %p32, %p33
      %p35 = scmp.ne.s32.totalorder %s27, %s30
      %p36 = scmp.eq.s32.totalorder %s17, 0
      %p37 = por %p35, %p36
      %p38 = scmp.ne.s32.totalorder %s27, %s30
      %p39 = scmp.eq.s32.totalorder %s22, 1
      %p40 = por %p38, %p39
      %p41 = scmp.ne.s32.totalorder %s30, %s31
      %p42 = scmp.eq.s32.totalorder %s22, 0
      %p43 = por %p41, %p42
      %p44 = scmp.ne.s32.totalorder %s30, %s31
      %p45 = scmp.eq.s32.totalorder %s23, 1
      %p46 = por %p44, %p45
      %p48 = scmp.ne.s32.totalorder %s31, %s47
      %p49 = scmp.eq.s32.totalorder %s23, 0
      %p50 = por %p48, %p49
      %s52 = sadd.s32 %s51, 1
      %p55 = scmp.eq.s32.totalorder %s17, 1
      %p56 = scmp.ne.s32.totalorder %s51, %s53
      %p57 = scmp.eq.s32.totalorder %s17, 0
      %p58 = por %p56, %p57
      %p59 = scmp.ne.s32.totalorder %s51, %s53
      %p60 = scmp.eq.s32.totalorder %s22, 1
      %p61 = por %p59, %p60
      %p62 = scmp.ne.s32.totalorder %s53, %s54
      %p63 = scmp.eq.s32.totalorder %s22, 0
      %p64 = por %p62, %p63
      %p65 = scmp.ne.s32.totalorder %s53, %s54
      %p66 = scmp.eq.s32.totalorder %s23, 1
      %p67 = por %p65, %p66
      %p69 = scmp.ne.s32.totalorder %s54, %s68
      %p70 = scmp.eq.s32.totalorder %s23, 0
      %p71 = por %p69, %p70
      %s73 = sadd.s32 %s72, 1
      %p76 = scmp.eq.s32.totalorder %s17, 1
      %p77 = scmp.ne.s32.totalorder %s72, %s74
      %p78 = scmp.eq.s32.totalorder %s17, 0
      %p79 = por %p77, %p78
      %p80 = scmp.ne.s32.totalorder %s72, %s74
      %p81 = scmp.eq.s32.totalorder %s22, 1
      %p82 = por %p80, %p81
      %p83 = scmp.ne.s32.totalorder %s74, %s75
      %p84 = scmp.eq.s32.totalorder %s22, 0
      %p85 = por %p83, %p84
      %p86 = scmp.ne.s32.totalorder %s74, %s75
      %p87 = scmp.eq.s32.totalorder %s23, 1
      %p88 = por %p86, %p87
      %p90 = scmp.ne.s32.totalorder %s75, %s89
      %p91 = scmp.eq.s32.totalorder %s23, 0
      %p92 = por %p90, %p91
      %s94 = sadd.s32 %s93, 1
      %p97 = scmp.eq.s32.totalorder %s17, 1
      %p98 = scmp.ne.s32.totalorder %s93, %s95
      %p99 = scmp.eq.s32.totalorder %s17, 0
      %p100 = por %p98, %p99
      %p101 = scmp.ne.s32.totalorder %s93, %s95
      %p102 = scmp.eq.s32.totalorder %s22, 1
      %p103 = por %p101, %p102
      %p104 = scmp.ne.s32.totalorder %s95, %s96
      %p105 = scmp.eq.s32.totalorder %s22, 0
      %p106 = por %p104, %p105
      %p107 = scmp.ne.s32.totalorder %s95, %s96
      %p108 = scmp.eq.s32.totalorder %s23, 1
      %p109 = por %p107, %p108
      %p111 = scmp.ne.s32.totalorder %s96, %s110
      %p112 = scmp.eq.s32.totalorder %s23, 0
      %p113 = por %p111, %p112
      %s115 = sadd.s32 %s114, 1
      %p118 = scmp.eq.s32.totalorder %s17, 1
      %p119 = scmp.ne.s32.totalorder %s114, %s116
      %p120 = scmp.eq.s32.totalorder %s17, 0
      %p121 = por %p119, %p120
      %p122 = scmp.ne.s32.totalorder %s114, %s116
      %p123 = scmp.eq.s32.totalorder %s22, 1
      %p124 = por %p122, %p123
      %p125 = scmp.ne.s32.totalorder %s116, %s117
      %p126 = scmp.eq.s32.totalorder %s22, 0
      %p127 = por %p125, %p126
      %p128 = scmp.ne.s32.totalorder %s116, %s117
      %p129 = scmp.eq.s32.totalorder %s23, 1
      %p130 = por %p128, %p129
      %p132 = scmp.ne.s32.totalorder %s117, %s131
      %p133 = scmp.eq.s32.totalorder %s23, 0
      %p134 = por %p132, %p133
      %s136 = sadd.s32 %s135, 1
      %p139 = scmp.eq.s32.totalorder %s17, 1
      %p140 = scmp.ne.s32.totalorder %s135, %s137
      %p141 = scmp.eq.s32.totalorder %s17, 0
      %p142 = por %p140, %p141
      %p143 = scmp.ne.s32.totalorder %s135, %s137
      %p144 = scmp.eq.s32.totalorder %s22, 1
      %p145 = por %p143, %p144
      %p146 = scmp.ne.s32.totalorder %s137, %s138
      %p147 = scmp.eq.s32.totalorder %s22, 0
      %p148 = por %p146, %p147
      %p149 = scmp.ne.s32.totalorder %s137, %s138
      %p150 = scmp.eq.s32.totalorder %s23, 1
      %p151 = por %p149, %p150
      %p153 = scmp.ne.s32.totalorder %s138, %s152
      %p154 = scmp.eq.s32.totalorder %s23, 0
      %p155 = por %p153, %p154
      %s157 = sadd.s32 %s156, 1
      %p160 = scmp.eq.s32.totalorder %s17, 1
      %p161 = scmp.ne.s32.totalorder %s156, %s158
      %p162 = scmp.eq.s32.totalorder %s17, 0
      %p163 = por %p161, %p162
      %p164 = scmp.ne.s32.totalorder %s156, %s158
      %p165 = scmp.eq.s32.totalorder %s22, 1
      %p166 = por %p164, %p165
      %p167 = scmp.ne.s32.totalorder %s158, %s159
      %p168 = scmp.eq.s32.totalorder %s22, 0
      %p169 = por %p167, %p168
      %p170 = scmp.ne.s32.totalorder %s158, %s159
      %p171 = scmp.eq.s32.totalorder %s23, 1
      %p172 = por %p170, %p171
      %p174 = scmp.ne.s32.totalorder %s159, %s173
      %p175 = scmp.eq.s32.totalorder %s23, 0
      %p176 = por %p174, %p175
      %s177 = ssub.s32 %s17, %s24
      %p178 = scmp.eq.s32.totalorder %s177, 0
      %s180 = sadd.s32 %s179, 1
      %s181 = scalar_select %p178, %s179, %s180
      %p184 = pneg %p178
      %p185 = scmp.eq.s32.totalorder %s17, 1
      %p186 = por %p184, %p185
      %p187 = scmp.ne.s32.totalorder %s179, %s182
      %p188 = scmp.eq.s32.totalorder %s17, 0
      %p189 = por %p187, %p188
      %p190 = scmp.ne.s32.totalorder %s179, %s182
      %p191 = scmp.eq.s32.totalorder %s22, 1
      %p192 = por %p190, %p191
      %p193 = scmp.ne.s32.totalorder %s182, %s183
      %p194 = scmp.eq.s32.totalorder %s22, 0
      %p195 = por %p193, %p194
      %p196 = scmp.ne.s32.totalorder %s182, %s183
      %p197 = scmp.eq.s32.totalorder %s23, 1
      %p198 = por %p196, %p197
      %p200 = scmp.ne.s32.totalorder %s183, %s199
      %p201 = scmp.eq.s32.totalorder %s23, 0
      %p202 = por %p200, %p201
      %p203 = scmp.le.s32.totalorder 1, %s17
      %p204 = scmp.lt.s32.totalorder %s17, 3
      %p205 = pnand %p203, %p204
      %p206 = pneg %p205
      // Predicated region
      $region9: #{tabcnn_forward.2} parent=5 // pred_check
        _
      $region10: #{tabcnn_forward.2} parent=5 // pred_check_branch
        %208 = sbr.rel (%p205) target = $region12
      $region11: #{tabcnn_forward.2} parent=5 // pred_region
        %s209 = ssub.s32 %s17, 1
        // Predicated region
        $region13: #{tabcnn_forward.2} parent=11 // pred_check
          %p210 = pneg %p64
        $region14: #{tabcnn_forward.2} parent=11 // pred_check_branch
          %212 = sbr.rel (%p210) target = $region16
        $region15: #{tabcnn_forward.2} parent=11 // pred_region
          %s214 = ssub.s32 512, 512
          %215 = vsyncadd [#allocation7], %s214
          %s216 = sshll.u32 [#allocation6], 4
          %s217 = int_to_ptr.vmem [resolvable:$true] %s216
          %222 = dma.hbm_to_vmem [thread:$0]  %s1, 512, %s217, [#allocation7], 128, 128, 8
        $region16: #{tabcnn_forward.2} parent=11 // pred_fallthru
          _
        // Predicated region
        $region17: #{tabcnn_forward.2} parent=11 // pred_check
          %p223 = pneg %p85
        $region18: #{tabcnn_forward.2} parent=11 // pred_check_branch
          %225 = sbr.rel (%p223) target = $region20
        $region19: #{tabcnn_forward.2} parent=11 // pred_region
          %s227 = ssub.s32 32, 32
          %228 = vsyncadd [#allocation9], %s227
          %s230 = sshll.u32 [#allocation8], 4
          %s231 = int_to_ptr.vmem [resolvable:$true] %s230
          %233 = dma.hbm_to_vmem [thread:$0]  %s2, 32, %s231, [#allocation9]
        $region20: #{tabcnn_forward.2} parent=11 // pred_fallthru
          _
        // Predicated region
        $region21: #{tabcnn_forward.2} parent=11 // pred_check
          %p234 = pneg %p106
        $region22: #{tabcnn_forward.2} parent=11 // pred_check_branch
          %236 = sbr.rel (%p234) target = $region24
        $region23: #{tabcnn_forward.2} parent=11 // pred_region
          %s238 = ssub.s32 3072, 3072
          %239 = vsyncadd [#allocation9], %s238
          %s240 = sshll.u32 [#allocation10], 4
          %s241 = int_to_ptr.vmem [resolvable:$true] %s240
          %246 = dma.hbm_to_vmem [thread:$0]  %s3, 3072, %s241, [#allocation9], 64, 64, 4
        $region24: #{tabcnn_forward.2} parent=11 // pred_fallthru
          _
        // Predicated region
        $region25: #{tabcnn_forward.2} parent=11 // pred_check
          %p247 = pneg %p127
        $region26: #{tabcnn_forward.2} parent=11 // pred_check_branch
          %249 = sbr.rel (%p247) target = $region28
        $region27: #{tabcnn_forward.2} parent=11 // pred_region
          %s251 = ssub.s32 32, 32
          %252 = vsyncadd [#allocation12], %s251
          %s254 = sshll.u32 [#allocation11], 4
          %s255 = int_to_ptr.vmem [resolvable:$true] %s254
          %257 = dma.hbm_to_vmem [thread:$0]  %s4, 32, %s255, [#allocation12]
        $region28: #{tabcnn_forward.2} parent=11 // pred_fallthru
          _
        // Predicated region
        $region29: #{tabcnn_forward.2} parent=11 // pred_check
          %p258 = pneg %p148
        $region30: #{tabcnn_forward.2} parent=11 // pred_check_branch
          %260 = sbr.rel (%p258) target = $region32
        $region31: #{tabcnn_forward.2} parent=11 // pred_region
          %s262 = ssub.s32 6144, 6144
          %263 = vsyncadd [#allocation12], %s262
          %s264 = sshll.u32 [#allocation13], 4
          %s265 = int_to_ptr.vmem [resolvable:$true] %s264
          %270 = dma.hbm_to_vmem [thread:$0]  %s5, 6144, %s265, [#allocation12], 64, 64, 4
        $region32: #{tabcnn_forward.2} parent=11 // pred_fallthru
          _
        // Predicated region
        $region33: #{tabcnn_forward.2} parent=11 // pred_check
          %p271 = pneg %p169
        $region34: #{tabcnn_forward.2} parent=11 // pred_check_branch
          %273 = sbr.rel (%p271) target = $region36
        $region35: #{tabcnn_forward.2} parent=11 // pred_region
          %s275 = ssub.s32 16, 16
          %276 = vsyncadd [#allocation15], %s275
          %s278 = sshll.u32 [#allocation14], 4
          %s279 = int_to_ptr.vmem [resolvable:$true] %s278
          %281 = dma.hbm_to_vmem [thread:$0]  %s6, 16, %s279, [#allocation15]
        $region36: #{tabcnn_forward.2} parent=11 // pred_fallthru
          _
      $region12: #{tabcnn_forward.2} parent=5 // pred_fallthru
        _
      %p282 = scmp.lt.s32.totalorder %s17, 2
      // Predicated region
      $region37: #{tabcnn_forward.2} parent=5 // pred_check
        %p283 = pneg %p282
      $region38: #{tabcnn_forward.2} parent=5 // pred_check_branch
        %285 = sbr.rel (%p283) target = $region40
      $region39: #{tabcnn_forward.2} parent=5 // pred_region
        // Predicated region
        $region41: #{tabcnn_forward.2} parent=39 // pred_check
          %p286 = pneg %p37
        $region42: #{tabcnn_forward.2} parent=39 // pred_check_branch
          %288 = sbr.rel (%p286) target = $region44
        $region43: #{tabcnn_forward.2} parent=39 // pred_region
          %p289 = scmp.lt.s32.totalorder %s17, 1
          %s290 = scalar_select %p289, %s17, 1
          %s291 = smul.addr %s290, 24
          %s292 = smul.addr %s291, 8
          %s293 = scalar_lea.vmem %s0, %s292
        $region44: #{tabcnn_forward.2} parent=39 // pred_fallthru
          _
      $region40: #{tabcnn_forward.2} parent=5 // pred_fallthru
        _
      %p294 = scmp.le.s32.totalorder 1, %s17
      %p295 = scmp.lt.s32.totalorder %s17, 3
      %p296 = pnand %p294, %p295
      %p297 = pneg %p296
      // Predicated region
      $region45: #{tabcnn_forward.2} parent=5 // pred_check
        _
      $region46: #{tabcnn_forward.2} parent=5 // pred_check_branch
        %299 = sbr.rel (%p296) target = $region48
      $region47: #{tabcnn_forward.2} parent=5 // pred_region
        %s300 = ssub.s32 %s17, 1
        // Predicated region
        $region49: #{tabcnn_forward.2} parent=47 // pred_check
          %p301 = pneg %p64
        $region50: #{tabcnn_forward.2} parent=47 // pred_check_branch
          %303 = sbr.rel (%p301) target = $region52
        $region51: #{tabcnn_forward.2} parent=47 // pred_region
          %304 = dma.done [#allocation7], 512
        $region52: #{tabcnn_forward.2} parent=47 // pred_fallthru
          _
        // Predicated region
        $region53: #{tabcnn_forward.2} parent=47 // pred_check
          %p305 = pneg %p85
        $region54: #{tabcnn_forward.2} parent=47 // pred_check_branch
          %307 = sbr.rel (%p305) target = $region56
        $region55: #{tabcnn_forward.2} parent=47 // pred_region
          %308 = dma.done [#allocation9], 32
        $region56: #{tabcnn_forward.2} parent=47 // pred_fallthru
          _
        // Predicated region
        $region57: #{tabcnn_forward.2} parent=47 // pred_check
          %p309 = pneg %p106
        $region58: #{tabcnn_forward.2} parent=47 // pred_check_branch
          %311 = sbr.rel (%p309) target = $region60
        $region59: #{tabcnn_forward.2} parent=47 // pred_region
          %312 = dma.done [#allocation9], 3072
        $region60: #{tabcnn_forward.2} parent=47 // pred_fallthru
          _
        // Predicated region
        $region61: #{tabcnn_forward.2} parent=47 // pred_check
          %p313 = pneg %p127
        $region62: #{tabcnn_forward.2} parent=47 // pred_check_branch
          %315 = sbr.rel (%p313) target = $region64
        $region63: #{tabcnn_forward.2} parent=47 // pred_region
          %316 = dma.done [#allocation12], 32
        $region64: #{tabcnn_forward.2} parent=47 // pred_fallthru
          _
        // Predicated region
        $region65: #{tabcnn_forward.2} parent=47 // pred_check
          %p317 = pneg %p148
        $region66: #{tabcnn_forward.2} parent=47 // pred_check_branch
          %319 = sbr.rel (%p317) target = $region68
        $region67: #{tabcnn_forward.2} parent=47 // pred_region
          %320 = dma.done [#allocation12], 6144
        $region68: #{tabcnn_forward.2} parent=47 // pred_fallthru
          _
        // Predicated region
        $region69: #{tabcnn_forward.2} parent=47 // pred_check
          %p321 = pneg %p169
        $region70: #{tabcnn_forward.2} parent=47 // pred_check_branch
          %323 = sbr.rel (%p321) target = $region72
        $region71: #{tabcnn_forward.2} parent=47 // pred_region
          %324 = dma.done [#allocation15], 16
        $region72: #{tabcnn_forward.2} parent=47 // pred_fallthru
          _
        %p325 = scmp.lt.s32.totalorder %s22, 1
        %s326 = scalar_select %p325, %s22, 1
        %s327 = smul.addr %s326, 24
        %s328 = smul.addr %s327, 8
        %s329 = scalar_lea.vmem %s0, %s328
        %p330 = pneg %p43
        %p331 = pneg %p40
        %p332 = pneg %p64
        %p333 = pneg %p61
        %p334 = pneg %p85
        %p335 = pneg %p82
        %p336 = pneg %p106
        %p337 = pneg %p103
        %p338 = pneg %p127
        %p339 = pneg %p124
        %p340 = pneg %p148
        %p341 = pneg %p145
        %p342 = pneg %p169
        %p343 = pneg %p166
        %p344 = pneg %p195
        %p345 = pneg %p192
        %p346 = scmp.lt.s32.totalorder %s22, 1
        %s347 = scalar_select %p346, %s22, 1
        %s348 = smul.addr %s347, 6
        %s349 = smul.addr %s348, 4
        %s350 = scalar_lea.vmem %s7, %s349
        %p351 = scmp.lt.s32.totalorder %s22, 1
        %s352 = scalar_select %p351, %s22, 1
        %s353 = smul.addr %s352, 24
        %s354 = smul.addr %s353, 8
        %s355 = scalar_lea.vmem %s0, %s354
        %p356 = scmp.lt.s32.totalorder %s22, 1
        %s357 = scalar_select %p356, %s22, 1
        %s358 = smul.addr %s357, 6
        %s359 = smul.addr %s358, 4
        %s360 = scalar_lea.vmem %s7, %s359
        %362 = vst [vmem:[#allocation4 + $0xba] sm:$0x3f] 0.0
        %v363 = vld [vmem:[%s355] sm:$0xff]
        %v364 = vld [vmem:[%s355 + $0x8] sm:$0xff]
        %v365 = vld [vmem:[%s355 + $0x10] sm:$0xff]
        %v366 = vld [vmem:[%s355 + $0x18] sm:$0xff]
        %v367 = vld [vmem:[%s355 + $0x20] sm:$0xff]
        %v368 = vld [vmem:[%s355 + $0x28] sm:$0xff]
        %v369 = vld [vmem:[%s355 + $0x30] sm:$0xff]
        %v370 = vld [vmem:[%s355 + $0x38] sm:$0xff]
        %v371 = vld [vmem:[%s355 + $0x40] sm:$0xff]
        %v372 = vld [vmem:[%s355 + $0x48] sm:$0xff]
        %v373 = vld [vmem:[%s355 + $0x50] sm:$0xff]
        %v374 = vld [vmem:[%s355 + $0x58] sm:$0xff]
        %v375 = vpack.c.bf16 %v364, %v363
        %v376 = vpack.c.bf16 %v366, %v365
        %v377 = vpack.c.bf16 %v368, %v367
        %v378 = vpack.c.bf16 %v370, %v369
        %v379 = vpack.c.bf16 %v372, %v371
        %v380 = vpack.c.bf16 %v374, %v373
        %v381 = vld [vmem:[#allocation6] sm:$0xff]
        %v382 = vld [vmem:[#allocation6 + $0x8] sm:$0x11]
        %v383 = vld [vmem:[%s355 + $0x1] sm:$0xff]
        %v384 = vld [vmem:[%s355 + $0x9] sm:$0xff]
        %v385 = vld [vmem:[%s355 + $0x11] sm:$0xff]
        %v386 = vld [vmem:[%s355 + $0x19] sm:$0xff]
        %v387 = vld [vmem:[%s355 + $0x21] sm:$0xff]
        %v388 = vld [vmem:[%s355 + $0x29] sm:$0xff]
        %v389 = vld [vmem:[%s355 + $0x31] sm:$0xff]
        %v390 = vld [vmem:[%s355 + $0x39] sm:$0xff]
        %v391 = vld [vmem:[%s355 + $0x41] sm:$0xff]
        %v392 = vld [vmem:[%s355 + $0x49] sm:$0xff]
        %v393 = vld [vmem:[%s355 + $0x51] sm:$0xff]
        %v394 = vld [vmem:[%s355 + $0x59] sm:$0xff]
        %v395 = vpack.c.bf16 %v384, %v383
        %v396 = vpack.c.bf16 %v386, %v385
        %v397 = vpack.c.bf16 %v388, %v387
        %v398 = vpack.c.bf16 %v390, %v389
        %v399 = vpack.c.bf16 %v392, %v391
        %v400 = vpack.c.bf16 %v394, %v393
        %v401 = vld [vmem:[#allocation6 + $0x8] sm:$0xff]
        %v402 = vld [vmem:[#allocation6 + $0x10] sm:$0x11]
        %v405 = vunpack.c.l.b16 %v401
        %v406 = vunpack.c.h.b16 %v401
        %v407 = vunpack.c.l.b16 %v402
        %v408 = vunpack.c.h.b16 %v402
        %v409 = vpack.c.b16 %v407, %v405
        %v410 = vpack.c.b16 %v408, %v406
        %v412 = vshrl.u32 %v409, 16
        %v414 = vshll.u32 %v409, 16
        %v416 = vrot.slane %v414, 1
        %v417 = vor.u32 %v412, %v416
        %v419 = vshrl.u32 %v410, 16
        %v421 = vshll.u32 %v410, 16
        %v423 = vrot.slane %v421, 1
        %v424 = vor.u32 %v419, %v423
        %vm425 = vcmask 72704
        %v427 = vsel %vm425, %v395, 0
        %v430 = vsel %vm425, %v396, 0
        %v433 = vsel %vm425, %v397, 0
        %v436 = vsel %vm425, %v398, 0
        %v439 = vsel %vm425, %v399, 0
        %v442 = vsel %vm425, %v400, 0
        %vm444 = vcmask 1043456
        %vm445 = vcmask 1044480
        %v446 = vsel %vm444, 4294967295, 65535
        %v447 = vsel %vm445, %v446, 0
        %v449 = vand.u32 %v417, %v447
        %v452 = vand.u32 %v424, %v447
        %454 = vmatprep.subr.bf16.mxu0 %v452
        %455 = vmatpush1.bf16.msra.mxu0 %v449
        %456 = vmatprep.subr.bf16.mxu0 0
        %457 = vmatpush1.bf16.msra.mxu0 0
        %458 = vmatprep.subr.bf16.mxu0 0
        %459 = vmatpush1.bf16.msra.mxu0 0
        %460 = vmatprep.subr.bf16.mxu0 0
        %461 = vmatpush1.bf16.msra.mxu0 0
        %462 = vmatprep.subr.bf16.mxu0 0
        %463 = vmatpush1.bf16.msra.mxu0 0
        %464 = vmatprep.subr.bf16.mxu0 0
        %465 = vmatpush1.bf16.msra.mxu0 0
        %466 = vmatprep.subr.bf16.mxu0 0
        %467 = vmatpush1.bf16.msra.mxu0 0
        %468 = vmatprep.subr.bf16.mxu0 0
        %469 = vmatpush1.bf16.msra.mxu0 0
        %470 = vmatprep.subr.bf16.mxu0 0
        %471 = vmatpush1.bf16.msra.mxu0 0
        %472 = vmatprep.subr.bf16.mxu0 0
        %473 = vmatpush1.bf16.msra.mxu0 0
        %474 = vmatprep.subr.bf16.mxu0 0
        %475 = vmatpush1.bf16.msra.mxu0 0
        %476 = vmatprep.subr.bf16.mxu0 0
        %477 = vmatpush1.bf16.msra.mxu0 0
        %478 = vmatprep.subr.bf16.mxu0 0
        %479 = vmatpush1.bf16.msra.mxu0 0
        %480 = vmatprep.subr.bf16.mxu0 0
        %481 = vmatpush1.bf16.msra.mxu0 0
        %482 = vmatprep.subr.bf16.mxu0 0
        %483 = vmatpush1.bf16.msra.mxu0 0
        %484 = vmatprep.subr.bf16.mxu0 0
        %485 = vmatpush1.bf16.msra.mxu0 0
        %486 = vmatprep.mubr.bf16.mxu0 0
        %487 = vmatmul.mubr.bf16.gmra.mrb[0].mxu0 %v427
        %v488 = vpop.f32.mrb[0].mxu0
        %v489 = vadd.f32 0.0, %v488
        %v490 = vpop.f32.mrb[0].mxu0
        %v491 = vadd.f32 0.0, %v490
        %v492 = vpop.f32.mrb[0].mxu0
        %v493 = vadd.f32 0.0, %v492
        %v494 = vpop.f32.mrb[0].mxu0
        %v495 = vadd.f32 0.0, %v494
        %496 = vmatprep.mubr.bf16.mxu0 0
        %497 = vmatmul.mubr.bf16.gmra.mrb[0].mxu0 %v430
        %v498 = vpop.f32.mrb[0].mxu0
        %v499 = vadd.f32 0.0, %v498
        %v500 = vpop.f32.mrb[0].mxu0
        %v501 = vadd.f32 0.0, %v500
        %v502 = vpop.f32.mrb[0].mxu0
        %v503 = vadd.f32 0.0, %v502
        %v504 = vpop.f32.mrb[0].mxu0
        %v505 = vadd.f32 0.0, %v504
        %506 = vmatprep.mubr.bf16.mxu0 0
        %507 = vmatmul.mubr.bf16.gmra.mrb[0].mxu0 %v433
        %v508 = vpop.f32.mrb[0].mxu0
        %v509 = vadd.f32 0.0, %v508
        %v510 = vpop.f32.mrb[0].mxu0
        %v511 = vadd.f32 0.0, %v510
        %v512 = vpop.f32.mrb[0].mxu0
        %v513 = vadd.f32 0.0, %v512
        %v514 = vpop.f32.mrb[0].mxu0
        %v515 = vadd.f32 0.0, %v514
        %516 = vmatprep.mubr.bf16.mxu0 0
        %517 = vmatmul.mubr.bf16.gmra.mrb[0].mxu0 %v436
        %v518 = vpop.f32.mrb[0].mxu0
        %v519 = vadd.f32 0.0, %v518
        %v520 = vpop.f32.mrb[0].mxu0
        %v521 = vadd.f32 0.0, %v520
        %v522 = vpop.f32.mrb[0].mxu0
        %v523 = vadd.f32 0.0, %v522
        %v524 = vpop.f32.mrb[0].mxu0
        %v525 = vadd.f32 0.0, %v524
        %526 = vmatprep.mubr.bf16.mxu0 0
        %527 = vmatmul.mubr.bf16.gmra.mrb[0].mxu0 %v439
        %v528 = vpop.f32.mrb[0].mxu0
        %v529 = vadd.f32 0.0, %v528
        %v530 = vpop.f32.mrb[0].mxu0
        %v531 = vadd.f32 0.0, %v530
        %v532 = vpop.f32.mrb[0].mxu0
        %v533 = vadd.f32 0.0, %v532
        %v534 = vpop.f32.mrb[0].mxu0
        %v535 = vadd.f32 0.0, %v534
        %536 = vmatprep.mubr.bf16.mxu0 0
        %537 = vmatmul.mubr.bf16.gmra.mrb[0].mxu0 %v442
        %v538 = vpop.f32.mrb[0].mxu0
        %v539 = vadd.f32 0.0, %v538
        %v540 = vpop.f32.mrb[0].mxu0
        %v541 = vadd.f32 0.0, %v540
        %v542 = vpop.f32.mrb[0].mxu0
        %v543 = vadd.f32 0.0, %v542
        %v544 = vpop.f32.mrb[0].mxu0
        %v545 = vadd.f32 0.0, %v544
        %546 = vdwg.mxu0
        %v549 = vunpack.c.l.b16 %v381
        %v550 = vunpack.c.h.b16 %v381
        %v551 = vunpack.c.l.b16 %v382
        %v552 = vunpack.c.h.b16 %v382
        %v553 = vpack.c.b16 %v551, %v549
        %v554 = vpack.c.b16 %v552, %v550
        %v556 = vsel %vm425, %v375, 0
        %v559 = vsel %vm425, %v376, 0
        %v562 = vsel %vm425, %v377, 0
        %v565 = vsel %vm425, %v378, 0
        %v568 = vsel %vm425, %v379, 0
        %v571 = vsel %vm425, %v380, 0
        %v574 = vand.u32 %v553, %v447
        %v577 = vand.u32 %v554, %v447
        %579 = vmatprep.subr.bf16.mxu0 %v577
        %580 = vmatpush1.bf16.msra.mxu0 %v574
        %581 = vmatprep.subr.bf16.mxu0 0
        %582 = vmatpush1.bf16.msra.mxu0 0
        %583 = vmatprep.subr.bf16.mxu0 0
        %584 = vmatpush1.bf16.msra.mxu0 0
        %585 = vmatprep.subr.bf16.mxu0 0
        %586 = vmatpush1.bf16.msra.mxu0 0
        %587 = vmatprep.subr.bf16.mxu0 0
        %588 = vmatpush1.bf16.msra.mxu0 0
        %589 = vmatprep.subr.bf16.mxu0 0
        %590 = vmatpush1.bf16.msra.mxu0 0
        %591 = vmatprep.subr.bf16.mxu0 0
        %592 = vmatpush1.bf16.msra.mxu0 0
        %593 = vmatprep.subr.bf16.mxu0 0
        %594 = vmatpush1.bf16.msra.mxu0 0
        %595 = vmatprep.subr.bf16.mxu0 0
        %596 = vmatpush1.bf16.msra.mxu0 0
        %597 = vmatprep.subr.bf16.mxu0 0
        %598 = vmatpush1.bf16.msra.mxu0 0
        %599 = vmatprep.subr.bf16.mxu0 0
        %600 = vmatpush1.bf16.msra.mxu0 0
        %601 = vmatprep.subr.bf16.mxu0 0
        %602 = vmatpush1.bf16.msra.mxu0 0
        %603 = vmatprep.subr.bf16.mxu0 0
        %604 = vmatpush1.bf16.msra.mxu0 0
        %605 = vmatprep.subr.bf16.mxu0 0
        %606 = vmatpush1.bf16.msra.mxu0 0
        %607 = vmatprep.subr.bf16.mxu0 0
        %608 = vmatpush1.bf16.msra.mxu0 0
        %609 = vmatprep.subr.bf16.mxu0 0
        %610 = vmatpush1.bf16.msra.mxu0 0
        %611 = vmatprep.mubr.bf16.mxu0 0
        %612 = vmatmul.mubr.bf16.gmra.mrb[0].mxu0 %v556
        %v613 = vpop.f32.mrb[0].mxu0
        %v614 = vadd.f32 %v489, %v613
        %v615 = vpop.f32.mrb[0].mxu0
        %v616 = vadd.f32 %v491, %v615
        %v617 = vpop.f32.mrb[0].mxu0
        %v618 = vadd.f32 %v493, %v617
        %v619 = vpop.f32.mrb[0].mxu0
        %v620 = vadd.f32 %v495, %v619
        %621 = vmatprep.mubr.bf16.mxu0 0
        %622 = vmatmul.mubr.bf16.gmra.mrb[0].mxu0 %v559
        %v623 = vpop.f32.mrb[0].mxu0
        %v624 = vadd.f32 %v499, %v623
        %v625 = vpop.f32.mrb[0].mxu0
        %v626 = vadd.f32 %v501, %v625
        %v627 = vpop.f32.mrb[0].mxu0
        %v628 = vadd.f32 %v503, %v627
        %v629 = vpop.f32.mrb[0].mxu0
        %v630 = vadd.f32 %v505, %v629
        %631 = vmatprep.mubr.bf16.mxu0 0
        %632 = vmatmul.mubr.bf16.gmra.mrb[0].mxu0 %v562
        %v633 = vpop.f32.mrb[0].mxu0
        %v634 = vadd.f32 %v509, %v633
        %v635 = vpop.f32.mrb[0].mxu0
        %v636 = vadd.f32 %v511, %v635
        %v637 = vpop.f32.mrb[0].mxu0
        %v638 = vadd.f32 %v513, %v637
        %v639 = vpop.f32.mrb[0].mxu0
        %v640 = vadd.f32 %v515, %v639
        %641 = vmatprep.mubr.bf16.mxu0 0
        %642 = vmatmul.mubr.bf16.gmra.mrb[0].mxu0 %v565
        %v643 = vpop.f32.mrb[0].mxu0
        %v644 = vadd.f32 %v519, %v643
        %v645 = vpop.f32.mrb[0].mxu0
        %v646 = vadd.f32 %v521, %v645
        %v647 = vpop.f32.mrb[0].mxu0
        %v648 = vadd.f32 %v523, %v647
        %v649 = vpop.f32.mrb[0].mxu0
        %v650 = vadd.f32 %v525, %v649
        %651 = vmatprep.mubr.bf16.mxu0 0
        %652 = vmatmul.mubr.bf16.gmra.mrb[0].mxu0 %v568
        %v653 = vpop.f32.mrb[0].mxu0
        %v654 = vadd.f32 %v529, %v653
        %v655 = vpop.f32.mrb[0].mxu0
        %v656 = vadd.f32 %v531, %v655
        %v657 = vpop.f32.mrb[0].mxu0
        %v658 = vadd.f32 %v533, %v657
        %v659 = vpop.f32.mrb[0].mxu0
        %v660 = vadd.f32 %v535, %v659
        %661 = vmatprep.mubr.bf16.mxu0 0
        %662 = vmatmul.mubr.bf16.gmra.mrb[0].mxu0 %v571
        %v663 = vpop.f32.mrb[0].mxu0
        %v664 = vadd.f32 %v539, %v663
        %v665 = vpop.f32.mrb[0].mxu0
        %v666 = vadd.f32 %v541, %v665
        %v667 = vpop.f32.mrb[0].mxu0
        %v668 = vadd.f32 %v543, %v667
        %v669 = vpop.f32.mrb[0].mxu0
        %v670 = vadd.f32 %v545, %v669
        %671 = vdwg.mxu0
        %v672 = vld [vmem:[%s355 + $0x2] sm:$0xff]
        %v673 = vld [vmem:[%s355 + $0xa] sm:$0xff]
        %v674 = vld [vmem:[%s355 + $0x12] sm:$0xff]
        %v675 = vld [vmem:[%s355 + $0x1a] sm:$0xff]
        %v676 = vld [vmem:[%s355 + $0x22] sm:$0xff]
        %v677 = vld [vmem:[%s355 + $0x2a] sm:$0xff]
        %v678 = vld [vmem:[%s355 + $0x32] sm:$0xff]
        %v679 = vld [vmem:[%s355 + $0x3a] sm:$0xff]
        %v680 = vld [vmem:[%s355 + $0x42] sm:$0xff]
        %v681 = vld [vmem:[%s355 + $0x4a] sm:$0xff]
        %v682 = vld [vmem:[%s355 + $0x52] sm:$0xff]
        %v683 = vld [vmem:[%s355 + $0x5a] sm:$0xff]
        %v684 = vpack.c.bf16 %v673, %v672
        %v685 = vpack.c.bf16 %v675, %v674
        %v686 = vpack.c.bf16 %v677, %v676
        %v687 = vpack.c.bf16 %v679, %v678
        %v688 = vpack.c.bf16 %v681, %v680
        %v689 = vpack.c.bf16 %v683, %v682
        %v690 = vld [vmem:[#allocation6 + $0x10] sm:$0xee]
        %v691 = vld [vmem:[#allocation6 + $0x18] sm:$0x33]
        %v694 = vunpack.c.l.b16 %v690
        %v695 = vunpack.c.h.b16 %v690
        %v696 = vunpack.c.l.b16 %v691
        %v697 = vunpack.c.h.b16 %v691
        %v698 = vpack.c.b16 %v696, %v694
        %v699 = vpack.c.b16 %v697, %v695
        %v700 = vrot.slane %v698, 1
        %v701 = vrot.slane %v699, 1
        %v703 = vsel %vm425, %v684, 0
        %v706 = vsel %vm425, %v685, 0
        %v709 = vsel %vm425, %v686, 0
        %v712 = vsel %vm425, %v687, 0
        %v715 = vsel %vm425, %v688, 0
        %v718 = vsel %vm425, %v689, 0
        %v721 = vand.u32 %v700, %v447
        %v724 = vand.u32 %v701, %v447
        %726 = vmatprep.subr.bf16.mxu0 %v724
        %727 = vmatpush1.bf16.msra.mxu0 %v721
        %728 = vmatprep.subr.bf16.mxu0 0
        %729 = vmatpush1.bf16.msra.mxu0 0
        %730 = vmatprep.subr.bf16.mxu0 0
        %731 = vmatpush1.bf16.msra.mxu0 0
        %732 = vmatprep.subr.bf16.mxu0 0
        %733 = vmatpush1.bf16.msra.mxu0 0
        %734 = vmatprep.subr.bf16.mxu0 0
        %735 = vmatpush1.bf16.msra.mxu0 0
        %736 = vmatprep.subr.bf16.mxu0 0
        %737 = vmatpush1.bf16.msra.mxu0 0
        %738 = vmatprep.subr.bf16.mxu0 0
        %739 = vmatpush1.bf16.msra.mxu0 0
        %740 = vmatprep.subr.bf16.mxu0 0
        %741 = vmatpush1.bf16.msra.mxu0 0
        %742 = vmatprep.subr.bf16.mxu0 0
        %743 = vmatpush1.bf16.msra.mxu0 0
        %744 = vmatprep.subr.bf16.mxu0 0
        %745 = vmatpush1.bf16.msra.mxu0 0
        %746 = vmatprep.subr.bf16.mxu0 0
        %747 = vmatpush1.bf16.msra.mxu0 0
        %748 = vmatprep.subr.bf16.mxu0 0
        %749 = vmatpush1.bf16.msra.mxu0 0
        %750 = vmatprep.subr.bf16.mxu0 0
        %751 = vmatpush1.bf16.msra.mxu0 0
        %752 = vmatprep.subr.bf16.mxu0 0
        %753 = vmatpush1.bf16.msra.mxu0 0
        %754 = vmatprep.subr.bf16.mxu0 0
        %755 = vmatpush1.bf16.msra.mxu0 0
        %756 = vmatprep.subr.bf16.mxu0 0
        %757 = vmatpush1.bf16.msra.mxu0 0
        %758 = vmatprep.mubr.bf16.mxu0 0
        %759 = vmatmul.mubr.bf16.gmra.mrb[0].mxu0 %v703
        %v760 = vpop.f32.mrb[0].mxu0
        %v761 = vadd.f32 0.0, %v760
        %v762 = vpop.f32.mrb[0].mxu0
        %v763 = vadd.f32 0.0, %v762
        %v764 = vpop.f32.mrb[0].mxu0
        %v765 = vadd.f32 0.0, %v764
        %v766 = vpop.f32.mrb[0].mxu0
        %v767 = vadd.f32 0.0, %v766
        %768 = vmatprep.mubr.bf16.mxu0 0
        %769 = vmatmul.mubr.bf16.gmra.mrb[0].mxu0 %v706
        %v770 = vpop.f32.mrb[0].mxu0
        %v771 = vadd.f32 0.0, %v770
        %v772 = vpop.f32.mrb[0].mxu0
        %v773 = vadd.f32 0.0, %v772
        %v774 = vpop.f32.mrb[0].mxu0
        %v775 = vadd.f32 0.0, %v774
        %v776 = vpop.f32.mrb[0].mxu0
        %v777 = vadd.f32 0.0, %v776
        %778 = vmatprep.mubr.bf16.mxu0 0
        %779 = vmatmul.mubr.bf16.gmra.mrb[0].mxu0 %v709
        %v780 = vpop.f32.mrb[0].mxu0
        %v781 = vadd.f32 0.0, %v780
        %v782 = vpop.f32.mrb[0].mxu0
        %v783 = vadd.f32 0.0, %v782
        %v784 = vpop.f32.mrb[0].mxu0
        %v785 = vadd.f32 0.0, %v784
        %v786 = vpop.f32.mrb[0].mxu0
        %v787 = vadd.f32 0.0, %v786
        %788 = vmatprep.mubr.bf16.mxu0 0
        %789 = vmatmul.mubr.bf16.gmra.mrb[0].mxu0 %v712
        %v790 = vpop.f32.mrb[0].mxu0
        %v791 = vadd.f32 0.0, %v790
        %v792 = vpop.f32.mrb[0].mxu0
        %v793 = vadd.f32 0.0, %v792
        %v794 = vpop.f32.mrb[0].mxu0
        %v795 = vadd.f32 0.0, %v794
        %v796 = vpop.f32.mrb[0].mxu0
        %v797 = vadd.f32 0.0, %v796
        %798 = vmatprep.mubr.bf16.mxu0 0
        %799 = vmatmul.mubr.bf16.gmra.mrb[0].mxu0 %v715
        %v800 = vpop.f32.mrb[0].mxu0
        %v801 = vadd.f32 0.0, %v800
        %v802 = vpop.f32.mrb[0].mxu0
        %v803 = vadd.f32 0.0, %v802
        %v804 = vpop.f32.mrb[0].mxu0
        %v805 = vadd.f32 0.0, %v804
        %v806 = vpop.f32.mrb[0].mxu0
        %v807 = vadd.f32 0.0, %v806
        %808 = vmatprep.mubr.bf16.mxu0 0
        %809 = vmatmul.mubr.bf16.gmra.mrb[0].mxu0 %v718
        %v810 = vpop.f32.mrb[0].mxu0
        %v811 = vadd.f32 0.0, %v810
        %v812 = vpop.f32.mrb[0].mxu0
        %v813 = vadd.f32 0.0, %v812
        %v814 = vpop.f32.mrb[0].mxu0
        %v815 = vadd.f32 0.0, %v814
        %v816 = vpop.f32.mrb[0].mxu0
        %v817 = vadd.f32 0.0, %v816
        %818 = vdwg.mxu0
        %v819 = vadd.f32 %v614, %v761
        %v820 = vadd.f32 %v616, %v763
        %v821 = vadd.f32 %v618, %v765
        %v822 = vadd.f32 %v620, %v767
        %v823 = vadd.f32 %v624, %v771
        %v824 = vadd.f32 %v626, %v773
        %v825 = vadd.f32 %v628, %v775
        %v826 = vadd.f32 %v630, %v777
        %v827 = vadd.f32 %v634, %v781
        %v828 = vadd.f32 %v636, %v783
        %v829 = vadd.f32 %v638, %v785
        %v830 = vadd.f32 %v640, %v787
        %v831 = vadd.f32 %v644, %v791
        %v832 = vadd.f32 %v646, %v793
        %v833 = vadd.f32 %v648, %v795
        %v834 = vadd.f32 %v650, %v797
        %v835 = vadd.f32 %v654, %v801
        %v836 = vadd.f32 %v656, %v803
        %v837 = vadd.f32 %v658, %v805
        %v838 = vadd.f32 %v660, %v807
        %v839 = vadd.f32 %v664, %v811
        %v840 = vadd.f32 %v666, %v813
        %v841 = vadd.f32 %v668, %v815
        %v842 = vadd.f32 %v670, %v817
        %v843 = vld [vmem:[#allocation8] sm:$0x3]
        %v845 = vlaneseq
        %v846 = vshrl.u32 %v845, 7
        %v847 = vsub.s32 0, %v846
        %v848 = vrot.slane %v843, %v847
        %v849 = vlaneseq
        %v850 = vshrl.u32 %v849, 7
        %v851 = vsub.s32 1, %v850
        %v852 = vrot.slane %v843, %v851
        %v855 = vadd.f32 %v819, %v848
        %v856 = vadd.f32 %v820, %v852
        %v857 = vadd.f32 %v821, %v848
        %v858 = vadd.f32 %v822, %v852
        %v859 = vadd.f32 %v823, %v848
        %v860 = vadd.f32 %v824, %v852
        %v861 = vadd.f32 %v825, %v848
        %v862 = vadd.f32 %v826, %v852
        %v863 = vadd.f32 %v827, %v848
        %v864 = vadd.f32 %v828, %v852
        %v865 = vadd.f32 %v829, %v848
        %v866 = vadd.f32 %v830, %v852
        %v867 = vadd.f32 %v831, %v848
        %v868 = vadd.f32 %v832, %v852
        %v869 = vadd.f32 %v833, %v848
        %v870 = vadd.f32 %v834, %v852
        %v871 = vadd.f32 %v835, %v848
        %v872 = vadd.f32 %v836, %v852
        %v873 = vadd.f32 %v837, %v848
        %v874 = vadd.f32 %v838, %v852
        %v875 = vadd.f32 %v839, %v848
        %v876 = vadd.f32 %v840, %v852
        %v877 = vadd.f32 %v841, %v848
        %v878 = vadd.f32 %v842, %v852
        %v879 = vmax.f32 %v855, 0.0
        %v880 = vmax.f32 %v856, 0.0
        %v881 = vmax.f32 %v857, 0.0
        %v882 = vmax.f32 %v858, 0.0
        %v883 = vmax.f32 %v859, 0.0
        %v884 = vmax.f32 %v860, 0.0
        %v885 = vmax.f32 %v861, 0.0
        %v886 = vmax.f32 %v862, 0.0
        %v887 = vmax.f32 %v863, 0.0
        %v888 = vmax.f32 %v864, 0.0
        %v889 = vmax.f32 %v865, 0.0
        %v890 = vmax.f32 %v866, 0.0
        %v891 = vmax.f32 %v867, 0.0
        %v892 = vmax.f32 %v868, 0.0
        %v893 = vmax.f32 %v869, 0.0
        %v894 = vmax.f32 %v870, 0.0
        %v895 = vmax.f32 %v871, 0.0
        %v896 = vmax.f32 %v872, 0.0
        %v897 = vmax.f32 %v873, 0.0
        %v898 = vmax.f32 %v874, 0.0
        %v899 = vmax.f32 %v875, 0.0
        %v900 = vmax.f32 %v876, 0.0
        %v901 = vmax.f32 %v877, 0.0
        %v902 = vmax.f32 %v878, 0.0
        %903 = vst [vmem:[#allocation2] sm:$0xff] %v879
        %vm904 = vcmask 523264
        %905 = vst.msk [vmem:[#allocation2 + $0x8] sm:$0xff] %vm904, %v880
        %906 = vst [vmem:[#allocation2 + $0x10] sm:$0xff] %v881
        %907 = vst.msk [vmem:[#allocation2 + $0x18] sm:$0xff] %vm904, %v882
        %908 = vst [vmem:[#allocation2 + $0x20] sm:$0xff] %v883
        %909 = vst.msk [vmem:[#allocation2 + $0x28] sm:$0xff] %vm904, %v884
        %910 = vst [vmem:[#allocation2 + $0x30] sm:$0xff] %v885
        %911 = vst.msk [vmem:[#allocation2 + $0x38] sm:$0xff] %vm904, %v886
        %912 = vst [vmem:[#allocation2 + $0x40] sm:$0xff] %v887
        %913 = vst.msk [vmem:[#allocation2 + $0x48] sm:$0xff] %vm904, %v888
        %914 = vst [vmem:[#allocation2 + $0x50] sm:$0xff] %v889
        %915 = vst.msk [vmem:[#allocation2 + $0x58] sm:$0xff] %vm904, %v890
        %916 = vst [vmem:[#allocation2 + $0x60] sm:$0xff] %v891
        %917 = vst.msk [vmem:[#allocation2 + $0x68] sm:$0xff] %vm904, %v892
        %918 = vst [vmem:[#allocation2 + $0x70] sm:$0xff] %v893
        %919 = vst.msk [vmem:[#allocation2 + $0x78] sm:$0xff] %vm904, %v894
        %920 = vst [vmem:[#allocation2 + $0x80] sm:$0xff] %v895
        %921 = vst.msk [vmem:[#allocation2 + $0x88] sm:$0xff] %vm904, %v896
        %922 = vst [vmem:[#allocation2 + $0x90] sm:$0xff] %v897
        %923 = vst.msk [vmem:[#allocation2 + $0x98] sm:$0xff] %vm904, %v898
        %924 = vst [vmem:[#allocation2 + $0xa0] sm:$0xff] %v899
        %925 = vst.msk [vmem:[#allocation2 + $0xa8] sm:$0xff] %vm904, %v900
        %926 = vst [vmem:[#allocation2 + $0xb0] sm:$0xff] %v901
        %927 = vst.msk [vmem:[#allocation2 + $0xb8] sm:$0xff] %vm904, %v902
        %v928 = vld [vmem:[%s355 + $0x60] sm:$0xff]
        %v929 = vld [vmem:[%s355 + $0x68] sm:$0xff]
        %v930 = vld [vmem:[%s355 + $0x70] sm:$0xff]
        %v931 = vld [vmem:[%s355 + $0x78] sm:$0xff]
        %v932 = vld [vmem:[%s355 + $0x80] sm:$0xff]
        %v933 = vld [vmem:[%s355 + $0x88] sm:$0xff]
        %v934 = vld [vmem:[%s355 + $0x90] sm:$0xff]
        %v935 = vld [vmem:[%s355 + $0x98] sm:$0xff]
        %v936 = vld [vmem:[%s355 + $0xa0] sm:$0xff]
        %v937 = vld [vmem:[%s355 + $0xa8] sm:$0xff]
        %v938 = vld [vmem:[%s355 + $0xb0] sm:$0xff]
        %v939 = vld [vmem:[%s355 + $0xb8] sm:$0x3f]
        %v940 = vpack.c.bf16 %v929, %v928
        %v941 = vpack.c.bf16 %v931, %v930
        %v942 = vpack.c.bf16 %v933, %v932
        %v943 = vpack.c.bf16 %v935, %v934
        %v944 = vpack.c.bf16 %v937, %v936
        %v945 = vpack.c.bf16 %v939, %v938
        %v946 = vld [vmem:[#allocation6] sm:$0xff]
        %v947 = vld [vmem:[#allocation6 + $0x8] sm:$0x11]
        %v948 = vld [vmem:[%s355 + $0x61] sm:$0xff]
        %v949 = vld [vmem:[%s355 + $0x69] sm:$0xff]
        %v950 = vld [vmem:[%s355 + $0x71] sm:$0xff]
        %v951 = vld [vmem:[%s355 + $0x79] sm:$0xff]
        %v952 = vld [vmem:[%s355 + $0x81] sm:$0xff]
        %v953 = vld [vmem:[%s355 + $0x89] sm:$0xff]
        %v954 = vld [vmem:[%s355 + $0x91] sm:$0xff]
        %v955 = vld [vmem:[%s355 + $0x99] sm:$0xff]
        %v956 = vld [vmem:[%s355 + $0xa1] sm:$0xff]
        %v957 = vld [vmem:[%s355 + $0xa9] sm:$0xff]
        %v958 = vld [vmem:[%s355 + $0xb1] sm:$0xff]
        %v959 = vld [vmem:[%s355 + $0xb9] sm:$0x3f]
        %v960 = vpack.c.bf16 %v949, %v948
        %v961 = vpack.c.bf16 %v951, %v950
        %v962 = vpack.c.bf16 %v953, %v952
        %v963 = vpack.c.bf16 %v955, %v954
        %v964 = vpack.c.bf16 %v957, %v956
        %v965 = vpack.c.bf16 %v959, %v958
        %v966 = vld [vmem:[#allocation6 + $0x8] sm:$0xff]
        %v967 = vld [vmem:[#allocation6 + $0x10] sm:$0x11]
        %v970 = vunpack.c.l.b16 %v966
        %v971 = vunpack.c.h.b16 %v966
        %v972 = vunpack.c.l.b16 %v967
        %v973 = vunpack.c.h.b16 %v967
        %v974 = vpack.c.b16 %v972, %v970
        %v975 = vpack.c.b16 %v973, %v971
        %v977 = vshrl.u32 %v974, 16
        %v979 = vshll.u32 %v974, 16
        %v981 = vrot.slane %v979, 1
        %v982 = vor.u32 %v977, %v981
        %v984 = vshrl.u32 %v975, 16
        %v986 = vshll.u32 %v975, 16
        %v988 = vrot.slane %v986, 1
        %v989 = vor.u32 %v984, %v988
        %v991 = vsel %vm425, %v960, 0
        %v994 = vsel %vm425, %v961, 0
        %v997 = vsel %vm425, %v962, 0
        %v1000 = vsel %vm425, %v963, 0
        %v1003 = vsel %vm425, %v964, 0
        %v1006 = vsel %vm425, %v965, 0
        %v1009 = vand.u32 %v982, %v447
        %v1012 = vand.u32 %v989, %v447
        %1014 = vmatprep.subr.bf16.mxu0 %v1012
        %1015 = vmatpush1.bf16.msra.mxu0 %v1009
        %1016 = vmatprep.subr.bf16.mxu0 0
        %1017 = vmatpush1.bf16.msra.mxu0 0
        %1018 = vmatprep.subr.bf16.mxu0 0
        %1019 = vmatpush1.bf16.msra.mxu0 0
        %1020 = vmatprep.subr.bf16.mxu0 0
        %1021 = vmatpush1.bf16.msra.mxu0 0
        %1022 = vmatprep.subr.bf16.mxu0 0
        %1023 = vmatpush1.bf16.msra.mxu0 0
        %1024 = vmatprep.subr.bf16.mxu0 0
        %1025 = vmatpush1.bf16.msra.mxu0 0
        %1026 = vmatprep.subr.bf16.mxu0 0
        %1027 = vmatpush1.bf16.msra.mxu0 0
        %1028 = vmatprep.subr.bf16.mxu0 0
        %1029 = vmatpush1.bf16.msra.mxu0 0
        %1030 = vmatprep.subr.bf16.mxu0 0
        %1031 = vmatpush1.bf16.msra.mxu0 0
        %1032 = vmatprep.subr.bf16.mxu0 0
        %1033 = vmatpush1.bf16.msra.mxu0 0
        %1034 = vmatprep.subr.bf16.mxu0 0
        %1035 = vmatpush1.bf16.msra.mxu0 0
        %1036 = vmatprep.subr.bf16.mxu0 0
        %1037 = vmatpush1.bf16.msra.mxu0 0
        %1038 = vmatprep.subr.bf16.mxu0 0
        %1039 = vmatpush1.bf16.msra.mxu0 0
        %1040 = vmatprep.subr.bf16.mxu0 0
        %1041 = vmatpush1.bf16.msra.mxu0 0
        %1042 = vmatprep.subr.bf16.mxu0 0
        %1043 = vmatpush1.bf16.msra.mxu0 0
        %1044 = vmatprep.subr.bf16.mxu0 0
        %1045 = vmatpush1.bf16.msra.mxu0 0
        %1046 = vmatprep.mubr.bf16.mxu0 0
        %1047 = vmatmul.mubr.bf16.gmra.mrb[0].mxu0 %v991
        %v1048 = vpop.f32.mrb[0].mxu0
        %v1049 = vadd.f32 0.0, %v1048
        %v1050 = vpop.f32.mrb[0].mxu0
        %v1051 = vadd.f32 0.0, %v1050
        %v1052 = vpop.f32.mrb[0].mxu0
        %v1053 = vadd.f32 0.0, %v1052
        %v1054 = vpop.f32.mrb[0].mxu0
        %v1055 = vadd.f32 0.0, %v1054
        %1056 = vmatprep.mubr.bf16.mxu0 0
        %1057 = vmatmul.mubr.bf16.gmra.mrb[0].mxu0 %v994
        %v1058 = vpop.f32.mrb[0].mxu0
        %v1059 = vadd.f32 0.0, %v1058
        %v1060 = vpop.f32.mrb[0].mxu0
        %v1061 = vadd.f32 0.0, %v1060
        %v1062 = vpop.f32.mrb[0].mxu0
        %v1063 = vadd.f32 0.0, %v1062
        %v1064 = vpop.f32.mrb[0].mxu0
        %v1065 = vadd.f32 0.0, %v1064
        %1066 = vmatprep.mubr.bf16.mxu0 0
        %1067 = vmatmul.mubr.bf16.gmra.mrb[0].mxu0 %v997
        %v1068 = vpop.f32.mrb[0].mxu0
        %v1069 = vadd.f32 0.0, %v1068
        %v1070 = vpop.f32.mrb[0].mxu0
        %v1071 = vadd.f32 0.0, %v1070
        %v1072 = vpop.f32.mrb[0].mxu0
        %v1073 = vadd.f32 0.0, %v1072
        %v1074 = vpop.f32.mrb[0].mxu0
        %v1075 = vadd.f32 0.0, %v1074
        %1076 = vmatprep.mubr.bf16.mxu0 0
        %1077 = vmatmul.mubr.bf16.gmra.mrb[0].mxu0 %v1000
        %v1078 = vpop.f32.mrb[0].mxu0
        %v1079 = vadd.f32 0.0, %v1078
        %v1080 = vpop.f32.mrb[0].mxu0
        %v1081 = vadd.f32 0.0, %v1080
        %v1082 = vpop.f32.mrb[0].mxu0
        %v1083 = vadd.f32 0.0, %v1082
        %v1084 = vpop.f32.mrb[0].mxu0
        %v1085 = vadd.f32 0.0, %v1084
        %1086 = vmatprep.mubr.bf16.mxu0 0
        %1087 = vmatmul.mubr.bf16.gmra.mrb[0].mxu0 %v1003
        %v1088 = vpop.f32.mrb[0].mxu0
        %v1089 = vadd.f32 0.0, %v1088
        %v1090 = vpop.f32.mrb[0].mxu0
        %v1091 = vadd.f32 0.0, %v1090
        %v1092 = vpop.f32.mrb[0].mxu0
        %v1093 = vadd.f32 0.0, %v1092
        %v1094 = vpop.f32.mrb[0].mxu0
        %v1095 = vadd.f32 0.0, %v1094
        %1096 = vmatprep.mubr.bf16.mxu0 0
        %1097 = vmatmul.mubr.bf16.gmra.mrb[0].mxu0 %v1006
        %v1098 = vpop.f32.mrb[0].mxu0
        %v1099 = vadd.f32 0.0, %v1098
        %v1100 = vpop.f32.mrb[0].mxu0
        %v1101 = vadd.f32 0.0, %v1100
        %v1102 = vpop.f32.mrb[0].mxu0
        %v1103 = vadd.f32 0.0, %v1102
        %v1104 = vpop.f32.mrb[0].mxu0
        %v1105 = vadd.f32 0.0, %v1104
        %1106 = vdwg.mxu0
        %v1109 = vunpack.c.l.b16 %v946
        %v1110 = vunpack.c.h.b16 %v946
        %v1111 = vunpack.c.l.b16 %v947
        %v1112 = vunpack.c.h.b16 %v947
        %v1113 = vpack.c.b16 %v1111, %v1109
        %v1114 = vpack.c.b16 %v1112, %v1110
        %v1116 = vsel %vm425, %v940, 0
        %v1119 = vsel %vm425, %v941, 0
        %v1122 = vsel %vm425, %v942, 0
        %v1125 = vsel %vm425, %v943, 0
        %v1128 = vsel %vm425, %v944, 0
        %v1131 = vsel %vm425, %v945, 0
        %v1134 = vand.u32 %v1113, %v447
        %v1137 = vand.u32 %v1114, %v447
        %1139 = vmatprep.subr.bf16.mxu0 %v1137
        %1140 = vmatpush1.bf16.msra.mxu0 %v1134
        %1141 = vmatprep.subr.bf16.mxu0 0
        %1142 = vmatpush1.bf16.msra.mxu0 0
        %1143 = vmatprep.subr.bf16.mxu0 0
        %1144 = vmatpush1.bf16.msra.mxu0 0
        %1145 = vmatprep.subr.bf16.mxu0 0
        %1146 = vmatpush1.bf16.msra.mxu0 0
        %1147 = vmatprep.subr.bf16.mxu0 0
        %1148 = vmatpush1.bf16.msra.mxu0 0
        %1149 = vmatprep.subr.bf16.mxu0 0
        %1150 = vmatpush1.bf16.msra.mxu0 0
        %1151 = vmatprep.subr.bf16.mxu0 0
        %1152 = vmatpush1.bf16.msra.mxu0 0
        %1153 = vmatprep.subr.bf16.mxu0 0
        %1154 = vmatpush1.bf16.msra.mxu0 0
        %1155 = vmatprep.subr.bf16.mxu0 0
        %1156 = vmatpush1.bf16.msra.mxu0 0
        %1157 = vmatprep.subr.bf16.mxu0 0
        %1158 = vmatpush1.bf16.msra.mxu0 0
        %1159 = vmatprep.subr.bf16.mxu0 0
        %1160 = vmatpush1.bf16.msra.mxu0 0
        %1161 = vmatprep.subr.bf16.mxu0 0
        %1162 = vmatpush1.bf16.msra.mxu0 0
        %1163 = vmatprep.subr.bf16.mxu0 0
        %1164 = vmatpush1.bf16.msra.mxu0 0
        %1165 = vmatprep.subr.bf16.mxu0 0
        %1166 = vmatpush1.bf16.msra.mxu0 0
        %1167 = vmatprep.subr.bf16.mxu0 0
        %1168 = vmatpush1.bf16.msra.mxu0 0
        %1169 = vmatprep.subr.bf16.mxu0 0
        %1170 = vmatpush1.bf16.msra.mxu0 0
        %1171 = vmatprep.mubr.bf16.mxu0 0
        %1172 = vmatmul.mubr.bf16.gmra.mrb[0].mxu0 %v1116
        %v1173 = vpop.f32.mrb[0].mxu0
        %v1174 = vadd.f32 %v1049, %v1173
        %v1175 = vpop.f32.mrb[0].mxu0
        %v1176 = vadd.f32 %v1051, %v1175
        %v1177 = vpop.f32.mrb[0].mxu0
        %v1178 = vadd.f32 %v1053, %v1177
        %v1179 = vpop.f32.mrb[0].mxu0
        %v1180 = vadd.f32 %v1055, %v1179
        %1181 = vmatprep.mubr.bf16.mxu0 0
        %1182 = vmatmul.mubr.bf16.gmra.mrb[0].mxu0 %v1119
        %v1183 = vpop.f32.mrb[0].mxu0
        %v1184 = vadd.f32 %v1059, %v1183
        %v1185 = vpop.f32.mrb[0].mxu0
        %v1186 = vadd.f32 %v1061, %v1185
        %v1187 = vpop.f32.mrb[0].mxu0
        %v1188 = vadd.f32 %v1063, %v1187
        %v1189 = vpop.f32.mrb[0].mxu0
        %v1190 = vadd.f32 %v1065, %v1189
        %1191 = vmatprep.mubr.bf16.mxu0 0
        %1192 = vmatmul.mubr.bf16.gmra.mrb[0].mxu0 %v1122
        %v1193 = vpop.f32.mrb[0].mxu0
        %v1194 = vadd.f32 %v1069, %v1193
        %v1195 = vpop.f32.mrb[0].mxu0
        %v1196 = vadd.f32 %v1071, %v1195
        %v1197 = vpop.f32.mrb[0].mxu0
        %v1198 = vadd.f32 %v1073, %v1197
        %v1199 = vpop.f32.mrb[0].mxu0
        %v1200 = vadd.f32 %v1075, %v1199
        %1201 = vmatprep.mubr.bf16.mxu0 0
        %1202 = vmatmul.mubr.bf16.gmra.mrb[0].mxu0 %v1125
        %v1203 = vpop.f32.mrb[0].mxu0
        %v1204 = vadd.f32 %v1079, %v1203
        %v1205 = vpop.f32.mrb[0].mxu0
        %v1206 = vadd.f32 %v1081, %v1205
        %v1207 = vpop.f32.mrb[0].mxu0
        %v1208 = vadd.f32 %v1083, %v1207
        %v1209 = vpop.f32.mrb[0].mxu0
        %v1210 = vadd.f32 %v1085, %v1209
        %1211 = vmatprep.mubr.bf16.mxu0 0
        %1212 = vmatmul.mubr.bf16.gmra.mrb[0].mxu0 %v1128
        %v1213 = vpop.f32.mrb[0].mxu0
        %v1214 = vadd.f32 %v1089, %v1213
        %v1215 = vpop.f32.mrb[0].mxu0
        %v1216 = vadd.f32 %v1091, %v1215
        %v1217 = vpop.f32.mrb[0].mxu0
        %v1218 = vadd.f32 %v1093, %v1217
        %v1219 = vpop.f32.mrb[0].mxu0
        %v1220 = vadd.f32 %v1095, %v1219
        %1221 = vmatprep.mubr.bf16.mxu0 0
        %1222 = vmatmul.mubr.bf16.gmra.mrb[0].mxu0 %v1131
        %v1223 = vpop.f32.mrb[0].mxu0
        %v1224 = vadd.f32 %v1099, %v1223
        %v1225 = vpop.f32.mrb[0].mxu0
        %v1226 = vadd.f32 %v1101, %v1225
        %v1227 = vpop.f32.mrb[0].mxu0
        %v1228 = vadd.f32 %v1103, %v1227
        %v1229 = vpop.f32.mrb[0].mxu0
        %v1230 = vadd.f32 %v1105, %v1229
        %1231 = vdwg.mxu0
        %v1232 = vld [vmem:[%s355 + $0x62] sm:$0xff]
        %v1233 = vld [vmem:[%s355 + $0x6a] sm:$0xff]
        %v1234 = vld [vmem:[%s355 + $0x72] sm:$0xff]
        %v1235 = vld [vmem:[%s355 + $0x7a] sm:$0xff]
        %v1236 = vld [vmem:[%s355 + $0x82] sm:$0xff]
        %v1237 = vld [vmem:[%s355 + $0x8a] sm:$0xff]
        %v1238 = vld [vmem:[%s355 + $0x92] sm:$0xff]
        %v1239 = vld [vmem:[%s355 + $0x9a] sm:$0xff]
        %v1240 = vld [vmem:[%s355 + $0xa2] sm:$0xff]
        %v1241 = vld [vmem:[%s355 + $0xaa] sm:$0xff]
        %v1242 = vld [vmem:[%s355 + $0xb2] sm:$0xff]
        %v1243 = vld [vmem:[%s355 + $0xba] sm:$0x3f]
        %v1244 = vpack.c.bf16 %v1233, %v1232
        %v1245 = vpack.c.bf16 %v1235, %v1234
        %v1246 = vpack.c.bf16 %v1237, %v1236
        %v1247 = vpack.c.bf16 %v1239, %v1238
        %v1248 = vpack.c.bf16 %v1241, %v1240
        %v1249 = vpack.c.bf16 %v1243, %v1242
        %v1250 = vld [vmem:[#allocation6 + $0x10] sm:$0xee]
        %v1251 = vld [vmem:[#allocation6 + $0x18] sm:$0x33]
        %v1254 = vunpack.c.l.b16 %v1250
        %v1255 = vunpack.c.h.b16 %v1250
        %v1256 = vunpack.c.l.b16 %v1251
        %v1257 = vunpack.c.h.b16 %v1251
        %v1258 = vpack.c.b16 %v1256, %v1254
        %v1259 = vpack.c.b16 %v1257, %v1255
        %v1260 = vrot.slane %v1258, 1
        %v1261 = vrot.slane %v1259, 1
        %v1263 = vsel %vm425, %v1244, 0
        %v1266 = vsel %vm425, %v1245, 0
        %v1269 = vsel %vm425, %v1246, 0
        %v1272 = vsel %vm425, %v1247, 0
        %v1275 = vsel %vm425, %v1248, 0
        %v1278 = vsel %vm425, %v1249, 0
        %v1281 = vand.u32 %v1260, %v447
        %v1284 = vand.u32 %v1261, %v447
        %1286 = vmatprep.subr.bf16.mxu0 %v1284
        %1287 = vmatpush1.bf16.msra.mxu0 %v1281
        %1288 = vmatprep.subr.bf16.mxu0 0
        %1289 = vmatpush1.bf16.msra.mxu0 0
        %1290 = vmatprep.subr.bf16.mxu0 0
        %1291 = vmatpush1.bf16.msra.mxu0 0
        %1292 = vmatprep.subr.bf16.mxu0 0
        %1293 = vmatpush1.bf16.msra.mxu0 0
        %1294 = vmatprep.subr.bf16.mxu0 0
        %1295 = vmatpush1.bf16.msra.mxu0 0
        %1296 = vmatprep.subr.bf16.mxu0 0
        %1297 = vmatpush1.bf16.msra.mxu0 0
        %1298 = vmatprep.subr.bf16.mxu0 0
        %1299 = vmatpush1.bf16.msra.mxu0 0
        %1300 = vmatprep.subr.bf16.mxu0 0
        %1301 = vmatpush1.bf16.msra.mxu0 0
        %1302 = vmatprep.subr.bf16.mxu0 0
        %1303 = vmatpush1.bf16.msra.mxu0 0
        %1304 = vmatprep.subr.bf16.mxu0 0
        %1305 = vmatpush1.bf16.msra.mxu0 0
        %1306 = vmatprep.subr.bf16.mxu0 0
        %1307 = vmatpush1.bf16.msra.mxu0 0
        %1308 = vmatprep.subr.bf16.mxu0 0
        %1309 = vmatpush1.bf16.msra.mxu0 0
        %1310 = vmatprep.subr.bf16.mxu0 0
        %1311 = vmatpush1.bf16.msra.mxu0 0
        %1312 = vmatprep.subr.bf16.mxu0 0
        %1313 = vmatpush1.bf16.msra.mxu0 0
        %1314 = vmatprep.subr.bf16.mxu0 0
        %1315 = vmatpush1.bf16.msra.mxu0 0
        %1316 = vmatprep.subr.bf16.mxu0 0
        %1317 = vmatpush1.bf16.msra.mxu0 0
        %1318 = vmatprep.mubr.bf16.mxu0 0
        %1319 = vmatmul.mubr.bf16.gmra.mrb[0].mxu0 %v1263
        %v1320 = vpop.f32.mrb[0].mxu0
        %v1321 = vadd.f32 0.0, %v1320
        %v1322 = vpop.f32.mrb[0].mxu0
        %v1323 = vadd.f32 0.0, %v1322
        %v1324 = vpop.f32.mrb[0].mxu0
        %v1325 = vadd.f32 0.0, %v1324
        %v1326 = vpop.f32.mrb[0].mxu0
        %v1327 = vadd.f32 0.0, %v1326
        %1328 = vmatprep.mubr.bf16.mxu0 0
        %1329 = vmatmul.mubr.bf16.gmra.mrb[0].mxu0 %v1266
        %v1330 = vpop.f32.mrb[0].mxu0
        %v1331 = vadd.f32 0.0, %v1330
        %v1332 = vpop.f32.mrb[0].mxu0
        %v1333 = vadd.f32 0.0, %v1332
        %v1334 = vpop.f32.mrb[0].mxu0
        %v1335 = vadd.f32 0.0, %v1334
        %v1336 = vpop.f32.mrb[0].mxu0
        %v1337 = vadd.f32 0.0, %v1336
        %1338 = vmatprep.mubr.bf16.mxu0 0
        %1339 = vmatmul.mubr.bf16.gmra.mrb[0].mxu0 %v1269
        %v1340 = vpop.f32.mrb[0].mxu0
        %v1341 = vadd.f32 0.0, %v1340
        %v1342 = vpop.f32.mrb[0].mxu0
        %v1343 = vadd.f32 0.0, %v1342
        %v1344 = vpop.f32.mrb[0].mxu0
        %v1345 = vadd.f32 0.0, %v1344
        %v1346 = vpop.f32.mrb[0].mxu0
        %v1347 = vadd.f32 0.0, %v1346
        %1348 = vmatprep.mubr.bf16.mxu0 0
        %1349 = vmatmul.mubr.bf16.gmra.mrb[0].mxu0 %v1272
        %v1350 = vpop.f32.mrb[0].mxu0
        %v1351 = vadd.f32 0.0, %v1350
        %v1352 = vpop.f32.mrb[0].mxu0
        %v1353 = vadd.f32 0.0, %v1352
        %v1354 = vpop.f32.mrb[0].mxu0
        %v1355 = vadd.f32 0.0, %v1354
        %v1356 = vpop.f32.mrb[0].mxu0
        %v1357 = vadd.f32 0.0, %v1356
        %1358 = vmatprep.mubr.bf16.mxu0 0
        %1359 = vmatmul.mubr.bf16.gmra.mrb[0].mxu0 %v1275
        %v1360 = vpop.f32.mrb[0].mxu0
        %v1361 = vadd.f32 0.0, %v1360
        %v1362 = vpop.f32.mrb[0].mxu0
        %v1363 = vadd.f32 0.0, %v1362
        %v1364 = vpop.f32.mrb[0].mxu0
        %v1365 = vadd.f32 0.0, %v1364
        %v1366 = vpop.f32.mrb[0].mxu0
        %v1367 = vadd.f32 0.0, %v1366
        %1368 = vmatprep.mubr.bf16.mxu0 0
        %1369 = vmatmul.mubr.bf16.gmra.mrb[0].mxu0 %v1278
        %v1370 = vpop.f32.mrb[0].mxu0
        %v1371 = vadd.f32 0.0, %v1370
        %v1372 = vpop.f32.mrb[0].mxu0
        %v1373 = vadd.f32 0.0, %v1372
        %v1374 = vpop.f32.mrb[0].mxu0
        %v1375 = vadd.f32 0.0, %v1374
        %v1376 = vpop.f32.mrb[0].mxu0
        %v1377 = vadd.f32 0.0, %v1376
        %1378 = vdwg.mxu0
        %v1379 = vadd.f32 %v1174, %v1321
        %v1380 = vadd.f32 %v1176, %v1323
        %v1381 = vadd.f32 %v1178, %v1325
        %v1382 = vadd.f32 %v1180, %v1327
        %v1383 = vadd.f32 %v1184, %v1331
        %v1384 = vadd.f32 %v1186, %v1333
        %v1385 = vadd.f32 %v1188, %v1335
        %v1386 = vadd.f32 %v1190, %v1337
        %v1387 = vadd.f32 %v1194, %v1341
        %v1388 = vadd.f32 %v1196, %v1343
        %v1389 = vadd.f32 %v1198, %v1345
        %v1390 = vadd.f32 %v1200, %v1347
        %v1391 = vadd.f32 %v1204, %v1351
        %v1392 = vadd.f32 %v1206, %v1353
        %v1393 = vadd.f32 %v1208, %v1355
        %v1394 = vadd.f32 %v1210, %v1357
        %v1395 = vadd.f32 %v1214, %v1361
        %v1396 = vadd.f32 %v1216, %v1363
        %v1397 = vadd.f32 %v1218, %v1365
        %v1398 = vadd.f32 %v1220, %v1367
        %v1399 = vadd.f32 %v1224, %v1371
        %v1400 = vadd.f32 %v1226, %v1373
        %v1401 = vadd.f32 %v1228, %v1375
        %v1402 = vadd.f32 %v1230, %v1377
        %v1403 = vld [vmem:[#allocation8] sm:$0x3]
        %v1405 = vlaneseq
        %v1406 = vshrl.u32 %v1405, 7
        %v1407 = vsub.s32 0, %v1406
        %v1408 = vrot.slane %v1403, %v1407
        %v1409 = vlaneseq
        %v1410 = vshrl.u32 %v1409, 7
        %v1411 = vsub.s32 1, %v1410
        %v1412 = vrot.slane %v1403, %v1411
        %v1415 = vadd.f32 %v1379, %v1408
        %v1416 = vadd.f32 %v1380, %v1412
        %v1417 = vadd.f32 %v1381, %v1408
        %v1418 = vadd.f32 %v1382, %v1412
        %v1419 = vadd.f32 %v1383, %v1408
        %v1420 = vadd.f32 %v1384, %v1412
        %v1421 = vadd.f32 %v1385, %v1408
        %v1422 = vadd.f32 %v1386, %v1412
        %v1423 = vadd.f32 %v1387, %v1408
        %v1424 = vadd.f32 %v1388, %v1412
        %v1425 = vadd.f32 %v1389, %v1408
        %v1426 = vadd.f32 %v1390, %v1412
        %v1427 = vadd.f32 %v1391, %v1408
        %v1428 = vadd.f32 %v1392, %v1412
        %v1429 = vadd.f32 %v1393, %v1408
        %v1430 = vadd.f32 %v1394, %v1412
        %v1431 = vadd.f32 %v1395, %v1408
        %v1432 = vadd.f32 %v1396, %v1412
        %v1433 = vadd.f32 %v1397, %v1408
        %v1434 = vadd.f32 %v1398, %v1412
        %v1435 = vadd.f32 %v1399, %v1408
        %v1436 = vadd.f32 %v1400, %v1412
        %v1437 = vadd.f32 %v1401, %v1408
        %v1438 = vadd.f32 %v1402, %v1412
        %v1439 = vmax.f32 %v1415, 0.0
        %v1440 = vmax.f32 %v1416, 0.0
        %v1441 = vmax.f32 %v1417, 0.0
        %v1442 = vmax.f32 %v1418, 0.0
        %v1443 = vmax.f32 %v1419, 0.0
        %v1444 = vmax.f32 %v1420, 0.0
        %v1445 = vmax.f32 %v1421, 0.0
        %v1446 = vmax.f32 %v1422, 0.0
        %v1447 = vmax.f32 %v1423, 0.0
        %v1448 = vmax.f32 %v1424, 0.0
        %v1449 = vmax.f32 %v1425, 0.0
        %v1450 = vmax.f32 %v1426, 0.0
        %v1451 = vmax.f32 %v1427, 0.0
        %v1452 = vmax.f32 %v1428, 0.0
        %v1453 = vmax.f32 %v1429, 0.0
        %v1454 = vmax.f32 %v1430, 0.0
        %v1455 = vmax.f32 %v1431, 0.0
        %v1456 = vmax.f32 %v1432, 0.0
        %v1457 = vmax.f32 %v1433, 0.0
        %v1458 = vmax.f32 %v1434, 0.0
        %v1459 = vmax.f32 %v1435, 0.0
        %v1460 = vmax.f32 %v1436, 0.0
        %v1461 = vmax.f32 %v1437, 0.0
        %v1462 = vmax.f32 %v1438, 0.0
        %1463 = vst [vmem:[#allocation2 + $0xc0] sm:$0xff] %v1439
        %1464 = vst.msk [vmem:[#allocation2 + $0xc8] sm:$0xff] %vm904, %v1440
        %1465 = vst [vmem:[#allocation2 + $0xd0] sm:$0xff] %v1441
        %1466 = vst.msk [vmem:[#allocation2 + $0xd8] sm:$0xff] %vm904, %v1442
        %1467 = vst [vmem:[#allocation2 + $0xe0] sm:$0xff] %v1443
        %1468 = vst.msk [vmem:[#allocation2 + $0xe8] sm:$0xff] %vm904, %v1444
        %1469 = vst [vmem:[#allocation2 + $0xf0] sm:$0xff] %v1445
        %1470 = vst.msk [vmem:[#allocation2 + $0xf8] sm:$0xff] %vm904, %v1446
        %1471 = vst [vmem:[#allocation2 + $0x100] sm:$0xff] %v1447
        %1472 = vst.msk [vmem:[#allocation2 + $0x108] sm:$0xff] %vm904, %v1448
        %1473 = vst [vmem:[#allocation2 + $0x110] sm:$0xff] %v1449
        %1474 = vst.msk [vmem:[#allocation2 + $0x118] sm:$0xff] %vm904, %v1450
        %1475 = vst [vmem:[#allocation2 + $0x120] sm:$0xff] %v1451
        %1476 = vst.msk [vmem:[#allocation2 + $0x128] sm:$0xff] %vm904, %v1452
        %1477 = vst [vmem:[#allocation2 + $0x130] sm:$0xff] %v1453
        %1478 = vst.msk [vmem:[#allocation2 + $0x138] sm:$0xff] %vm904, %v1454
        %1479 = vst [vmem:[#allocation2 + $0x140] sm:$0xff] %v1455
        %1480 = vst.msk [vmem:[#allocation2 + $0x148] sm:$0xff] %vm904, %v1456
        %1481 = vst [vmem:[#allocation2 + $0x150] sm:$0xff] %v1457
        %1482 = vst.msk [vmem:[#allocation2 + $0x158] sm:$0xff] %vm904, %v1458
        %1483 = vst [vmem:[#allocation2 + $0x160] sm:$0xff] %v1459
        %1484 = vst.msk [vmem:[#allocation2 + $0x168] sm:$0xff] %vm904, %v1460
        %1485 = vst [vmem:[#allocation2 + $0x170] sm:$0x3f] %v1461
        %vm1486 = vcmask 521216
        %1487 = vst.msk [vmem:[#allocation2 + $0x178] sm:$0x3f] %vm1486, %v1462
        %v1488 = vld [vmem:[#allocation2] sm:$0xff]
        %v1489 = vld [vmem:[#allocation2 + $0x10] sm:$0xff]
        %v1490 = vld [vmem:[#allocation2 + $0x20] sm:$0xff]
        %v1491 = vld [vmem:[#allocation2 + $0x30] sm:$0xff]
        %v1492 = vld [vmem:[#allocation2 + $0x40] sm:$0xff]
        %v1493 = vld [vmem:[#allocation2 + $0x50] sm:$0xff]
        %v1494 = vld [vmem:[#allocation2 + $0x60] sm:$0xff]
        %v1495 = vld [vmem:[#allocation2 + $0x70] sm:$0xff]
        %v1496 = vld [vmem:[#allocation2 + $0x80] sm:$0xff]
        %v1497 = vld [vmem:[#allocation2 + $0x90] sm:$0xff]
        %v1498 = vld [vmem:[#allocation2 + $0xa0] sm:$0xff]
        %v1499 = vld [vmem:[#allocation2 + $0xb0] sm:$0xff]
        %v1500 = vld [vmem:[#allocation2 + $0xc0] sm:$0xff]
        %v1501 = vld [vmem:[#allocation2 + $0xd0] sm:$0xff]
        %v1502 = vld [vmem:[#allocation2 + $0xe0] sm:$0xff]
        %v1503 = vld [vmem:[#allocation2 + $0xf0] sm:$0xff]
        %v1504 = vld [vmem:[#allocation2 + $0x100] sm:$0xff]
        %v1505 = vld [vmem:[#allocation2 + $0x110] sm:$0xff]
        %v1506 = vld [vmem:[#allocation2 + $0x120] sm:$0xff]
        %v1507 = vld [vmem:[#allocation2 + $0x130] sm:$0xff]
        %v1508 = vld [vmem:[#allocation2 + $0x140] sm:$0xff]
        %v1509 = vld [vmem:[#allocation2 + $0x150] sm:$0xff]
        %v1510 = vld [vmem:[#allocation2 + $0x160] sm:$0xff]
        %v1511 = vld [vmem:[#allocation2 + $0x170] sm:$0xf]
        %v1512 = vpack.c.bf16 %v1489, %v1488
        %v1513 = vpack.c.bf16 %v1491, %v1490
        %v1514 = vpack.c.bf16 %v1493, %v1492
        %v1515 = vpack.c.bf16 %v1495, %v1494
        %v1516 = vpack.c.bf16 %v1497, %v1496
        %v1517 = vpack.c.bf16 %v1499, %v1498
        %v1518 = vpack.c.bf16 %v1501, %v1500
        %v1519 = vpack.c.bf16 %v1503, %v1502
        %v1520 = vpack.c.bf16 %v1505, %v1504
        %v1521 = vpack.c.bf16 %v1507, %v1506
        %v1522 = vpack.c.bf16 %v1509, %v1508
        %v1523 = vpack.c.bf16 %v1511, %v1510
        %v1524 = vld [vmem:[#allocation10] sm:$0xf]
        %v1525 = vld [vmem:[#allocation10 + $0x4] sm:$0xf]
        %v1526 = vld [vmem:[#allocation10 + $0x8] sm:$0xf]
        %v1527 = vld [vmem:[#allocation10 + $0xc] sm:$0xf]
        %v1528 = vld [vmem:[#allocation10 + $0x10] sm:$0xf]
        %v1529 = vld [vmem:[#allocation10 + $0x14] sm:$0xf]
        %v1530 = vld [vmem:[#allocation10 + $0x18] sm:$0xf]
        %v1531 = vld [vmem:[#allocation10 + $0x1c] sm:$0xf]
        %v1532 = vld [vmem:[#allocation10 + $0x20] sm:$0xf]
        %v1533 = vld [vmem:[#allocation10 + $0x24] sm:$0xf]
        %v1534 = vld [vmem:[#allocation10 + $0x28] sm:$0xf]
        %v1535 = vld [vmem:[#allocation10 + $0x2c] sm:$0xf]
        %v1536 = vld [vmem:[#allocation10 + $0x30] sm:$0xf]
        %v1537 = vld [vmem:[#allocation10 + $0x34] sm:$0xf]
        %v1538 = vld [vmem:[#allocation10 + $0x38] sm:$0xf]
        %v1539 = vld [vmem:[#allocation10 + $0x3c] sm:$0xf]
        %v1540 = vld [vmem:[#allocation2] sm:$0xfe]
        %v1541 = vld [vmem:[#allocation2 + $0x170] sm:$0x1f]
        %v1542 = vpack.c.bf16 %v1489, %v1540
        %v1543 = vpack.c.bf16 %v1541, %v1510
        %v1544 = vld [vmem:[#allocation10 + $0x40] sm:$0xf]
        %v1545 = vld [vmem:[#allocation10 + $0x44] sm:$0xf]
        %v1546 = vld [vmem:[#allocation10 + $0x48] sm:$0xf]
        %v1547 = vld [vmem:[#allocation10 + $0x4c] sm:$0xf]
        %v1548 = vld [vmem:[#allocation10 + $0x50] sm:$0xf]
        %v1549 = vld [vmem:[#allocation10 + $0x54] sm:$0xf]
        %v1550 = vld [vmem:[#allocation10 + $0x58] sm:$0xf]
        %v1551 = vld [vmem:[#allocation10 + $0x5c] sm:$0xf]
        %v1552 = vld [vmem:[#allocation10 + $0x60] sm:$0xf]
        %v1553 = vld [vmem:[#allocation10 + $0x64] sm:$0xf]
        %v1554 = vld [vmem:[#allocation10 + $0x68] sm:$0xf]
        %v1555 = vld [vmem:[#allocation10 + $0x6c] sm:$0xf]
        %v1556 = vld [vmem:[#allocation10 + $0x70] sm:$0xf]
        %v1557 = vld [vmem:[#allocation10 + $0x74] sm:$0xf]
        %v1558 = vld [vmem:[#allocation10 + $0x78] sm:$0xf]
        %v1559 = vld [vmem:[#allocation10 + $0x7c] sm:$0xf]
        %vm1560 = vsmask.f32 7424
        %v1562 = vshrl.u32 %v1542, 16
        %v1564 = vshll.u32 %v1542, 16
        %v1566 = vrot.slane %v1564, 1
        %v1567 = vor.u32 %v1562, %v1566
        %v1569 = vshll.u32 %v1513, 16
        %v1571 = vrot.slane %v1569, 1
        %v1572 = vsel %vm1560, %v1567, %v1571
        %v1573 = vshrl.u32 %v1513, 16
        %v1575 = vor.u32 %v1573, %v1571
        %v1577 = vshll.u32 %v1514, 16
        %v1579 = vrot.slane %v1577, 1
        %v1580 = vsel %vm1560, %v1575, %v1579
        %v1581 = vshrl.u32 %v1514, 16
        %v1583 = vor.u32 %v1581, %v1579
        %v1585 = vshll.u32 %v1515, 16
        %v1587 = vrot.slane %v1585, 1
        %v1588 = vsel %vm1560, %v1583, %v1587
        %v1589 = vshrl.u32 %v1515, 16
        %v1591 = vor.u32 %v1589, %v1587
        %v1593 = vshll.u32 %v1516, 16
        %v1595 = vrot.slane %v1593, 1
        %v1596 = vsel %vm1560, %v1591, %v1595
        %v1597 = vshrl.u32 %v1516, 16
        %v1599 = vor.u32 %v1597, %v1595
        %v1601 = vshll.u32 %v1517, 16
        %v1603 = vrot.slane %v1601, 1
        %v1604 = vsel %vm1560, %v1599, %v1603
        %v1605 = vshrl.u32 %v1517, 16
        %v1607 = vor.u32 %v1605, %v1603
        %v1609 = vshll.u32 %v1518, 16
        %v1611 = vrot.slane %v1609, 1
        %v1612 = vsel %vm1560, %v1607, %v1611
        %v1613 = vshrl.u32 %v1518, 16
        %v1615 = vor.u32 %v1613, %v1611
        %v1617 = vshll.u32 %v1519, 16
        %v1619 = vrot.slane %v1617, 1
        %v1620 = vsel %vm1560, %v1615, %v1619
        %v1621 = vshrl.u32 %v1519, 16
        %v1623 = vor.u32 %v1621, %v1619
        %v1625 = vshll.u32 %v1520, 16
        %v1627 = vrot.slane %v1625, 1
        %v1628 = vsel %vm1560, %v1623, %v1627
        %v1629 = vshrl.u32 %v1520, 16
        %v1631 = vor.u32 %v1629, %v1627
        %v1633 = vshll.u32 %v1521, 16
        %v1635 = vrot.slane %v1633, 1
        %v1636 = vsel %vm1560, %v1631, %v1635
        %v1637 = vshrl.u32 %v1521, 16
        %v1639 = vor.u32 %v1637, %v1635
        %v1641 = vshll.u32 %v1522, 16
        %v1643 = vrot.slane %v1641, 1
        %v1644 = vsel %vm1560, %v1639, %v1643
        %v1645 = vshrl.u32 %v1522, 16
        %v1647 = vor.u32 %v1645, %v1643
        %v1649 = vshll.u32 %v1543, 16
        %v1651 = vrot.slane %v1649, 1
        %v1652 = vsel %vm1560, %v1647, %v1651
        %v1653 = vshrl.u32 %v1543, 16
        %v1655 = vor.u32 %v1653, %v1651
        %v1684 = vunpack.c.l.b16 %v1544
        %v1685 = vunpack.c.l.b16 %v1545
        %v1686 = vunpack.c.l.b16 %v1546
        %v1687 = vunpack.c.l.b16 %v1547
        %v1688 = vunpack.c.l.b16 %v1548
        %v1689 = vunpack.c.l.b16 %v1549
        %v1690 = vunpack.c.l.b16 %v1550
        %v1691 = vunpack.c.l.b16 %v1551
        %v1692 = vunpack.c.l.b16 %v1552
        %v1693 = vunpack.c.l.b16 %v1553
        %v1694 = vunpack.c.l.b16 %v1554
        %v1695 = vunpack.c.l.b16 %v1555
        %v1696 = vunpack.c.l.b16 %v1556
        %v1697 = vunpack.c.l.b16 %v1557
        %v1698 = vunpack.c.l.b16 %v1558
        %v1699 = vunpack.c.l.b16 %v1559
        %v1700 = vpack.c.b16 %v1685, %v1684
        %v1701 = vpack.c.b16 %v1687, %v1686
        %v1702 = vpack.c.b16 %v1689, %v1688
        %v1703 = vpack.c.b16 %v1691, %v1690
        %v1704 = vpack.c.b16 %v1693, %v1692
        %v1705 = vpack.c.b16 %v1695, %v1694
        %v1706 = vpack.c.b16 %v1697, %v1696
        %v1707 = vpack.c.b16 %v1699, %v1698
        %1716 = vmatprep.subr.bf16.mxu0 0
        %1717 = vmatpush1.bf16.msra.mxu0 %v1700
        %1718 = vmatprep.subr.bf16.mxu0 0
        %1719 = vmatpush1.bf16.msra.mxu0 %v1701
        %1720 = vmatprep.subr.bf16.mxu0 0
        %1721 = vmatpush1.bf16.msra.mxu0 %v1702
        %1722 = vmatprep.subr.bf16.mxu0 0
        %1723 = vmatpush1.bf16.msra.mxu0 %v1703
        %1724 = vmatprep.subr.bf16.mxu0 0
        %1725 = vmatpush1.bf16.msra.mxu0 %v1704
        %1726 = vmatprep.subr.bf16.mxu0 0
        %1727 = vmatpush1.bf16.msra.mxu0 %v1705
        %1728 = vmatprep.subr.bf16.mxu0 0
        %1729 = vmatpush1.bf16.msra.mxu0 %v1706
        %1730 = vmatprep.subr.bf16.mxu0 0
        %1731 = vmatpush1.bf16.msra.mxu0 %v1707
        %1732 = vmatprep.subr.bf16.mxu0 0
        %1733 = vmatpush1.bf16.msra.mxu0 0
        %1734 = vmatprep.subr.bf16.mxu0 0
        %1735 = vmatpush1.bf16.msra.mxu0 0
        %1736 = vmatprep.subr.bf16.mxu0 0
        %1737 = vmatpush1.bf16.msra.mxu0 0
        %1738 = vmatprep.subr.bf16.mxu0 0
        %1739 = vmatpush1.bf16.msra.mxu0 0
        %1740 = vmatprep.subr.bf16.mxu0 0
        %1741 = vmatpush1.bf16.msra.mxu0 0
        %1742 = vmatprep.subr.bf16.mxu0 0
        %1743 = vmatpush1.bf16.msra.mxu0 0
        %1744 = vmatprep.subr.bf16.mxu0 0
        %1745 = vmatpush1.bf16.msra.mxu0 0
        %1746 = vmatprep.subr.bf16.mxu0 0
        %1747 = vmatpush1.bf16.msra.mxu0 0
        %1748 = vmatprep.mubr.bf16.mxu0 0
        %1749 = vmatmul.mubr.bf16.gmra.mrb[0].mxu0 %v1572
        %v1750 = vpop.f32.mrb[0].mxu0
        %v1751 = vadd.f32 0.0, %v1750
        %v1752 = vpop.f32.mrb[0].mxu0
        %v1753 = vpop.f32.mrb[0].mxu0
        %v1754 = vadd.f32 0.0, %v1753
        %v1755 = vpop.f32.mrb[0].mxu0
        %1756 = vmatprep.mubr.bf16.mxu0 0
        %1757 = vmatmul.mubr.bf16.gmra.mrb[0].mxu0 %v1580
        %v1758 = vpop.f32.mrb[0].mxu0
        %v1759 = vadd.f32 0.0, %v1758
        %v1760 = vpop.f32.mrb[0].mxu0
        %v1761 = vpop.f32.mrb[0].mxu0
        %v1762 = vadd.f32 0.0, %v1761
        %v1763 = vpop.f32.mrb[0].mxu0
        %1764 = vmatprep.mubr.bf16.mxu0 0
        %1765 = vmatmul.mubr.bf16.gmra.mrb[0].mxu0 %v1588
        %v1766 = vpop.f32.mrb[0].mxu0
        %v1767 = vadd.f32 0.0, %v1766
        %v1768 = vpop.f32.mrb[0].mxu0
        %v1769 = vpop.f32.mrb[0].mxu0
        %v1770 = vadd.f32 0.0, %v1769
        %v1771 = vpop.f32.mrb[0].mxu0
        %1772 = vmatprep.mubr.bf16.mxu0 0
        %1773 = vmatmul.mubr.bf16.gmra.mrb[0].mxu0 %v1596
        %v1774 = vpop.f32.mrb[0].mxu0
        %v1775 = vadd.f32 0.0, %v1774
        %v1776 = vpop.f32.mrb[0].mxu0
        %v1777 = vpop.f32.mrb[0].mxu0
        %v1778 = vadd.f32 0.0, %v1777
        %v1779 = vpop.f32.mrb[0].mxu0
        %1780 = vmatprep.mubr.bf16.mxu0 0
        %1781 = vmatmul.mubr.bf16.gmra.mrb[0].mxu0 %v1604
        %v1782 = vpop.f32.mrb[0].mxu0
        %v1783 = vadd.f32 0.0, %v1782
        %v1784 = vpop.f32.mrb[0].mxu0
        %v1785 = vpop.f32.mrb[0].mxu0
        %v1786 = vadd.f32 0.0, %v1785
        %v1787 = vpop.f32.mrb[0].mxu0
        %1788 = vmatprep.mubr.bf16.mxu0 0
        %1789 = vmatmul.mubr.bf16.gmra.mrb[0].mxu0 %v1612
        %v1790 = vpop.f32.mrb[0].mxu0
        %v1791 = vadd.f32 0.0, %v1790
        %v1792 = vpop.f32.mrb[0].mxu0
        %v1793 = vpop.f32.mrb[0].mxu0
        %v1794 = vadd.f32 0.0, %v1793
        %v1795 = vpop.f32.mrb[0].mxu0
        %1796 = vmatprep.mubr.bf16.mxu0 0
        %1797 = vmatmul.mubr.bf16.gmra.mrb[0].mxu0 %v1620
        %v1798 = vpop.f32.mrb[0].mxu0
        %v1799 = vadd.f32 0.0, %v1798
        %v1800 = vpop.f32.mrb[0].mxu0
        %v1801 = vpop.f32.mrb[0].mxu0
        %v1802 = vadd.f32 0.0, %v1801
        %v1803 = vpop.f32.mrb[0].mxu0
        %1804 = vmatprep.mubr.bf16.mxu0 0
        %1805 = vmatmul.mubr.bf16.gmra.mrb[0].mxu0 %v1628
        %v1806 = vpop.f32.mrb[0].mxu0
        %v1807 = vadd.f32 0.0, %v1806
        %v1808 = vpop.f32.mrb[0].mxu0
        %v1809 = vpop.f32.mrb[0].mxu0
        %v1810 = vadd.f32 0.0, %v1809
        %v1811 = vpop.f32.mrb[0].mxu0
        %1812 = vmatprep.mubr.bf16.mxu0 0
        %1813 = vmatmul.mubr.bf16.gmra.mrb[0].mxu0 %v1636
        %v1814 = vpop.f32.mrb[0].mxu0
        %v1815 = vadd.f32 0.0, %v1814
        %v1816 = vpop.f32.mrb[0].mxu0
        %v1817 = vpop.f32.mrb[0].mxu0
        %v1818 = vadd.f32 0.0, %v1817
        %v1819 = vpop.f32.mrb[0].mxu0
        %1820 = vmatprep.mubr.bf16.mxu0 0
        %1821 = vmatmul.mubr.bf16.gmra.mrb[0].mxu0 %v1644
        %v1822 = vpop.f32.mrb[0].mxu0
        %v1823 = vadd.f32 0.0, %v1822
        %v1824 = vpop.f32.mrb[0].mxu0
        %v1825 = vpop.f32.mrb[0].mxu0
        %v1826 = vadd.f32 0.0, %v1825
        %v1827 = vpop.f32.mrb[0].mxu0
        %1828 = vmatprep.mubr.bf16.mxu0 0
        %1829 = vmatmul.mubr.bf16.gmra.mrb[0].mxu0 %v1652
        %v1830 = vpop.f32.mrb[0].mxu0
        %v1831 = vadd.f32 0.0, %v1830
        %v1832 = vpop.f32.mrb[0].mxu0
        %v1833 = vpop.f32.mrb[0].mxu0
        %v1834 = vadd.f32 0.0, %v1833
        %v1835 = vpop.f32.mrb[0].mxu0
        %1836 = vmatprep.mubr.bf16.mxu0 0
        %1837 = vmatmul.mubr.bf16.gmra.mrb[0].mxu0 %v1655
        %v1838 = vpop.f32.mrb[0].mxu0
        %v1839 = vadd.f32 0.0, %v1838
        %v1840 = vpop.f32.mrb[0].mxu0
        %v1841 = vpop.f32.mrb[0].mxu0
        %v1842 = vadd.f32 0.0, %v1841
        %v1843 = vpop.f32.mrb[0].mxu0
        %1844 = vdwg.mxu0
        %v1861 = vunpack.c.l.b16 %v1524
        %v1862 = vunpack.c.l.b16 %v1525
        %v1863 = vunpack.c.l.b16 %v1526
        %v1864 = vunpack.c.l.b16 %v1527
        %v1865 = vunpack.c.l.b16 %v1528
        %v1866 = vunpack.c.l.b16 %v1529
        %v1867 = vunpack.c.l.b16 %v1530
        %v1868 = vunpack.c.l.b16 %v1531
        %v1869 = vunpack.c.l.b16 %v1532
        %v1870 = vunpack.c.l.b16 %v1533
        %v1871 = vunpack.c.l.b16 %v1534
        %v1872 = vunpack.c.l.b16 %v1535
        %v1873 = vunpack.c.l.b16 %v1536
        %v1874 = vunpack.c.l.b16 %v1537
        %v1875 = vunpack.c.l.b16 %v1538
        %v1876 = vunpack.c.l.b16 %v1539
        %v1877 = vpack.c.b16 %v1862, %v1861
        %v1878 = vpack.c.b16 %v1864, %v1863
        %v1879 = vpack.c.b16 %v1866, %v1865
        %v1880 = vpack.c.b16 %v1868, %v1867
        %v1881 = vpack.c.b16 %v1870, %v1869
        %v1882 = vpack.c.b16 %v1872, %v1871
        %v1883 = vpack.c.b16 %v1874, %v1873
        %v1884 = vpack.c.b16 %v1876, %v1875
        %1893 = vmatprep.subr.bf16.mxu0 0
        %1894 = vmatpush1.bf16.msra.mxu0 %v1877
        %1895 = vmatprep.subr.bf16.mxu0 0
        %1896 = vmatpush1.bf16.msra.mxu0 %v1878
        %1897 = vmatprep.subr.bf16.mxu0 0
        %1898 = vmatpush1.bf16.msra.mxu0 %v1879
        %1899 = vmatprep.subr.bf16.mxu0 0
        %1900 = vmatpush1.bf16.msra.mxu0 %v1880
        %1901 = vmatprep.subr.bf16.mxu0 0
        %1902 = vmatpush1.bf16.msra.mxu0 %v1881
        %1903 = vmatprep.subr.bf16.mxu0 0
        %1904 = vmatpush1.bf16.msra.mxu0 %v1882
        %1905 = vmatprep.subr.bf16.mxu0 0
        %1906 = vmatpush1.bf16.msra.mxu0 %v1883
        %1907 = vmatprep.subr.bf16.mxu0 0
        %1908 = vmatpush1.bf16.msra.mxu0 %v1884
        %1909 = vmatprep.subr.bf16.mxu0 0
        %1910 = vmatpush1.bf16.msra.mxu0 0
        %1911 = vmatprep.subr.bf16.mxu0 0
        %1912 = vmatpush1.bf16.msra.mxu0 0
        %1913 = vmatprep.subr.bf16.mxu0 0
        %1914 = vmatpush1.bf16.msra.mxu0 0
        %1915 = vmatprep.subr.bf16.mxu0 0
        %1916 = vmatpush1.bf16.msra.mxu0 0
        %1917 = vmatprep.subr.bf16.mxu0 0
        %1918 = vmatpush1.bf16.msra.mxu0 0
        %1919 = vmatprep.subr.bf16.mxu0 0
        %1920 = vmatpush1.bf16.msra.mxu0 0
        %1921 = vmatprep.subr.bf16.mxu0 0
        %1922 = vmatpush1.bf16.msra.mxu0 0
        %1923 = vmatprep.subr.bf16.mxu0 0
        %1924 = vmatpush1.bf16.msra.mxu0 0
        %1925 = vmatprep.mubr.bf16.mxu0 0
        %1926 = vmatmul.mubr.bf16.gmra.mrb[0].mxu0 %v1512
        %v1927 = vpop.f32.mrb[0].mxu0
        %v1928 = vadd.f32 %v1751, %v1927
        %v1929 = vpop.f32.mrb[0].mxu0
        %v1930 = vpop.f32.mrb[0].mxu0
        %v1931 = vadd.f32 %v1754, %v1930
        %v1932 = vpop.f32.mrb[0].mxu0
        %1933 = vmatprep.mubr.bf16.mxu0 0
        %1934 = vmatmul.mubr.bf16.gmra.mrb[0].mxu0 %v1513
        %v1935 = vpop.f32.mrb[0].mxu0
        %v1936 = vadd.f32 %v1759, %v1935
        %v1937 = vpop.f32.mrb[0].mxu0
        %v1938 = vpop.f32.mrb[0].mxu0
        %v1939 = vadd.f32 %v1762, %v1938
        %v1940 = vpop.f32.mrb[0].mxu0
        %1941 = vmatprep.mubr.bf16.mxu0 0
        %1942 = vmatmul.mubr.bf16.gmra.mrb[0].mxu0 %v1514
        %v1943 = vpop.f32.mrb[0].mxu0
        %v1944 = vadd.f32 %v1767, %v1943
        %v1945 = vpop.f32.mrb[0].mxu0
        %v1946 = vpop.f32.mrb[0].mxu0
        %v1947 = vadd.f32 %v1770, %v1946
        %v1948 = vpop.f32.mrb[0].mxu0
        %1949 = vmatprep.mubr.bf16.mxu0 0
        %1950 = vmatmul.mubr.bf16.gmra.mrb[0].mxu0 %v1515
        %v1951 = vpop.f32.mrb[0].mxu0
        %v1952 = vadd.f32 %v1775, %v1951
        %v1953 = vpop.f32.mrb[0].mxu0
        %v1954 = vpop.f32.mrb[0].mxu0
        %v1955 = vadd.f32 %v1778, %v1954
        %v1956 = vpop.f32.mrb[0].mxu0
        %1957 = vmatprep.mubr.bf16.mxu0 0
        %1958 = vmatmul.mubr.bf16.gmra.mrb[0].mxu0 %v1516
        %v1959 = vpop.f32.mrb[0].mxu0
        %v1960 = vadd.f32 %v1783, %v1959
        %v1961 = vpop.f32.mrb[0].mxu0
        %v1962 = vpop.f32.mrb[0].mxu0
        %v1963 = vadd.f32 %v1786, %v1962
        %v1964 = vpop.f32.mrb[0].mxu0
        %1965 = vmatprep.mubr.bf16.mxu0 0
        %1966 = vmatmul.mubr.bf16.gmra.mrb[0].mxu0 %v1517
        %v1967 = vpop.f32.mrb[0].mxu0
        %v1968 = vadd.f32 %v1791, %v1967
        %v1969 = vpop.f32.mrb[0].mxu0
        %v1970 = vpop.f32.mrb[0].mxu0
        %v1971 = vadd.f32 %v1794, %v1970
        %v1972 = vpop.f32.mrb[0].mxu0
        %1973 = vmatprep.mubr.bf16.mxu0 0
        %1974 = vmatmul.mubr.bf16.gmra.mrb[0].mxu0 %v1518
        %v1975 = vpop.f32.mrb[0].mxu0
        %v1976 = vadd.f32 %v1799, %v1975
        %v1977 = vpop.f32.mrb[0].mxu0
        %v1978 = vpop.f32.mrb[0].mxu0
        %v1979 = vadd.f32 %v1802, %v1978
        %v1980 = vpop.f32.mrb[0].mxu0
        %1981 = vmatprep.mubr.bf16.mxu0 0
        %1982 = vmatmul.mubr.bf16.gmra.mrb[0].mxu0 %v1519
        %v1983 = vpop.f32.mrb[0].mxu0
        %v1984 = vadd.f32 %v1807, %v1983
        %v1985 = vpop.f32.mrb[0].mxu0
        %v1986 = vpop.f32.mrb[0].mxu0
        %v1987 = vadd.f32 %v1810, %v1986
        %v1988 = vpop.f32.mrb[0].mxu0
        %1989 = vmatprep.mubr.bf16.mxu0 0
        %1990 = vmatmul.mubr.bf16.gmra.mrb[0].mxu0 %v1520
        %v1991 = vpop.f32.mrb[0].mxu0
        %v1992 = vadd.f32 %v1815, %v1991
        %v1993 = vpop.f32.mrb[0].mxu0
        %v1994 = vpop.f32.mrb[0].mxu0
        %v1995 = vadd.f32 %v1818, %v1994
        %v1996 = vpop.f32.mrb[0].mxu0
        %1997 = vmatprep.mubr.bf16.mxu0 0
        %1998 = vmatmul.mubr.bf16.gmra.mrb[0].mxu0 %v1521
        %v1999 = vpop.f32.mrb[0].mxu0
        %v2000 = vadd.f32 %v1823, %v1999
        %v2001 = vpop.f32.mrb[0].mxu0
        %v2002 = vpop.f32.mrb[0].mxu0
        %v2003 = vadd.f32 %v1826, %v2002
        %v2004 = vpop.f32.mrb[0].mxu0
        %2005 = vmatprep.mubr.bf16.mxu0 0
        %2006 = vmatmul.mubr.bf16.gmra.mrb[0].mxu0 %v1522
        %v2007 = vpop.f32.mrb[0].mxu0
        %v2008 = vadd.f32 %v1831, %v2007
        %v2009 = vpop.f32.mrb[0].mxu0
        %v2010 = vpop.f32.mrb[0].mxu0
        %v2011 = vadd.f32 %v1834, %v2010
        %v2012 = vpop.f32.mrb[0].mxu0
        %2013 = vmatprep.mubr.bf16.mxu0 0
        %2014 = vmatmul.mubr.bf16.gmra.mrb[0].mxu0 %v1523
        %v2015 = vpop.f32.mrb[0].mxu0
        %v2016 = vadd.f32 %v1839, %v2015
        %v2017 = vpop.f32.mrb[0].mxu0
        %v2018 = vpop.f32.mrb[0].mxu0
        %v2019 = vadd.f32 %v1842, %v2018
        %v2020 = vpop.f32.mrb[0].mxu0
        %2021 = vdwg.mxu0
        %v2022 = vld [vmem:[#allocation2] sm:$0xfc]
        %v2023 = vld [vmem:[#allocation2 + $0x170] sm:$0x3f]
        %v2024 = vpack.c.bf16 %v1489, %v2022
        %v2025 = vpack.c.bf16 %v2023, %v1510
        %v2026 = vld [vmem:[#allocation10 + $0x80] sm:$0xf]
        %v2027 = vld [vmem:[#allocation10 + $0x84] sm:$0xf]
        %v2028 = vld [vmem:[#allocation10 + $0x88] sm:$0xf]
        %v2029 = vld [vmem:[#allocation10 + $0x8c] sm:$0xf]
        %v2030 = vld [vmem:[#allocation10 + $0x90] sm:$0xf]
        %v2031 = vld [vmem:[#allocation10 + $0x94] sm:$0xf]
        %v2032 = vld [vmem:[#allocation10 + $0x98] sm:$0xf]
        %v2033 = vld [vmem:[#allocation10 + $0x9c] sm:$0xf]
        %v2034 = vld [vmem:[#allocation10 + $0xa0] sm:$0xf]
        %v2035 = vld [vmem:[#allocation10 + $0xa4] sm:$0xf]
        %v2036 = vld [vmem:[#allocation10 + $0xa8] sm:$0xf]
        %v2037 = vld [vmem:[#allocation10 + $0xac] sm:$0xf]
        %v2038 = vld [vmem:[#allocation10 + $0xb0] sm:$0xf]
        %v2039 = vld [vmem:[#allocation10 + $0xb4] sm:$0xf]
        %v2040 = vld [vmem:[#allocation10 + $0xb8] sm:$0xf]
        %v2041 = vld [vmem:[#allocation10 + $0xbc] sm:$0xf]
        %vm2054 = vcmask 1046528
        %v2055 = vrot.slane %v2024, 1
        %v2056 = vrot.slane %v1513, 1
        %v2057 = vsel %vm2054, %v2055, %v2056
        %v2058 = vrot.slane %v1514, 1
        %v2059 = vsel %vm2054, %v2056, %v2058
        %v2060 = vrot.slane %v1515, 1
        %v2061 = vsel %vm2054, %v2058, %v2060
        %v2062 = vrot.slane %v1516, 1
        %v2063 = vsel %vm2054, %v2060, %v2062
        %v2064 = vrot.slane %v1517, 1
        %v2065 = vsel %vm2054, %v2062, %v2064
        %v2066 = vrot.slane %v1518, 1
        %v2067 = vsel %vm2054, %v2064, %v2066
        %v2068 = vrot.slane %v1519, 1
        %v2069 = vsel %vm2054, %v2066, %v2068
        %v2070 = vrot.slane %v1520, 1
        %v2071 = vsel %vm2054, %v2068, %v2070
        %v2072 = vrot.slane %v1521, 1
        %v2073 = vsel %vm2054, %v2070, %v2072
        %v2074 = vrot.slane %v1522, 1
        %v2075 = vsel %vm2054, %v2072, %v2074
        %v2076 = vrot.slane %v2025, 1
        %v2077 = vsel %vm2054, %v2074, %v2076
        %v2106 = vunpack.c.l.b16 %v2026
        %v2107 = vunpack.c.l.b16 %v2027
        %v2108 = vunpack.c.l.b16 %v2028
        %v2109 = vunpack.c.l.b16 %v2029
        %v2110 = vunpack.c.l.b16 %v2030
        %v2111 = vunpack.c.l.b16 %v2031
        %v2112 = vunpack.c.l.b16 %v2032
        %v2113 = vunpack.c.l.b16 %v2033
        %v2114 = vunpack.c.l.b16 %v2034
        %v2115 = vunpack.c.l.b16 %v2035
        %v2116 = vunpack.c.l.b16 %v2036
        %v2117 = vunpack.c.l.b16 %v2037
        %v2118 = vunpack.c.l.b16 %v2038
        %v2119 = vunpack.c.l.b16 %v2039
        %v2120 = vunpack.c.l.b16 %v2040
        %v2121 = vunpack.c.l.b16 %v2041
        %v2122 = vpack.c.b16 %v2107, %v2106
        %v2123 = vpack.c.b16 %v2109, %v2108
        %v2124 = vpack.c.b16 %v2111, %v2110
        %v2125 = vpack.c.b16 %v2113, %v2112
        %v2126 = vpack.c.b16 %v2115, %v2114
        %v2127 = vpack.c.b16 %v2117, %v2116
        %v2128 = vpack.c.b16 %v2119, %v2118
        %v2129 = vpack.c.b16 %v2121, %v2120
        %2138 = vmatprep.subr.bf16.mxu0 0
        %2139 = vmatpush1.bf16.msra.mxu0 %v2122
        %2140 = vmatprep.subr.bf16.mxu0 0
        %2141 = vmatpush1.bf16.msra.mxu0 %v2123
        %2142 = vmatprep.subr.bf16.mxu0 0
        %2143 = vmatpush1.bf16.msra.mxu0 %v2124
        %2144 = vmatprep.subr.bf16.mxu0 0
        %2145 = vmatpush1.bf16.msra.mxu0 %v2125
        %2146 = vmatprep.subr.bf16.mxu0 0
        %2147 = vmatpush1.bf16.msra.mxu0 %v2126
        %2148 = vmatprep.subr.bf16.mxu0 0
        %2149 = vmatpush1.bf16.msra.mxu0 %v2127
        %2150 = vmatprep.subr.bf16.mxu0 0
        %2151 = vmatpush1.bf16.msra.mxu0 %v2128
        %2152 = vmatprep.subr.bf16.mxu0 0
        %2153 = vmatpush1.bf16.msra.mxu0 %v2129
        %2154 = vmatprep.subr.bf16.mxu0 0
        %2155 = vmatpush1.bf16.msra.mxu0 0
        %2156 = vmatprep.subr.bf16.mxu0 0
        %2157 = vmatpush1.bf16.msra.mxu0 0
        %2158 = vmatprep.subr.bf16.mxu0 0
        %2159 = vmatpush1.bf16.msra.mxu0 0
        %2160 = vmatprep.subr.bf16.mxu0 0
        %2161 = vmatpush1.bf16.msra.mxu0 0
        %2162 = vmatprep.subr.bf16.mxu0 0
        %2163 = vmatpush1.bf16.msra.mxu0 0
        %2164 = vmatprep.subr.bf16.mxu0 0
        %2165 = vmatpush1.bf16.msra.mxu0 0
        %2166 = vmatprep.subr.bf16.mxu0 0
        %2167 = vmatpush1.bf16.msra.mxu0 0
        %2168 = vmatprep.subr.bf16.mxu0 0
        %2169 = vmatpush1.bf16.msra.mxu0 0
        %2170 = vmatprep.mubr.bf16.mxu0 0
        %2171 = vmatmul.mubr.bf16.gmra.mrb[0].mxu0 %v2057
        %v2172 = vpop.f32.mrb[0].mxu0
        %v2173 = vadd.f32 0.0, %v2172
        %v2174 = vpop.f32.mrb[0].mxu0
        %v2175 = vpop.f32.mrb[0].mxu0
        %v2176 = vadd.f32 0.0, %v2175
        %v2177 = vpop.f32.mrb[0].mxu0
        %2178 = vmatprep.mubr.bf16.mxu0 0
        %2179 = vmatmul.mubr.bf16.gmra.mrb[0].mxu0 %v2059
        %v2180 = vpop.f32.mrb[0].mxu0
        %v2181 = vadd.f32 0.0, %v2180
        %v2182 = vpop.f32.mrb[0].mxu0
        %v2183 = vpop.f32.mrb[0].mxu0
        %v2184 = vadd.f32 0.0, %v2183
        %v2185 = vpop.f32.mrb[0].mxu0
        %2186 = vmatprep.mubr.bf16.mxu0 0
        %2187 = vmatmul.mubr.bf16.gmra.mrb[0].mxu0 %v2061
        %v2188 = vpop.f32.mrb[0].mxu0
        %v2189 = vadd.f32 0.0, %v2188
        %v2190 = vpop.f32.mrb[0].mxu0
        %v2191 = vpop.f32.mrb[0].mxu0
        %v2192 = vadd.f32 0.0, %v2191
        %v2193 = vpop.f32.mrb[0].mxu0
        %2194 = vmatprep.mubr.bf16.mxu0 0
        %2195 = vmatmul.mubr.bf16.gmra.mrb[0].mxu0 %v2063
        %v2196 = vpop.f32.mrb[0].mxu0
        %v2197 = vadd.f32 0.0, %v2196
        %v2198 = vpop.f32.mrb[0].mxu0
        %v2199 = vpop.f32.mrb[0].mxu0
        %v2200 = vadd.f32 0.0, %v2199
        %v2201 = vpop.f32.mrb[0].mxu0
        %2202 = vmatprep.mubr.bf16.mxu0 0
        %2203 = vmatmul.mubr.bf16.gmra.mrb[0].mxu0 %v2065
        %v2204 = vpop.f32.mrb[0].mxu0
        %v2205 = vadd.f32 0.0, %v2204
        %v2206 = vpop.f32.mrb[0].mxu0
        %v2207 = vpop.f32.mrb[0].mxu0
        %v2208 = vadd.f32 0.0, %v2207
        %v2209 = vpop.f32.mrb[0].mxu0
        %2210 = vmatprep.mubr.bf16.mxu0 0
        %2211 = vmatmul.mubr.bf16.gmra.mrb[0].mxu0 %v2067
        %v2212 = vpop.f32.mrb[0].mxu0
        %v2213 = vadd.f32 0.0, %v2212
        %v2214 = vpop.f32.mrb[0].mxu0
        %v2215 = vpop.f32.mrb[0].mxu0
        %v2216 = vadd.f32 0.0, %v2215
        %v2217 = vpop.f32.mrb[0].mxu0
        %2218 = vmatprep.mubr.bf16.mxu0 0
        %2219 = vmatmul.mubr.bf16.gmra.mrb[0].mxu0 %v2069
        %v2220 = vpop.f32.mrb[0].mxu0
        %v2221 = vadd.f32 0.0, %v2220
        %v2222 = vpop.f32.mrb[0].mxu0
        %v2223 = vpop.f32.mrb[0].mxu0
        %v2224 = vadd.f32 0.0, %v2223
        %v2225 = vpop.f32.mrb[0].mxu0
        %2226 = vmatprep.mubr.bf16.mxu0 0
        %2227 = vmatmul.mubr.bf16.gmra.mrb[0].mxu0 %v2071
        %v2228 = vpop.f32.mrb[0].mxu0
        %v2229 = vadd.f32 0.0, %v2228
        %v2230 = vpop.f32.mrb[0].mxu0
        %v2231 = vpop.f32.mrb[0].mxu0
        %v2232 = vadd.f32 0.0, %v2231
        %v2233 = vpop.f32.mrb[0].mxu0
        %2234 = vmatprep.mubr.bf16.mxu0 0
        %2235 = vmatmul.mubr.bf16.gmra.mrb[0].mxu0 %v2073
        %v2236 = vpop.f32.mrb[0].mxu0
        %v2237 = vadd.f32 0.0, %v2236
        %v2238 = vpop.f32.mrb[0].mxu0
        %v2239 = vpop.f32.mrb[0].mxu0
        %v2240 = vadd.f32 0.0, %v2239
        %v2241 = vpop.f32.mrb[0].mxu0
        %2242 = vmatprep.mubr.bf16.mxu0 0
        %2243 = vmatmul.mubr.bf16.gmra.mrb[0].mxu0 %v2075
        %v2244 = vpop.f32.mrb[0].mxu0
        %v2245 = vadd.f32 0.0, %v2244
        %v2246 = vpop.f32.mrb[0].mxu0
        %v2247 = vpop.f32.mrb[0].mxu0
        %v2248 = vadd.f32 0.0, %v2247
        %v2249 = vpop.f32.mrb[0].mxu0
        %2250 = vmatprep.mubr.bf16.mxu0 0
        %2251 = vmatmul.mubr.bf16.gmra.mrb[0].mxu0 %v2077
        %v2252 = vpop.f32.mrb[0].mxu0
        %v2253 = vadd.f32 0.0, %v2252
        %v2254 = vpop.f32.mrb[0].mxu0
        %v2255 = vpop.f32.mrb[0].mxu0
        %v2256 = vadd.f32 0.0, %v2255
        %v2257 = vpop.f32.mrb[0].mxu0
        %2258 = vmatprep.mubr.bf16.mxu0 0
        %2259 = vmatmul.mubr.bf16.gmra.mrb[0].mxu0 %v2076
        %v2260 = vpop.f32.mrb[0].mxu0
        %v2261 = vadd.f32 0.0, %v2260
        %v2262 = vpop.f32.mrb[0].mxu0
        %v2263 = vpop.f32.mrb[0].mxu0
        %v2264 = vadd.f32 0.0, %v2263
        %v2265 = vpop.f32.mrb[0].mxu0
        %2266 = vdwg.mxu0
        %v2267 = vadd.f32 %v1928, %v2173
        %v2268 = vadd.f32 %v1931, %v2176
        %v2269 = vadd.f32 %v1936, %v2181
        %v2270 = vadd.f32 %v1939, %v2184
        %v2271 = vadd.f32 %v1944, %v2189
        %v2272 = vadd.f32 %v1947, %v2192
        %v2273 = vadd.f32 %v1952, %v2197
        %v2274 = vadd.f32 %v1955, %v2200
        %v2275 = vadd.f32 %v1960, %v2205
        %v2276 = vadd.f32 %v1963, %v2208
        %v2277 = vadd.f32 %v1968, %v2213
        %v2278 = vadd.f32 %v1971, %v2216
        %v2279 = vadd.f32 %v1976, %v2221
        %v2280 = vadd.f32 %v1979, %v2224
        %v2281 = vadd.f32 %v1984, %v2229
        %v2282 = vadd.f32 %v1987, %v2232
        %v2283 = vadd.f32 %v1992, %v2237
        %v2284 = vadd.f32 %v1995, %v2240
        %v2285 = vadd.f32 %v2000, %v2245
        %v2286 = vadd.f32 %v2003, %v2248
        %v2287 = vadd.f32 %v2008, %v2253
        %v2288 = vadd.f32 %v2011, %v2256
        %v2289 = vadd.f32 %v2016, %v2261
        %v2290 = vadd.f32 %v2019, %v2264
        %v2291 = vld [vmem:[#allocation11] sm:$0x1]
        %v2293 = vlaneseq
        %v2294 = vshrl.u32 %v2293, 7
        %v2295 = vsub.s32 0, %v2294
        %v2296 = vrot.slane %v2291, %v2295
        %v2298 = vadd.f32 %v2267, %v2296
        %v2299 = vadd.f32 %v2268, %v2296
        %v2300 = vadd.f32 %v2269, %v2296
        %v2301 = vadd.f32 %v2270, %v2296
        %v2302 = vadd.f32 %v2271, %v2296
        %v2303 = vadd.f32 %v2272, %v2296
        %v2304 = vadd.f32 %v2273, %v2296
        %v2305 = vadd.f32 %v2274, %v2296
        %v2306 = vadd.f32 %v2275, %v2296
        %v2307 = vadd.f32 %v2276, %v2296
        %v2308 = vadd.f32 %v2277, %v2296
        %v2309 = vadd.f32 %v2278, %v2296
        %v2310 = vadd.f32 %v2279, %v2296
        %v2311 = vadd.f32 %v2280, %v2296
        %v2312 = vadd.f32 %v2281, %v2296
        %v2313 = vadd.f32 %v2282, %v2296
        %v2314 = vadd.f32 %v2283, %v2296
        %v2315 = vadd.f32 %v2284, %v2296
        %v2316 = vadd.f32 %v2285, %v2296
        %v2317 = vadd.f32 %v2286, %v2296
        %v2318 = vadd.f32 %v2287, %v2296
        %v2319 = vadd.f32 %v2288, %v2296
        %v2320 = vadd.f32 %v2289, %v2296
        %v2321 = vadd.f32 %v2290, %v2296
        %v2322 = vmax.f32 %v2298, 0.0
        %v2323 = vmax.f32 %v2299, 0.0
        %v2324 = vmax.f32 %v2300, 0.0
        %v2325 = vmax.f32 %v2301, 0.0
        %v2326 = vmax.f32 %v2302, 0.0
        %v2327 = vmax.f32 %v2303, 0.0
        %v2328 = vmax.f32 %v2304, 0.0
        %v2329 = vmax.f32 %v2305, 0.0
        %v2330 = vmax.f32 %v2306, 0.0
        %v2331 = vmax.f32 %v2307, 0.0
        %v2332 = vmax.f32 %v2308, 0.0
        %v2333 = vmax.f32 %v2309, 0.0
        %v2334 = vmax.f32 %v2310, 0.0
        %v2335 = vmax.f32 %v2311, 0.0
        %v2336 = vmax.f32 %v2312, 0.0
        %v2337 = vmax.f32 %v2313, 0.0
        %v2338 = vmax.f32 %v2314, 0.0
        %v2339 = vmax.f32 %v2315, 0.0
        %v2340 = vmax.f32 %v2316, 0.0
        %v2341 = vmax.f32 %v2317, 0.0
        %v2342 = vmax.f32 %v2318, 0.0
        %v2343 = vmax.f32 %v2319, 0.0
        %v2344 = vmax.f32 %v2320, 0.0
        %v2345 = vmax.f32 %v2321, 0.0
        %2346 = vst [vmem:[#allocation3] sm:$0xff] %v2322
        %2347 = vst [vmem:[#allocation3 + $0x10] sm:$0xff] %v2323
        %2348 = vst [vmem:[#allocation3 + $0x20] sm:$0xff] %v2324
        %2349 = vst [vmem:[#allocation3 + $0x30] sm:$0xff] %v2325
        %2350 = vst [vmem:[#allocation3 + $0x40] sm:$0xff] %v2326
        %2351 = vst [vmem:[#allocation3 + $0x50] sm:$0xff] %v2327
        %2352 = vst [vmem:[#allocation3 + $0x60] sm:$0xff] %v2328
        %2353 = vst [vmem:[#allocation3 + $0x70] sm:$0xff] %v2329
        %2354 = vst [vmem:[#allocation3 + $0x80] sm:$0xff] %v2330
        %2355 = vst [vmem:[#allocation3 + $0x90] sm:$0xff] %v2331
        %2356 = vst [vmem:[#allocation3 + $0xa0] sm:$0xff] %v2332
        %2357 = vst [vmem:[#allocation3 + $0xb0] sm:$0xff] %v2333
        %2358 = vst [vmem:[#allocation3 + $0xc0] sm:$0xff] %v2334
        %2359 = vst [vmem:[#allocation3 + $0xd0] sm:$0xff] %v2335
        %2360 = vst [vmem:[#allocation3 + $0xe0] sm:$0xff] %v2336
        %2361 = vst [vmem:[#allocation3 + $0xf0] sm:$0xff] %v2337
        %2362 = vst [vmem:[#allocation3 + $0x100] sm:$0xff] %v2338
        %2363 = vst [vmem:[#allocation3 + $0x110] sm:$0xff] %v2339
        %2364 = vst [vmem:[#allocation3 + $0x120] sm:$0xff] %v2340
        %2365 = vst [vmem:[#allocation3 + $0x130] sm:$0xff] %v2341
        %2366 = vst [vmem:[#allocation3 + $0x140] sm:$0xff] %v2342
        %2367 = vst [vmem:[#allocation3 + $0x150] sm:$0xff] %v2343
        %2368 = vst [vmem:[#allocation3 + $0x160] sm:$0xff] %v2344
        %2369 = vst [vmem:[#allocation3 + $0x170] sm:$0xf] %v2345
        %v2370 = vld [vmem:[#allocation2] sm:$0xff]
        %v2371 = vld [vmem:[#allocation2 + $0x8] sm:$0xff]
        %v2372 = vld [vmem:[#allocation2 + $0x10] sm:$0xff]
        %v2373 = vld [vmem:[#allocation2 + $0x18] sm:$0xff]
        %v2374 = vld [vmem:[#allocation2 + $0x20] sm:$0xff]
        %v2375 = vld [vmem:[#allocation2 + $0x28] sm:$0xff]
        %v2376 = vld [vmem:[#allocation2 + $0x30] sm:$0xff]
        %v2377 = vld [vmem:[#allocation2 + $0x38] sm:$0xff]
        %v2378 = vld [vmem:[#allocation2 + $0x40] sm:$0xff]
        %v2379 = vld [vmem:[#allocation2 + $0x48] sm:$0xff]
        %v2380 = vld [vmem:[#allocation2 + $0x50] sm:$0xff]
        %v2381 = vld [vmem:[#allocation2 + $0x58] sm:$0xff]
        %v2382 = vld [vmem:[#allocation2 + $0x60] sm:$0xff]
        %v2383 = vld [vmem:[#allocation2 + $0x68] sm:$0xff]
        %v2384 = vld [vmem:[#allocation2 + $0x70] sm:$0xff]
        %v2385 = vld [vmem:[#allocation2 + $0x78] sm:$0xff]
        %v2386 = vld [vmem:[#allocation2 + $0x80] sm:$0xff]
        %v2387 = vld [vmem:[#allocation2 + $0x88] sm:$0xff]
        %v2388 = vld [vmem:[#allocation2 + $0x90] sm:$0xff]
        %v2389 = vld [vmem:[#allocation2 + $0x98] sm:$0xff]
        %v2390 = vld [vmem:[#allocation2 + $0xa0] sm:$0xff]
        %v2391 = vld [vmem:[#allocation2 + $0xa8] sm:$0xff]
        %v2392 = vld [vmem:[#allocation2 + $0xb0] sm:$0xff]
        %v2393 = vld [vmem:[#allocation2 + $0xb8] sm:$0xff]
        %v2394 = vld [vmem:[#allocation2 + $0xc0] sm:$0xff]
        %v2395 = vld [vmem:[#allocation2 + $0xc8] sm:$0xff]
        %v2396 = vld [vmem:[#allocation2 + $0xd0] sm:$0xff]
        %v2397 = vld [vmem:[#allocation2 + $0xd8] sm:$0xff]
        %v2398 = vld [vmem:[#allocation2 + $0xe0] sm:$0xff]
        %v2399 = vld [vmem:[#allocation2 + $0xe8] sm:$0xff]
        %v2400 = vld [vmem:[#allocation2 + $0xf0] sm:$0xff]
        %v2401 = vld [vmem:[#allocation2 + $0xf8] sm:$0xff]
        %v2402 = vld [vmem:[#allocation2 + $0x100] sm:$0xff]
        %v2403 = vld [vmem:[#allocation2 + $0x108] sm:$0xff]
        %v2404 = vld [vmem:[#allocation2 + $0x110] sm:$0xff]
        %v2405 = vld [vmem:[#allocation2 + $0x118] sm:$0xff]
        %v2406 = vld [vmem:[#allocation2 + $0x120] sm:$0xff]
        %v2407 = vld [vmem:[#allocation2 + $0x128] sm:$0xff]
        %v2408 = vld [vmem:[#allocation2 + $0x130] sm:$0xff]
        %v2409 = vld [vmem:[#allocation2 + $0x138] sm:$0xff]
        %v2410 = vld [vmem:[#allocation2 + $0x140] sm:$0xff]
        %v2411 = vld [vmem:[#allocation2 + $0x148] sm:$0xff]
        %v2412 = vld [vmem:[#allocation2 + $0x150] sm:$0xff]
        %v2413 = vld [vmem:[#allocation2 + $0x158] sm:$0xff]
        %v2414 = vld [vmem:[#allocation2 + $0x160] sm:$0xff]
        %v2415 = vld [vmem:[#allocation2 + $0x168] sm:$0xff]
        %v2416 = vld [vmem:[#allocation2 + $0x170] sm:$0xf]
        %v2417 = vld [vmem:[#allocation2 + $0x178] sm:$0xf]
        %v2418 = vpack.c.bf16 %v2372, %v2370
        %v2419 = vpack.c.bf16 %v2373, %v2371
        %v2420 = vpack.c.bf16 %v2376, %v2374
        %v2421 = vpack.c.bf16 %v2377, %v2375
        %v2422 = vpack.c.bf16 %v2380, %v2378
        %v2423 = vpack.c.bf16 %v2381, %v2379
        %v2424 = vpack.c.bf16 %v2384, %v2382
        %v2425 = vpack.c.bf16 %v2385, %v2383
        %v2426 = vpack.c.bf16 %v2388, %v2386
        %v2427 = vpack.c.bf16 %v2389, %v2387
        %v2428 = vpack.c.bf16 %v2392, %v2390
        %v2429 = vpack.c.bf16 %v2393, %v2391
        %v2430 = vpack.c.bf16 %v2396, %v2394
        %v2431 = vpack.c.bf16 %v2397, %v2395
        %v2432 = vpack.c.bf16 %v2400, %v2398
        %v2433 = vpack.c.bf16 %v2401, %v2399
        %v2434 = vpack.c.bf16 %v2404, %v2402
        %v2435 = vpack.c.bf16 %v2405, %v2403
        %v2436 = vpack.c.bf16 %v2408, %v2406
        %v2437 = vpack.c.bf16 %v2409, %v2407
        %v2438 = vpack.c.bf16 %v2412, %v2410
        %v2439 = vpack.c.bf16 %v2413, %v2411
        %v2440 = vpack.c.bf16 %v2416, %v2414
        %v2441 = vpack.c.bf16 %v2417, %v2415
        %v2442 = vld [vmem:[#allocation10] sm:$0xf]
        %v2443 = vld [vmem:[#allocation10 + $0x4] sm:$0xf]
        %v2444 = vld [vmem:[#allocation10 + $0x8] sm:$0xf]
        %v2445 = vld [vmem:[#allocation10 + $0xc] sm:$0xf]
        %v2446 = vld [vmem:[#allocation10 + $0x10] sm:$0xf]
        %v2447 = vld [vmem:[#allocation10 + $0x14] sm:$0xf]
        %v2448 = vld [vmem:[#allocation10 + $0x18] sm:$0xf]
        %v2449 = vld [vmem:[#allocation10 + $0x1c] sm:$0xf]
        %v2450 = vld [vmem:[#allocation10 + $0x20] sm:$0xf]
        %v2451 = vld [vmem:[#allocation10 + $0x24] sm:$0xf]
        %v2452 = vld [vmem:[#allocation10 + $0x28] sm:$0xf]
        %v2453 = vld [vmem:[#allocation10 + $0x2c] sm:$0xf]
        %v2454 = vld [vmem:[#allocation10 + $0x30] sm:$0xf]
        %v2455 = vld [vmem:[#allocation10 + $0x34] sm:$0xf]
        %v2456 = vld [vmem:[#allocation10 + $0x38] sm:$0xf]
        %v2457 = vld [vmem:[#allocation10 + $0x3c] sm:$0xf]
        %v2458 = vld [vmem:[#allocation2] sm:$0xfe]
        %v2459 = vld [vmem:[#allocation2 + $0x8] sm:$0xfe]
        %v2460 = vld [vmem:[#allocation2 + $0x170] sm:$0x1f]
        %v2461 = vld [vmem:[#allocation2 + $0x178] sm:$0x1f]
        %v2462 = vpack.c.bf16 %v2372, %v2458
        %v2463 = vpack.c.bf16 %v2373, %v2459
        %v2464 = vpack.c.bf16 %v2460, %v2414
        %v2465 = vpack.c.bf16 %v2461, %v2415
        %v2466 = vld [vmem:[#allocation10 + $0x40] sm:$0xf]
        %v2467 = vld [vmem:[#allocation10 + $0x44] sm:$0xf]
        %v2468 = vld [vmem:[#allocation10 + $0x48] sm:$0xf]
        %v2469 = vld [vmem:[#allocation10 + $0x4c] sm:$0xf]
        %v2470 = vld [vmem:[#allocation10 + $0x50] sm:$0xf]
        %v2471 = vld [vmem:[#allocation10 + $0x54] sm:$0xf]
        %v2472 = vld [vmem:[#allocation10 + $0x58] sm:$0xf]
        %v2473 = vld [vmem:[#allocation10 + $0x5c] sm:$0xf]
        %v2474 = vld [vmem:[#allocation10 + $0x60] sm:$0xf]
        %v2475 = vld [vmem:[#allocation10 + $0x64] sm:$0xf]
        %v2476 = vld [vmem:[#allocation10 + $0x68] sm:$0xf]
        %v2477 = vld [vmem:[#allocation10 + $0x6c] sm:$0xf]
        %v2478 = vld [vmem:[#allocation10 + $0x70] sm:$0xf]
        %v2479 = vld [vmem:[#allocation10 + $0x74] sm:$0xf]
        %v2480 = vld [vmem:[#allocation10 + $0x78] sm:$0xf]
        %v2481 = vld [vmem:[#allocation10 + $0x7c] sm:$0xf]
        %v2483 = vshrl.u32 %v2462, 16
        %v2485 = vshll.u32 %v2462, 16
        %v2487 = vrot.slane %v2485, 1
        %v2488 = vor.u32 %v2483, %v2487
        %v2490 = vshll.u32 %v2420, 16
        %v2492 = vrot.slane %v2490, 1
        %v2493 = vsel %vm1560, %v2488, %v2492
        %v2495 = vshrl.u32 %v2463, 16
        %v2497 = vshll.u32 %v2463, 16
        %v2499 = vrot.slane %v2497, 1
        %v2500 = vor.u32 %v2495, %v2499
        %v2502 = vshll.u32 %v2421, 16
        %v2504 = vrot.slane %v2502, 1
        %v2505 = vsel %vm1560, %v2500, %v2504
        %v2506 = vshrl.u32 %v2420, 16
        %v2508 = vor.u32 %v2506, %v2492
        %v2510 = vshll.u32 %v2422, 16
        %v2512 = vrot.slane %v2510, 1
        %v2513 = vsel %vm1560, %v2508, %v2512
        %v2514 = vshrl.u32 %v2421, 16
        %v2516 = vor.u32 %v2514, %v2504
        %v2518 = vshll.u32 %v2423, 16
        %v2520 = vrot.slane %v2518, 1
        %v2521 = vsel %vm1560, %v2516, %v2520
        %v2522 = vshrl.u32 %v2422, 16
        %v2524 = vor.u32 %v2522, %v2512
        %v2526 = vshll.u32 %v2424, 16
        %v2528 = vrot.slane %v2526, 1
        %v2529 = vsel %vm1560, %v2524, %v2528
        %v2530 = vshrl.u32 %v2423, 16
        %v2532 = vor.u32 %v2530, %v2520
        %v2534 = vshll.u32 %v2425, 16
        %v2536 = vrot.slane %v2534, 1
        %v2537 = vsel %vm1560, %v2532, %v2536
        %v2538 = vshrl.u32 %v2424, 16
        %v2540 = vor.u32 %v2538, %v2528
        %v2542 = vshll.u32 %v2426, 16
        %v2544 = vrot.slane %v2542, 1
        %v2545 = vsel %vm1560, %v2540, %v2544
        %v2546 = vshrl.u32 %v2425, 16
        %v2548 = vor.u32 %v2546, %v2536
        %v2550 = vshll.u32 %v2427, 16
        %v2552 = vrot.slane %v2550, 1
        %v2553 = vsel %vm1560, %v2548, %v2552
        %v2554 = vshrl.u32 %v2426, 16
        %v2556 = vor.u32 %v2554, %v2544
        %v2558 = vshll.u32 %v2428, 16
        %v2560 = vrot.slane %v2558, 1
        %v2561 = vsel %vm1560, %v2556, %v2560
        %v2562 = vshrl.u32 %v2427, 16
        %v2564 = vor.u32 %v2562, %v2552
        %v2566 = vshll.u32 %v2429, 16
        %v2568 = vrot.slane %v2566, 1
        %v2569 = vsel %vm1560, %v2564, %v2568
        %v2570 = vshrl.u32 %v2428, 16
        %v2572 = vor.u32 %v2570, %v2560
        %v2574 = vshll.u32 %v2430, 16
        %v2576 = vrot.slane %v2574, 1
        %v2577 = vsel %vm1560, %v2572, %v2576
        %v2578 = vshrl.u32 %v2429, 16
        %v2580 = vor.u32 %v2578, %v2568
        %v2582 = vshll.u32 %v2431, 16
        %v2584 = vrot.slane %v2582, 1
        %v2585 = vsel %vm1560, %v2580, %v2584
        %v2586 = vshrl.u32 %v2430, 16
        %v2588 = vor.u32 %v2586, %v2576
        %v2590 = vshll.u32 %v2432, 16
        %v2592 = vrot.slane %v2590, 1
        %v2593 = vsel %vm1560, %v2588, %v2592
        %v2594 = vshrl.u32 %v2431, 16
        %v2596 = vor.u32 %v2594, %v2584
        %v2598 = vshll.u32 %v2433, 16
        %v2600 = vrot.slane %v2598, 1
        %v2601 = vsel %vm1560, %v2596, %v2600
        %v2602 = vshrl.u32 %v2432, 16
        %v2604 = vor.u32 %v2602, %v2592
        %v2606 = vshll.u32 %v2434, 16
        %v2608 = vrot.slane %v2606, 1
        %v2609 = vsel %vm1560, %v2604, %v2608
        %v2610 = vshrl.u32 %v2433, 16
        %v2612 = vor.u32 %v2610, %v2600
        %v2614 = vshll.u32 %v2435, 16
        %v2616 = vrot.slane %v2614, 1
        %v2617 = vsel %vm1560, %v2612, %v2616
        %v2618 = vshrl.u32 %v2434, 16
        %v2620 = vor.u32 %v2618, %v2608
        %v2622 = vshll.u32 %v2436, 16
        %v2624 = vrot.slane %v2622, 1
        %v2625 = vsel %vm1560, %v2620, %v2624
        %v2626 = vshrl.u32 %v2435, 16
        %v2628 = vor.u32 %v2626, %v2616
        %v2630 = vshll.u32 %v2437, 16
        %v2632 = vrot.slane %v2630, 1
        %v2633 = vsel %vm1560, %v2628, %v2632
        %v2634 = vshrl.u32 %v2436, 16
        %v2636 = vor.u32 %v2634, %v2624
        %v2638 = vshll.u32 %v2438, 16
        %v2640 = vrot.slane %v2638, 1
        %v2641 = vsel %vm1560, %v2636, %v2640
        %v2642 = vshrl.u32 %v2437, 16
        %v2644 = vor.u32 %v2642, %v2632
        %v2646 = vshll.u32 %v2439, 16
        %v2648 = vrot.slane %v2646, 1
        %v2649 = vsel %vm1560, %v2644, %v2648
        %v2650 = vshrl.u32 %v2438, 16
        %v2652 = vor.u32 %v2650, %v2640
        %v2654 = vshll.u32 %v2464, 16
        %v2656 = vrot.slane %v2654, 1
        %v2657 = vsel %vm1560, %v2652, %v2656
        %v2658 = vshrl.u32 %v2439, 16
        %v2660 = vor.u32 %v2658, %v2648
        %v2662 = vshll.u32 %v2465, 16
        %v2664 = vrot.slane %v2662, 1
        %v2665 = vsel %vm1560, %v2660, %v2664
        %v2666 = vshrl.u32 %v2464, 16
        %v2668 = vor.u32 %v2666, %v2656
        %v2669 = vshrl.u32 %v2465, 16
        %v2671 = vor.u32 %v2669, %v2664
        %2672 = vrot.lane.b32.xlu0 %v2493, 64
        %v2673 = vpop.permute.xlu0 %2672
        %2674 = vrot.lane.b32.xlu0 %v2505, 64
        %v2675 = vpop.permute.xlu0 %2674
        %2676 = vrot.lane.b32.xlu0 %v2513, 64
        %v2677 = vpop.permute.xlu0 %2676
        %2678 = vrot.lane.b32.xlu0 %v2521, 64
        %v2679 = vpop.permute.xlu0 %2678
        %2680 = vrot.lane.b32.xlu0 %v2529, 64
        %v2681 = vpop.permute.xlu0 %2680
        %2682 = vrot.lane.b32.xlu0 %v2537, 64
        %v2683 = vpop.permute.xlu0 %2682
        %2684 = vrot.lane.b32.xlu0 %v2545, 64
        %v2685 = vpop.permute.xlu0 %2684
        %2686 = vrot.lane.b32.xlu0 %v2553, 64
        %v2687 = vpop.permute.xlu0 %2686
        %2688 = vrot.lane.b32.xlu0 %v2561, 64
        %v2689 = vpop.permute.xlu0 %2688
        %2690 = vrot.lane.b32.xlu0 %v2569, 64
        %v2691 = vpop.permute.xlu0 %2690
        %2692 = vrot.lane.b32.xlu0 %v2577, 64
        %v2693 = vpop.permute.xlu0 %2692
        %2694 = vrot.lane.b32.xlu0 %v2585, 64
        %v2695 = vpop.permute.xlu0 %2694
        %2696 = vrot.lane.b32.xlu0 %v2593, 64
        %v2697 = vpop.permute.xlu0 %2696
        %2698 = vrot.lane.b32.xlu0 %v2601, 64
        %v2699 = vpop.permute.xlu0 %2698
        %2700 = vrot.lane.b32.xlu0 %v2609, 64
        %v2701 = vpop.permute.xlu0 %2700
        %2702 = vrot.lane.b32.xlu0 %v2617, 64
        %v2703 = vpop.permute.xlu0 %2702
        %2704 = vrot.lane.b32.xlu0 %v2625, 64
        %v2705 = vpop.permute.xlu0 %2704
        %2706 = vrot.lane.b32.xlu0 %v2633, 64
        %v2707 = vpop.permute.xlu0 %2706
        %2708 = vrot.lane.b32.xlu0 %v2641, 64
        %v2709 = vpop.permute.xlu0 %2708
        %2710 = vrot.lane.b32.xlu0 %v2649, 64
        %v2711 = vpop.permute.xlu0 %2710
        %2712 = vrot.lane.b32.xlu0 %v2657, 64
        %v2713 = vpop.permute.xlu0 %2712
        %2714 = vrot.lane.b32.xlu0 %v2665, 64
        %v2715 = vpop.permute.xlu0 %2714
        %2716 = vrot.lane.b32.xlu0 %v2668, 64
        %v2717 = vpop.permute.xlu0 %2716
        %2718 = vrot.lane.b32.xlu0 %v2671, 64
        %v2719 = vpop.permute.xlu0 %2718
        %vm2720 = vcmask 523264
        %v2721 = vsel %vm2720, %v2673, %v2675
        %v2722 = vsel %vm2720, %v2677, %v2679
        %v2723 = vsel %vm2720, %v2681, %v2683
        %v2724 = vsel %vm2720, %v2685, %v2687
        %v2725 = vsel %vm2720, %v2689, %v2691
        %v2726 = vsel %vm2720, %v2693, %v2695
        %v2727 = vsel %vm2720, %v2697, %v2699
        %v2728 = vsel %vm2720, %v2701, %v2703
        %v2729 = vsel %vm2720, %v2705, %v2707
        %v2730 = vsel %vm2720, %v2709, %v2711
        %v2731 = vsel %vm2720, %v2713, %v2715
        %v2732 = vsel %vm2720, %v2717, %v2719
        %v2761 = vunpack.c.l.b16 %v2466
        %v2762 = vunpack.c.l.b16 %v2467
        %v2763 = vunpack.c.l.b16 %v2468
        %v2764 = vunpack.c.l.b16 %v2469
        %v2765 = vunpack.c.l.b16 %v2470
        %v2766 = vunpack.c.l.b16 %v2471
        %v2767 = vunpack.c.l.b16 %v2472
        %v2768 = vunpack.c.l.b16 %v2473
        %v2769 = vunpack.c.l.b16 %v2474
        %v2770 = vunpack.c.l.b16 %v2475
        %v2771 = vunpack.c.l.b16 %v2476
        %v2772 = vunpack.c.l.b16 %v2477
        %v2773 = vunpack.c.l.b16 %v2478
        %v2774 = vunpack.c.l.b16 %v2479
        %v2775 = vunpack.c.l.b16 %v2480
        %v2776 = vunpack.c.l.b16 %v2481
        %v2777 = vpack.c.b16 %v2762, %v2761
        %v2778 = vpack.c.b16 %v2764, %v2763
        %v2779 = vpack.c.b16 %v2766, %v2765
        %v2780 = vpack.c.b16 %v2768, %v2767
        %v2781 = vpack.c.b16 %v2770, %v2769
        %v2782 = vpack.c.b16 %v2772, %v2771
        %v2783 = vpack.c.b16 %v2774, %v2773
        %v2784 = vpack.c.b16 %v2776, %v2775
        %2793 = vmatprep.subr.bf16.mxu0 0
        %2794 = vmatpush1.bf16.msra.mxu0 %v2777
        %2795 = vmatprep.subr.bf16.mxu0 0
        %2796 = vmatpush1.bf16.msra.mxu0 %v2778
        %2797 = vmatprep.subr.bf16.mxu0 0
        %2798 = vmatpush1.bf16.msra.mxu0 %v2779
        %2799 = vmatprep.subr.bf16.mxu0 0
        %2800 = vmatpush1.bf16.msra.mxu0 %v2780
        %2801 = vmatprep.subr.bf16.mxu0 0
        %2802 = vmatpush1.bf16.msra.mxu0 %v2781
        %2803 = vmatprep.subr.bf16.mxu0 0
        %2804 = vmatpush1.bf16.msra.mxu0 %v2782
        %2805 = vmatprep.subr.bf16.mxu0 0
        %2806 = vmatpush1.bf16.msra.mxu0 %v2783
        %2807 = vmatprep.subr.bf16.mxu0 0
        %2808 = vmatpush1.bf16.msra.mxu0 %v2784
        %2809 = vmatprep.subr.bf16.mxu0 0
        %2810 = vmatpush1.bf16.msra.mxu0 0
        %2811 = vmatprep.subr.bf16.mxu0 0
        %2812 = vmatpush1.bf16.msra.mxu0 0
        %2813 = vmatprep.subr.bf16.mxu0 0
        %2814 = vmatpush1.bf16.msra.mxu0 0
        %2815 = vmatprep.subr.bf16.mxu0 0
        %2816 = vmatpush1.bf16.msra.mxu0 0
        %2817 = vmatprep.subr.bf16.mxu0 0
        %2818 = vmatpush1.bf16.msra.mxu0 0
        %2819 = vmatprep.subr.bf16.mxu0 0
        %2820 = vmatpush1.bf16.msra.mxu0 0
        %2821 = vmatprep.subr.bf16.mxu0 0
        %2822 = vmatpush1.bf16.msra.mxu0 0
        %2823 = vmatprep.subr.bf16.mxu0 0
        %2824 = vmatpush1.bf16.msra.mxu0 0
        %2825 = vmatprep.mubr.bf16.mxu0 0
        %2826 = vmatmul.mubr.bf16.gmra.mrb[0].mxu0 %v2721
        %v2827 = vpop.f32.mrb[0].mxu0
        %v2828 = vadd.f32 0.0, %v2827
        %v2829 = vpop.f32.mrb[0].mxu0
        %v2830 = vpop.f32.mrb[0].mxu0
        %v2831 = vadd.f32 0.0, %v2830
        %v2832 = vpop.f32.mrb[0].mxu0
        %2833 = vmatprep.mubr.bf16.mxu0 0
        %2834 = vmatmul.mubr.bf16.gmra.mrb[0].mxu0 %v2722
        %v2835 = vpop.f32.mrb[0].mxu0
        %v2836 = vadd.f32 0.0, %v2835
        %v2837 = vpop.f32.mrb[0].mxu0
        %v2838 = vpop.f32.mrb[0].mxu0
        %v2839 = vadd.f32 0.0, %v2838
        %v2840 = vpop.f32.mrb[0].mxu0
        %2841 = vmatprep.mubr.bf16.mxu0 0
        %2842 = vmatmul.mubr.bf16.gmra.mrb[0].mxu0 %v2723
        %v2843 = vpop.f32.mrb[0].mxu0
        %v2844 = vadd.f32 0.0, %v2843
        %v2845 = vpop.f32.mrb[0].mxu0
        %v2846 = vpop.f32.mrb[0].mxu0
        %v2847 = vadd.f32 0.0, %v2846
        %v2848 = vpop.f32.mrb[0].mxu0
        %2849 = vmatprep.mubr.bf16.mxu0 0
        %2850 = vmatmul.mubr.bf16.gmra.mrb[0].mxu0 %v2724
        %v2851 = vpop.f32.mrb[0].mxu0
        %v2852 = vadd.f32 0.0, %v2851
        %v2853 = vpop.f32.mrb[0].mxu0
        %v2854 = vpop.f32.mrb[0].mxu0
        %v2855 = vadd.f32 0.0, %v2854
        %v2856 = vpop.f32.mrb[0].mxu0
        %2857 = vmatprep.mubr.bf16.mxu0 0
        %2858 = vmatmul.mubr.bf16.gmra.mrb[0].mxu0 %v2725
        %v2859 = vpop.f32.mrb[0].mxu0
        %v2860 = vadd.f32 0.0, %v2859
        %v2861 = vpop.f32.mrb[0].mxu0
        %v2862 = vpop.f32.mrb[0].mxu0
        %v2863 = vadd.f32 0.0, %v2862
        %v2864 = vpop.f32.mrb[0].mxu0
        %2865 = vmatprep.mubr.bf16.mxu0 0
        %2866 = vmatmul.mubr.bf16.gmra.mrb[0].mxu0 %v2726
        %v2867 = vpop.f32.mrb[0].mxu0
        %v2868 = vadd.f32 0.0, %v2867
        %v2869 = vpop.f32.mrb[0].mxu0
        %v2870 = vpop.f32.mrb[0].mxu0
        %v2871 = vadd.f32 0.0, %v2870
        %v2872 = vpop.f32.mrb[0].mxu0
        %2873 = vmatprep.mubr.bf16.mxu0 0
        %2874 = vmatmul.mubr.bf16.gmra.mrb[0].mxu0 %v2727
        %v2875 = vpop.f32.mrb[0].mxu0
        %v2876 = vadd.f32 0.0, %v2875
        %v2877 = vpop.f32.mrb[0].mxu0
        %v2878 = vpop.f32.mrb[0].mxu0
        %v2879 = vadd.f32 0.0, %v2878
        %v2880 = vpop.f32.mrb[0].mxu0
        %2881 = vmatprep.mubr.bf16.mxu0 0
        %2882 = vmatmul.mubr.bf16.gmra.mrb[0].mxu0 %v2728
        %v2883 = vpop.f32.mrb[0].mxu0
        %v2884 = vadd.f32 0.0, %v2883
        %v2885 = vpop.f32.mrb[0].mxu0
        %v2886 = vpop.f32.mrb[0].mxu0
        %v2887 = vadd.f32 0.0, %v2886
        %v2888 = vpop.f32.mrb[0].mxu0
        %2889 = vmatprep.mubr.bf16.mxu0 0
        %2890 = vmatmul.mubr.bf16.gmra.mrb[0].mxu0 %v2729
        %v2891 = vpop.f32.mrb[0].mxu0
        %v2892 = vadd.f32 0.0, %v2891
        %v2893 = vpop.f32.mrb[0].mxu0
        %v2894 = vpop.f32.mrb[0].mxu0
        %v2895 = vadd.f32 0.0, %v2894
        %v2896 = vpop.f32.mrb[0].mxu0
        %2897 = vmatprep.mubr.bf16.mxu0 0
        %2898 = vmatmul.mubr.bf16.gmra.mrb[0].mxu0 %v2730
        %v2899 = vpop.f32.mrb[0].mxu0
        %v2900 = vadd.f32 0.0, %v2899
        %v2901 = vpop.f32.mrb[0].mxu0
        %v2902 = vpop.f32.mrb[0].mxu0
        %v2903 = vadd.f32 0.0, %v2902
        %v2904 = vpop.f32.mrb[0].mxu0
        %2905 = vmatprep.mubr.bf16.mxu0 0
        %2906 = vmatmul.mubr.bf16.gmra.mrb[0].mxu0 %v2731
        %v2907 = vpop.f32.mrb[0].mxu0
        %v2908 = vadd.f32 0.0, %v2907
        %v2909 = vpop.f32.mrb[0].mxu0
        %v2910 = vpop.f32.mrb[0].mxu0
        %v2911 = vadd.f32 0.0, %v2910
        %v2912 = vpop.f32.mrb[0].mxu0
        %2913 = vmatprep.mubr.bf16.mxu0 0
        %2914 = vmatmul.mubr.bf16.gmra.mrb[0].mxu0 %v2732
        %v2915 = vpop.f32.mrb[0].mxu0
        %v2916 = vadd.f32 0.0, %v2915
        %v2917 = vpop.f32.mrb[0].mxu0
        %v2918 = vpop.f32.mrb[0].mxu0
        %v2919 = vadd.f32 0.0, %v2918
        %v2920 = vpop.f32.mrb[0].mxu0
        %2921 = vdwg.mxu0
        %2946 = vrot.lane.b32.xlu0 %v2418, 64
        %v2947 = vpop.permute.xlu0 %2946
        %2948 = vrot.lane.b32.xlu0 %v2419, 64
        %v2949 = vpop.permute.xlu0 %2948
        %2950 = vrot.lane.b32.xlu0 %v2420, 64
        %v2951 = vpop.permute.xlu0 %2950
        %2952 = vrot.lane.b32.xlu0 %v2421, 64
        %v2953 = vpop.permute.xlu0 %2952
        %2954 = vrot.lane.b32.xlu0 %v2422, 64
        %v2955 = vpop.permute.xlu0 %2954
        %2956 = vrot.lane.b32.xlu0 %v2423, 64
        %v2957 = vpop.permute.xlu0 %2956
        %2958 = vrot.lane.b32.xlu0 %v2424, 64
        %v2959 = vpop.permute.xlu0 %2958
        %2960 = vrot.lane.b32.xlu0 %v2425, 64
        %v2961 = vpop.permute.xlu0 %2960
        %2962 = vrot.lane.b32.xlu0 %v2426, 64
        %v2963 = vpop.permute.xlu0 %2962
        %2964 = vrot.lane.b32.xlu0 %v2427, 64
        %v2965 = vpop.permute.xlu0 %2964
        %2966 = vrot.lane.b32.xlu0 %v2428, 64
        %v2967 = vpop.permute.xlu0 %2966
        %2968 = vrot.lane.b32.xlu0 %v2429, 64
        %v2969 = vpop.permute.xlu0 %2968
        %2970 = vrot.lane.b32.xlu0 %v2430, 64
        %v2971 = vpop.permute.xlu0 %2970
        %2972 = vrot.lane.b32.xlu0 %v2431, 64
        %v2973 = vpop.permute.xlu0 %2972
        %2974 = vrot.lane.b32.xlu0 %v2432, 64
        %v2975 = vpop.permute.xlu0 %2974
        %2976 = vrot.lane.b32.xlu0 %v2433, 64
        %v2977 = vpop.permute.xlu0 %2976
        %2978 = vrot.lane.b32.xlu0 %v2434, 64
        %v2979 = vpop.permute.xlu0 %2978
        %2980 = vrot.lane.b32.xlu0 %v2435, 64
        %v2981 = vpop.permute.xlu0 %2980
        %2982 = vrot.lane.b32.xlu0 %v2436, 64
        %v2983 = vpop.permute.xlu0 %2982
        %2984 = vrot.lane.b32.xlu0 %v2437, 64
        %v2985 = vpop.permute.xlu0 %2984
        %2986 = vrot.lane.b32.xlu0 %v2438, 64
        %v2987 = vpop.permute.xlu0 %2986
        %2988 = vrot.lane.b32.xlu0 %v2439, 64
        %v2989 = vpop.permute.xlu0 %2988
        %2990 = vrot.lane.b32.xlu0 %v2440, 64
        %v2991 = vpop.permute.xlu0 %2990
        %2992 = vrot.lane.b32.xlu0 %v2441, 64
        %v2993 = vpop.permute.xlu0 %2992
        %v2994 = vsel %vm2720, %v2947, %v2949
        %v2995 = vsel %vm2720, %v2951, %v2953
        %v2996 = vsel %vm2720, %v2955, %v2957
        %v2997 = vsel %vm2720, %v2959, %v2961
        %v2998 = vsel %vm2720, %v2963, %v2965
        %v2999 = vsel %vm2720, %v2967, %v2969
        %v3000 = vsel %vm2720, %v2971, %v2973
        %v3001 = vsel %vm2720, %v2975, %v2977
        %v3002 = vsel %vm2720, %v2979, %v2981
        %v3003 = vsel %vm2720, %v2983, %v2985
        %v3004 = vsel %vm2720, %v2987, %v2989
        %v3005 = vsel %vm2720, %v2991, %v2993
        %v3034 = vunpack.c.l.b16 %v2442
        %v3035 = vunpack.c.l.b16 %v2443
        %v3036 = vunpack.c.l.b16 %v2444
        %v3037 = vunpack.c.l.b16 %v2445
        %v3038 = vunpack.c.l.b16 %v2446
        %v3039 = vunpack.c.l.b16 %v2447
        %v3040 = vunpack.c.l.b16 %v2448
        %v3041 = vunpack.c.l.b16 %v2449
        %v3042 = vunpack.c.l.b16 %v2450
        %v3043 = vunpack.c.l.b16 %v2451
        %v3044 = vunpack.c.l.b16 %v2452
        %v3045 = vunpack.c.l.b16 %v2453
        %v3046 = vunpack.c.l.b16 %v2454
        %v3047 = vunpack.c.l.b16 %v2455
        %v3048 = vunpack.c.l.b16 %v2456
        %v3049 = vunpack.c.l.b16 %v2457
        %v3050 = vpack.c.b16 %v3035, %v3034
        %v3051 = vpack.c.b16 %v3037, %v3036
        %v3052 = vpack.c.b16 %v3039, %v3038
        %v3053 = vpack.c.b16 %v3041, %v3040
        %v3054 = vpack.c.b16 %v3043, %v3042
        %v3055 = vpack.c.b16 %v3045, %v3044
        %v3056 = vpack.c.b16 %v3047, %v3046
        %v3057 = vpack.c.b16 %v3049, %v3048
        %3066 = vmatprep.subr.bf16.mxu0 0
        %3067 = vmatpush1.bf16.msra.mxu0 %v3050
        %3068 = vmatprep.subr.bf16.mxu0 0
        %3069 = vmatpush1.bf16.msra.mxu0 %v3051
        %3070 = vmatprep.subr.bf16.mxu0 0
        %3071 = vmatpush1.bf16.msra.mxu0 %v3052
        %3072 = vmatprep.subr.bf16.mxu0 0
        %3073 = vmatpush1.bf16.msra.mxu0 %v3053
        %3074 = vmatprep.subr.bf16.mxu0 0
        %3075 = vmatpush1.bf16.msra.mxu0 %v3054
        %3076 = vmatprep.subr.bf16.mxu0 0
        %3077 = vmatpush1.bf16.msra.mxu0 %v3055
        %3078 = vmatprep.subr.bf16.mxu0 0
        %3079 = vmatpush1.bf16.msra.mxu0 %v3056
        %3080 = vmatprep.subr.bf16.mxu0 0
        %3081 = vmatpush1.bf16.msra.mxu0 %v3057
        %3082 = vmatprep.subr.bf16.mxu0 0
        %3083 = vmatpush1.bf16.msra.mxu0 0
        %3084 = vmatprep.subr.bf16.mxu0 0
        %3085 = vmatpush1.bf16.msra.mxu0 0
        %3086 = vmatprep.subr.bf16.mxu0 0
        %3087 = vmatpush1.bf16.msra.mxu0 0
        %3088 = vmatprep.subr.bf16.mxu0 0
        %3089 = vmatpush1.bf16.msra.mxu0 0
        %3090 = vmatprep.subr.bf16.mxu0 0
        %3091 = vmatpush1.bf16.msra.mxu0 0
        %3092 = vmatprep.subr.bf16.mxu0 0
        %3093 = vmatpush1.bf16.msra.mxu0 0
        %3094 = vmatprep.subr.bf16.mxu0 0
        %3095 = vmatpush1.bf16.msra.mxu0 0
        %3096 = vmatprep.subr.bf16.mxu0 0
        %3097 = vmatpush1.bf16.msra.mxu0 0
        %3098 = vmatprep.mubr.bf16.mxu0 0
        %3099 = vmatmul.mubr.bf16.gmra.mrb[0].mxu0 %v2994
        %v3100 = vpop.f32.mrb[0].mxu0
        %v3101 = vadd.f32 %v2828, %v3100
        %v3102 = vpop.f32.mrb[0].mxu0
        %v3103 = vpop.f32.mrb[0].mxu0
        %v3104 = vadd.f32 %v2831, %v3103
        %v3105 = vpop.f32.mrb[0].mxu0
        %3106 = vmatprep.mubr.bf16.mxu0 0
        %3107 = vmatmul.mubr.bf16.gmra.mrb[0].mxu0 %v2995
        %v3108 = vpop.f32.mrb[0].mxu0
        %v3109 = vadd.f32 %v2836, %v3108
        %v3110 = vpop.f32.mrb[0].mxu0
        %v3111 = vpop.f32.mrb[0].mxu0
        %v3112 = vadd.f32 %v2839, %v3111
        %v3113 = vpop.f32.mrb[0].mxu0
        %3114 = vmatprep.mubr.bf16.mxu0 0
        %3115 = vmatmul.mubr.bf16.gmra.mrb[0].mxu0 %v2996
        %v3116 = vpop.f32.mrb[0].mxu0
        %v3117 = vadd.f32 %v2844, %v3116
        %v3118 = vpop.f32.mrb[0].mxu0
        %v3119 = vpop.f32.mrb[0].mxu0
        %v3120 = vadd.f32 %v2847, %v3119
        %v3121 = vpop.f32.mrb[0].mxu0
        %3122 = vmatprep.mubr.bf16.mxu0 0
        %3123 = vmatmul.mubr.bf16.gmra.mrb[0].mxu0 %v2997
        %v3124 = vpop.f32.mrb[0].mxu0
        %v3125 = vadd.f32 %v2852, %v3124
        %v3126 = vpop.f32.mrb[0].mxu0
        %v3127 = vpop.f32.mrb[0].mxu0
        %v3128 = vadd.f32 %v2855, %v3127
        %v3129 = vpop.f32.mrb[0].mxu0
        %3130 = vmatprep.mubr.bf16.mxu0 0
        %3131 = vmatmul.mubr.bf16.gmra.mrb[0].mxu0 %v2998
        %v3132 = vpop.f32.mrb[0].mxu0
        %v3133 = vadd.f32 %v2860, %v3132
        %v3134 = vpop.f32.mrb[0].mxu0
        %v3135 = vpop.f32.mrb[0].mxu0
        %v3136 = vadd.f32 %v2863, %v3135
        %v3137 = vpop.f32.mrb[0].mxu0
        %3138 = vmatprep.mubr.bf16.mxu0 0
        %3139 = vmatmul.mubr.bf16.gmra.mrb[0].mxu0 %v2999
        %v3140 = vpop.f32.mrb[0].mxu0
        %v3141 = vadd.f32 %v2868, %v3140
        %v3142 = vpop.f32.mrb[0].mxu0
        %v3143 = vpop.f32.mrb[0].mxu0
        %v3144 = vadd.f32 %v2871, %v3143
        %v3145 = vpop.f32.mrb[0].mxu0
        %3146 = vmatprep.mubr.bf16.mxu0 0
        %3147 = vmatmul.mubr.bf16.gmra.mrb[0].mxu0 %v3000
        %v3148 = vpop.f32.mrb[0].mxu0
        %v3149 = vadd.f32 %v2876, %v3148
        %v3150 = vpop.f32.mrb[0].mxu0
        %v3151 = vpop.f32.mrb[0].mxu0
        %v3152 = vadd.f32 %v2879, %v3151
        %v3153 = vpop.f32.mrb[0].mxu0
        %3154 = vmatprep.mubr.bf16.mxu0 0
        %3155 = vmatmul.mubr.bf16.gmra.mrb[0].mxu0 %v3001
        %v3156 = vpop.f32.mrb[0].mxu0
        %v3157 = vadd.f32 %v2884, %v3156
        %v3158 = vpop.f32.mrb[0].mxu0
        %v3159 = vpop.f32.mrb[0].mxu0
        %v3160 = vadd.f32 %v2887, %v3159
        %v3161 = vpop.f32.mrb[0].mxu0
        %3162 = vmatprep.mubr.bf16.mxu0 0
        %3163 = vmatmul.mubr.bf16.gmra.mrb[0].mxu0 %v3002
        %v3164 = vpop.f32.mrb[0].mxu0
        %v3165 = vadd.f32 %v2892, %v3164
        %v3166 = vpop.f32.mrb[0].mxu0
        %v3167 = vpop.f32.mrb[0].mxu0
        %v3168 = vadd.f32 %v2895, %v3167
        %v3169 = vpop.f32.mrb[0].mxu0
        %3170 = vmatprep.mubr.bf16.mxu0 0
        %3171 = vmatmul.mubr.bf16.gmra.mrb[0].mxu0 %v3003
        %v3172 = vpop.f32.mrb[0].mxu0
        %v3173 = vadd.f32 %v2900, %v3172
        %v3174 = vpop.f32.mrb[0].mxu0
        %v3175 = vpop.f32.mrb[0].mxu0
        %v3176 = vadd.f32 %v2903, %v3175
        %v3177 = vpop.f32.mrb[0].mxu0
        %3178 = vmatprep.mubr.bf16.mxu0 0
        %3179 = vmatmul.mubr.bf16.gmra.mrb[0].mxu0 %v3004
        %v3180 = vpop.f32.mrb[0].mxu0
        %v3181 = vadd.f32 %v2908, %v3180
        %v3182 = vpop.f32.mrb[0].mxu0
        %v3183 = vpop.f32.mrb[0].mxu0
        %v3184 = vadd.f32 %v2911, %v3183
        %v3185 = vpop.f32.mrb[0].mxu0
        %3186 = vmatprep.mubr.bf16.mxu0 0
        %3187 = vmatmul.mubr.bf16.gmra.mrb[0].mxu0 %v3005
        %v3188 = vpop.f32.mrb[0].mxu0
        %v3189 = vadd.f32 %v2916, %v3188
        %v3190 = vpop.f32.mrb[0].mxu0
        %v3191 = vpop.f32.mrb[0].mxu0
        %v3192 = vadd.f32 %v2919, %v3191
        %v3193 = vpop.f32.mrb[0].mxu0
        %3194 = vdwg.mxu0
        %v3195 = vld [vmem:[#allocation2] sm:$0xfc]
        %v3196 = vld [vmem:[#allocation2 + $0x8] sm:$0xfc]
        %v3197 = vld [vmem:[#allocation2 + $0x170] sm:$0x3f]
        %v3198 = vld [vmem:[#allocation2 + $0x178] sm:$0x3f]
        %v3199 = vpack.c.bf16 %v2372, %v3195
        %v3200 = vpack.c.bf16 %v2373, %v3196
        %v3201 = vpack.c.bf16 %v3197, %v2414
        %v3202 = vpack.c.bf16 %v3198, %v2415
        %v3203 = vld [vmem:[#allocation10 + $0x80] sm:$0xf]
        %v3204 = vld [vmem:[#allocation10 + $0x84] sm:$0xf]
        %v3205 = vld [vmem:[#allocation10 + $0x88] sm:$0xf]
        %v3206 = vld [vmem:[#allocation10 + $0x8c] sm:$0xf]
        %v3207 = vld [vmem:[#allocation10 + $0x90] sm:$0xf]
        %v3208 = vld [vmem:[#allocation10 + $0x94] sm:$0xf]
        %v3209 = vld [vmem:[#allocation10 + $0x98] sm:$0xf]
        %v3210 = vld [vmem:[#allocation10 + $0x9c] sm:$0xf]
        %v3211 = vld [vmem:[#allocation10 + $0xa0] sm:$0xf]
        %v3212 = vld [vmem:[#allocation10 + $0xa4] sm:$0xf]
        %v3213 = vld [vmem:[#allocation10 + $0xa8] sm:$0xf]
        %v3214 = vld [vmem:[#allocation10 + $0xac] sm:$0xf]
        %v3215 = vld [vmem:[#allocation10 + $0xb0] sm:$0xf]
        %v3216 = vld [vmem:[#allocation10 + $0xb4] sm:$0xf]
        %v3217 = vld [vmem:[#allocation10 + $0xb8] sm:$0xf]
        %v3218 = vld [vmem:[#allocation10 + $0xbc] sm:$0xf]
        %v3223 = vrot.slane %v3199, 1
        %v3224 = vrot.slane %v2420, 1
        %v3225 = vsel %vm2054, %v3223, %v3224
        %v3226 = vrot.slane %v3200, 1
        %v3227 = vrot.slane %v2421, 1
        %v3228 = vsel %vm2054, %v3226, %v3227
        %v3229 = vrot.slane %v2422, 1
        %v3230 = vsel %vm2054, %v3224, %v3229
        %v3231 = vrot.slane %v2423, 1
        %v3232 = vsel %vm2054, %v3227, %v3231
        %v3233 = vrot.slane %v2424, 1
        %v3234 = vsel %vm2054, %v3229, %v3233
        %v3235 = vrot.slane %v2425, 1
        %v3236 = vsel %vm2054, %v3231, %v3235
        %v3237 = vrot.slane %v2426, 1
        %v3238 = vsel %vm2054, %v3233, %v3237
        %v3239 = vrot.slane %v2427, 1
        %v3240 = vsel %vm2054, %v3235, %v3239
        %v3241 = vrot.slane %v2428, 1
        %v3242 = vsel %vm2054, %v3237, %v3241
        %v3243 = vrot.slane %v2429, 1
        %v3244 = vsel %vm2054, %v3239, %v3243
        %v3245 = vrot.slane %v2430, 1
        %v3246 = vsel %vm2054, %v3241, %v3245
        %v3247 = vrot.slane %v2431, 1
        %v3248 = vsel %vm2054, %v3243, %v3247
        %v3249 = vrot.slane %v2432, 1
        %v3250 = vsel %vm2054, %v3245, %v3249
        %v3251 = vrot.slane %v2433, 1
        %v3252 = vsel %vm2054, %v3247, %v3251
        %v3253 = vrot.slane %v2434, 1
        %v3254 = vsel %vm2054, %v3249, %v3253
        %v3255 = vrot.slane %v2435, 1
        %v3256 = vsel %vm2054, %v3251, %v3255
        %v3257 = vrot.slane %v2436, 1
        %v3258 = vsel %vm2054, %v3253, %v3257
        %v3259 = vrot.slane %v2437, 1
        %v3260 = vsel %vm2054, %v3255, %v3259
        %v3261 = vrot.slane %v2438, 1
        %v3262 = vsel %vm2054, %v3257, %v3261
        %v3263 = vrot.slane %v2439, 1
        %v3264 = vsel %vm2054, %v3259, %v3263
        %v3265 = vrot.slane %v3201, 1
        %v3266 = vsel %vm2054, %v3261, %v3265
        %v3267 = vrot.slane %v3202, 1
        %v3268 = vsel %vm2054, %v3263, %v3267
        %3269 = vrot.lane.b32.xlu0 %v3225, 64
        %v3270 = vpop.permute.xlu0 %3269
        %3271 = vrot.lane.b32.xlu0 %v3228, 64
        %v3272 = vpop.permute.xlu0 %3271
        %3273 = vrot.lane.b32.xlu0 %v3230, 64
        %v3274 = vpop.permute.xlu0 %3273
        %3275 = vrot.lane.b32.xlu0 %v3232, 64
        %v3276 = vpop.permute.xlu0 %3275
        %3277 = vrot.lane.b32.xlu0 %v3234, 64
        %v3278 = vpop.permute.xlu0 %3277
        %3279 = vrot.lane.b32.xlu0 %v3236, 64
        %v3280 = vpop.permute.xlu0 %3279
        %3281 = vrot.lane.b32.xlu0 %v3238, 64
        %v3282 = vpop.permute.xlu0 %3281
        %3283 = vrot.lane.b32.xlu0 %v3240, 64
        %v3284 = vpop.permute.xlu0 %3283
        %3285 = vrot.lane.b32.xlu0 %v3242, 64
        %v3286 = vpop.permute.xlu0 %3285
        %3287 = vrot.lane.b32.xlu0 %v3244, 64
        %v3288 = vpop.permute.xlu0 %3287
        %3289 = vrot.lane.b32.xlu0 %v3246, 64
        %v3290 = vpop.permute.xlu0 %3289
        %3291 = vrot.lane.b32.xlu0 %v3248, 64
        %v3292 = vpop.permute.xlu0 %3291
        %3293 = vrot.lane.b32.xlu0 %v3250, 64
        %v3294 = vpop.permute.xlu0 %3293
        %3295 = vrot.lane.b32.xlu0 %v3252, 64
        %v3296 = vpop.permute.xlu0 %3295
        %3297 = vrot.lane.b32.xlu0 %v3254, 64
        %v3298 = vpop.permute.xlu0 %3297
        %3299 = vrot.lane.b32.xlu0 %v3256, 64
        %v3300 = vpop.permute.xlu0 %3299
        %3301 = vrot.lane.b32.xlu0 %v3258, 64
        %v3302 = vpop.permute.xlu0 %3301
        %3303 = vrot.lane.b32.xlu0 %v3260, 64
        %v3304 = vpop.permute.xlu0 %3303
        %3305 = vrot.lane.b32.xlu0 %v3262, 64
        %v3306 = vpop.permute.xlu0 %3305
        %3307 = vrot.lane.b32.xlu0 %v3264, 64
        %v3308 = vpop.permute.xlu0 %3307
        %3309 = vrot.lane.b32.xlu0 %v3266, 64
        %v3310 = vpop.permute.xlu0 %3309
        %3311 = vrot.lane.b32.xlu0 %v3268, 64
        %v3312 = vpop.permute.xlu0 %3311
        %3313 = vrot.lane.b32.xlu0 %v3265, 64
        %v3314 = vpop.permute.xlu0 %3313
        %3315 = vrot.lane.b32.xlu0 %v3267, 64
        %v3316 = vpop.permute.xlu0 %3315
        %v3317 = vsel %vm2720, %v3270, %v3272
        %v3318 = vsel %vm2720, %v3274, %v3276
        %v3319 = vsel %vm2720, %v3278, %v3280
        %v3320 = vsel %vm2720, %v3282, %v3284
        %v3321 = vsel %vm2720, %v3286, %v3288
        %v3322 = vsel %vm2720, %v3290, %v3292
        %v3323 = vsel %vm2720, %v3294, %v3296
        %v3324 = vsel %vm2720, %v3298, %v3300
        %v3325 = vsel %vm2720, %v3302, %v3304
        %v3326 = vsel %vm2720, %v3306, %v3308
        %v3327 = vsel %vm2720, %v3310, %v3312
        %v3328 = vsel %vm2720, %v3314, %v3316
        %v3357 = vunpack.c.l.b16 %v3203
        %v3358 = vunpack.c.l.b16 %v3204
        %v3359 = vunpack.c.l.b16 %v3205
        %v3360 = vunpack.c.l.b16 %v3206
        %v3361 = vunpack.c.l.b16 %v3207
        %v3362 = vunpack.c.l.b16 %v3208
        %v3363 = vunpack.c.l.b16 %v3209
        %v3364 = vunpack.c.l.b16 %v3210
        %v3365 = vunpack.c.l.b16 %v3211
        %v3366 = vunpack.c.l.b16 %v3212
        %v3367 = vunpack.c.l.b16 %v3213
        %v3368 = vunpack.c.l.b16 %v3214
        %v3369 = vunpack.c.l.b16 %v3215
        %v3370 = vunpack.c.l.b16 %v3216
        %v3371 = vunpack.c.l.b16 %v3217
        %v3372 = vunpack.c.l.b16 %v3218
        %v3373 = vpack.c.b16 %v3358, %v3357
        %v3374 = vpack.c.b16 %v3360, %v3359
        %v3375 = vpack.c.b16 %v3362, %v3361
        %v3376 = vpack.c.b16 %v3364, %v3363
        %v3377 = vpack.c.b16 %v3366, %v3365
        %v3378 = vpack.c.b16 %v3368, %v3367
        %v3379 = vpack.c.b16 %v3370, %v3369
        %v3380 = vpack.c.b16 %v3372, %v3371
        %3389 = vmatprep.subr.bf16.mxu0 0
        %3390 = vmatpush1.bf16.msra.mxu0 %v3373
        %3391 = vmatprep.subr.bf16.mxu0 0
        %3392 = vmatpush1.bf16.msra.mxu0 %v3374
        %3393 = vmatprep.subr.bf16.mxu0 0
        %3394 = vmatpush1.bf16.msra.mxu0 %v3375
        %3395 = vmatprep.subr.bf16.mxu0 0
        %3396 = vmatpush1.bf16.msra.mxu0 %v3376
        %3397 = vmatprep.subr.bf16.mxu0 0
        %3398 = vmatpush1.bf16.msra.mxu0 %v3377
        %3399 = vmatprep.subr.bf16.mxu0 0
        %3400 = vmatpush1.bf16.msra.mxu0 %v3378
        %3401 = vmatprep.subr.bf16.mxu0 0
        %3402 = vmatpush1.bf16.msra.mxu0 %v3379
        %3403 = vmatprep.subr.bf16.mxu0 0
        %3404 = vmatpush1.bf16.msra.mxu0 %v3380
        %3405 = vmatprep.subr.bf16.mxu0 0
        %3406 = vmatpush1.bf16.msra.mxu0 0
        %3407 = vmatprep.subr.bf16.mxu0 0
        %3408 = vmatpush1.bf16.msra.mxu0 0
        %3409 = vmatprep.subr.bf16.mxu0 0
        %3410 = vmatpush1.bf16.msra.mxu0 0
        %3411 = vmatprep.subr.bf16.mxu0 0
        %3412 = vmatpush1.bf16.msra.mxu0 0
        %3413 = vmatprep.subr.bf16.mxu0 0
        %3414 = vmatpush1.bf16.msra.mxu0 0
        %3415 = vmatprep.subr.bf16.mxu0 0
        %3416 = vmatpush1.bf16.msra.mxu0 0
        %3417 = vmatprep.subr.bf16.mxu0 0
        %3418 = vmatpush1.bf16.msra.mxu0 0
        %3419 = vmatprep.subr.bf16.mxu0 0
        %3420 = vmatpush1.bf16.msra.mxu0 0
        %3421 = vmatprep.mubr.bf16.mxu0 0
        %3422 = vmatmul.mubr.bf16.gmra.mrb[0].mxu0 %v3317
        %v3423 = vpop.f32.mrb[0].mxu0
        %v3424 = vadd.f32 0.0, %v3423
        %v3425 = vpop.f32.mrb[0].mxu0
        %v3426 = vpop.f32.mrb[0].mxu0
        %v3427 = vadd.f32 0.0, %v3426
        %v3428 = vpop.f32.mrb[0].mxu0
        %3429 = vmatprep.mubr.bf16.mxu0 0
        %3430 = vmatmul.mubr.bf16.gmra.mrb[0].mxu0 %v3318
        %v3431 = vpop.f32.mrb[0].mxu0
        %v3432 = vadd.f32 0.0, %v3431
        %v3433 = vpop.f32.mrb[0].mxu0
        %v3434 = vpop.f32.mrb[0].mxu0
        %v3435 = vadd.f32 0.0, %v3434
        %v3436 = vpop.f32.mrb[0].mxu0
        %3437 = vmatprep.mubr.bf16.mxu0 0
        %3438 = vmatmul.mubr.bf16.gmra.mrb[0].mxu0 %v3319
        %v3439 = vpop.f32.mrb[0].mxu0
        %v3440 = vadd.f32 0.0, %v3439
        %v3441 = vpop.f32.mrb[0].mxu0
        %v3442 = vpop.f32.mrb[0].mxu0
        %v3443 = vadd.f32 0.0, %v3442
        %v3444 = vpop.f32.mrb[0].mxu0
        %3445 = vmatprep.mubr.bf16.mxu0 0
        %3446 = vmatmul.mubr.bf16.gmra.mrb[0].mxu0 %v3320
        %v3447 = vpop.f32.mrb[0].mxu0
        %v3448 = vadd.f32 0.0, %v3447
        %v3449 = vpop.f32.mrb[0].mxu0
        %v3450 = vpop.f32.mrb[0].mxu0
        %v3451 = vadd.f32 0.0, %v3450
        %v3452 = vpop.f32.mrb[0].mxu0
        %3453 = vmatprep.mubr.bf16.mxu0 0
        %3454 = vmatmul.mubr.bf16.gmra.mrb[0].mxu0 %v3321
        %v3455 = vpop.f32.mrb[0].mxu0
        %v3456 = vadd.f32 0.0, %v3455
        %v3457 = vpop.f32.mrb[0].mxu0
        %v3458 = vpop.f32.mrb[0].mxu0
        %v3459 = vadd.f32 0.0, %v3458
        %v3460 = vpop.f32.mrb[0].mxu0
        %3461 = vmatprep.mubr.bf16.mxu0 0
        %3462 = vmatmul.mubr.bf16.gmra.mrb[0].mxu0 %v3322
        %v3463 = vpop.f32.mrb[0].mxu0
        %v3464 = vadd.f32 0.0, %v3463
        %v3465 = vpop.f32.mrb[0].mxu0
        %v3466 = vpop.f32.mrb[0].mxu0
        %v3467 = vadd.f32 0.0, %v3466
        %v3468 = vpop.f32.mrb[0].mxu0
        %3469 = vmatprep.mubr.bf16.mxu0 0
        %3470 = vmatmul.mubr.bf16.gmra.mrb[0].mxu0 %v3323
        %v3471 = vpop.f32.mrb[0].mxu0
        %v3472 = vadd.f32 0.0, %v3471
        %v3473 = vpop.f32.mrb[0].mxu0
        %v3474 = vpop.f32.mrb[0].mxu0
        %v3475 = vadd.f32 0.0, %v3474
        %v3476 = vpop.f32.mrb[0].mxu0
        %3477 = vmatprep.mubr.bf16.mxu0 0
        %3478 = vmatmul.mubr.bf16.gmra.mrb[0].mxu0 %v3324
        %v3479 = vpop.f32.mrb[0].mxu0
        %v3480 = vadd.f32 0.0, %v3479
        %v3481 = vpop.f32.mrb[0].mxu0
        %v3482 = vpop.f32.mrb[0].mxu0
        %v3483 = vadd.f32 0.0, %v3482
        %v3484 = vpop.f32.mrb[0].mxu0
        %3485 = vmatprep.mubr.bf16.mxu0 0
        %3486 = vmatmul.mubr.bf16.gmra.mrb[0].mxu0 %v3325
        %v3487 = vpop.f32.mrb[0].mxu0
        %v3488 = vadd.f32 0.0, %v3487
        %v3489 = vpop.f32.mrb[0].mxu0
        %v3490 = vpop.f32.mrb[0].mxu0
        %v3491 = vadd.f32 0.0, %v3490
        %v3492 = vpop.f32.mrb[0].mxu0
        %3493 = vmatprep.mubr.bf16.mxu0 0
        %3494 = vmatmul.mubr.bf16.gmra.mrb[0].mxu0 %v3326
        %v3495 = vpop.f32.mrb[0].mxu0
        %v3496 = vadd.f32 0.0, %v3495
        %v3497 = vpop.f32.mrb[0].mxu0
        %v3498 = vpop.f32.mrb[0].mxu0
        %v3499 = vadd.f32 0.0, %v3498
        %v3500 = vpop.f32.mrb[0].mxu0
        %3501 = vmatprep.mubr.bf16.mxu0 0
        %3502 = vmatmul.mubr.bf16.gmra.mrb[0].mxu0 %v3327
        %v3503 = vpop.f32.mrb[0].mxu0
        %v3504 = vadd.f32 0.0, %v3503
        %v3505 = vpop.f32.mrb[0].mxu0
        %v3506 = vpop.f32.mrb[0].mxu0
        %v3507 = vadd.f32 0.0, %v3506
        %v3508 = vpop.f32.mrb[0].mxu0
        %3509 = vmatprep.mubr.bf16.mxu0 0
        %3510 = vmatmul.mubr.bf16.gmra.mrb[0].mxu0 %v3328
        %v3511 = vpop.f32.mrb[0].mxu0
        %v3512 = vadd.f32 0.0, %v3511
        %v3513 = vpop.f32.mrb[0].mxu0
        %v3514 = vpop.f32.mrb[0].mxu0
        %v3515 = vadd.f32 0.0, %v3514
        %v3516 = vpop.f32.mrb[0].mxu0
        %3517 = vdwg.mxu0
        %v3518 = vadd.f32 %v3101, %v3424
        %v3519 = vadd.f32 %v3104, %v3427
        %v3520 = vadd.f32 %v3109, %v3432
        %v3521 = vadd.f32 %v3112, %v3435
        %v3522 = vadd.f32 %v3117, %v3440
        %v3523 = vadd.f32 %v3120, %v3443
        %v3524 = vadd.f32 %v3125, %v3448
        %v3525 = vadd.f32 %v3128, %v3451
        %v3526 = vadd.f32 %v3133, %v3456
        %v3527 = vadd.f32 %v3136, %v3459
        %v3528 = vadd.f32 %v3141, %v3464
        %v3529 = vadd.f32 %v3144, %v3467
        %v3530 = vadd.f32 %v3149, %v3472
        %v3531 = vadd.f32 %v3152, %v3475
        %v3532 = vadd.f32 %v3157, %v3480
        %v3533 = vadd.f32 %v3160, %v3483
        %v3534 = vadd.f32 %v3165, %v3488
        %v3535 = vadd.f32 %v3168, %v3491
        %v3536 = vadd.f32 %v3173, %v3496
        %v3537 = vadd.f32 %v3176, %v3499
        %v3538 = vadd.f32 %v3181, %v3504
        %v3539 = vadd.f32 %v3184, %v3507
        %v3540 = vadd.f32 %v3189, %v3512
        %v3541 = vadd.f32 %v3192, %v3515
        %v3542 = vld [vmem:[#allocation11 + $0x1] sm:$0x1]
        %v3544 = vlaneseq
        %v3545 = vshrl.u32 %v3544, 7
        %v3546 = vsub.s32 0, %v3545
        %v3547 = vrot.slane %v3542, %v3546
        %v3549 = vadd.f32 %v3518, %v3547
        %v3550 = vadd.f32 %v3519, %v3547
        %v3551 = vadd.f32 %v3520, %v3547
        %v3552 = vadd.f32 %v3521, %v3547
        %v3553 = vadd.f32 %v3522, %v3547
        %v3554 = vadd.f32 %v3523, %v3547
        %v3555 = vadd.f32 %v3524, %v3547
        %v3556 = vadd.f32 %v3525, %v3547
        %v3557 = vadd.f32 %v3526, %v3547
        %v3558 = vadd.f32 %v3527, %v3547
        %v3559 = vadd.f32 %v3528, %v3547
        %v3560 = vadd.f32 %v3529, %v3547
        %v3561 = vadd.f32 %v3530, %v3547
        %v3562 = vadd.f32 %v3531, %v3547
        %v3563 = vadd.f32 %v3532, %v3547
        %v3564 = vadd.f32 %v3533, %v3547
        %v3565 = vadd.f32 %v3534, %v3547
        %v3566 = vadd.f32 %v3535, %v3547
        %v3567 = vadd.f32 %v3536, %v3547
        %v3568 = vadd.f32 %v3537, %v3547
        %v3569 = vadd.f32 %v3538, %v3547
        %v3570 = vadd.f32 %v3539, %v3547
        %v3571 = vadd.f32 %v3540, %v3547
        %v3572 = vadd.f32 %v3541, %v3547
        %v3573 = vmax.f32 %v3549, 0.0
        %v3574 = vmax.f32 %v3550, 0.0
        %v3575 = vmax.f32 %v3551, 0.0
        %v3576 = vmax.f32 %v3552, 0.0
        %v3577 = vmax.f32 %v3553, 0.0
        %v3578 = vmax.f32 %v3554, 0.0
        %v3579 = vmax.f32 %v3555, 0.0
        %v3580 = vmax.f32 %v3556, 0.0
        %v3581 = vmax.f32 %v3557, 0.0
        %v3582 = vmax.f32 %v3558, 0.0
        %v3583 = vmax.f32 %v3559, 0.0
        %v3584 = vmax.f32 %v3560, 0.0
        %v3585 = vmax.f32 %v3561, 0.0
        %v3586 = vmax.f32 %v3562, 0.0
        %v3587 = vmax.f32 %v3563, 0.0
        %v3588 = vmax.f32 %v3564, 0.0
        %v3589 = vmax.f32 %v3565, 0.0
        %v3590 = vmax.f32 %v3566, 0.0
        %v3591 = vmax.f32 %v3567, 0.0
        %v3592 = vmax.f32 %v3568, 0.0
        %v3593 = vmax.f32 %v3569, 0.0
        %v3594 = vmax.f32 %v3570, 0.0
        %v3595 = vmax.f32 %v3571, 0.0
        %v3596 = vmax.f32 %v3572, 0.0
        %3597 = vst [vmem:[#allocation3 + $0x8] sm:$0xff] %v3573
        %3598 = vst [vmem:[#allocation3 + $0x18] sm:$0xff] %v3574
        %3599 = vst [vmem:[#allocation3 + $0x28] sm:$0xff] %v3575
        %3600 = vst [vmem:[#allocation3 + $0x38] sm:$0xff] %v3576
        %3601 = vst [vmem:[#allocation3 + $0x48] sm:$0xff] %v3577
        %3602 = vst [vmem:[#allocation3 + $0x58] sm:$0xff] %v3578
        %3603 = vst [vmem:[#allocation3 + $0x68] sm:$0xff] %v3579
        %3604 = vst [vmem:[#allocation3 + $0x78] sm:$0xff] %v3580
        %3605 = vst [vmem:[#allocation3 + $0x88] sm:$0xff] %v3581
        %3606 = vst [vmem:[#allocation3 + $0x98] sm:$0xff] %v3582
        %3607 = vst [vmem:[#allocation3 + $0xa8] sm:$0xff] %v3583
        %3608 = vst [vmem:[#allocation3 + $0xb8] sm:$0xff] %v3584
        %3609 = vst [vmem:[#allocation3 + $0xc8] sm:$0xff] %v3585
        %3610 = vst [vmem:[#allocation3 + $0xd8] sm:$0xff] %v3586
        %3611 = vst [vmem:[#allocation3 + $0xe8] sm:$0xff] %v3587
        %3612 = vst [vmem:[#allocation3 + $0xf8] sm:$0xff] %v3588
        %3613 = vst [vmem:[#allocation3 + $0x108] sm:$0xff] %v3589
        %3614 = vst [vmem:[#allocation3 + $0x118] sm:$0xff] %v3590
        %3615 = vst [vmem:[#allocation3 + $0x128] sm:$0xff] %v3591
        %3616 = vst [vmem:[#allocation3 + $0x138] sm:$0xff] %v3592
        %3617 = vst [vmem:[#allocation3 + $0x148] sm:$0xff] %v3593
        %3618 = vst [vmem:[#allocation3 + $0x158] sm:$0xff] %v3594
        %3619 = vst [vmem:[#allocation3 + $0x168] sm:$0xff] %v3595
        %3620 = vst [vmem:[#allocation3 + $0x178] sm:$0xf] %v3596
        %v3621 = vld [vmem:[#allocation3] sm:$0xff]
        %v3622 = vld [vmem:[#allocation3 + $0x8] sm:$0xff]
        %v3623 = vld [vmem:[#allocation3 + $0x10] sm:$0xff]
        %v3624 = vld [vmem:[#allocation3 + $0x18] sm:$0xff]
        %v3625 = vld [vmem:[#allocation3 + $0x20] sm:$0xff]
        %v3626 = vld [vmem:[#allocation3 + $0x28] sm:$0xff]
        %v3627 = vld [vmem:[#allocation3 + $0x30] sm:$0xff]
        %v3628 = vld [vmem:[#allocation3 + $0x38] sm:$0xff]
        %v3629 = vld [vmem:[#allocation3 + $0x40] sm:$0xff]
        %v3630 = vld [vmem:[#allocation3 + $0x48] sm:$0xff]
        %v3631 = vld [vmem:[#allocation3 + $0x50] sm:$0xff]
        %v3632 = vld [vmem:[#allocation3 + $0x58] sm:$0xff]
        %v3633 = vld [vmem:[#allocation3 + $0x60] sm:$0xff]
        %v3634 = vld [vmem:[#allocation3 + $0x68] sm:$0xff]
        %v3635 = vld [vmem:[#allocation3 + $0x70] sm:$0xff]
        %v3636 = vld [vmem:[#allocation3 + $0x78] sm:$0xff]
        %v3637 = vld [vmem:[#allocation3 + $0x80] sm:$0xff]
        %v3638 = vld [vmem:[#allocation3 + $0x88] sm:$0xff]
        %v3639 = vld [vmem:[#allocation3 + $0x90] sm:$0xff]
        %v3640 = vld [vmem:[#allocation3 + $0x98] sm:$0xff]
        %v3641 = vld [vmem:[#allocation3 + $0xa0] sm:$0xff]
        %v3642 = vld [vmem:[#allocation3 + $0xa8] sm:$0xff]
        %v3643 = vld [vmem:[#allocation3 + $0xb0] sm:$0xff]
        %v3644 = vld [vmem:[#allocation3 + $0xb8] sm:$0xff]
        %v3645 = vld [vmem:[#allocation3 + $0xc0] sm:$0xff]
        %v3646 = vld [vmem:[#allocation3 + $0xc8] sm:$0xff]
        %v3647 = vld [vmem:[#allocation3 + $0xd0] sm:$0xff]
        %v3648 = vld [vmem:[#allocation3 + $0xd8] sm:$0xff]
        %v3649 = vld [vmem:[#allocation3 + $0xe0] sm:$0xff]
        %v3650 = vld [vmem:[#allocation3 + $0xe8] sm:$0xff]
        %v3651 = vld [vmem:[#allocation3 + $0xf0] sm:$0xff]
        %v3652 = vld [vmem:[#allocation3 + $0xf8] sm:$0xff]
        %v3653 = vld [vmem:[#allocation3 + $0x100] sm:$0xff]
        %v3654 = vld [vmem:[#allocation3 + $0x108] sm:$0xff]
        %v3655 = vld [vmem:[#allocation3 + $0x110] sm:$0xff]
        %v3656 = vld [vmem:[#allocation3 + $0x118] sm:$0xff]
        %v3657 = vld [vmem:[#allocation3 + $0x120] sm:$0xff]
        %v3658 = vld [vmem:[#allocation3 + $0x128] sm:$0xff]
        %v3659 = vld [vmem:[#allocation3 + $0x130] sm:$0xff]
        %v3660 = vld [vmem:[#allocation3 + $0x138] sm:$0xff]
        %v3661 = vld [vmem:[#allocation3 + $0x140] sm:$0xff]
        %v3662 = vld [vmem:[#allocation3 + $0x148] sm:$0xff]
        %v3663 = vld [vmem:[#allocation3 + $0x150] sm:$0xff]
        %v3664 = vld [vmem:[#allocation3 + $0x158] sm:$0xff]
        %v3665 = vld [vmem:[#allocation3 + $0x160] sm:$0xff]
        %v3666 = vld [vmem:[#allocation3 + $0x168] sm:$0xff]
        %v3667 = vld [vmem:[#allocation3 + $0x170] sm:$0x3]
        %v3668 = vld [vmem:[#allocation3 + $0x178] sm:$0x3]
        %v3669 = vpack.c.bf16 %v3623, %v3621
        %v3670 = vpack.c.bf16 %v3624, %v3622
        %v3671 = vpack.c.bf16 %v3627, %v3625
        %v3672 = vpack.c.bf16 %v3628, %v3626
        %v3673 = vpack.c.bf16 %v3631, %v3629
        %v3674 = vpack.c.bf16 %v3632, %v3630
        %v3675 = vpack.c.bf16 %v3635, %v3633
        %v3676 = vpack.c.bf16 %v3636, %v3634
        %v3677 = vpack.c.bf16 %v3639, %v3637
        %v3678 = vpack.c.bf16 %v3640, %v3638
        %v3679 = vpack.c.bf16 %v3643, %v3641
        %v3680 = vpack.c.bf16 %v3644, %v3642
        %v3681 = vpack.c.bf16 %v3647, %v3645
        %v3682 = vpack.c.bf16 %v3648, %v3646
        %v3683 = vpack.c.bf16 %v3651, %v3649
        %v3684 = vpack.c.bf16 %v3652, %v3650
        %v3685 = vpack.c.bf16 %v3655, %v3653
        %v3686 = vpack.c.bf16 %v3656, %v3654
        %v3687 = vpack.c.bf16 %v3659, %v3657
        %v3688 = vpack.c.bf16 %v3660, %v3658
        %v3689 = vpack.c.bf16 %v3663, %v3661
        %v3690 = vpack.c.bf16 %v3664, %v3662
        %v3691 = vpack.c.bf16 %v3667, %v3665
        %v3692 = vpack.c.bf16 %v3668, %v3666
        %v3693 = vld [vmem:[#allocation13] sm:$0xf]
        %v3694 = vld [vmem:[#allocation13 + $0x4] sm:$0xf]
        %v3695 = vld [vmem:[#allocation13 + $0x8] sm:$0xf]
        %v3696 = vld [vmem:[#allocation13 + $0xc] sm:$0xf]
        %v3697 = vld [vmem:[#allocation13 + $0x10] sm:$0xf]
        %v3698 = vld [vmem:[#allocation13 + $0x14] sm:$0xf]
        %v3699 = vld [vmem:[#allocation13 + $0x18] sm:$0xf]
        %v3700 = vld [vmem:[#allocation13 + $0x1c] sm:$0xf]
        %v3701 = vld [vmem:[#allocation13 + $0x20] sm:$0xf]
        %v3702 = vld [vmem:[#allocation13 + $0x24] sm:$0xf]
        %v3703 = vld [vmem:[#allocation13 + $0x28] sm:$0xf]
        %v3704 = vld [vmem:[#allocation13 + $0x2c] sm:$0xf]
        %v3705 = vld [vmem:[#allocation13 + $0x30] sm:$0xf]
        %v3706 = vld [vmem:[#allocation13 + $0x34] sm:$0xf]
        %v3707 = vld [vmem:[#allocation13 + $0x38] sm:$0xf]
        %v3708 = vld [vmem:[#allocation13 + $0x3c] sm:$0xf]
        %v3709 = vld [vmem:[#allocation13 + $0x40] sm:$0xf]
        %v3710 = vld [vmem:[#allocation13 + $0x44] sm:$0xf]
        %v3711 = vld [vmem:[#allocation13 + $0x48] sm:$0xf]
        %v3712 = vld [vmem:[#allocation13 + $0x4c] sm:$0xf]
        %v3713 = vld [vmem:[#allocation13 + $0x50] sm:$0xf]
        %v3714 = vld [vmem:[#allocation13 + $0x54] sm:$0xf]
        %v3715 = vld [vmem:[#allocation13 + $0x58] sm:$0xf]
        %v3716 = vld [vmem:[#allocation13 + $0x5c] sm:$0xf]
        %v3717 = vld [vmem:[#allocation13 + $0x60] sm:$0xf]
        %v3718 = vld [vmem:[#allocation13 + $0x64] sm:$0xf]
        %v3719 = vld [vmem:[#allocation13 + $0x68] sm:$0xf]
        %v3720 = vld [vmem:[#allocation13 + $0x6c] sm:$0xf]
        %v3721 = vld [vmem:[#allocation13 + $0x70] sm:$0xf]
        %v3722 = vld [vmem:[#allocation13 + $0x74] sm:$0xf]
        %v3723 = vld [vmem:[#allocation13 + $0x78] sm:$0xf]
        %v3724 = vld [vmem:[#allocation13 + $0x7c] sm:$0xf]
        %v3725 = vld [vmem:[#allocation3] sm:$0xfe]
        %v3726 = vld [vmem:[#allocation3 + $0x8] sm:$0xfe]
        %v3727 = vld [vmem:[#allocation3 + $0x170] sm:$0x7]
        %v3728 = vld [vmem:[#allocation3 + $0x178] sm:$0x7]
        %v3729 = vpack.c.bf16 %v3623, %v3725
        %v3730 = vpack.c.bf16 %v3624, %v3726
        %v3731 = vpack.c.bf16 %v3727, %v3665
        %v3732 = vpack.c.bf16 %v3728, %v3666
        %v3733 = vld [vmem:[#allocation13 + $0x80] sm:$0xf]
        %v3734 = vld [vmem:[#allocation13 + $0x84] sm:$0xf]
        %v3735 = vld [vmem:[#allocation13 + $0x88] sm:$0xf]
        %v3736 = vld [vmem:[#allocation13 + $0x8c] sm:$0xf]
        %v3737 = vld [vmem:[#allocation13 + $0x90] sm:$0xf]
        %v3738 = vld [vmem:[#allocation13 + $0x94] sm:$0xf]
        %v3739 = vld [vmem:[#allocation13 + $0x98] sm:$0xf]
        %v3740 = vld [vmem:[#allocation13 + $0x9c] sm:$0xf]
        %v3741 = vld [vmem:[#allocation13 + $0xa0] sm:$0xf]
        %v3742 = vld [vmem:[#allocation13 + $0xa4] sm:$0xf]
        %v3743 = vld [vmem:[#allocation13 + $0xa8] sm:$0xf]
        %v3744 = vld [vmem:[#allocation13 + $0xac] sm:$0xf]
        %v3745 = vld [vmem:[#allocation13 + $0xb0] sm:$0xf]
        %v3746 = vld [vmem:[#allocation13 + $0xb4] sm:$0xf]
        %v3747 = vld [vmem:[#allocation13 + $0xb8] sm:$0xf]
        %v3748 = vld [vmem:[#allocation13 + $0xbc] sm:$0xf]
        %v3749 = vld [vmem:[#allocation13 + $0xc0] sm:$0xf]
        %v3750 = vld [vmem:[#allocation13 + $0xc4] sm:$0xf]
        %v3751 = vld [vmem:[#allocation13 + $0xc8] sm:$0xf]
        %v3752 = vld [vmem:[#allocation13 + $0xcc] sm:$0xf]
        %v3753 = vld [vmem:[#allocation13 + $0xd0] sm:$0xf]
        %v3754 = vld [vmem:[#allocation13 + $0xd4] sm:$0xf]
        %v3755 = vld [vmem:[#allocation13 + $0xd8] sm:$0xf]
        %v3756 = vld [vmem:[#allocation13 + $0xdc] sm:$0xf]
        %v3757 = vld [vmem:[#allocation13 + $0xe0] sm:$0xf]
        %v3758 = vld [vmem:[#allocation13 + $0xe4] sm:$0xf]
        %v3759 = vld [vmem:[#allocation13 + $0xe8] sm:$0xf]
        %v3760 = vld [vmem:[#allocation13 + $0xec] sm:$0xf]
        %v3761 = vld [vmem:[#allocation13 + $0xf0] sm:$0xf]
        %v3762 = vld [vmem:[#allocation13 + $0xf4] sm:$0xf]
        %v3763 = vld [vmem:[#allocation13 + $0xf8] sm:$0xf]
        %v3764 = vld [vmem:[#allocation13 + $0xfc] sm:$0xf]
        %v3766 = vshrl.u32 %v3729, 16
        %v3768 = vshll.u32 %v3729, 16
        %v3770 = vrot.slane %v3768, 1
        %v3771 = vor.u32 %v3766, %v3770
        %v3773 = vshll.u32 %v3671, 16
        %v3775 = vrot.slane %v3773, 1
        %v3776 = vsel %vm1560, %v3771, %v3775
        %v3778 = vshrl.u32 %v3730, 16
        %v3780 = vshll.u32 %v3730, 16
        %v3782 = vrot.slane %v3780, 1
        %v3783 = vor.u32 %v3778, %v3782
        %v3785 = vshll.u32 %v3672, 16
        %v3787 = vrot.slane %v3785, 1
        %v3788 = vsel %vm1560, %v3783, %v3787
        %v3789 = vshrl.u32 %v3671, 16
        %v3791 = vor.u32 %v3789, %v3775
        %v3793 = vshll.u32 %v3673, 16
        %v3795 = vrot.slane %v3793, 1
        %v3796 = vsel %vm1560, %v3791, %v3795
        %v3797 = vshrl.u32 %v3672, 16
        %v3799 = vor.u32 %v3797, %v3787
        %v3801 = vshll.u32 %v3674, 16
        %v3803 = vrot.slane %v3801, 1
        %v3804 = vsel %vm1560, %v3799, %v3803
        %v3805 = vshrl.u32 %v3673, 16
        %v3807 = vor.u32 %v3805, %v3795
        %v3809 = vshll.u32 %v3675, 16
        %v3811 = vrot.slane %v3809, 1
        %v3812 = vsel %vm1560, %v3807, %v3811
        %v3813 = vshrl.u32 %v3674, 16
        %v3815 = vor.u32 %v3813, %v3803
        %v3817 = vshll.u32 %v3676, 16
        %v3819 = vrot.slane %v3817, 1
        %v3820 = vsel %vm1560, %v3815, %v3819
        %v3821 = vshrl.u32 %v3675, 16
        %v3823 = vor.u32 %v3821, %v3811
        %v3825 = vshll.u32 %v3677, 16
        %v3827 = vrot.slane %v3825, 1
        %v3828 = vsel %vm1560, %v3823, %v3827
        %v3829 = vshrl.u32 %v3676, 16
        %v3831 = vor.u32 %v3829, %v3819
        %v3833 = vshll.u32 %v3678, 16
        %v3835 = vrot.slane %v3833, 1
        %v3836 = vsel %vm1560, %v3831, %v3835
        %v3837 = vshrl.u32 %v3677, 16
        %v3839 = vor.u32 %v3837, %v3827
        %v3841 = vshll.u32 %v3679, 16
        %v3843 = vrot.slane %v3841, 1
        %v3844 = vsel %vm1560, %v3839, %v3843
        %v3845 = vshrl.u32 %v3678, 16
        %v3847 = vor.u32 %v3845, %v3835
        %v3849 = vshll.u32 %v3680, 16
        %v3851 = vrot.slane %v3849, 1
        %v3852 = vsel %vm1560, %v3847, %v3851
        %v3853 = vshrl.u32 %v3679, 16
        %v3855 = vor.u32 %v3853, %v3843
        %v3857 = vshll.u32 %v3681, 16
        %v3859 = vrot.slane %v3857, 1
        %v3860 = vsel %vm1560, %v3855, %v3859
        %v3861 = vshrl.u32 %v3680, 16
        %v3863 = vor.u32 %v3861, %v3851
        %v3865 = vshll.u32 %v3682, 16
        %v3867 = vrot.slane %v3865, 1
        %v3868 = vsel %vm1560, %v3863, %v3867
        %v3869 = vshrl.u32 %v3681, 16
        %v3871 = vor.u32 %v3869, %v3859
        %v3873 = vshll.u32 %v3683, 16
        %v3875 = vrot.slane %v3873, 1
        %v3876 = vsel %vm1560, %v3871, %v3875
        %v3877 = vshrl.u32 %v3682, 16
        %v3879 = vor.u32 %v3877, %v3867
        %v3881 = vshll.u32 %v3684, 16
        %v3883 = vrot.slane %v3881, 1
        %v3884 = vsel %vm1560, %v3879, %v3883
        %v3885 = vshrl.u32 %v3683, 16
        %v3887 = vor.u32 %v3885, %v3875
        %v3889 = vshll.u32 %v3685, 16
        %v3891 = vrot.slane %v3889, 1
        %v3892 = vsel %vm1560, %v3887, %v3891
        %v3893 = vshrl.u32 %v3684, 16
        %v3895 = vor.u32 %v3893, %v3883
        %v3897 = vshll.u32 %v3686, 16
        %v3899 = vrot.slane %v3897, 1
        %v3900 = vsel %vm1560, %v3895, %v3899
        %v3901 = vshrl.u32 %v3685, 16
        %v3903 = vor.u32 %v3901, %v3891
        %v3905 = vshll.u32 %v3687, 16
        %v3907 = vrot.slane %v3905, 1
        %v3908 = vsel %vm1560, %v3903, %v3907
        %v3909 = vshrl.u32 %v3686, 16
        %v3911 = vor.u32 %v3909, %v3899
        %v3913 = vshll.u32 %v3688, 16
        %v3915 = vrot.slane %v3913, 1
        %v3916 = vsel %vm1560, %v3911, %v3915
        %v3917 = vshrl.u32 %v3687, 16
        %v3919 = vor.u32 %v3917, %v3907
        %v3921 = vshll.u32 %v3689, 16
        %v3923 = vrot.slane %v3921, 1
        %v3924 = vsel %vm1560, %v3919, %v3923
        %v3925 = vshrl.u32 %v3688, 16
        %v3927 = vor.u32 %v3925, %v3915
        %v3929 = vshll.u32 %v3690, 16
        %v3931 = vrot.slane %v3929, 1
        %v3932 = vsel %vm1560, %v3927, %v3931
        %v3933 = vshrl.u32 %v3689, 16
        %v3935 = vor.u32 %v3933, %v3923
        %v3937 = vshll.u32 %v3731, 16
        %v3939 = vrot.slane %v3937, 1
        %v3940 = vsel %vm1560, %v3935, %v3939
        %v3941 = vshrl.u32 %v3690, 16
        %v3943 = vor.u32 %v3941, %v3931
        %v3945 = vshll.u32 %v3732, 16
        %v3947 = vrot.slane %v3945, 1
        %v3948 = vsel %vm1560, %v3943, %v3947
        %v3949 = vshrl.u32 %v3731, 16
        %v3951 = vor.u32 %v3949, %v3939
        %v3952 = vshrl.u32 %v3732, 16
        %v3954 = vor.u32 %v3952, %v3947
        %v4011 = vunpack.c.l.b16 %v3733
        %v4012 = vunpack.c.l.b16 %v3734
        %v4013 = vunpack.c.l.b16 %v3735
        %v4014 = vunpack.c.l.b16 %v3736
        %v4015 = vunpack.c.l.b16 %v3737
        %v4016 = vunpack.c.l.b16 %v3738
        %v4017 = vunpack.c.l.b16 %v3739
        %v4018 = vunpack.c.l.b16 %v3740
        %v4019 = vunpack.c.l.b16 %v3741
        %v4020 = vunpack.c.l.b16 %v3742
        %v4021 = vunpack.c.l.b16 %v3743
        %v4022 = vunpack.c.l.b16 %v3744
        %v4023 = vunpack.c.l.b16 %v3745
        %v4024 = vunpack.c.l.b16 %v3746
        %v4025 = vunpack.c.l.b16 %v3747
        %v4026 = vunpack.c.l.b16 %v3748
        %v4027 = vunpack.c.l.b16 %v3749
        %v4028 = vunpack.c.l.b16 %v3750
        %v4029 = vunpack.c.l.b16 %v3751
        %v4030 = vunpack.c.l.b16 %v3752
        %v4031 = vunpack.c.l.b16 %v3753
        %v4032 = vunpack.c.l.b16 %v3754
        %v4033 = vunpack.c.l.b16 %v3755
        %v4034 = vunpack.c.l.b16 %v3756
        %v4035 = vunpack.c.l.b16 %v3757
        %v4036 = vunpack.c.l.b16 %v3758
        %v4037 = vunpack.c.l.b16 %v3759
        %v4038 = vunpack.c.l.b16 %v3760
        %v4039 = vunpack.c.l.b16 %v3761
        %v4040 = vunpack.c.l.b16 %v3762
        %v4041 = vunpack.c.l.b16 %v3763
        %v4042 = vunpack.c.l.b16 %v3764
        %v4043 = vpack.c.b16 %v4012, %v4011
        %v4044 = vpack.c.b16 %v4014, %v4013
        %v4045 = vpack.c.b16 %v4016, %v4015
        %v4046 = vpack.c.b16 %v4018, %v4017
        %v4047 = vpack.c.b16 %v4020, %v4019
        %v4048 = vpack.c.b16 %v4022, %v4021
        %v4049 = vpack.c.b16 %v4024, %v4023
        %v4050 = vpack.c.b16 %v4026, %v4025
        %v4051 = vpack.c.b16 %v4028, %v4027
        %v4052 = vpack.c.b16 %v4030, %v4029
        %v4053 = vpack.c.b16 %v4032, %v4031
        %v4054 = vpack.c.b16 %v4034, %v4033
        %v4055 = vpack.c.b16 %v4036, %v4035
        %v4056 = vpack.c.b16 %v4038, %v4037
        %v4057 = vpack.c.b16 %v4040, %v4039
        %v4058 = vpack.c.b16 %v4042, %v4041
        %4075 = vmatprep.subr.bf16.mxu0 0
        %4076 = vmatpush1.bf16.msra.mxu0 %v4043
        %4077 = vmatprep.subr.bf16.mxu0 0
        %4078 = vmatpush1.bf16.msra.mxu0 %v4044
        %4079 = vmatprep.subr.bf16.mxu0 0
        %4080 = vmatpush1.bf16.msra.mxu0 %v4045
        %4081 = vmatprep.subr.bf16.mxu0 0
        %4082 = vmatpush1.bf16.msra.mxu0 %v4046
        %4083 = vmatprep.subr.bf16.mxu0 0
        %4084 = vmatpush1.bf16.msra.mxu0 %v4047
        %4085 = vmatprep.subr.bf16.mxu0 0
        %4086 = vmatpush1.bf16.msra.mxu0 %v4048
        %4087 = vmatprep.subr.bf16.mxu0 0
        %4088 = vmatpush1.bf16.msra.mxu0 %v4049
        %4089 = vmatprep.subr.bf16.mxu0 0
        %4090 = vmatpush1.bf16.msra.mxu0 %v4050
        %4091 = vmatprep.subr.bf16.mxu0 0
        %4092 = vmatpush1.bf16.msra.mxu0 %v4051
        %4093 = vmatprep.subr.bf16.mxu0 0
        %4094 = vmatpush1.bf16.msra.mxu0 %v4052
        %4095 = vmatprep.subr.bf16.mxu0 0
        %4096 = vmatpush1.bf16.msra.mxu0 %v4053
        %4097 = vmatprep.subr.bf16.mxu0 0
        %4098 = vmatpush1.bf16.msra.mxu0 %v4054
        %4099 = vmatprep.subr.bf16.mxu0 0
        %4100 = vmatpush1.bf16.msra.mxu0 %v4055
        %4101 = vmatprep.subr.bf16.mxu0 0
        %4102 = vmatpush1.bf16.msra.mxu0 %v4056
        %4103 = vmatprep.subr.bf16.mxu0 0
        %4104 = vmatpush1.bf16.msra.mxu0 %v4057
        %4105 = vmatprep.subr.bf16.mxu0 0
        %4106 = vmatpush1.bf16.msra.mxu0 %v4058
        %4107 = vmatprep.mubr.bf16.mxu0 %v3788
        %4108 = vmatmul.mubr.bf16.gmra.mrb[0].mxu0 %v3776
        %v4109 = vpop.f32.mrb[0].mxu0
        %v4110 = vadd.f32 0.0, %v4109
        %v4111 = vpop.f32.mrb[0].mxu0
        %v4112 = vpop.f32.mrb[0].mxu0
        %v4113 = vadd.f32 0.0, %v4112
        %v4114 = vpop.f32.mrb[0].mxu0
        %4115 = vmatprep.mubr.bf16.mxu0 %v3804
        %4116 = vmatmul.mubr.bf16.gmra.mrb[0].mxu0 %v3796
        %v4117 = vpop.f32.mrb[0].mxu0
        %v4118 = vadd.f32 0.0, %v4117
        %v4119 = vpop.f32.mrb[0].mxu0
        %v4120 = vpop.f32.mrb[0].mxu0
        %v4121 = vadd.f32 0.0, %v4120
        %v4122 = vpop.f32.mrb[0].mxu0
        %4123 = vmatprep.mubr.bf16.mxu0 %v3820
        %4124 = vmatmul.mubr.bf16.gmra.mrb[0].mxu0 %v3812
        %v4125 = vpop.f32.mrb[0].mxu0
        %v4126 = vadd.f32 0.0, %v4125
        %v4127 = vpop.f32.mrb[0].mxu0
        %v4128 = vpop.f32.mrb[0].mxu0
        %v4129 = vadd.f32 0.0, %v4128
        %v4130 = vpop.f32.mrb[0].mxu0
        %4131 = vmatprep.mubr.bf16.mxu0 %v3836
        %4132 = vmatmul.mubr.bf16.gmra.mrb[0].mxu0 %v3828
        %v4133 = vpop.f32.mrb[0].mxu0
        %v4134 = vadd.f32 0.0, %v4133
        %v4135 = vpop.f32.mrb[0].mxu0
        %v4136 = vpop.f32.mrb[0].mxu0
        %v4137 = vadd.f32 0.0, %v4136
        %v4138 = vpop.f32.mrb[0].mxu0
        %4139 = vmatprep.mubr.bf16.mxu0 %v3852
        %4140 = vmatmul.mubr.bf16.gmra.mrb[0].mxu0 %v3844
        %v4141 = vpop.f32.mrb[0].mxu0
        %v4142 = vadd.f32 0.0, %v4141
        %v4143 = vpop.f32.mrb[0].mxu0
        %v4144 = vpop.f32.mrb[0].mxu0
        %v4145 = vadd.f32 0.0, %v4144
        %v4146 = vpop.f32.mrb[0].mxu0
        %4147 = vmatprep.mubr.bf16.mxu0 %v3868
        %4148 = vmatmul.mubr.bf16.gmra.mrb[0].mxu0 %v3860
        %v4149 = vpop.f32.mrb[0].mxu0
        %v4150 = vadd.f32 0.0, %v4149
        %v4151 = vpop.f32.mrb[0].mxu0
        %v4152 = vpop.f32.mrb[0].mxu0
        %v4153 = vadd.f32 0.0, %v4152
        %v4154 = vpop.f32.mrb[0].mxu0
        %4155 = vmatprep.mubr.bf16.mxu0 %v3884
        %4156 = vmatmul.mubr.bf16.gmra.mrb[0].mxu0 %v3876
        %v4157 = vpop.f32.mrb[0].mxu0
        %v4158 = vadd.f32 0.0, %v4157
        %v4159 = vpop.f32.mrb[0].mxu0
        %v4160 = vpop.f32.mrb[0].mxu0
        %v4161 = vadd.f32 0.0, %v4160
        %v4162 = vpop.f32.mrb[0].mxu0
        %4163 = vmatprep.mubr.bf16.mxu0 %v3900
        %4164 = vmatmul.mubr.bf16.gmra.mrb[0].mxu0 %v3892
        %v4165 = vpop.f32.mrb[0].mxu0
        %v4166 = vadd.f32 0.0, %v4165
        %v4167 = vpop.f32.mrb[0].mxu0
        %v4168 = vpop.f32.mrb[0].mxu0
        %v4169 = vadd.f32 0.0, %v4168
        %v4170 = vpop.f32.mrb[0].mxu0
        %4171 = vmatprep.mubr.bf16.mxu0 %v3916
        %4172 = vmatmul.mubr.bf16.gmra.mrb[0].mxu0 %v3908
        %v4173 = vpop.f32.mrb[0].mxu0
        %v4174 = vadd.f32 0.0, %v4173
        %v4175 = vpop.f32.mrb[0].mxu0
        %v4176 = vpop.f32.mrb[0].mxu0
        %v4177 = vadd.f32 0.0, %v4176
        %v4178 = vpop.f32.mrb[0].mxu0
        %4179 = vmatprep.mubr.bf16.mxu0 %v3932
        %4180 = vmatmul.mubr.bf16.gmra.mrb[0].mxu0 %v3924
        %v4181 = vpop.f32.mrb[0].mxu0
        %v4182 = vadd.f32 0.0, %v4181
        %v4183 = vpop.f32.mrb[0].mxu0
        %v4184 = vpop.f32.mrb[0].mxu0
        %v4185 = vadd.f32 0.0, %v4184
        %v4186 = vpop.f32.mrb[0].mxu0
        %4187 = vmatprep.mubr.bf16.mxu0 %v3948
        %4188 = vmatmul.mubr.bf16.gmra.mrb[0].mxu0 %v3940
        %v4189 = vpop.f32.mrb[0].mxu0
        %v4190 = vadd.f32 0.0, %v4189
        %v4191 = vpop.f32.mrb[0].mxu0
        %v4192 = vpop.f32.mrb[0].mxu0
        %v4193 = vadd.f32 0.0, %v4192
        %v4194 = vpop.f32.mrb[0].mxu0
        %4195 = vmatprep.mubr.bf16.mxu0 %v3954
        %4196 = vmatmul.mubr.bf16.gmra.mrb[0].mxu0 %v3951
        %v4197 = vpop.f32.mrb[0].mxu0
        %v4198 = vadd.f32 0.0, %v4197
        %v4199 = vpop.f32.mrb[0].mxu0
        %v4200 = vpop.f32.mrb[0].mxu0
        %v4201 = vadd.f32 0.0, %v4200
        %v4202 = vpop.f32.mrb[0].mxu0
        %4203 = vdwg.mxu0
        %v4236 = vunpack.c.l.b16 %v3693
        %v4237 = vunpack.c.l.b16 %v3694
        %v4238 = vunpack.c.l.b16 %v3695
        %v4239 = vunpack.c.l.b16 %v3696
        %v4240 = vunpack.c.l.b16 %v3697
        %v4241 = vunpack.c.l.b16 %v3698
        %v4242 = vunpack.c.l.b16 %v3699
        %v4243 = vunpack.c.l.b16 %v3700
        %v4244 = vunpack.c.l.b16 %v3701
        %v4245 = vunpack.c.l.b16 %v3702
        %v4246 = vunpack.c.l.b16 %v3703
        %v4247 = vunpack.c.l.b16 %v3704
        %v4248 = vunpack.c.l.b16 %v3705
        %v4249 = vunpack.c.l.b16 %v3706
        %v4250 = vunpack.c.l.b16 %v3707
        %v4251 = vunpack.c.l.b16 %v3708
        %v4252 = vunpack.c.l.b16 %v3709
        %v4253 = vunpack.c.l.b16 %v3710
        %v4254 = vunpack.c.l.b16 %v3711
        %v4255 = vunpack.c.l.b16 %v3712
        %v4256 = vunpack.c.l.b16 %v3713
        %v4257 = vunpack.c.l.b16 %v3714
        %v4258 = vunpack.c.l.b16 %v3715
        %v4259 = vunpack.c.l.b16 %v3716
        %v4260 = vunpack.c.l.b16 %v3717
        %v4261 = vunpack.c.l.b16 %v3718
        %v4262 = vunpack.c.l.b16 %v3719
        %v4263 = vunpack.c.l.b16 %v3720
        %v4264 = vunpack.c.l.b16 %v3721
        %v4265 = vunpack.c.l.b16 %v3722
        %v4266 = vunpack.c.l.b16 %v3723
        %v4267 = vunpack.c.l.b16 %v3724
        %v4268 = vpack.c.b16 %v4237, %v4236
        %v4269 = vpack.c.b16 %v4239, %v4238
        %v4270 = vpack.c.b16 %v4241, %v4240
        %v4271 = vpack.c.b16 %v4243, %v4242
        %v4272 = vpack.c.b16 %v4245, %v4244
        %v4273 = vpack.c.b16 %v4247, %v4246
        %v4274 = vpack.c.b16 %v4249, %v4248
        %v4275 = vpack.c.b16 %v4251, %v4250
        %v4276 = vpack.c.b16 %v4253, %v4252
        %v4277 = vpack.c.b16 %v4255, %v4254
        %v4278 = vpack.c.b16 %v4257, %v4256
        %v4279 = vpack.c.b16 %v4259, %v4258
        %v4280 = vpack.c.b16 %v4261, %v4260
        %v4281 = vpack.c.b16 %v4263, %v4262
        %v4282 = vpack.c.b16 %v4265, %v4264
        %v4283 = vpack.c.b16 %v4267, %v4266
        %4300 = vmatprep.subr.bf16.mxu0 0
        %4301 = vmatpush1.bf16.msra.mxu0 %v4268
        %4302 = vmatprep.subr.bf16.mxu0 0
        %4303 = vmatpush1.bf16.msra.mxu0 %v4269
        %4304 = vmatprep.subr.bf16.mxu0 0
        %4305 = vmatpush1.bf16.msra.mxu0 %v4270
        %4306 = vmatprep.subr.bf16.mxu0 0
        %4307 = vmatpush1.bf16.msra.mxu0 %v4271
        %4308 = vmatprep.subr.bf16.mxu0 0
        %4309 = vmatpush1.bf16.msra.mxu0 %v4272
        %4310 = vmatprep.subr.bf16.mxu0 0
        %4311 = vmatpush1.bf16.msra.mxu0 %v4273
        %4312 = vmatprep.subr.bf16.mxu0 0
        %4313 = vmatpush1.bf16.msra.mxu0 %v4274
        %4314 = vmatprep.subr.bf16.mxu0 0
        %4315 = vmatpush1.bf16.msra.mxu0 %v4275
        %4316 = vmatprep.subr.bf16.mxu0 0
        %4317 = vmatpush1.bf16.msra.mxu0 %v4276
        %4318 = vmatprep.subr.bf16.mxu0 0
        %4319 = vmatpush1.bf16.msra.mxu0 %v4277
        %4320 = vmatprep.subr.bf16.mxu0 0
        %4321 = vmatpush1.bf16.msra.mxu0 %v4278
        %4322 = vmatprep.subr.bf16.mxu0 0
        %4323 = vmatpush1.bf16.msra.mxu0 %v4279
        %4324 = vmatprep.subr.bf16.mxu0 0
        %4325 = vmatpush1.bf16.msra.mxu0 %v4280
        %4326 = vmatprep.subr.bf16.mxu0 0
        %4327 = vmatpush1.bf16.msra.mxu0 %v4281
        %4328 = vmatprep.subr.bf16.mxu0 0
        %4329 = vmatpush1.bf16.msra.mxu0 %v4282
        %4330 = vmatprep.subr.bf16.mxu0 0
        %4331 = vmatpush1.bf16.msra.mxu0 %v4283
        %4332 = vmatprep.mubr.bf16.mxu0 %v3670
        %4333 = vmatmul.mubr.bf16.gmra.mrb[0].mxu0 %v3669
        %v4334 = vpop.f32.mrb[0].mxu0
        %v4335 = vadd.f32 %v4110, %v4334
        %v4336 = vpop.f32.mrb[0].mxu0
        %v4337 = vpop.f32.mrb[0].mxu0
        %v4338 = vadd.f32 %v4113, %v4337
        %v4339 = vpop.f32.mrb[0].mxu0
        %4340 = vmatprep.mubr.bf16.mxu0 %v3672
        %4341 = vmatmul.mubr.bf16.gmra.mrb[0].mxu0 %v3671
        %v4342 = vpop.f32.mrb[0].mxu0
        %v4343 = vadd.f32 %v4118, %v4342
        %v4344 = vpop.f32.mrb[0].mxu0
        %v4345 = vpop.f32.mrb[0].mxu0
        %v4346 = vadd.f32 %v4121, %v4345
        %v4347 = vpop.f32.mrb[0].mxu0
        %4348 = vmatprep.mubr.bf16.mxu0 %v3674
        %4349 = vmatmul.mubr.bf16.gmra.mrb[0].mxu0 %v3673
        %v4350 = vpop.f32.mrb[0].mxu0
        %v4351 = vadd.f32 %v4126, %v4350
        %v4352 = vpop.f32.mrb[0].mxu0
        %v4353 = vpop.f32.mrb[0].mxu0
        %v4354 = vadd.f32 %v4129, %v4353
        %v4355 = vpop.f32.mrb[0].mxu0
        %4356 = vmatprep.mubr.bf16.mxu0 %v3676
        %4357 = vmatmul.mubr.bf16.gmra.mrb[0].mxu0 %v3675
        %v4358 = vpop.f32.mrb[0].mxu0
        %v4359 = vadd.f32 %v4134, %v4358
        %v4360 = vpop.f32.mrb[0].mxu0
        %v4361 = vpop.f32.mrb[0].mxu0
        %v4362 = vadd.f32 %v4137, %v4361
        %v4363 = vpop.f32.mrb[0].mxu0
        %4364 = vmatprep.mubr.bf16.mxu0 %v3678
        %4365 = vmatmul.mubr.bf16.gmra.mrb[0].mxu0 %v3677
        %v4366 = vpop.f32.mrb[0].mxu0
        %v4367 = vadd.f32 %v4142, %v4366
        %v4368 = vpop.f32.mrb[0].mxu0
        %v4369 = vpop.f32.mrb[0].mxu0
        %v4370 = vadd.f32 %v4145, %v4369
        %v4371 = vpop.f32.mrb[0].mxu0
        %4372 = vmatprep.mubr.bf16.mxu0 %v3680
        %4373 = vmatmul.mubr.bf16.gmra.mrb[0].mxu0 %v3679
        %v4374 = vpop.f32.mrb[0].mxu0
        %v4375 = vadd.f32 %v4150, %v4374
        %v4376 = vpop.f32.mrb[0].mxu0
        %v4377 = vpop.f32.mrb[0].mxu0
        %v4378 = vadd.f32 %v4153, %v4377
        %v4379 = vpop.f32.mrb[0].mxu0
        %4380 = vmatprep.mubr.bf16.mxu0 %v3682
        %4381 = vmatmul.mubr.bf16.gmra.mrb[0].mxu0 %v3681
        %v4382 = vpop.f32.mrb[0].mxu0
        %v4383 = vadd.f32 %v4158, %v4382
        %v4384 = vpop.f32.mrb[0].mxu0
        %v4385 = vpop.f32.mrb[0].mxu0
        %v4386 = vadd.f32 %v4161, %v4385
        %v4387 = vpop.f32.mrb[0].mxu0
        %4388 = vmatprep.mubr.bf16.mxu0 %v3684
        %4389 = vmatmul.mubr.bf16.gmra.mrb[0].mxu0 %v3683
        %v4390 = vpop.f32.mrb[0].mxu0
        %v4391 = vadd.f32 %v4166, %v4390
        %v4392 = vpop.f32.mrb[0].mxu0
        %v4393 = vpop.f32.mrb[0].mxu0
        %v4394 = vadd.f32 %v4169, %v4393
        %v4395 = vpop.f32.mrb[0].mxu0
        %4396 = vmatprep.mubr.bf16.mxu0 %v3686
        %4397 = vmatmul.mubr.bf16.gmra.mrb[0].mxu0 %v3685
        %v4398 = vpop.f32.mrb[0].mxu0
        %v4399 = vadd.f32 %v4174, %v4398
        %v4400 = vpop.f32.mrb[0].mxu0
        %v4401 = vpop.f32.mrb[0].mxu0
        %v4402 = vadd.f32 %v4177, %v4401
        %v4403 = vpop.f32.mrb[0].mxu0
        %4404 = vmatprep.mubr.bf16.mxu0 %v3688
        %4405 = vmatmul.mubr.bf16.gmra.mrb[0].mxu0 %v3687
        %v4406 = vpop.f32.mrb[0].mxu0
        %v4407 = vadd.f32 %v4182, %v4406
        %v4408 = vpop.f32.mrb[0].mxu0
        %v4409 = vpop.f32.mrb[0].mxu0
        %v4410 = vadd.f32 %v4185, %v4409
        %v4411 = vpop.f32.mrb[0].mxu0
        %4412 = vmatprep.mubr.bf16.mxu0 %v3690
        %4413 = vmatmul.mubr.bf16.gmra.mrb[0].mxu0 %v3689
        %v4414 = vpop.f32.mrb[0].mxu0
        %v4415 = vadd.f32 %v4190, %v4414
        %v4416 = vpop.f32.mrb[0].mxu0
        %v4417 = vpop.f32.mrb[0].mxu0
        %v4418 = vadd.f32 %v4193, %v4417
        %v4419 = vpop.f32.mrb[0].mxu0
        %4420 = vmatprep.mubr.bf16.mxu0 %v3692
        %4421 = vmatmul.mubr.bf16.gmra.mrb[0].mxu0 %v3691
        %v4422 = vpop.f32.mrb[0].mxu0
        %v4423 = vadd.f32 %v4198, %v4422
        %v4424 = vpop.f32.mrb[0].mxu0
        %v4425 = vpop.f32.mrb[0].mxu0
        %v4426 = vadd.f32 %v4201, %v4425
        %v4427 = vpop.f32.mrb[0].mxu0
        %4428 = vdwg.mxu0
        %v4429 = vld [vmem:[#allocation3] sm:$0xfc]
        %v4430 = vld [vmem:[#allocation3 + $0x8] sm:$0xfc]
        %v4431 = vld [vmem:[#allocation3 + $0x170] sm:$0xf]
        %v4432 = vld [vmem:[#allocation3 + $0x178] sm:$0xf]
        %v4433 = vpack.c.bf16 %v3623, %v4429
        %v4434 = vpack.c.bf16 %v3624, %v4430
        %v4435 = vpack.c.bf16 %v4431, %v3665
        %v4436 = vpack.c.bf16 %v4432, %v3666
        %v4437 = vld [vmem:[#allocation13 + $0x100] sm:$0xf]
        %v4438 = vld [vmem:[#allocation13 + $0x104] sm:$0xf]
        %v4439 = vld [vmem:[#allocation13 + $0x108] sm:$0xf]
        %v4440 = vld [vmem:[#allocation13 + $0x10c] sm:$0xf]
        %v4441 = vld [vmem:[#allocation13 + $0x110] sm:$0xf]
        %v4442 = vld [vmem:[#allocation13 + $0x114] sm:$0xf]
        %v4443 = vld [vmem:[#allocation13 + $0x118] sm:$0xf]
        %v4444 = vld [vmem:[#allocation13 + $0x11c] sm:$0xf]
        %v4445 = vld [vmem:[#allocation13 + $0x120] sm:$0xf]
        %v4446 = vld [vmem:[#allocation13 + $0x124] sm:$0xf]
        %v4447 = vld [vmem:[#allocation13 + $0x128] sm:$0xf]
        %v4448 = vld [vmem:[#allocation13 + $0x12c] sm:$0xf]
        %v4449 = vld [vmem:[#allocation13 + $0x130] sm:$0xf]
        %v4450 = vld [vmem:[#allocation13 + $0x134] sm:$0xf]
        %v4451 = vld [vmem:[#allocation13 + $0x138] sm:$0xf]
        %v4452 = vld [vmem:[#allocation13 + $0x13c] sm:$0xf]
        %v4453 = vld [vmem:[#allocation13 + $0x140] sm:$0xf]
        %v4454 = vld [vmem:[#allocation13 + $0x144] sm:$0xf]
        %v4455 = vld [vmem:[#allocation13 + $0x148] sm:$0xf]
        %v4456 = vld [vmem:[#allocation13 + $0x14c] sm:$0xf]
        %v4457 = vld [vmem:[#allocation13 + $0x150] sm:$0xf]
        %v4458 = vld [vmem:[#allocation13 + $0x154] sm:$0xf]
        %v4459 = vld [vmem:[#allocation13 + $0x158] sm:$0xf]
        %v4460 = vld [vmem:[#allocation13 + $0x15c] sm:$0xf]
        %v4461 = vld [vmem:[#allocation13 + $0x160] sm:$0xf]
        %v4462 = vld [vmem:[#allocation13 + $0x164] sm:$0xf]
        %v4463 = vld [vmem:[#allocation13 + $0x168] sm:$0xf]
        %v4464 = vld [vmem:[#allocation13 + $0x16c] sm:$0xf]
        %v4465 = vld [vmem:[#allocation13 + $0x170] sm:$0xf]
        %v4466 = vld [vmem:[#allocation13 + $0x174] sm:$0xf]
        %v4467 = vld [vmem:[#allocation13 + $0x178] sm:$0xf]
        %v4468 = vld [vmem:[#allocation13 + $0x17c] sm:$0xf]
        %v4493 = vrot.slane %v4433, 1
        %v4494 = vrot.slane %v3671, 1
        %v4495 = vsel %vm2054, %v4493, %v4494
        %v4496 = vrot.slane %v4434, 1
        %v4497 = vrot.slane %v3672, 1
        %v4498 = vsel %vm2054, %v4496, %v4497
        %v4499 = vrot.slane %v3673, 1
        %v4500 = vsel %vm2054, %v4494, %v4499
        %v4501 = vrot.slane %v3674, 1
        %v4502 = vsel %vm2054, %v4497, %v4501
        %v4503 = vrot.slane %v3675, 1
        %v4504 = vsel %vm2054, %v4499, %v4503
        %v4505 = vrot.slane %v3676, 1
        %v4506 = vsel %vm2054, %v4501, %v4505
        %v4507 = vrot.slane %v3677, 1
        %v4508 = vsel %vm2054, %v4503, %v4507
        %v4509 = vrot.slane %v3678, 1
        %v4510 = vsel %vm2054, %v4505, %v4509
        %v4511 = vrot.slane %v3679, 1
        %v4512 = vsel %vm2054, %v4507, %v4511
        %v4513 = vrot.slane %v3680, 1
        %v4514 = vsel %vm2054, %v4509, %v4513
        %v4515 = vrot.slane %v3681, 1
        %v4516 = vsel %vm2054, %v4511, %v4515
        %v4517 = vrot.slane %v3682, 1
        %v4518 = vsel %vm2054, %v4513, %v4517
        %v4519 = vrot.slane %v3683, 1
        %v4520 = vsel %vm2054, %v4515, %v4519
        %v4521 = vrot.slane %v3684, 1
        %v4522 = vsel %vm2054, %v4517, %v4521
        %v4523 = vrot.slane %v3685, 1
        %v4524 = vsel %vm2054, %v4519, %v4523
        %v4525 = vrot.slane %v3686, 1
        %v4526 = vsel %vm2054, %v4521, %v4525
        %v4527 = vrot.slane %v3687, 1
        %v4528 = vsel %vm2054, %v4523, %v4527
        %v4529 = vrot.slane %v3688, 1
        %v4530 = vsel %vm2054, %v4525, %v4529
        %v4531 = vrot.slane %v3689, 1
        %v4532 = vsel %vm2054, %v4527, %v4531
        %v4533 = vrot.slane %v3690, 1
        %v4534 = vsel %vm2054, %v4529, %v4533
        %v4535 = vrot.slane %v4435, 1
        %v4536 = vsel %vm2054, %v4531, %v4535
        %v4537 = vrot.slane %v4436, 1
        %v4538 = vsel %vm2054, %v4533, %v4537
        %v4595 = vunpack.c.l.b16 %v4437
        %v4596 = vunpack.c.l.b16 %v4438
        %v4597 = vunpack.c.l.b16 %v4439
        %v4598 = vunpack.c.l.b16 %v4440
        %v4599 = vunpack.c.l.b16 %v4441
        %v4600 = vunpack.c.l.b16 %v4442
        %v4601 = vunpack.c.l.b16 %v4443
        %v4602 = vunpack.c.l.b16 %v4444
        %v4603 = vunpack.c.l.b16 %v4445
        %v4604 = vunpack.c.l.b16 %v4446
        %v4605 = vunpack.c.l.b16 %v4447
        %v4606 = vunpack.c.l.b16 %v4448
        %v4607 = vunpack.c.l.b16 %v4449
        %v4608 = vunpack.c.l.b16 %v4450
        %v4609 = vunpack.c.l.b16 %v4451
        %v4610 = vunpack.c.l.b16 %v4452
        %v4611 = vunpack.c.l.b16 %v4453
        %v4612 = vunpack.c.l.b16 %v4454
        %v4613 = vunpack.c.l.b16 %v4455
        %v4614 = vunpack.c.l.b16 %v4456
        %v4615 = vunpack.c.l.b16 %v4457
        %v4616 = vunpack.c.l.b16 %v4458
        %v4617 = vunpack.c.l.b16 %v4459
        %v4618 = vunpack.c.l.b16 %v4460
        %v4619 = vunpack.c.l.b16 %v4461
        %v4620 = vunpack.c.l.b16 %v4462
        %v4621 = vunpack.c.l.b16 %v4463
        %v4622 = vunpack.c.l.b16 %v4464
        %v4623 = vunpack.c.l.b16 %v4465
        %v4624 = vunpack.c.l.b16 %v4466
        %v4625 = vunpack.c.l.b16 %v4467
        %v4626 = vunpack.c.l.b16 %v4468
        %v4627 = vpack.c.b16 %v4596, %v4595
        %v4628 = vpack.c.b16 %v4598, %v4597
        %v4629 = vpack.c.b16 %v4600, %v4599
        %v4630 = vpack.c.b16 %v4602, %v4601
        %v4631 = vpack.c.b16 %v4604, %v4603
        %v4632 = vpack.c.b16 %v4606, %v4605
        %v4633 = vpack.c.b16 %v4608, %v4607
        %v4634 = vpack.c.b16 %v4610, %v4609
        %v4635 = vpack.c.b16 %v4612, %v4611
        %v4636 = vpack.c.b16 %v4614, %v4613
        %v4637 = vpack.c.b16 %v4616, %v4615
        %v4638 = vpack.c.b16 %v4618, %v4617
        %v4639 = vpack.c.b16 %v4620, %v4619
        %v4640 = vpack.c.b16 %v4622, %v4621
        %v4641 = vpack.c.b16 %v4624, %v4623
        %v4642 = vpack.c.b16 %v4626, %v4625
        %4659 = vmatprep.subr.bf16.mxu0 0
        %4660 = vmatpush1.bf16.msra.mxu0 %v4627
        %4661 = vmatprep.subr.bf16.mxu0 0
        %4662 = vmatpush1.bf16.msra.mxu0 %v4628
        %4663 = vmatprep.subr.bf16.mxu0 0
        %4664 = vmatpush1.bf16.msra.mxu0 %v4629
        %4665 = vmatprep.subr.bf16.mxu0 0
        %4666 = vmatpush1.bf16.msra.mxu0 %v4630
        %4667 = vmatprep.subr.bf16.mxu0 0
        %4668 = vmatpush1.bf16.msra.mxu0 %v4631
        %4669 = vmatprep.subr.bf16.mxu0 0
        %4670 = vmatpush1.bf16.msra.mxu0 %v4632
        %4671 = vmatprep.subr.bf16.mxu0 0
        %4672 = vmatpush1.bf16.msra.mxu0 %v4633
        %4673 = vmatprep.subr.bf16.mxu0 0
        %4674 = vmatpush1.bf16.msra.mxu0 %v4634
        %4675 = vmatprep.subr.bf16.mxu0 0
        %4676 = vmatpush1.bf16.msra.mxu0 %v4635
        %4677 = vmatprep.subr.bf16.mxu0 0
        %4678 = vmatpush1.bf16.msra.mxu0 %v4636
        %4679 = vmatprep.subr.bf16.mxu0 0
        %4680 = vmatpush1.bf16.msra.mxu0 %v4637
        %4681 = vmatprep.subr.bf16.mxu0 0
        %4682 = vmatpush1.bf16.msra.mxu0 %v4638
        %4683 = vmatprep.subr.bf16.mxu0 0
        %4684 = vmatpush1.bf16.msra.mxu0 %v4639
        %4685 = vmatprep.subr.bf16.mxu0 0
        %4686 = vmatpush1.bf16.msra.mxu0 %v4640
        %4687 = vmatprep.subr.bf16.mxu0 0
        %4688 = vmatpush1.bf16.msra.mxu0 %v4641
        %4689 = vmatprep.subr.bf16.mxu0 0
        %4690 = vmatpush1.bf16.msra.mxu0 %v4642
        %4691 = vmatprep.mubr.bf16.mxu0 %v4498
        %4692 = vmatmul.mubr.bf16.gmra.mrb[0].mxu0 %v4495
        %v4693 = vpop.f32.mrb[0].mxu0
        %v4694 = vadd.f32 0.0, %v4693
        %v4695 = vpop.f32.mrb[0].mxu0
        %v4696 = vpop.f32.mrb[0].mxu0
        %v4697 = vadd.f32 0.0, %v4696
        %v4698 = vpop.f32.mrb[0].mxu0
        %4699 = vmatprep.mubr.bf16.mxu0 %v4502
        %4700 = vmatmul.mubr.bf16.gmra.mrb[0].mxu0 %v4500
        %v4701 = vpop.f32.mrb[0].mxu0
        %v4702 = vadd.f32 0.0, %v4701
        %v4703 = vpop.f32.mrb[0].mxu0
        %v4704 = vpop.f32.mrb[0].mxu0
        %v4705 = vadd.f32 0.0, %v4704
        %v4706 = vpop.f32.mrb[0].mxu0
        %4707 = vmatprep.mubr.bf16.mxu0 %v4506
        %4708 = vmatmul.mubr.bf16.gmra.mrb[0].mxu0 %v4504
        %v4709 = vpop.f32.mrb[0].mxu0
        %v4710 = vadd.f32 0.0, %v4709
        %v4711 = vpop.f32.mrb[0].mxu0
        %v4712 = vpop.f32.mrb[0].mxu0
        %v4713 = vadd.f32 0.0, %v4712
        %v4714 = vpop.f32.mrb[0].mxu0
        %4715 = vmatprep.mubr.bf16.mxu0 %v4510
        %4716 = vmatmul.mubr.bf16.gmra.mrb[0].mxu0 %v4508
        %v4717 = vpop.f32.mrb[0].mxu0
        %v4718 = vadd.f32 0.0, %v4717
        %v4719 = vpop.f32.mrb[0].mxu0
        %v4720 = vpop.f32.mrb[0].mxu0
        %v4721 = vadd.f32 0.0, %v4720
        %v4722 = vpop.f32.mrb[0].mxu0
        %4723 = vmatprep.mubr.bf16.mxu0 %v4514
        %4724 = vmatmul.mubr.bf16.gmra.mrb[0].mxu0 %v4512
        %v4725 = vpop.f32.mrb[0].mxu0
        %v4726 = vadd.f32 0.0, %v4725
        %v4727 = vpop.f32.mrb[0].mxu0
        %v4728 = vpop.f32.mrb[0].mxu0
        %v4729 = vadd.f32 0.0, %v4728
        %v4730 = vpop.f32.mrb[0].mxu0
        %4731 = vmatprep.mubr.bf16.mxu0 %v4518
        %4732 = vmatmul.mubr.bf16.gmra.mrb[0].mxu0 %v4516
        %v4733 = vpop.f32.mrb[0].mxu0
        %v4734 = vadd.f32 0.0, %v4733
        %v4735 = vpop.f32.mrb[0].mxu0
        %v4736 = vpop.f32.mrb[0].mxu0
        %v4737 = vadd.f32 0.0, %v4736
        %v4738 = vpop.f32.mrb[0].mxu0
        %4739 = vmatprep.mubr.bf16.mxu0 %v4522
        %4740 = vmatmul.mubr.bf16.gmra.mrb[0].mxu0 %v4520
        %v4741 = vpop.f32.mrb[0].mxu0
        %v4742 = vadd.f32 0.0, %v4741
        %v4743 = vpop.f32.mrb[0].mxu0
        %v4744 = vpop.f32.mrb[0].mxu0
        %v4745 = vadd.f32 0.0, %v4744
        %v4746 = vpop.f32.mrb[0].mxu0
        %4747 = vmatprep.mubr.bf16.mxu0 %v4526
        %4748 = vmatmul.mubr.bf16.gmra.mrb[0].mxu0 %v4524
        %v4749 = vpop.f32.mrb[0].mxu0
        %v4750 = vadd.f32 0.0, %v4749
        %v4751 = vpop.f32.mrb[0].mxu0
        %v4752 = vpop.f32.mrb[0].mxu0
        %v4753 = vadd.f32 0.0, %v4752
        %v4754 = vpop.f32.mrb[0].mxu0
        %4755 = vmatprep.mubr.bf16.mxu0 %v4530
        %4756 = vmatmul.mubr.bf16.gmra.mrb[0].mxu0 %v4528
        %v4757 = vpop.f32.mrb[0].mxu0
        %v4758 = vadd.f32 0.0, %v4757
        %v4759 = vpop.f32.mrb[0].mxu0
        %v4760 = vpop.f32.mrb[0].mxu0
        %v4761 = vadd.f32 0.0, %v4760
        %v4762 = vpop.f32.mrb[0].mxu0
        %4763 = vmatprep.mubr.bf16.mxu0 %v4534
        %4764 = vmatmul.mubr.bf16.gmra.mrb[0].mxu0 %v4532
        %v4765 = vpop.f32.mrb[0].mxu0
        %v4766 = vadd.f32 0.0, %v4765
        %v4767 = vpop.f32.mrb[0].mxu0
        %v4768 = vpop.f32.mrb[0].mxu0
        %v4769 = vadd.f32 0.0, %v4768
        %v4770 = vpop.f32.mrb[0].mxu0
        %4771 = vmatprep.mubr.bf16.mxu0 %v4538
        %4772 = vmatmul.mubr.bf16.gmra.mrb[0].mxu0 %v4536
        %v4773 = vpop.f32.mrb[0].mxu0
        %v4774 = vadd.f32 0.0, %v4773
        %v4775 = vpop.f32.mrb[0].mxu0
        %v4776 = vpop.f32.mrb[0].mxu0
        %v4777 = vadd.f32 0.0, %v4776
        %v4778 = vpop.f32.mrb[0].mxu0
        %4779 = vmatprep.mubr.bf16.mxu0 %v4537
        %4780 = vmatmul.mubr.bf16.gmra.mrb[0].mxu0 %v4535
        %v4781 = vpop.f32.mrb[0].mxu0
        %v4782 = vadd.f32 0.0, %v4781
        %v4783 = vpop.f32.mrb[0].mxu0
        %v4784 = vpop.f32.mrb[0].mxu0
        %v4785 = vadd.f32 0.0, %v4784
        %v4786 = vpop.f32.mrb[0].mxu0
        %4787 = vdwg.mxu0
        %v4788 = vadd.f32 %v4335, %v4694
        %v4789 = vadd.f32 %v4338, %v4697
        %v4790 = vadd.f32 %v4343, %v4702
        %v4791 = vadd.f32 %v4346, %v4705
        %v4792 = vadd.f32 %v4351, %v4710
        %v4793 = vadd.f32 %v4354, %v4713
        %v4794 = vadd.f32 %v4359, %v4718
        %v4795 = vadd.f32 %v4362, %v4721
        %v4796 = vadd.f32 %v4367, %v4726
        %v4797 = vadd.f32 %v4370, %v4729
        %v4798 = vadd.f32 %v4375, %v4734
        %v4799 = vadd.f32 %v4378, %v4737
        %v4800 = vadd.f32 %v4383, %v4742
        %v4801 = vadd.f32 %v4386, %v4745
        %v4802 = vadd.f32 %v4391, %v4750
        %v4803 = vadd.f32 %v4394, %v4753
        %v4804 = vadd.f32 %v4399, %v4758
        %v4805 = vadd.f32 %v4402, %v4761
        %v4806 = vadd.f32 %v4407, %v4766
        %v4807 = vadd.f32 %v4410, %v4769
        %v4808 = vadd.f32 %v4415, %v4774
        %v4809 = vadd.f32 %v4418, %v4777
        %v4810 = vadd.f32 %v4423, %v4782
        %v4811 = vadd.f32 %v4426, %v4785
        %v4812 = vld [vmem:[#allocation14] sm:$0x1]
        %v4814 = vlaneseq
        %v4815 = vshrl.u32 %v4814, 7
        %v4816 = vsub.s32 0, %v4815
        %v4817 = vrot.slane %v4812, %v4816
        %v4819 = vadd.f32 %v4788, %v4817
        %v4820 = vadd.f32 %v4789, %v4817
        %v4821 = vadd.f32 %v4790, %v4817
        %v4822 = vadd.f32 %v4791, %v4817
        %v4823 = vadd.f32 %v4792, %v4817
        %v4824 = vadd.f32 %v4793, %v4817
        %v4825 = vadd.f32 %v4794, %v4817
        %v4826 = vadd.f32 %v4795, %v4817
        %v4827 = vadd.f32 %v4796, %v4817
        %v4828 = vadd.f32 %v4797, %v4817
        %v4829 = vadd.f32 %v4798, %v4817
        %v4830 = vadd.f32 %v4799, %v4817
        %v4831 = vadd.f32 %v4800, %v4817
        %v4832 = vadd.f32 %v4801, %v4817
        %v4833 = vadd.f32 %v4802, %v4817
        %v4834 = vadd.f32 %v4803, %v4817
        %v4835 = vadd.f32 %v4804, %v4817
        %v4836 = vadd.f32 %v4805, %v4817
        %v4837 = vadd.f32 %v4806, %v4817
        %v4838 = vadd.f32 %v4807, %v4817
        %v4839 = vadd.f32 %v4808, %v4817
        %v4840 = vadd.f32 %v4809, %v4817
        %v4841 = vadd.f32 %v4810, %v4817
        %v4842 = vadd.f32 %v4811, %v4817
        %4843 = vst [vmem:[#allocation4] sm:$0xff] %v4819
        %4844 = vst [vmem:[#allocation4 + $0x8] sm:$0xff] %v4820
        %4845 = vst [vmem:[#allocation4 + $0x10] sm:$0xff] %v4821
        %4846 = vst [vmem:[#allocation4 + $0x18] sm:$0xff] %v4822
        %4847 = vst [vmem:[#allocation4 + $0x20] sm:$0xff] %v4823
        %4848 = vst [vmem:[#allocation4 + $0x28] sm:$0xff] %v4824
        %4849 = vst [vmem:[#allocation4 + $0x30] sm:$0xff] %v4825
        %4850 = vst [vmem:[#allocation4 + $0x38] sm:$0xff] %v4826
        %4851 = vst [vmem:[#allocation4 + $0x40] sm:$0xff] %v4827
        %4852 = vst [vmem:[#allocation4 + $0x48] sm:$0xff] %v4828
        %4853 = vst [vmem:[#allocation4 + $0x50] sm:$0xff] %v4829
        %4854 = vst [vmem:[#allocation4 + $0x58] sm:$0xff] %v4830
        %4855 = vst [vmem:[#allocation4 + $0x60] sm:$0xff] %v4831
        %4856 = vst [vmem:[#allocation4 + $0x68] sm:$0xff] %v4832
        %4857 = vst [vmem:[#allocation4 + $0x70] sm:$0xff] %v4833
        %4858 = vst [vmem:[#allocation4 + $0x78] sm:$0xff] %v4834
        %4859 = vst [vmem:[#allocation4 + $0x80] sm:$0xff] %v4835
        %4860 = vst [vmem:[#allocation4 + $0x88] sm:$0xff] %v4836
        %4861 = vst [vmem:[#allocation4 + $0x90] sm:$0xff] %v4837
        %4862 = vst [vmem:[#allocation4 + $0x98] sm:$0xff] %v4838
        %4863 = vst [vmem:[#allocation4 + $0xa0] sm:$0xff] %v4839
        %4864 = vst [vmem:[#allocation4 + $0xa8] sm:$0xff] %v4840
        %4865 = vst [vmem:[#allocation4 + $0xb0] sm:$0xff] %v4841
        %4866 = vst [vmem:[#allocation4 + $0xb8] sm:$0x3] %v4842
        %v4867 = vld [vmem:[#allocation4] ss:$2 sm:$0xff]
        %s4868 = scalar_lea.vmem [#allocation4], 16
        %v4869 = vld [vmem:[%s4868] ss:$2 sm:$0xff]
        %s4870 = scalar_lea.vmem [#allocation4], 32
        %v4871 = vld [vmem:[%s4870] ss:$2 sm:$0xff]
        %s4872 = scalar_lea.vmem [#allocation4], 48
        %v4873 = vld [vmem:[%s4872] ss:$2 sm:$0xff]
        %s4874 = scalar_lea.vmem [#allocation4], 64
        %v4875 = vld [vmem:[%s4874] ss:$2 sm:$0xff]
        %s4876 = scalar_lea.vmem [#allocation4], 80
        %v4877 = vld [vmem:[%s4876] ss:$2 sm:$0xff]
        %s4878 = scalar_lea.vmem [#allocation4], 96
        %v4879 = vld [vmem:[%s4878] ss:$2 sm:$0xff]
        %s4880 = scalar_lea.vmem [#allocation4], 112
        %v4881 = vld [vmem:[%s4880] ss:$2 sm:$0xff]
        %s4882 = scalar_lea.vmem [#allocation4], 128
        %v4883 = vld [vmem:[%s4882] ss:$2 sm:$0xff]
        %s4884 = scalar_lea.vmem [#allocation4], 144
        %v4885 = vld [vmem:[%s4884] ss:$2 sm:$0xff]
        %s4886 = scalar_lea.vmem [#allocation4], 160
        %v4887 = vld [vmem:[%s4886] ss:$2 sm:$0xff]
        %s4888 = scalar_lea.vmem [#allocation4], 176
        %v4889 = vld [vmem:[%s4888] ss:$2 sm:$0xff]
        %s4890 = scalar_lea.vmem [#allocation4], 1
        %v4891 = vld [vmem:[%s4890] ss:$2 sm:$0xff]
        %s4892 = scalar_lea.vmem [#allocation4], 17
        %v4893 = vld [vmem:[%s4892] ss:$2 sm:$0xff]
        %s4894 = scalar_lea.vmem [#allocation4], 33
        %v4895 = vld [vmem:[%s4894] ss:$2 sm:$0xff]
        %s4896 = scalar_lea.vmem [#allocation4], 49
        %v4897 = vld [vmem:[%s4896] ss:$2 sm:$0xff]
        %s4898 = scalar_lea.vmem [#allocation4], 65
        %v4899 = vld [vmem:[%s4898] ss:$2 sm:$0xff]
        %s4900 = scalar_lea.vmem [#allocation4], 81
        %v4901 = vld [vmem:[%s4900] ss:$2 sm:$0xff]
        %s4902 = scalar_lea.vmem [#allocation4], 97
        %v4903 = vld [vmem:[%s4902] ss:$2 sm:$0xff]
        %s4904 = scalar_lea.vmem [#allocation4], 113
        %v4905 = vld [vmem:[%s4904] ss:$2 sm:$0xff]
        %s4906 = scalar_lea.vmem [#allocation4], 129
        %v4907 = vld [vmem:[%s4906] ss:$2 sm:$0xff]
        %s4908 = scalar_lea.vmem [#allocation4], 145
        %v4909 = vld [vmem:[%s4908] ss:$2 sm:$0xff]
        %s4910 = scalar_lea.vmem [#allocation4], 161
        %v4911 = vld [vmem:[%s4910] ss:$2 sm:$0xff]
        %s4912 = scalar_lea.vmem [#allocation4], 177
        %v4913 = vld [vmem:[%s4912] ss:$2 sm:$0xff]
        %v4914 = vmax.f32 %v4867, %v4891
        %v4915 = vmax.f32 %v4869, %v4893
        %v4916 = vmax.f32 %v4871, %v4895
        %v4917 = vmax.f32 %v4873, %v4897
        %v4918 = vmax.f32 %v4875, %v4899
        %v4919 = vmax.f32 %v4877, %v4901
        %v4920 = vmax.f32 %v4879, %v4903
        %v4921 = vmax.f32 %v4881, %v4905
        %v4922 = vmax.f32 %v4883, %v4907
        %v4923 = vmax.f32 %v4885, %v4909
        %v4924 = vmax.f32 %v4887, %v4911
        %v4925 = vmax.f32 %v4889, %v4913
        %4926 = vst [vmem:[#allocation5] sm:$0xff] %v4914
        %4927 = vst [vmem:[#allocation5 + $0x8] sm:$0xff] %v4915
        %4928 = vst [vmem:[#allocation5 + $0x10] sm:$0xff] %v4916
        %4929 = vst [vmem:[#allocation5 + $0x18] sm:$0xff] %v4917
        %4930 = vst [vmem:[#allocation5 + $0x20] sm:$0xff] %v4918
        %4931 = vst [vmem:[#allocation5 + $0x28] sm:$0xff] %v4919
        %4932 = vst [vmem:[#allocation5 + $0x30] sm:$0xff] %v4920
        %4933 = vst [vmem:[#allocation5 + $0x38] sm:$0xff] %v4921
        %4934 = vst [vmem:[#allocation5 + $0x40] sm:$0xff] %v4922
        %4935 = vst [vmem:[#allocation5 + $0x48] sm:$0xff] %v4923
        %4936 = vst [vmem:[#allocation5 + $0x50] sm:$0xff] %v4924
        %4937 = vst [vmem:[#allocation5 + $0x58] sm:$0xff] %v4925
        %v4938 = vld [vmem:[#allocation5] ss:$2 sm:$0xff]
        %s4939 = scalar_lea.vmem [#allocation5], 16
        %v4940 = vld [vmem:[%s4939] ss:$2 sm:$0xff]
        %s4941 = scalar_lea.vmem [#allocation5], 32
        %v4942 = vld [vmem:[%s4941] ss:$2 sm:$0xff]
        %s4943 = scalar_lea.vmem [#allocation5], 48
        %v4944 = vld [vmem:[%s4943] ss:$2 sm:$0xff]
        %s4945 = scalar_lea.vmem [#allocation5], 64
        %v4946 = vld [vmem:[%s4945] ss:$2 sm:$0xff]
        %s4947 = scalar_lea.vmem [#allocation5], 80
        %v4948 = vld [vmem:[%s4947] ss:$2 sm:$0xff]
        %s4949 = scalar_lea.vmem [#allocation5], 1
        %v4950 = vld [vmem:[%s4949] ss:$2 sm:$0xff]
        %s4951 = scalar_lea.vmem [#allocation5], 17
        %v4952 = vld [vmem:[%s4951] ss:$2 sm:$0xff]
        %s4953 = scalar_lea.vmem [#allocation5], 33
        %v4954 = vld [vmem:[%s4953] ss:$2 sm:$0xff]
        %s4955 = scalar_lea.vmem [#allocation5], 49
        %v4956 = vld [vmem:[%s4955] ss:$2 sm:$0xff]
        %s4957 = scalar_lea.vmem [#allocation5], 65
        %v4958 = vld [vmem:[%s4957] ss:$2 sm:$0xff]
        %s4959 = scalar_lea.vmem [#allocation5], 81
        %v4960 = vld [vmem:[%s4959] ss:$2 sm:$0xff]
        %4967 = vrot.lane.b32.xlu0 %v4938, 64
        %v4968 = vpop.permute.xlu0 %4967
        %4969 = vrot.lane.b32.xlu0 %v4940, 64
        %v4970 = vpop.permute.xlu0 %4969
        %4971 = vrot.lane.b32.xlu0 %v4942, 64
        %v4972 = vpop.permute.xlu0 %4971
        %4973 = vrot.lane.b32.xlu0 %v4944, 64
        %v4974 = vpop.permute.xlu0 %4973
        %4975 = vrot.lane.b32.xlu0 %v4946, 64
        %v4976 = vpop.permute.xlu0 %4975
        %4977 = vrot.lane.b32.xlu0 %v4948, 64
        %v4978 = vpop.permute.xlu0 %4977
        %v4985 = vmax.f32 %v4938, %v4968
        %v4986 = vmax.f32 %v4940, %v4970
        %v4987 = vmax.f32 %v4942, %v4972
        %v4988 = vmax.f32 %v4944, %v4974
        %v4989 = vmax.f32 %v4946, %v4976
        %v4990 = vmax.f32 %v4948, %v4978
        %v4991 = vmax.f32 %v4985, 0.0
        %v4992 = vmax.f32 %v4986, 0.0
        %v4993 = vmax.f32 %v4987, 0.0
        %v4994 = vmax.f32 %v4988, 0.0
        %v4995 = vmax.f32 %v4989, 0.0
        %v4996 = vmax.f32 %v4990, 0.0
        %5003 = vrot.lane.b32.xlu0 %v4950, 64
        %v5004 = vpop.permute.xlu0 %5003
        %5005 = vrot.lane.b32.xlu0 %v4952, 64
        %v5006 = vpop.permute.xlu0 %5005
        %5007 = vrot.lane.b32.xlu0 %v4954, 64
        %v5008 = vpop.permute.xlu0 %5007
        %5009 = vrot.lane.b32.xlu0 %v4956, 64
        %v5010 = vpop.permute.xlu0 %5009
        %5011 = vrot.lane.b32.xlu0 %v4958, 64
        %v5012 = vpop.permute.xlu0 %5011
        %5013 = vrot.lane.b32.xlu0 %v4960, 64
        %v5014 = vpop.permute.xlu0 %5013
        %v5021 = vmax.f32 %v4950, %v5004
        %v5022 = vmax.f32 %v4952, %v5006
        %v5023 = vmax.f32 %v4954, %v5008
        %v5024 = vmax.f32 %v4956, %v5010
        %v5025 = vmax.f32 %v4958, %v5012
        %v5026 = vmax.f32 %v4960, %v5014
        %v5027 = vmax.f32 %v5021, 0.0
        %v5028 = vmax.f32 %v5022, 0.0
        %v5029 = vmax.f32 %v5023, 0.0
        %v5030 = vmax.f32 %v5024, 0.0
        %v5031 = vmax.f32 %v5025, 0.0
        %v5032 = vmax.f32 %v5026, 0.0
        %v5033 = vpack.c.bf16 %v4992, %v4991
        %v5034 = vpack.c.bf16 %v4994, %v4993
        %v5035 = vpack.c.bf16 %v4996, %v4995
        %v5039 = vunpack.c.l.b16 %v5033
        %v5040 = vunpack.c.h.b16 %v5033
        %v5041 = vunpack.c.l.b16 %v5034
        %v5042 = vunpack.c.h.b16 %v5034
        %v5043 = vunpack.c.l.b16 %v5035
        %v5044 = vunpack.c.h.b16 %v5035
        %v5045 = vpack.c.b16 %v5039, %v5039
        %v5046 = vpack.c.b16 %v5040, %v5040
        %v5047 = vpack.c.b16 %v5041, %v5041
        %v5048 = vpack.c.b16 %v5042, %v5042
        %v5049 = vpack.c.b16 %v5043, %v5043
        %v5050 = vpack.c.b16 %v5044, %v5044
        %vm5057 = vcmask 519168
        %5058 = vst.msk [vmem:[%s360] sm:$0xf] %vm5057, %v5045
        %5059 = vst.msk [vmem:[%s360 + $0x4] sm:$0xf] %vm5057, %v5046
        %5060 = vst.msk [vmem:[%s360 + $0x8] sm:$0xf] %vm5057, %v5047
        %5061 = vst.msk [vmem:[%s360 + $0xc] sm:$0xf] %vm5057, %v5048
        %5062 = vst.msk [vmem:[%s360 + $0x10] sm:$0xf] %vm5057, %v5049
        %5063 = vst.msk [vmem:[%s360 + $0x14] sm:$0xf] %vm5057, %v5050
        %v5064 = vpack.c.bf16 %v5028, %v5027
        %v5065 = vpack.c.bf16 %v5030, %v5029
        %v5066 = vpack.c.bf16 %v5032, %v5031
        %v5070 = vunpack.c.l.b16 %v5064
        %v5071 = vunpack.c.h.b16 %v5064
        %v5072 = vunpack.c.l.b16 %v5065
        %v5073 = vunpack.c.h.b16 %v5065
        %v5074 = vunpack.c.l.b16 %v5066
        %v5075 = vunpack.c.h.b16 %v5066
        %v5076 = vpack.c.b16 %v5070, %v5070
        %v5077 = vpack.c.b16 %v5071, %v5071
        %v5078 = vpack.c.b16 %v5072, %v5072
        %v5079 = vpack.c.b16 %v5073, %v5073
        %v5080 = vpack.c.b16 %v5074, %v5074
        %v5081 = vpack.c.b16 %v5075, %v5075
        %5082 = vrot.lane.b32.xlu0 %v5076, 64
        %v5083 = vpop.permute.xlu0 %5082
        %5084 = vrot.lane.b32.xlu0 %v5077, 64
        %v5085 = vpop.permute.xlu0 %5084
        %5086 = vrot.lane.b32.xlu0 %v5078, 64
        %v5087 = vpop.permute.xlu0 %5086
        %5088 = vrot.lane.b32.xlu0 %v5079, 64
        %v5089 = vpop.permute.xlu0 %5088
        %5090 = vrot.lane.b32.xlu0 %v5080, 64
        %v5091 = vpop.permute.xlu0 %5090
        %5092 = vrot.lane.b32.xlu0 %v5081, 64
        %v5093 = vpop.permute.xlu0 %5092
        %vm5100 = vcmask 1043968
        %5101 = vst.msk [vmem:[%s360] sm:$0xf] %vm5100, %v5083
        %5102 = vst.msk [vmem:[%s360 + $0x4] sm:$0xf] %vm5100, %v5085
        %5103 = vst.msk [vmem:[%s360 + $0x8] sm:$0xf] %vm5100, %v5087
        %5104 = vst.msk [vmem:[%s360 + $0xc] sm:$0xf] %vm5100, %v5089
        %5105 = vst.msk [vmem:[%s360 + $0x10] sm:$0xf] %vm5100, %v5091
        %5106 = vst.msk [vmem:[%s360 + $0x14] sm:$0xf] %vm5100, %v5093
        %p5107 = scmp.lt.s32.totalorder %s22, 1
        %s5108 = scalar_select %p5107, %s22, 1
        %s5109 = smul.addr %s5108, 6
        %s5110 = smul.addr %s5109, 4
        %s5111 = scalar_lea.vmem %s7, %s5110
        // Predicated region
        $region73: #{tabcnn_forward.2} parent=47 // pred_check
          %p5112 = pneg %p192
        $region74: #{tabcnn_forward.2} parent=47 // pred_check_branch
          %5114 = sbr.rel (%p5112) target = $region76
        $region75: #{tabcnn_forward.2} parent=47 // pred_region
          _
        $region76: #{tabcnn_forward.2} parent=47 // pred_fallthru
          _
      $region48: #{tabcnn_forward.2} parent=5 // pred_fallthru
        _
      %p5115 = scmp.le.s32.totalorder 2, %s17
      // Predicated region
      $region77: #{tabcnn_forward.2} parent=5 // pred_check
        %p5116 = pneg %p5115
      $region78: #{tabcnn_forward.2} parent=5 // pred_check_branch
        %5118 = sbr.rel (%p5116) target = $region80
      $region79: #{tabcnn_forward.2} parent=5 // pred_region
        %s5119 = ssub.s32 %s17, 2
        // Predicated region
        $region81: #{tabcnn_forward.2} parent=79 // pred_check
          %p5120 = pneg %p198
        $region82: #{tabcnn_forward.2} parent=79 // pred_check_branch
          %5122 = sbr.rel (%p5120) target = $region84
        $region83: #{tabcnn_forward.2} parent=79 // pred_region
          %p5123 = scmp.lt.s32.totalorder %s23, 1
          %s5124 = scalar_select %p5123, %s23, 1
          %s5125 = smul.addr %s5124, 6
          %s5126 = smul.addr %s5125, 4
          %s5127 = scalar_lea.vmem %s7, %s5126
        $region84: #{tabcnn_forward.2} parent=79 // pred_fallthru
          _
      $region80: #{tabcnn_forward.2} parent=5 // pred_fallthru
        _
    $region6: #{tabcnn_forward.2} parent=1 // loop_footer
      %s21 = sadd.s32 1, %s17
    $region7: #{tabcnn_forward.2} parent=1 // loop_footer_branch
      %16 = sbr.rel target = $region3
    $region8: #{tabcnn_forward.2} parent=1 // loop_exit
      _
    %5128 = vsyncpa [#allocation7], 1
    %s5129 = scalar_lea.sflag [#allocation7], 1
    %5130 = vsyncpa %s5129, 1
    %5131 = vsyncpa [#allocation9], 1
    %5132 = vsyncpa [#allocation12], 1
    %5133 = vsyncpa [#allocation15], 1

</llo_original>
